<compile_context>
chip_gen: v7x
topology: tpu7x:2x2x1
jax: 0.10.0
libtpu: 0.0.40
codegen_flags: <defaults>
</compile_context>

<pallas_src>
import functools

import jax
import jax.numpy as jnp
from jax import lax
from jax.experimental import pallas as pl
from jax.experimental.pallas import tpu as pltpu

BN_EPS = 1e-5


def _stem_kernel(x_ref, w_ref, sel_ref, o_ref, xp_ref, *, B, H, W, Cin, Cout):
    """Fused 3x3 conv (pad=1, no bias) + train-mode BatchNorm, all lane-dense.

    x_ref  : (B, H, W*Cin)        NHWC input with (W, C) fused into the lane dim
    w_ref  : (3, W*Cin, W*Cout)   block-Toeplitz conv weights, one per kernel row
    sel_ref: (Cout, W*Cout)       channel selector: sel[o, w*Cout+o'] = (o == o')
    o_ref  : (B*H, W*Cout)        lane-dense output
    xp_ref : (B, H+2, W*Cin)      scratch: input with zero rows above/below (H pad)
    """
    K = W * Cin
    N = W * Cout
    n_px = B * H * W

    # ---- fold padding=1 along H into the kernel: zero boundary rows ----------
    xp_ref[...] = jnp.zeros_like(xp_ref)
    xp_ref[:, 1:H + 1, :] = x_ref[...]

    # ---- conv: 3 dense matmuls (K = W*Cin), output directly (B*H, W*Cout) ----
    taps = []
    for ky in range(3):
        lhs = xp_ref[:, ky:ky + H, :].reshape(B * H, K)   # leading-dim collapse only
        taps.append(jnp.dot(lhs, w_ref[ky],
                            precision=lax.Precision.HIGHEST,
                            preferred_element_type=jnp.float32))
    acc = taps[0] + taps[1] + taps[2]                     # (B*H, W*Cout) f32

    # ---- BatchNorm2d (training stats), single pass: sum & sum-of-squares ----
    ssum = jnp.sum(acc, axis=0, keepdims=True)            # (1, W*Cout)
    ssq = jnp.sum(acc * acc, axis=0, keepdims=True)       # (1, W*Cout)
    sel = sel_ref[...]                                    # (Cout, W*Cout)

    def fold(v):    # (1, W*Cout) -> (1, Cout): sum the W repeats of each channel
        return lax.dot_general(v, sel, (((1,), (1,)), ((), ())),
                               precision=lax.Precision.HIGHEST,
                               preferred_element_type=jnp.float32)

    def spread(v):  # (1, Cout) -> (1, W*Cout): per-channel value on every lane
        return lax.dot_general(v, sel, (((1,), (0,)), ((), ())),
                               precision=lax.Precision.HIGHEST,
                               preferred_element_type=jnp.float32)

    inv_n = 1.0 / float(n_px)
    mean = fold(ssum) * inv_n                             # (1, Cout)
    var = jnp.maximum(fold(ssq) * inv_n - mean * mean, 0.0)   # biased variance
    inv_std = lax.rsqrt(var + BN_EPS)
    scale = spread(inv_std)                               # gamma = 1
    shift = spread(-mean * inv_std)                       # beta  = 0

    # ---- lane-dense normalize + unmasked full-lane store --------------------
    o_ref[...] = (acc * scale + shift).astype(o_ref.dtype)


def _build_toeplitz_weights(w_oihw, W):
    """(Cout, Cin, 3, 3) -> (3, W*Cin, W*Cout) block-Toeplitz matrices.

    wb[ky, (w+kx-1)*Cin + c, w*Cout + o] = w[o, c, ky, kx]; taps that would read
    the zero W-padding are dropped (exact: they contribute 0).
    """
    Cout, Cin, KH, KW = w_oihw.shape
    w_hwio = jnp.transpose(w_oihw, (2, 3, 1, 0)).astype(jnp.float32)  # (3,3,Cin,Cout)
    wflat = w_hwio.reshape(KH, KW * Cin, Cout)                         # rows = kx*Cin+c
    K = W * Cin
    blocks = []
    for w in range(W):
        off = (w - 1) * Cin
        lo = max(0, -off)                  # clip rows falling off the top (w=0)
        hi = min(KW * Cin, K - off)        # clip rows falling off the bottom (w=W-1)
        blk = jnp.pad(wflat[:, lo:hi, :],
                      ((0, 0), (off + lo, K - (off + hi)), (0, 0)))
        blocks.append(blk)
    return jnp.stack(blocks, axis=2).reshape(KH, K, W * Cout)


def stem_cifar(x_nchw, w_oihw):
    """x: (B, Cin, H, W) NCHW; w: (Cout, Cin, 3, 3). Returns (B, Cout, H, W)."""
    B, Cin, H, W = x_nchw.shape
    Cout = w_oihw.shape[0]

    # Layout glue (wrapper side): NCHW -> (B, H, W*Cin); Toeplitz weights and the
    # channel selector are built once per parameter set.
    x_rows = jnp.transpose(x_nchw, (0, 2, 3, 1)).reshape(B, H, W * Cin)
    x_rows = x_rows.astype(jnp.float32)
    wb = _build_toeplitz_weights(w_oihw, W)
    sel = (jnp.arange(W * Cout)[None, :] % Cout ==
           jnp.arange(Cout)[:, None]).astype(jnp.float32)          # (Cout, W*Cout)

    kernel = functools.partial(_stem_kernel, B=B, H=H, W=W, Cin=Cin, Cout=Cout)
    out = pl.pallas_call(
        kernel,
        out_shape=jax.ShapeDtypeStruct((B * H, W * Cout), jnp.float32),
        in_specs=[pl.BlockSpec(memory_space=pltpu.MemorySpace.VMEM),
                  pl.BlockSpec(memory_space=pltpu.MemorySpace.VMEM),
                  pl.BlockSpec(memory_space=pltpu.MemorySpace.VMEM)],
        out_specs=pl.BlockSpec(memory_space=pltpu.MemorySpace.VMEM),
        scratch_shapes=[pltpu.VMEM((B, H + 2, W * Cin), jnp.float32)],
    )(x_rows, wb, sel)

    # lane-dense (B*H, W*Cout) -> NCHW (reshape is free; single transpose back)
    return jnp.transpose(out.reshape(B, H, W, Cout), (0, 3, 1, 2))


def _reference(x_nchw, w_oihw):
    """Pure-JAX reference: conv2d 3x3 pad=1 no bias + train-mode BatchNorm."""
    conv = lax.conv_general_dilated(
        x_nchw.astype(jnp.float32), w_oihw.astype(jnp.float32),
        window_strides=(1, 1), padding=((1, 1), (1, 1)),
        dimension_numbers=("NCHW", "OIHW", "NCHW"),
        precision=lax.Precision.HIGHEST)
    mean = jnp.mean(conv, axis=(0, 2, 3), keepdims=True)
    var = jnp.mean((conv - mean) ** 2, axis=(0, 2, 3), keepdims=True)
    return (conv - mean) * lax.rsqrt(var + BN_EPS)


if __name__ == "__main__":
    B, CH_IN, CH_OUT, H, W = 2, 4, 32, 16, 16

    key = jax.random.PRNGKey(0)
    kx, kw = jax.random.split(key)
    x = jax.random.normal(kx, (B, CH_IN, H, W), dtype=jnp.float32)
    # PyTorch weight shape: (Cout, Cin, 3, 3)
    w = jax.random.normal(kw, (CH_OUT, CH_IN, 3, 3), dtype=jnp.float32) * 0.1

    out = stem_cifar(x, w)
    jax.block_until_ready(out)

    ref = _reference(x, w)
    assert out.shape == (B, CH_OUT, H, W)
    err = jnp.max(jnp.abs(out - ref))
    assert jnp.allclose(out, ref, atol=1e-4, rtol=1e-4), f"max abs err {err}"

    print("KERNEL_OK")
</pallas_src>

<mosaic_0001>
module attributes {stable_mosaic.version = 11 : i64} {
  func.func @_stem_kernel(%arg0: memref<2x16x64xf32, #tpu.memory_space<vmem>>, %arg1: memref<3x64x512xf32, #tpu.memory_space<vmem>>, %arg2: memref<32x512xf32, #tpu.memory_space<vmem>>, %arg3: memref<32x512xf32, #tpu.memory_space<vmem>>, %arg4: memref<2x18x64xf32, #tpu.memory_space<vmem>>) attributes {dimension_semantics = [], scalar_prefetch = 0 : i64, scratch_operands = 1 : i64, tpu.core_type = #tpu.core_type<tc>} {
    %cst = arith.constant 0.000000e+00 : f32
    %0 = vector.broadcast %cst : f32 to vector<2x18x64xf32>
    %c0 = arith.constant 0 : index
    %c0_0 = arith.constant 0 : index
    %c0_1 = arith.constant 0 : index
    %1 = vector.load %arg4[%c0, %c0_0, %c0_1] : memref<2x18x64xf32, #tpu.memory_space<vmem>>, vector<2x18x64xf32>
    tpu.vector_store %arg4[%c0, %c0_0, %c0_1], %0 {strides = array<i32>} : memref<2x18x64xf32, #tpu.memory_space<vmem>>, vector<2x18x64xf32>,
    %c0_2 = arith.constant 0 : index
    %c0_3 = arith.constant 0 : index
    %c0_4 = arith.constant 0 : index
    %2 = vector.load %arg0[%c0_2, %c0_3, %c0_4] : memref<2x16x64xf32, #tpu.memory_space<vmem>>, vector<2x16x64xf32>
    %c0_5 = arith.constant 0 : index
    %c1 = arith.constant 1 : index
    %c0_6 = arith.constant 0 : index
    %3 = vector.load %arg4[%c0_5, %c1, %c0_6] : memref<2x18x64xf32, #tpu.memory_space<vmem>>, vector<2x16x64xf32>
    tpu.vector_store %arg4[%c0_5, %c1, %c0_6], %2 {strides = array<i32>} : memref<2x18x64xf32, #tpu.memory_space<vmem>>, vector<2x16x64xf32>,
    %c0_7 = arith.constant 0 : index
    %c0_8 = arith.constant 0 : index
    %c0_9 = arith.constant 0 : index
    %4 = vector.load %arg4[%c0_7, %c0_8, %c0_9] : memref<2x18x64xf32, #tpu.memory_space<vmem>>, vector<2x16x64xf32>
    %5 = vector.shape_cast %4 : vector<2x16x64xf32> to vector<32x64xf32>
    %c0_10 = arith.constant 0 : index
    %c0_11 = arith.constant 0 : index
    %c0_12 = arith.constant 0 : index
    %6 = vector.load %arg1[%c0_10, %c0_11, %c0_12] : memref<3x64x512xf32, #tpu.memory_space<vmem>>, vector<1x64x512xf32>
    %7 = vector.shape_cast %6 : vector<1x64x512xf32> to vector<64x512xf32>
    %cst_13 = arith.constant dense<0.000000e+00> : vector<32x512xf32>
    %8 = tpu.matmul %5, %7, %cst_13 {dimension_numbers = #tpu.dot_dimension_numbers<[1], [0], [0], [1], [0, 0, 1, 1], [], []>, precision = #tpu.contract_precision<fp32>} : vector<32x64xf32>, vector<64x512xf32>, vector<32x512xf32> -> vector<32x512xf32>
    %c0_14 = arith.constant 0 : index
    %c1_15 = arith.constant 1 : index
    %c0_16 = arith.constant 0 : index
    %9 = vector.load %arg4[%c0_14, %c1_15, %c0_16] : memref<2x18x64xf32, #tpu.memory_space<vmem>>, vector<2x16x64xf32>
    %10 = vector.shape_cast %9 : vector<2x16x64xf32> to vector<32x64xf32>
    %c1_17 = arith.constant 1 : index
    %c0_18 = arith.constant 0 : index
    %c0_19 = arith.constant 0 : index
    %11 = vector.load %arg1[%c1_17, %c0_18, %c0_19] : memref<3x64x512xf32, #tpu.memory_space<vmem>>, vector<1x64x512xf32>
    %12 = vector.shape_cast %11 : vector<1x64x512xf32> to vector<64x512xf32>
    %cst_20 = arith.constant dense<0.000000e+00> : vector<32x512xf32>
    %13 = tpu.matmul %10, %12, %cst_20 {dimension_numbers = #tpu.dot_dimension_numbers<[1], [0], [0], [1], [0, 0, 1, 1], [], []>, precision = #tpu.contract_precision<fp32>} : vector<32x64xf32>, vector<64x512xf32>, vector<32x512xf32> -> vector<32x512xf32>
    %c0_21 = arith.constant 0 : index
    %c2 = arith.constant 2 : index
    %c0_22 = arith.constant 0 : index
    %14 = vector.load %arg4[%c0_21, %c2, %c0_22] : memref<2x18x64xf32, #tpu.memory_space<vmem>>, vector<2x16x64xf32>
    %15 = vector.shape_cast %14 : vector<2x16x64xf32> to vector<32x64xf32>
    %c2_23 = arith.constant 2 : index
    %c0_24 = arith.constant 0 : index
    %c0_25 = arith.constant 0 : index
    %16 = vector.load %arg1[%c2_23, %c0_24, %c0_25] : memref<3x64x512xf32, #tpu.memory_space<vmem>>, vector<1x64x512xf32>
    %17 = vector.shape_cast %16 : vector<1x64x512xf32> to vector<64x512xf32>
    %cst_26 = arith.constant dense<0.000000e+00> : vector<32x512xf32>
    %18 = tpu.matmul %15, %17, %cst_26 {dimension_numbers = #tpu.dot_dimension_numbers<[1], [0], [0], [1], [0, 0, 1, 1], [], []>, precision = #tpu.contract_precision<fp32>} : vector<32x64xf32>, vector<64x512xf32>, vector<32x512xf32> -> vector<32x512xf32>
    %19 = arith.addf %8, %13 : vector<32x512xf32>
    %20 = arith.addf %19, %18 : vector<32x512xf32>
    %cst_27 = arith.constant dense<0.000000e+00> : vector<512xf32>
    %21 = vector.multi_reduction <add>, %20, %cst_27 [0] : vector<32x512xf32> to vector<512xf32>
    %22 = vector.shape_cast %21 : vector<512xf32> to vector<1x512xf32>
    %23 = arith.mulf %20, %20 : vector<32x512xf32>
    %cst_28 = arith.constant dense<0.000000e+00> : vector<512xf32>
    %24 = vector.multi_reduction <add>, %23, %cst_28 [0] : vector<32x512xf32> to vector<512xf32>
    %25 = vector.shape_cast %24 : vector<512xf32> to vector<1x512xf32>
    %c0_29 = arith.constant 0 : index
    %c0_30 = arith.constant 0 : index
    %26 = vector.load %arg2[%c0_29, %c0_30] : memref<32x512xf32, #tpu.memory_space<vmem>>, vector<32x512xf32>
    %cst_31 = arith.constant dense<0.000000e+00> : vector<1x32xf32>
    %27 = tpu.matmul %22, %26, %cst_31 {dimension_numbers = #tpu.dot_dimension_numbers<[1], [1], [0], [0], [0, 0, 1, 0], [], []>, precision = #tpu.contract_precision<fp32>} : vector<1x512xf32>, vector<32x512xf32>, vector<1x32xf32> -> vector<1x32xf32>
    %cst_32 = arith.constant 0.001953125 : f32
    %28 = vector.broadcast %cst_32 : f32 to vector<1x32xf32>
    %29 = arith.mulf %27, %28 : vector<1x32xf32>
    %cst_33 = arith.constant dense<0.000000e+00> : vector<1x32xf32>
    %30 = tpu.matmul %25, %26, %cst_33 {dimension_numbers = #tpu.dot_dimension_numbers<[1], [1], [0], [0], [0, 0, 1, 0], [], []>, precision = #tpu.contract_precision<fp32>} : vector<1x512xf32>, vector<32x512xf32>, vector<1x32xf32> -> vector<1x32xf32>
    %cst_34 = arith.constant 0.001953125 : f32
    %31 = vector.broadcast %cst_34 : f32 to vector<1x32xf32>
    %32 = arith.mulf %30, %31 : vector<1x32xf32>
    %33 = arith.mulf %29, %29 : vector<1x32xf32>
    %34 = arith.subf %32, %33 : vector<1x32xf32>
    %cst_35 = arith.constant 0.000000e+00 : f32
    %35 = vector.broadcast %cst_35 : f32 to vector<1x32xf32>
    %36 = arith.maximumf %34, %35 : vector<1x32xf32>
    %cst_36 = arith.constant 9.99999974E-6 : f32
    %37 = vector.broadcast %cst_36 : f32 to vector<1x32xf32>
    %38 = arith.addf %36, %37 : vector<1x32xf32>
    %39 = math.rsqrt %38 : vector<1x32xf32>
    %cst_37 = arith.constant dense<0.000000e+00> : vector<1x512xf32>
    %40 = tpu.matmul %39, %26, %cst_37 {dimension_numbers = #tpu.dot_dimension_numbers<[1], [0], [0], [1], [0, 0, 1, 1], [], []>, precision = #tpu.contract_precision<fp32>} : vector<1x32xf32>, vector<32x512xf32>, vector<1x512xf32> -> vector<1x512xf32>
    %cst_38 = arith.constant 0.000000e+00 : f32
    %41 = vector.broadcast %cst_38 : f32 to vector<1x32xf32>
    %42 = arith.subf %41, %29 : vector<1x32xf32>
    %43 = arith.mulf %42, %39 : vector<1x32xf32>
    %cst_39 = arith.constant dense<0.000000e+00> : vector<1x512xf32>
    %44 = tpu.matmul %43, %26, %cst_39 {dimension_numbers = #tpu.dot_dimension_numbers<[1], [0], [0], [1], [0, 0, 1, 1], [], []>, precision = #tpu.contract_precision<fp32>} : vector<1x32xf32>, vector<32x512xf32>, vector<1x512xf32> -> vector<1x512xf32>
    %45 = vector.broadcast %40 : vector<1x512xf32> to vector<32x512xf32>
    %46 = arith.mulf %20, %45 : vector<32x512xf32>
    %47 = vector.broadcast %44 : vector<1x512xf32> to vector<32x512xf32>
    %48 = arith.addf %46, %47 : vector<32x512xf32>
    %c0_40 = arith.constant 0 : index
    %c0_41 = arith.constant 0 : index
    %49 = vector.load %arg3[%c0_40, %c0_41] : memref<32x512xf32, #tpu.memory_space<vmem>>, vector<32x512xf32>
    tpu.vector_store %arg3[%c0_40, %c0_41], %48 {strides = array<i32>} : memref<32x512xf32, #tpu.memory_space<vmem>>, vector<32x512xf32>,
    return
  }
}

</mosaic_0001>

<llo_original>
// kernel: tpu_custom_call.1
$region0: #{tpu_custom_call.1}
  #allocation0 [shape = 'u32[]', space=smem, size = 0x4, offset = 0x4, fixed_abs, tag = 'smem constant byte address 0x4 - core index']
  #allocation1 [shape = 'u32[144,128]{1,0:T(1,128)}', space=vmem, size = 0x12000, scoped, tag = 'internal scratch']
  #allocation2 [shape = 'f32[2,18,64]{2,1,0:T(8,128)}', space=vmem, size = 0x6000, scoped, tag = 'scratch operand']
  %s0 = inlined_call_operand.hbm [shape: f32[2,16,64], index: 0, kind: input, shape index: {}]
  %s1 = inlined_call_operand.hbm [shape: f32[3,64,512], index: 1, kind: input, shape index: {}]
  %s2 = inlined_call_operand.hbm [shape: f32[32,512], index: 2, kind: input, shape index: {}]
  %s3 = inlined_call_operand.hbm [shape: f32[32,512], index: 3, kind: output, shape index: {}]
  %s4 = sld [smem:[#allocation0]]
  $region34: #{tpu_custom_call.1} parent=0
    _
  %s6 = ssub.s32 1, %s4
  %s7 = scalar_select 0, %s6, %s4
  $region1: #{tpu_custom_call.1} parent=0
    #allocation3 [shape = 'u8[16384]{0}', space=vmem, size = 0x4000, scoped, tag = 'input window, operand 0, single buffered']
    #allocation4 [shape = 's32[1]{0}', space=sflag, size = 0x4, scoped, tag = 'scoped memory for tpu_custom_call.1']
    #allocation5 [shape = 's32[1]{0}', space=sflag, size = 0x4, scoped, tag = 'scoped memory for tpu_custom_call.1']
    #allocation6 [shape = 'u8[393216]{0}', space=vmem, size = 0x60000, scoped, tag = 'input window, operand 1, single buffered']
    #allocation7 [shape = 's32[1]{0}', space=sflag, size = 0x4, scoped, tag = 'scoped memory for tpu_custom_call.1']
    #allocation8 [shape = 'u8[65536]{0}', space=vmem, size = 0x10000, scoped, tag = 'input window, operand 2, single buffered']
    #allocation9 [shape = 'u8[65536]{0}', space=vmem, size = 0x10000, scoped, tag = 'output window, operand 0, single buffered']
    %8 = vsyncpa [#allocation4], 0
    %9 = vsyncpa [#allocation7], 0
    %10 = vsyncpa [#allocation5], 0
    // Predicated region
    $region2: #{tpu_custom_call.1} parent=1 // pred_check
      _
    $region3: #{tpu_custom_call.1} parent=1 // pred_check_branch
      %12 = sbr.rel (0) target = $region5
    $region4: #{tpu_custom_call.1} parent=1 // pred_region
      %s14 = ssub.s32 512, 512
      %15 = vsyncadd [#allocation4], %s14
      %s16 = sshll.u32 [#allocation3], 4
      %s17 = int_to_ptr.vmem [resolvable:$true] %s16
      %22 = dma.hbm_to_vmem [thread:$0]  %s0, 512, %s17, [#allocation4], 128, 128, 8
    $region5: #{tpu_custom_call.1} parent=1 // pred_fallthru
      _
    // Predicated region
    $region6: #{tpu_custom_call.1} parent=1 // pred_check
      _
    $region7: #{tpu_custom_call.1} parent=1 // pred_check_branch
      %24 = sbr.rel (0) target = $region9
    $region8: #{tpu_custom_call.1} parent=1 // pred_region
      %s26 = ssub.s32 12288, 12288
      %27 = vsyncadd [#allocation7], %s26
      %s28 = sshll.u32 [#allocation6], 4
      %s29 = int_to_ptr.vmem [resolvable:$true] %s28
      %34 = dma.hbm_to_vmem [thread:$0]  %s1, 12288, %s29, [#allocation7], 512, 512, 32
    $region9: #{tpu_custom_call.1} parent=1 // pred_fallthru
      _
    // Predicated region
    $region10: #{tpu_custom_call.1} parent=1 // pred_check
      _
    $region11: #{tpu_custom_call.1} parent=1 // pred_check_branch
      %36 = sbr.rel (0) target = $region13
    $region12: #{tpu_custom_call.1} parent=1 // pred_region
      %s38 = ssub.s32 2048, 2048
      %39 = vsyncadd [#allocation7], %s38
      %s40 = sshll.u32 [#allocation8], 4
      %s41 = int_to_ptr.vmem [resolvable:$true] %s40
      %46 = dma.hbm_to_vmem [thread:$0]  %s2, 2048, %s41, [#allocation7], 512, 512, 32
    $region13: #{tpu_custom_call.1} parent=1 // pred_fallthru
      _
    // Predicated region
    $region14: #{tpu_custom_call.1} parent=1 // pred_check
      _
    $region15: #{tpu_custom_call.1} parent=1 // pred_check_branch
      %48 = sbr.rel (0) target = $region17
    $region16: #{tpu_custom_call.1} parent=1 // pred_region
      %49 = dma.done [#allocation4], 512
    $region17: #{tpu_custom_call.1} parent=1 // pred_fallthru
      _
    // Predicated region
    $region18: #{tpu_custom_call.1} parent=1 // pred_check
      _
    $region19: #{tpu_custom_call.1} parent=1 // pred_check_branch
      %51 = sbr.rel (0) target = $region21
    $region20: #{tpu_custom_call.1} parent=1 // pred_region
      %52 = dma.done [#allocation7], 12288
    $region21: #{tpu_custom_call.1} parent=1 // pred_fallthru
      _
    // Predicated region
    $region22: #{tpu_custom_call.1} parent=1 // pred_check
      _
    $region23: #{tpu_custom_call.1} parent=1 // pred_check_branch
      %54 = sbr.rel (0) target = $region25
    $region24: #{tpu_custom_call.1} parent=1 // pred_region
      %55 = dma.done [#allocation7], 2048
    $region25: #{tpu_custom_call.1} parent=1 // pred_fallthru
      _
    %vm56 = vcmask 523264
    %57 = vst.msk [vmem:[#allocation2] sm:$0xff] %vm56, 0.0
    %58 = vst.msk [vmem:[#allocation2 + $0x8] sm:$0xff] %vm56, 0.0
    %vm59 = vcmask 517120
    %60 = vst.msk [vmem:[#allocation2 + $0x10] sm:$0x3] %vm59, 0.0
    %61 = vst.msk [vmem:[#allocation2 + $0x18] sm:$0xff] %vm56, 0.0
    %62 = vst.msk [vmem:[#allocation2 + $0x20] sm:$0xff] %vm56, 0.0
    %63 = vst.msk [vmem:[#allocation2 + $0x28] sm:$0x3] %vm59, 0.0
    %v64 = vld [vmem:[#allocation3] sm:$0xff]
    %v65 = vld [vmem:[#allocation3 + $0x8] sm:$0xff]
    %v66 = vld [vmem:[#allocation3 + $0x10] sm:$0xff]
    %v67 = vld [vmem:[#allocation3 + $0x18] sm:$0xff]
    %68 = vst.msk [vmem:[#allocation2 + $0x1] sm:$0xff] %vm56, %v64
    %69 = vst.msk [vmem:[#allocation2 + $0x9] sm:$0xff] %vm56, %v65
    %70 = vst.msk [vmem:[#allocation2 + $0x19] sm:$0xff] %vm56, %v66
    %71 = vst.msk [vmem:[#allocation2 + $0x21] sm:$0xff] %vm56, %v67
    %v72 = vld [vmem:[#allocation2] sm:$0xff]
    %v73 = vld [vmem:[#allocation2 + $0x8] sm:$0xff]
    %v74 = vld [vmem:[#allocation2 + $0x18] sm:$0xff]
    %v75 = vld [vmem:[#allocation2 + $0x20] sm:$0xff]
    %v76 = vld [vmem:[#allocation6] sm:$0xff]
    %v77 = vld [vmem:[#allocation6 + $0x8] sm:$0xff]
    %v78 = vld [vmem:[#allocation6 + $0x10] sm:$0xff]
    %v79 = vld [vmem:[#allocation6 + $0x18] sm:$0xff]
    %v80 = vld [vmem:[#allocation6 + $0x20] sm:$0xff]
    %v81 = vld [vmem:[#allocation6 + $0x28] sm:$0xff]
    %v82 = vld [vmem:[#allocation6 + $0x30] sm:$0xff]
    %v83 = vld [vmem:[#allocation6 + $0x38] sm:$0xff]
    %v84 = vld [vmem:[#allocation6 + $0x40] sm:$0xff]
    %v85 = vld [vmem:[#allocation6 + $0x48] sm:$0xff]
    %v86 = vld [vmem:[#allocation6 + $0x50] sm:$0xff]
    %v87 = vld [vmem:[#allocation6 + $0x58] sm:$0xff]
    %v88 = vld [vmem:[#allocation6 + $0x60] sm:$0xff]
    %v89 = vld [vmem:[#allocation6 + $0x68] sm:$0xff]
    %v90 = vld [vmem:[#allocation6 + $0x70] sm:$0xff]
    %v91 = vld [vmem:[#allocation6 + $0x78] sm:$0xff]
    %v92 = vld [vmem:[#allocation6 + $0x80] sm:$0xff]
    %v93 = vld [vmem:[#allocation6 + $0x88] sm:$0xff]
    %v94 = vld [vmem:[#allocation6 + $0x90] sm:$0xff]
    %v95 = vld [vmem:[#allocation6 + $0x98] sm:$0xff]
    %v96 = vld [vmem:[#allocation6 + $0xa0] sm:$0xff]
    %v97 = vld [vmem:[#allocation6 + $0xa8] sm:$0xff]
    %v98 = vld [vmem:[#allocation6 + $0xb0] sm:$0xff]
    %v99 = vld [vmem:[#allocation6 + $0xb8] sm:$0xff]
    %v100 = vld [vmem:[#allocation6 + $0xc0] sm:$0xff]
    %v101 = vld [vmem:[#allocation6 + $0xc8] sm:$0xff]
    %v102 = vld [vmem:[#allocation6 + $0xd0] sm:$0xff]
    %v103 = vld [vmem:[#allocation6 + $0xd8] sm:$0xff]
    %v104 = vld [vmem:[#allocation6 + $0xe0] sm:$0xff]
    %v105 = vld [vmem:[#allocation6 + $0xe8] sm:$0xff]
    %v106 = vld [vmem:[#allocation6 + $0xf0] sm:$0xff]
    %v107 = vld [vmem:[#allocation6 + $0xf8] sm:$0xff]
    %v108 = vld [vmem:[#allocation2 + $0x1] sm:$0xff]
    %v109 = vld [vmem:[#allocation2 + $0x9] sm:$0xff]
    %v110 = vld [vmem:[#allocation2 + $0x19] sm:$0xff]
    %v111 = vld [vmem:[#allocation2 + $0x21] sm:$0xff]
    %s112 = scalar_lea.vmem [#allocation6], 256
    %v113 = vld [vmem:[%s112] sm:$0xff]
    %v114 = vld [vmem:[%s112 + $0x8] sm:$0xff]
    %v115 = vld [vmem:[%s112 + $0x10] sm:$0xff]
    %v116 = vld [vmem:[%s112 + $0x18] sm:$0xff]
    %v117 = vld [vmem:[%s112 + $0x20] sm:$0xff]
    %v118 = vld [vmem:[%s112 + $0x28] sm:$0xff]
    %v119 = vld [vmem:[%s112 + $0x30] sm:$0xff]
    %v120 = vld [vmem:[%s112 + $0x38] sm:$0xff]
    %v121 = vld [vmem:[%s112 + $0x40] sm:$0xff]
    %v122 = vld [vmem:[%s112 + $0x48] sm:$0xff]
    %v123 = vld [vmem:[%s112 + $0x50] sm:$0xff]
    %v124 = vld [vmem:[%s112 + $0x58] sm:$0xff]
    %v125 = vld [vmem:[%s112 + $0x60] sm:$0xff]
    %v126 = vld [vmem:[%s112 + $0x68] sm:$0xff]
    %v127 = vld [vmem:[%s112 + $0x70] sm:$0xff]
    %v128 = vld [vmem:[%s112 + $0x78] sm:$0xff]
    %v129 = vld [vmem:[%s112 + $0x80] sm:$0xff]
    %v130 = vld [vmem:[%s112 + $0x88] sm:$0xff]
    %v131 = vld [vmem:[%s112 + $0x90] sm:$0xff]
    %v132 = vld [vmem:[%s112 + $0x98] sm:$0xff]
    %v133 = vld [vmem:[%s112 + $0xa0] sm:$0xff]
    %v134 = vld [vmem:[%s112 + $0xa8] sm:$0xff]
    %v135 = vld [vmem:[%s112 + $0xb0] sm:$0xff]
    %v136 = vld [vmem:[%s112 + $0xb8] sm:$0xff]
    %v137 = vld [vmem:[%s112 + $0xc0] sm:$0xff]
    %v138 = vld [vmem:[%s112 + $0xc8] sm:$0xff]
    %v139 = vld [vmem:[%s112 + $0xd0] sm:$0xff]
    %v140 = vld [vmem:[%s112 + $0xd8] sm:$0xff]
    %v141 = vld [vmem:[%s112 + $0xe0] sm:$0xff]
    %v142 = vld [vmem:[%s112 + $0xe8] sm:$0xff]
    %v143 = vld [vmem:[%s112 + $0xf0] sm:$0xff]
    %v144 = vld [vmem:[%s112 + $0xf8] sm:$0xff]
    %v146 = vsel %vm56, %v108, 0
    %v149 = vsel %vm56, %v109, 0
    %v152 = vsel %vm56, %v110, 0
    %v155 = vsel %vm56, %v111, 0
    %v157 = vand.u32 %v114, 4294901760
    %158 = vmatprep.subr.mxu0 %v157
    %v159 = vand.u32 %v113, 4294901760
    %160 = vmatpush1.msra.mxu0 %v159
    %v161 = vand.u32 %v118, 4294901760
    %162 = vmatprep.subr.mxu0 %v161
    %v163 = vand.u32 %v117, 4294901760
    %164 = vmatpush1.msra.mxu0 %v163
    %v165 = vand.u32 %v122, 4294901760
    %166 = vmatprep.subr.mxu0 %v165
    %v167 = vand.u32 %v121, 4294901760
    %168 = vmatpush1.msra.mxu0 %v167
    %v169 = vand.u32 %v126, 4294901760
    %170 = vmatprep.subr.mxu0 %v169
    %v171 = vand.u32 %v125, 4294901760
    %172 = vmatpush1.msra.mxu0 %v171
    %v173 = vand.u32 %v130, 4294901760
    %174 = vmatprep.subr.mxu0 %v173
    %v175 = vand.u32 %v129, 4294901760
    %176 = vmatpush1.msra.mxu0 %v175
    %v177 = vand.u32 %v134, 4294901760
    %178 = vmatprep.subr.mxu0 %v177
    %v179 = vand.u32 %v133, 4294901760
    %180 = vmatpush1.msra.mxu0 %v179
    %v181 = vand.u32 %v138, 4294901760
    %182 = vmatprep.subr.mxu0 %v181
    %v183 = vand.u32 %v137, 4294901760
    %184 = vmatpush1.msra.mxu0 %v183
    %v185 = vand.u32 %v142, 4294901760
    %186 = vmatprep.subr.mxu0 %v185
    %v187 = vand.u32 %v141, 4294901760
    %188 = vmatpush1.msra.mxu0 %v187
    %189 = vmatprep.subr.mxu0 0.0
    %190 = vmatpush1.msra.mxu0 0.0
    %191 = vmatprep.subr.mxu0 0.0
    %192 = vmatpush1.msra.mxu0 0.0
    %193 = vmatprep.subr.mxu0 0.0
    %194 = vmatpush1.msra.mxu0 0.0
    %195 = vmatprep.subr.mxu0 0.0
    %196 = vmatpush1.msra.mxu0 0.0
    %197 = vmatprep.subr.mxu0 0.0
    %198 = vmatpush1.msra.mxu0 0.0
    %199 = vmatprep.subr.mxu0 0.0
    %200 = vmatpush1.msra.mxu0 0.0
    %201 = vmatprep.subr.mxu0 0.0
    %202 = vmatpush1.msra.mxu0 0.0
    %203 = vmatprep.subr.mxu0 0.0
    %204 = vmatpush1.msra.mxu0 0.0
    %205 = vmatprep.subr.mxu0 0.0
    %206 = vmatpush1.msra.mxu0 0.0
    %207 = vmatprep.subr.mxu0 0.0
    %208 = vmatpush1.msra.mxu0 0.0
    %209 = vmatprep.subr.mxu0 0.0
    %210 = vmatpush1.msra.mxu0 0.0
    %211 = vmatprep.subr.mxu0 0.0
    %212 = vmatpush1.msra.mxu0 0.0
    %213 = vmatprep.subr.mxu0 0.0
    %214 = vmatpush1.msra.mxu0 0.0
    %215 = vmatprep.subr.mxu0 0.0
    %216 = vmatpush1.msra.mxu0 0.0
    %217 = vmatprep.subr.mxu0 0.0
    %218 = vmatpush1.msra.mxu0 0.0
    %219 = vmatprep.subr.mxu0 0.0
    %220 = vmatpush1.msra.mxu0 0.0
    %221 = vmatprep.subr.mxu0 0.0
    %222 = vmatpush1.msra.mxu0 0.0
    %223 = vmatprep.subr.mxu0 0.0
    %224 = vmatpush1.msra.mxu0 0.0
    %225 = vmatprep.subr.mxu0 0.0
    %226 = vmatpush1.msra.mxu0 0.0
    %227 = vmatprep.subr.mxu0 0.0
    %228 = vmatpush1.msra.mxu0 0.0
    %229 = vmatprep.subr.mxu0 0.0
    %230 = vmatpush1.msra.mxu0 0.0
    %231 = vmatprep.subr.mxu0 0.0
    %232 = vmatpush1.msra.mxu0 0.0
    %233 = vmatprep.subr.mxu0 0.0
    %234 = vmatpush1.msra.mxu0 0.0
    %235 = vmatprep.subr.mxu0 0.0
    %236 = vmatpush1.msra.mxu0 0.0
    %237 = vmatprep.mubr.f32.mxu0 0.0
    %v238 = vand.u32 %v146, 4294901760
    %v239 = vsub.f32 %v146, %v238
    %v240 = vand.u32 %v239, 4294901760
    %v241 = vsub.f32 %v239, %v240
    %v242 = vand.u32 %v241, 4294901760
    %243 = vmatmul.mubr.f32.gmra.mrb[0].mxu0 %v242
    %v244 = vpop.f32.mrb[0].mxu0
    %v245 = vadd.f32 0.0, %v244
    %v246 = vpop.f32.mrb[0].mxu0
    %v247 = vadd.f32 0.0, %v246
    %248 = vmatprep.mubr.f32.mxu0 0.0
    %v249 = vand.u32 %v149, 4294901760
    %v250 = vsub.f32 %v149, %v249
    %v251 = vand.u32 %v250, 4294901760
    %v252 = vsub.f32 %v250, %v251
    %v253 = vand.u32 %v252, 4294901760
    %254 = vmatmul.mubr.f32.gmra.mrb[0].mxu0 %v253
    %v255 = vpop.f32.mrb[0].mxu0
    %v256 = vadd.f32 0.0, %v255
    %v257 = vpop.f32.mrb[0].mxu0
    %v258 = vadd.f32 0.0, %v257
    %259 = vmatprep.mubr.f32.mxu0 0.0
    %v260 = vand.u32 %v152, 4294901760
    %v261 = vsub.f32 %v152, %v260
    %v262 = vand.u32 %v261, 4294901760
    %v263 = vsub.f32 %v261, %v262
    %v264 = vand.u32 %v263, 4294901760
    %265 = vmatmul.mubr.f32.gmra.mrb[0].mxu0 %v264
    %v266 = vpop.f32.mrb[0].mxu0
    %v267 = vadd.f32 0.0, %v266
    %v268 = vpop.f32.mrb[0].mxu0
    %v269 = vadd.f32 0.0, %v268
    %270 = vmatprep.mubr.f32.mxu0 0.0
    %v271 = vand.u32 %v155, 4294901760
    %v272 = vsub.f32 %v155, %v271
    %v273 = vand.u32 %v272, 4294901760
    %v274 = vsub.f32 %v272, %v273
    %v275 = vand.u32 %v274, 4294901760
    %276 = vmatmul.mubr.f32.gmra.mrb[0].mxu0 %v275
    %v277 = vpop.f32.mrb[0].mxu0
    %v278 = vadd.f32 0.0, %v277
    %v279 = vpop.f32.mrb[0].mxu0
    %v280 = vadd.f32 0.0, %v279
    %281 = vdwg.mxu0
    %v282 = vand.u32 %v114, 4294901760
    %v283 = vsub.f32 %v114, %v282
    %v284 = vand.u32 %v283, 4294901760
    %v285 = vsub.f32 %v283, %v284
    %v286 = vand.u32 %v285, 4294901760
    %287 = vmatprep.subr.mxu0 %v286
    %v288 = vand.u32 %v113, 4294901760
    %v289 = vsub.f32 %v113, %v288
    %v290 = vand.u32 %v289, 4294901760
    %v291 = vsub.f32 %v289, %v290
    %v292 = vand.u32 %v291, 4294901760
    %293 = vmatpush1.msra.mxu0 %v292
    %v294 = vand.u32 %v118, 4294901760
    %v295 = vsub.f32 %v118, %v294
    %v296 = vand.u32 %v295, 4294901760
    %v297 = vsub.f32 %v295, %v296
    %v298 = vand.u32 %v297, 4294901760
    %299 = vmatprep.subr.mxu0 %v298
    %v300 = vand.u32 %v117, 4294901760
    %v301 = vsub.f32 %v117, %v300
    %v302 = vand.u32 %v301, 4294901760
    %v303 = vsub.f32 %v301, %v302
    %v304 = vand.u32 %v303, 4294901760
    %305 = vmatpush1.msra.mxu0 %v304
    %v306 = vand.u32 %v122, 4294901760
    %v307 = vsub.f32 %v122, %v306
    %v308 = vand.u32 %v307, 4294901760
    %v309 = vsub.f32 %v307, %v308
    %v310 = vand.u32 %v309, 4294901760
    %311 = vmatprep.subr.mxu0 %v310
    %v312 = vand.u32 %v121, 4294901760
    %v313 = vsub.f32 %v121, %v312
    %v314 = vand.u32 %v313, 4294901760
    %v315 = vsub.f32 %v313, %v314
    %v316 = vand.u32 %v315, 4294901760
    %317 = vmatpush1.msra.mxu0 %v316
    %v318 = vand.u32 %v126, 4294901760
    %v319 = vsub.f32 %v126, %v318
    %v320 = vand.u32 %v319, 4294901760
    %v321 = vsub.f32 %v319, %v320
    %v322 = vand.u32 %v321, 4294901760
    %323 = vmatprep.subr.mxu0 %v322
    %v324 = vand.u32 %v125, 4294901760
    %v325 = vsub.f32 %v125, %v324
    %v326 = vand.u32 %v325, 4294901760
    %v327 = vsub.f32 %v325, %v326
    %v328 = vand.u32 %v327, 4294901760
    %329 = vmatpush1.msra.mxu0 %v328
    %v330 = vand.u32 %v130, 4294901760
    %v331 = vsub.f32 %v130, %v330
    %v332 = vand.u32 %v331, 4294901760
    %v333 = vsub.f32 %v331, %v332
    %v334 = vand.u32 %v333, 4294901760
    %335 = vmatprep.subr.mxu0 %v334
    %v336 = vand.u32 %v129, 4294901760
    %v337 = vsub.f32 %v129, %v336
    %v338 = vand.u32 %v337, 4294901760
    %v339 = vsub.f32 %v337, %v338
    %v340 = vand.u32 %v339, 4294901760
    %341 = vmatpush1.msra.mxu0 %v340
    %v342 = vand.u32 %v134, 4294901760
    %v343 = vsub.f32 %v134, %v342
    %v344 = vand.u32 %v343, 4294901760
    %v345 = vsub.f32 %v343, %v344
    %v346 = vand.u32 %v345, 4294901760
    %347 = vmatprep.subr.mxu0 %v346
    %v348 = vand.u32 %v133, 4294901760
    %v349 = vsub.f32 %v133, %v348
    %v350 = vand.u32 %v349, 4294901760
    %v351 = vsub.f32 %v349, %v350
    %v352 = vand.u32 %v351, 4294901760
    %353 = vmatpush1.msra.mxu0 %v352
    %v354 = vand.u32 %v138, 4294901760
    %v355 = vsub.f32 %v138, %v354
    %v356 = vand.u32 %v355, 4294901760
    %v357 = vsub.f32 %v355, %v356
    %v358 = vand.u32 %v357, 4294901760
    %359 = vmatprep.subr.mxu0 %v358
    %v360 = vand.u32 %v137, 4294901760
    %v361 = vsub.f32 %v137, %v360
    %v362 = vand.u32 %v361, 4294901760
    %v363 = vsub.f32 %v361, %v362
    %v364 = vand.u32 %v363, 4294901760
    %365 = vmatpush1.msra.mxu0 %v364
    %v366 = vand.u32 %v142, 4294901760
    %v367 = vsub.f32 %v142, %v366
    %v368 = vand.u32 %v367, 4294901760
    %v369 = vsub.f32 %v367, %v368
    %v370 = vand.u32 %v369, 4294901760
    %371 = vmatprep.subr.mxu0 %v370
    %v372 = vand.u32 %v141, 4294901760
    %v373 = vsub.f32 %v141, %v372
    %v374 = vand.u32 %v373, 4294901760
    %v375 = vsub.f32 %v373, %v374
    %v376 = vand.u32 %v375, 4294901760
    %377 = vmatpush1.msra.mxu0 %v376
    %378 = vmatprep.subr.mxu0 0.0
    %379 = vmatpush1.msra.mxu0 0.0
    %380 = vmatprep.subr.mxu0 0.0
    %381 = vmatpush1.msra.mxu0 0.0
    %382 = vmatprep.subr.mxu0 0.0
    %383 = vmatpush1.msra.mxu0 0.0
    %384 = vmatprep.subr.mxu0 0.0
    %385 = vmatpush1.msra.mxu0 0.0
    %386 = vmatprep.subr.mxu0 0.0
    %387 = vmatpush1.msra.mxu0 0.0
    %388 = vmatprep.subr.mxu0 0.0
    %389 = vmatpush1.msra.mxu0 0.0
    %390 = vmatprep.subr.mxu0 0.0
    %391 = vmatpush1.msra.mxu0 0.0
    %392 = vmatprep.subr.mxu0 0.0
    %393 = vmatpush1.msra.mxu0 0.0
    %394 = vmatprep.subr.mxu0 0.0
    %395 = vmatpush1.msra.mxu0 0.0
    %396 = vmatprep.subr.mxu0 0.0
    %397 = vmatpush1.msra.mxu0 0.0
    %398 = vmatprep.subr.mxu0 0.0
    %399 = vmatpush1.msra.mxu0 0.0
    %400 = vmatprep.subr.mxu0 0.0
    %401 = vmatpush1.msra.mxu0 0.0
    %402 = vmatprep.subr.mxu0 0.0
    %403 = vmatpush1.msra.mxu0 0.0
    %404 = vmatprep.subr.mxu0 0.0
    %405 = vmatpush1.msra.mxu0 0.0
    %406 = vmatprep.subr.mxu0 0.0
    %407 = vmatpush1.msra.mxu0 0.0
    %408 = vmatprep.subr.mxu0 0.0
    %409 = vmatpush1.msra.mxu0 0.0
    %410 = vmatprep.subr.mxu0 0.0
    %411 = vmatpush1.msra.mxu0 0.0
    %412 = vmatprep.subr.mxu0 0.0
    %413 = vmatpush1.msra.mxu0 0.0
    %414 = vmatprep.subr.mxu0 0.0
    %415 = vmatpush1.msra.mxu0 0.0
    %416 = vmatprep.subr.mxu0 0.0
    %417 = vmatpush1.msra.mxu0 0.0
    %418 = vmatprep.subr.mxu0 0.0
    %419 = vmatpush1.msra.mxu0 0.0
    %420 = vmatprep.subr.mxu0 0.0
    %421 = vmatpush1.msra.mxu0 0.0
    %422 = vmatprep.subr.mxu0 0.0
    %423 = vmatpush1.msra.mxu0 0.0
    %424 = vmatprep.subr.mxu0 0.0
    %425 = vmatpush1.msra.mxu0 0.0
    %426 = vmatprep.mubr.f32.mxu0 0.0
    %v427 = vand.u32 %v146, 4294901760
    %428 = vmatmul.mubr.f32.gmra.mrb[0].mxu0 %v427
    %v429 = vpop.f32.mrb[0].mxu0
    %v430 = vadd.f32 %v245, %v429
    %v431 = vpop.f32.mrb[0].mxu0
    %v432 = vadd.f32 %v247, %v431
    %433 = vmatprep.mubr.f32.mxu0 0.0
    %v434 = vand.u32 %v149, 4294901760
    %435 = vmatmul.mubr.f32.gmra.mrb[0].mxu0 %v434
    %v436 = vpop.f32.mrb[0].mxu0
    %v437 = vadd.f32 %v256, %v436
    %v438 = vpop.f32.mrb[0].mxu0
    %v439 = vadd.f32 %v258, %v438
    %440 = vmatprep.mubr.f32.mxu0 0.0
    %v441 = vand.u32 %v152, 4294901760
    %442 = vmatmul.mubr.f32.gmra.mrb[0].mxu0 %v441
    %v443 = vpop.f32.mrb[0].mxu0
    %v444 = vadd.f32 %v267, %v443
    %v445 = vpop.f32.mrb[0].mxu0
    %v446 = vadd.f32 %v269, %v445
    %447 = vmatprep.mubr.f32.mxu0 0.0
    %v448 = vand.u32 %v155, 4294901760
    %449 = vmatmul.mubr.f32.gmra.mrb[0].mxu0 %v448
    %v450 = vpop.f32.mrb[0].mxu0
    %v451 = vadd.f32 %v278, %v450
    %v452 = vpop.f32.mrb[0].mxu0
    %v453 = vadd.f32 %v280, %v452
    %454 = vdwg.mxu0
    %v455 = vand.u32 %v114, 4294901760
    %v456 = vsub.f32 %v114, %v455
    %457 = vmatprep.subr.mxu0 %v456
    %v458 = vand.u32 %v113, 4294901760
    %v459 = vsub.f32 %v113, %v458
    %460 = vmatpush1.msra.mxu0 %v459
    %v461 = vand.u32 %v118, 4294901760
    %v462 = vsub.f32 %v118, %v461
    %463 = vmatprep.subr.mxu0 %v462
    %v464 = vand.u32 %v117, 4294901760
    %v465 = vsub.f32 %v117, %v464
    %466 = vmatpush1.msra.mxu0 %v465
    %v467 = vand.u32 %v122, 4294901760
    %v468 = vsub.f32 %v122, %v467
    %469 = vmatprep.subr.mxu0 %v468
    %v470 = vand.u32 %v121, 4294901760
    %v471 = vsub.f32 %v121, %v470
    %472 = vmatpush1.msra.mxu0 %v471
    %v473 = vand.u32 %v126, 4294901760
    %v474 = vsub.f32 %v126, %v473
    %475 = vmatprep.subr.mxu0 %v474
    %v476 = vand.u32 %v125, 4294901760
    %v477 = vsub.f32 %v125, %v476
    %478 = vmatpush1.msra.mxu0 %v477
    %v479 = vand.u32 %v130, 4294901760
    %v480 = vsub.f32 %v130, %v479
    %481 = vmatprep.subr.mxu0 %v480
    %v482 = vand.u32 %v129, 4294901760
    %v483 = vsub.f32 %v129, %v482
    %484 = vmatpush1.msra.mxu0 %v483
    %v485 = vand.u32 %v134, 4294901760
    %v486 = vsub.f32 %v134, %v485
    %487 = vmatprep.subr.mxu0 %v486
    %v488 = vand.u32 %v133, 4294901760
    %v489 = vsub.f32 %v133, %v488
    %490 = vmatpush1.msra.mxu0 %v489
    %v491 = vand.u32 %v138, 4294901760
    %v492 = vsub.f32 %v138, %v491
    %493 = vmatprep.subr.mxu0 %v492
    %v494 = vand.u32 %v137, 4294901760
    %v495 = vsub.f32 %v137, %v494
    %496 = vmatpush1.msra.mxu0 %v495
    %v497 = vand.u32 %v142, 4294901760
    %v498 = vsub.f32 %v142, %v497
    %499 = vmatprep.subr.mxu0 %v498
    %v500 = vand.u32 %v141, 4294901760
    %v501 = vsub.f32 %v141, %v500
    %502 = vmatpush1.msra.mxu0 %v501
    %503 = vmatprep.subr.mxu0 0.0
    %504 = vmatpush1.msra.mxu0 0.0
    %505 = vmatprep.subr.mxu0 0.0
    %506 = vmatpush1.msra.mxu0 0.0
    %507 = vmatprep.subr.mxu0 0.0
    %508 = vmatpush1.msra.mxu0 0.0
    %509 = vmatprep.subr.mxu0 0.0
    %510 = vmatpush1.msra.mxu0 0.0
    %511 = vmatprep.subr.mxu0 0.0
    %512 = vmatpush1.msra.mxu0 0.0
    %513 = vmatprep.subr.mxu0 0.0
    %514 = vmatpush1.msra.mxu0 0.0
    %515 = vmatprep.subr.mxu0 0.0
    %516 = vmatpush1.msra.mxu0 0.0
    %517 = vmatprep.subr.mxu0 0.0
    %518 = vmatpush1.msra.mxu0 0.0
    %519 = vmatprep.subr.mxu0 0.0
    %520 = vmatpush1.msra.mxu0 0.0
    %521 = vmatprep.subr.mxu0 0.0
    %522 = vmatpush1.msra.mxu0 0.0
    %523 = vmatprep.subr.mxu0 0.0
    %524 = vmatpush1.msra.mxu0 0.0
    %525 = vmatprep.subr.mxu0 0.0
    %526 = vmatpush1.msra.mxu0 0.0
    %527 = vmatprep.subr.mxu0 0.0
    %528 = vmatpush1.msra.mxu0 0.0
    %529 = vmatprep.subr.mxu0 0.0
    %530 = vmatpush1.msra.mxu0 0.0
    %531 = vmatprep.subr.mxu0 0.0
    %532 = vmatpush1.msra.mxu0 0.0
    %533 = vmatprep.subr.mxu0 0.0
    %534 = vmatpush1.msra.mxu0 0.0
    %535 = vmatprep.subr.mxu0 0.0
    %536 = vmatpush1.msra.mxu0 0.0
    %537 = vmatprep.subr.mxu0 0.0
    %538 = vmatpush1.msra.mxu0 0.0
    %539 = vmatprep.subr.mxu0 0.0
    %540 = vmatpush1.msra.mxu0 0.0
    %541 = vmatprep.subr.mxu0 0.0
    %542 = vmatpush1.msra.mxu0 0.0
    %543 = vmatprep.subr.mxu0 0.0
    %544 = vmatpush1.msra.mxu0 0.0
    %545 = vmatprep.subr.mxu0 0.0
    %546 = vmatpush1.msra.mxu0 0.0
    %547 = vmatprep.subr.mxu0 0.0
    %548 = vmatpush1.msra.mxu0 0.0
    %549 = vmatprep.subr.mxu0 0.0
    %550 = vmatpush1.msra.mxu0 0.0
    %551 = vmatprep.mubr.f32.mxu0 0.0
    %v552 = vand.u32 %v146, 4294901760
    %v553 = vsub.f32 %v146, %v552
    %554 = vmatmul.mubr.f32.gmra.mrb[0].mxu0 %v553
    %v555 = vpop.f32.mrb[0].mxu0
    %v556 = vadd.f32 %v430, %v555
    %v557 = vpop.f32.mrb[0].mxu0
    %v558 = vadd.f32 %v432, %v557
    %559 = vmatprep.mubr.f32.mxu0 0.0
    %v560 = vand.u32 %v149, 4294901760
    %v561 = vsub.f32 %v149, %v560
    %562 = vmatmul.mubr.f32.gmra.mrb[0].mxu0 %v561
    %v563 = vpop.f32.mrb[0].mxu0
    %v564 = vadd.f32 %v437, %v563
    %v565 = vpop.f32.mrb[0].mxu0
    %v566 = vadd.f32 %v439, %v565
    %567 = vmatprep.mubr.f32.mxu0 0.0
    %v568 = vand.u32 %v152, 4294901760
    %v569 = vsub.f32 %v152, %v568
    %570 = vmatmul.mubr.f32.gmra.mrb[0].mxu0 %v569
    %v571 = vpop.f32.mrb[0].mxu0
    %v572 = vadd.f32 %v444, %v571
    %v573 = vpop.f32.mrb[0].mxu0
    %v574 = vadd.f32 %v446, %v573
    %575 = vmatprep.mubr.f32.mxu0 0.0
    %v576 = vand.u32 %v155, 4294901760
    %v577 = vsub.f32 %v155, %v576
    %578 = vmatmul.mubr.f32.gmra.mrb[0].mxu0 %v577
    %v579 = vpop.f32.mrb[0].mxu0
    %v580 = vadd.f32 %v451, %v579
    %v581 = vpop.f32.mrb[0].mxu0
    %v582 = vadd.f32 %v453, %v581
    %583 = vdwg.mxu0
    %v584 = vand.u32 %v114, 4294901760
    %585 = vmatprep.subr.mxu0 %v584
    %v586 = vand.u32 %v113, 4294901760
    %587 = vmatpush1.msra.mxu0 %v586
    %v588 = vand.u32 %v118, 4294901760
    %589 = vmatprep.subr.mxu0 %v588
    %v590 = vand.u32 %v117, 4294901760
    %591 = vmatpush1.msra.mxu0 %v590
    %v592 = vand.u32 %v122, 4294901760
    %593 = vmatprep.subr.mxu0 %v592
    %v594 = vand.u32 %v121, 4294901760
    %595 = vmatpush1.msra.mxu0 %v594
    %v596 = vand.u32 %v126, 4294901760
    %597 = vmatprep.subr.mxu0 %v596
    %v598 = vand.u32 %v125, 4294901760
    %599 = vmatpush1.msra.mxu0 %v598
    %v600 = vand.u32 %v130, 4294901760
    %601 = vmatprep.subr.mxu0 %v600
    %v602 = vand.u32 %v129, 4294901760
    %603 = vmatpush1.msra.mxu0 %v602
    %v604 = vand.u32 %v134, 4294901760
    %605 = vmatprep.subr.mxu0 %v604
    %v606 = vand.u32 %v133, 4294901760
    %607 = vmatpush1.msra.mxu0 %v606
    %v608 = vand.u32 %v138, 4294901760
    %609 = vmatprep.subr.mxu0 %v608
    %v610 = vand.u32 %v137, 4294901760
    %611 = vmatpush1.msra.mxu0 %v610
    %v612 = vand.u32 %v142, 4294901760
    %613 = vmatprep.subr.mxu0 %v612
    %v614 = vand.u32 %v141, 4294901760
    %615 = vmatpush1.msra.mxu0 %v614
    %616 = vmatprep.subr.mxu0 0.0
    %617 = vmatpush1.msra.mxu0 0.0
    %618 = vmatprep.subr.mxu0 0.0
    %619 = vmatpush1.msra.mxu0 0.0
    %620 = vmatprep.subr.mxu0 0.0
    %621 = vmatpush1.msra.mxu0 0.0
    %622 = vmatprep.subr.mxu0 0.0
    %623 = vmatpush1.msra.mxu0 0.0
    %624 = vmatprep.subr.mxu0 0.0
    %625 = vmatpush1.msra.mxu0 0.0
    %626 = vmatprep.subr.mxu0 0.0
    %627 = vmatpush1.msra.mxu0 0.0
    %628 = vmatprep.subr.mxu0 0.0
    %629 = vmatpush1.msra.mxu0 0.0
    %630 = vmatprep.subr.mxu0 0.0
    %631 = vmatpush1.msra.mxu0 0.0
    %632 = vmatprep.subr.mxu0 0.0
    %633 = vmatpush1.msra.mxu0 0.0
    %634 = vmatprep.subr.mxu0 0.0
    %635 = vmatpush1.msra.mxu0 0.0
    %636 = vmatprep.subr.mxu0 0.0
    %637 = vmatpush1.msra.mxu0 0.0
    %638 = vmatprep.subr.mxu0 0.0
    %639 = vmatpush1.msra.mxu0 0.0
    %640 = vmatprep.subr.mxu0 0.0
    %641 = vmatpush1.msra.mxu0 0.0
    %642 = vmatprep.subr.mxu0 0.0
    %643 = vmatpush1.msra.mxu0 0.0
    %644 = vmatprep.subr.mxu0 0.0
    %645 = vmatpush1.msra.mxu0 0.0
    %646 = vmatprep.subr.mxu0 0.0
    %647 = vmatpush1.msra.mxu0 0.0
    %648 = vmatprep.subr.mxu0 0.0
    %649 = vmatpush1.msra.mxu0 0.0
    %650 = vmatprep.subr.mxu0 0.0
    %651 = vmatpush1.msra.mxu0 0.0
    %652 = vmatprep.subr.mxu0 0.0
    %653 = vmatpush1.msra.mxu0 0.0
    %654 = vmatprep.subr.mxu0 0.0
    %655 = vmatpush1.msra.mxu0 0.0
    %656 = vmatprep.subr.mxu0 0.0
    %657 = vmatpush1.msra.mxu0 0.0
    %658 = vmatprep.subr.mxu0 0.0
    %659 = vmatpush1.msra.mxu0 0.0
    %660 = vmatprep.subr.mxu0 0.0
    %661 = vmatpush1.msra.mxu0 0.0
    %662 = vmatprep.subr.mxu0 0.0
    %663 = vmatpush1.msra.mxu0 0.0
    %664 = vmatprep.mubr.f32.mxu0 0.0
    %v665 = vand.u32 %v146, 4294901760
    %v666 = vsub.f32 %v146, %v665
    %v667 = vand.u32 %v666, 4294901760
    %668 = vmatmul.mubr.f32.gmra.mrb[0].mxu0 %v667
    %v669 = vpop.f32.mrb[0].mxu0
    %v670 = vadd.f32 %v556, %v669
    %v671 = vpop.f32.mrb[0].mxu0
    %v672 = vadd.f32 %v558, %v671
    %673 = vmatprep.mubr.f32.mxu0 0.0
    %v674 = vand.u32 %v149, 4294901760
    %v675 = vsub.f32 %v149, %v674
    %v676 = vand.u32 %v675, 4294901760
    %677 = vmatmul.mubr.f32.gmra.mrb[0].mxu0 %v676
    %v678 = vpop.f32.mrb[0].mxu0
    %v679 = vadd.f32 %v564, %v678
    %v680 = vpop.f32.mrb[0].mxu0
    %v681 = vadd.f32 %v566, %v680
    %682 = vmatprep.mubr.f32.mxu0 0.0
    %v683 = vand.u32 %v152, 4294901760
    %v684 = vsub.f32 %v152, %v683
    %v685 = vand.u32 %v684, 4294901760
    %686 = vmatmul.mubr.f32.gmra.mrb[0].mxu0 %v685
    %v687 = vpop.f32.mrb[0].mxu0
    %v688 = vadd.f32 %v572, %v687
    %v689 = vpop.f32.mrb[0].mxu0
    %v690 = vadd.f32 %v574, %v689
    %691 = vmatprep.mubr.f32.mxu0 0.0
    %v692 = vand.u32 %v155, 4294901760
    %v693 = vsub.f32 %v155, %v692
    %v694 = vand.u32 %v693, 4294901760
    %695 = vmatmul.mubr.f32.gmra.mrb[0].mxu0 %v694
    %v696 = vpop.f32.mrb[0].mxu0
    %v697 = vadd.f32 %v580, %v696
    %v698 = vpop.f32.mrb[0].mxu0
    %v699 = vadd.f32 %v582, %v698
    %700 = vdwg.mxu0
    %v701 = vand.u32 %v114, 4294901760
    %v702 = vsub.f32 %v114, %v701
    %v703 = vand.u32 %v702, 4294901760
    %704 = vmatprep.subr.mxu0 %v703
    %v705 = vand.u32 %v113, 4294901760
    %v706 = vsub.f32 %v113, %v705
    %v707 = vand.u32 %v706, 4294901760
    %708 = vmatpush1.msra.mxu0 %v707
    %v709 = vand.u32 %v118, 4294901760
    %v710 = vsub.f32 %v118, %v709
    %v711 = vand.u32 %v710, 4294901760
    %712 = vmatprep.subr.mxu0 %v711
    %v713 = vand.u32 %v117, 4294901760
    %v714 = vsub.f32 %v117, %v713
    %v715 = vand.u32 %v714, 4294901760
    %716 = vmatpush1.msra.mxu0 %v715
    %v717 = vand.u32 %v122, 4294901760
    %v718 = vsub.f32 %v122, %v717
    %v719 = vand.u32 %v718, 4294901760
    %720 = vmatprep.subr.mxu0 %v719
    %v721 = vand.u32 %v121, 4294901760
    %v722 = vsub.f32 %v121, %v721
    %v723 = vand.u32 %v722, 4294901760
    %724 = vmatpush1.msra.mxu0 %v723
    %v725 = vand.u32 %v126, 4294901760
    %v726 = vsub.f32 %v126, %v725
    %v727 = vand.u32 %v726, 4294901760
    %728 = vmatprep.subr.mxu0 %v727
    %v729 = vand.u32 %v125, 4294901760
    %v730 = vsub.f32 %v125, %v729
    %v731 = vand.u32 %v730, 4294901760
    %732 = vmatpush1.msra.mxu0 %v731
    %v733 = vand.u32 %v130, 4294901760
    %v734 = vsub.f32 %v130, %v733
    %v735 = vand.u32 %v734, 4294901760
    %736 = vmatprep.subr.mxu0 %v735
    %v737 = vand.u32 %v129, 4294901760
    %v738 = vsub.f32 %v129, %v737
    %v739 = vand.u32 %v738, 4294901760
    %740 = vmatpush1.msra.mxu0 %v739
    %v741 = vand.u32 %v134, 4294901760
    %v742 = vsub.f32 %v134, %v741
    %v743 = vand.u32 %v742, 4294901760
    %744 = vmatprep.subr.mxu0 %v743
    %v745 = vand.u32 %v133, 4294901760
    %v746 = vsub.f32 %v133, %v745
    %v747 = vand.u32 %v746, 4294901760
    %748 = vmatpush1.msra.mxu0 %v747
    %v749 = vand.u32 %v138, 4294901760
    %v750 = vsub.f32 %v138, %v749
    %v751 = vand.u32 %v750, 4294901760
    %752 = vmatprep.subr.mxu0 %v751
    %v753 = vand.u32 %v137, 4294901760
    %v754 = vsub.f32 %v137, %v753
    %v755 = vand.u32 %v754, 4294901760
    %756 = vmatpush1.msra.mxu0 %v755
    %v757 = vand.u32 %v142, 4294901760
    %v758 = vsub.f32 %v142, %v757
    %v759 = vand.u32 %v758, 4294901760
    %760 = vmatprep.subr.mxu0 %v759
    %v761 = vand.u32 %v141, 4294901760
    %v762 = vsub.f32 %v141, %v761
    %v763 = vand.u32 %v762, 4294901760
    %764 = vmatpush1.msra.mxu0 %v763
    %765 = vmatprep.subr.mxu0 0.0
    %766 = vmatpush1.msra.mxu0 0.0
    %767 = vmatprep.subr.mxu0 0.0
    %768 = vmatpush1.msra.mxu0 0.0
    %769 = vmatprep.subr.mxu0 0.0
    %770 = vmatpush1.msra.mxu0 0.0
    %771 = vmatprep.subr.mxu0 0.0
    %772 = vmatpush1.msra.mxu0 0.0
    %773 = vmatprep.subr.mxu0 0.0
    %774 = vmatpush1.msra.mxu0 0.0
    %775 = vmatprep.subr.mxu0 0.0
    %776 = vmatpush1.msra.mxu0 0.0
    %777 = vmatprep.subr.mxu0 0.0
    %778 = vmatpush1.msra.mxu0 0.0
    %779 = vmatprep.subr.mxu0 0.0
    %780 = vmatpush1.msra.mxu0 0.0
    %781 = vmatprep.subr.mxu0 0.0
    %782 = vmatpush1.msra.mxu0 0.0
    %783 = vmatprep.subr.mxu0 0.0
    %784 = vmatpush1.msra.mxu0 0.0
    %785 = vmatprep.subr.mxu0 0.0
    %786 = vmatpush1.msra.mxu0 0.0
    %787 = vmatprep.subr.mxu0 0.0
    %788 = vmatpush1.msra.mxu0 0.0
    %789 = vmatprep.subr.mxu0 0.0
    %790 = vmatpush1.msra.mxu0 0.0
    %791 = vmatprep.subr.mxu0 0.0
    %792 = vmatpush1.msra.mxu0 0.0
    %793 = vmatprep.subr.mxu0 0.0
    %794 = vmatpush1.msra.mxu0 0.0
    %795 = vmatprep.subr.mxu0 0.0
    %796 = vmatpush1.msra.mxu0 0.0
    %797 = vmatprep.subr.mxu0 0.0
    %798 = vmatpush1.msra.mxu0 0.0
    %799 = vmatprep.subr.mxu0 0.0
    %800 = vmatpush1.msra.mxu0 0.0
    %801 = vmatprep.subr.mxu0 0.0
    %802 = vmatpush1.msra.mxu0 0.0
    %803 = vmatprep.subr.mxu0 0.0
    %804 = vmatpush1.msra.mxu0 0.0
    %805 = vmatprep.subr.mxu0 0.0
    %806 = vmatpush1.msra.mxu0 0.0
    %807 = vmatprep.subr.mxu0 0.0
    %808 = vmatpush1.msra.mxu0 0.0
    %809 = vmatprep.subr.mxu0 0.0
    %810 = vmatpush1.msra.mxu0 0.0
    %811 = vmatprep.subr.mxu0 0.0
    %812 = vmatpush1.msra.mxu0 0.0
    %813 = vmatprep.mubr.f32.mxu0 0.0
    %v814 = vand.u32 %v146, 4294901760
    %815 = vmatmul.mubr.f32.gmra.mrb[0].mxu0 %v814
    %v816 = vpop.f32.mrb[0].mxu0
    %v817 = vadd.f32 %v670, %v816
    %v818 = vpop.f32.mrb[0].mxu0
    %v819 = vadd.f32 %v672, %v818
    %820 = vmatprep.mubr.f32.mxu0 0.0
    %v821 = vand.u32 %v149, 4294901760
    %822 = vmatmul.mubr.f32.gmra.mrb[0].mxu0 %v821
    %v823 = vpop.f32.mrb[0].mxu0
    %v824 = vadd.f32 %v679, %v823
    %v825 = vpop.f32.mrb[0].mxu0
    %v826 = vadd.f32 %v681, %v825
    %827 = vmatprep.mubr.f32.mxu0 0.0
    %v828 = vand.u32 %v152, 4294901760
    %829 = vmatmul.mubr.f32.gmra.mrb[0].mxu0 %v828
    %v830 = vpop.f32.mrb[0].mxu0
    %v831 = vadd.f32 %v688, %v830
    %v832 = vpop.f32.mrb[0].mxu0
    %v833 = vadd.f32 %v690, %v832
    %834 = vmatprep.mubr.f32.mxu0 0.0
    %v835 = vand.u32 %v155, 4294901760
    %836 = vmatmul.mubr.f32.gmra.mrb[0].mxu0 %v835
    %v837 = vpop.f32.mrb[0].mxu0
    %v838 = vadd.f32 %v697, %v837
    %v839 = vpop.f32.mrb[0].mxu0
    %v840 = vadd.f32 %v699, %v839
    %841 = vdwg.mxu0
    %v842 = vand.u32 %v114, 4294901760
    %843 = vmatprep.subr.mxu0 %v842
    %v844 = vand.u32 %v113, 4294901760
    %845 = vmatpush1.msra.mxu0 %v844
    %v846 = vand.u32 %v118, 4294901760
    %847 = vmatprep.subr.mxu0 %v846
    %v848 = vand.u32 %v117, 4294901760
    %849 = vmatpush1.msra.mxu0 %v848
    %v850 = vand.u32 %v122, 4294901760
    %851 = vmatprep.subr.mxu0 %v850
    %v852 = vand.u32 %v121, 4294901760
    %853 = vmatpush1.msra.mxu0 %v852
    %v854 = vand.u32 %v126, 4294901760
    %855 = vmatprep.subr.mxu0 %v854
    %v856 = vand.u32 %v125, 4294901760
    %857 = vmatpush1.msra.mxu0 %v856
    %v858 = vand.u32 %v130, 4294901760
    %859 = vmatprep.subr.mxu0 %v858
    %v860 = vand.u32 %v129, 4294901760
    %861 = vmatpush1.msra.mxu0 %v860
    %v862 = vand.u32 %v134, 4294901760
    %863 = vmatprep.subr.mxu0 %v862
    %v864 = vand.u32 %v133, 4294901760
    %865 = vmatpush1.msra.mxu0 %v864
    %v866 = vand.u32 %v138, 4294901760
    %867 = vmatprep.subr.mxu0 %v866
    %v868 = vand.u32 %v137, 4294901760
    %869 = vmatpush1.msra.mxu0 %v868
    %v870 = vand.u32 %v142, 4294901760
    %871 = vmatprep.subr.mxu0 %v870
    %v872 = vand.u32 %v141, 4294901760
    %873 = vmatpush1.msra.mxu0 %v872
    %874 = vmatprep.subr.mxu0 0.0
    %875 = vmatpush1.msra.mxu0 0.0
    %876 = vmatprep.subr.mxu0 0.0
    %877 = vmatpush1.msra.mxu0 0.0
    %878 = vmatprep.subr.mxu0 0.0
    %879 = vmatpush1.msra.mxu0 0.0
    %880 = vmatprep.subr.mxu0 0.0
    %881 = vmatpush1.msra.mxu0 0.0
    %882 = vmatprep.subr.mxu0 0.0
    %883 = vmatpush1.msra.mxu0 0.0
    %884 = vmatprep.subr.mxu0 0.0
    %885 = vmatpush1.msra.mxu0 0.0
    %886 = vmatprep.subr.mxu0 0.0
    %887 = vmatpush1.msra.mxu0 0.0
    %888 = vmatprep.subr.mxu0 0.0
    %889 = vmatpush1.msra.mxu0 0.0
    %890 = vmatprep.subr.mxu0 0.0
    %891 = vmatpush1.msra.mxu0 0.0
    %892 = vmatprep.subr.mxu0 0.0
    %893 = vmatpush1.msra.mxu0 0.0
    %894 = vmatprep.subr.mxu0 0.0
    %895 = vmatpush1.msra.mxu0 0.0
    %896 = vmatprep.subr.mxu0 0.0
    %897 = vmatpush1.msra.mxu0 0.0
    %898 = vmatprep.subr.mxu0 0.0
    %899 = vmatpush1.msra.mxu0 0.0
    %900 = vmatprep.subr.mxu0 0.0
    %901 = vmatpush1.msra.mxu0 0.0
    %902 = vmatprep.subr.mxu0 0.0
    %903 = vmatpush1.msra.mxu0 0.0
    %904 = vmatprep.subr.mxu0 0.0
    %905 = vmatpush1.msra.mxu0 0.0
    %906 = vmatprep.subr.mxu0 0.0
    %907 = vmatpush1.msra.mxu0 0.0
    %908 = vmatprep.subr.mxu0 0.0
    %909 = vmatpush1.msra.mxu0 0.0
    %910 = vmatprep.subr.mxu0 0.0
    %911 = vmatpush1.msra.mxu0 0.0
    %912 = vmatprep.subr.mxu0 0.0
    %913 = vmatpush1.msra.mxu0 0.0
    %914 = vmatprep.subr.mxu0 0.0
    %915 = vmatpush1.msra.mxu0 0.0
    %916 = vmatprep.subr.mxu0 0.0
    %917 = vmatpush1.msra.mxu0 0.0
    %918 = vmatprep.subr.mxu0 0.0
    %919 = vmatpush1.msra.mxu0 0.0
    %920 = vmatprep.subr.mxu0 0.0
    %921 = vmatpush1.msra.mxu0 0.0
    %922 = vmatprep.mubr.f32.mxu0 0.0
    %v923 = vand.u32 %v146, 4294901760
    %924 = vmatmul.mubr.f32.gmra.mrb[0].mxu0 %v923
    %v925 = vpop.f32.mrb[0].mxu0
    %v926 = vadd.f32 %v817, %v925
    %v927 = vpop.f32.mrb[0].mxu0
    %v928 = vadd.f32 %v819, %v927
    %929 = vmatprep.mubr.f32.mxu0 0.0
    %v930 = vand.u32 %v149, 4294901760
    %931 = vmatmul.mubr.f32.gmra.mrb[0].mxu0 %v930
    %v932 = vpop.f32.mrb[0].mxu0
    %v933 = vadd.f32 %v824, %v932
    %v934 = vpop.f32.mrb[0].mxu0
    %v935 = vadd.f32 %v826, %v934
    %936 = vmatprep.mubr.f32.mxu0 0.0
    %v937 = vand.u32 %v152, 4294901760
    %938 = vmatmul.mubr.f32.gmra.mrb[0].mxu0 %v937
    %v939 = vpop.f32.mrb[0].mxu0
    %v940 = vadd.f32 %v831, %v939
    %v941 = vpop.f32.mrb[0].mxu0
    %v942 = vadd.f32 %v833, %v941
    %943 = vmatprep.mubr.f32.mxu0 0.0
    %v944 = vand.u32 %v155, 4294901760
    %945 = vmatmul.mubr.f32.gmra.mrb[0].mxu0 %v944
    %v946 = vpop.f32.mrb[0].mxu0
    %v947 = vadd.f32 %v838, %v946
    %v948 = vpop.f32.mrb[0].mxu0
    %v949 = vadd.f32 %v840, %v948
    %950 = vdwg.mxu0
    %v951 = vand.u32 %v116, 4294901760
    %952 = vmatprep.subr.mxu0 %v951
    %v953 = vand.u32 %v115, 4294901760
    %954 = vmatpush1.msra.mxu0 %v953
    %v955 = vand.u32 %v120, 4294901760
    %956 = vmatprep.subr.mxu0 %v955
    %v957 = vand.u32 %v119, 4294901760
    %958 = vmatpush1.msra.mxu0 %v957
    %v959 = vand.u32 %v124, 4294901760
    %960 = vmatprep.subr.mxu0 %v959
    %v961 = vand.u32 %v123, 4294901760
    %962 = vmatpush1.msra.mxu0 %v961
    %v963 = vand.u32 %v128, 4294901760
    %964 = vmatprep.subr.mxu0 %v963
    %v965 = vand.u32 %v127, 4294901760
    %966 = vmatpush1.msra.mxu0 %v965
    %v967 = vand.u32 %v132, 4294901760
    %968 = vmatprep.subr.mxu0 %v967
    %v969 = vand.u32 %v131, 4294901760
    %970 = vmatpush1.msra.mxu0 %v969
    %v971 = vand.u32 %v136, 4294901760
    %972 = vmatprep.subr.mxu0 %v971
    %v973 = vand.u32 %v135, 4294901760
    %974 = vmatpush1.msra.mxu0 %v973
    %v975 = vand.u32 %v140, 4294901760
    %976 = vmatprep.subr.mxu0 %v975
    %v977 = vand.u32 %v139, 4294901760
    %978 = vmatpush1.msra.mxu0 %v977
    %v979 = vand.u32 %v144, 4294901760
    %980 = vmatprep.subr.mxu0 %v979
    %v981 = vand.u32 %v143, 4294901760
    %982 = vmatpush1.msra.mxu0 %v981
    %983 = vmatprep.subr.mxu0 0.0
    %984 = vmatpush1.msra.mxu0 0.0
    %985 = vmatprep.subr.mxu0 0.0
    %986 = vmatpush1.msra.mxu0 0.0
    %987 = vmatprep.subr.mxu0 0.0
    %988 = vmatpush1.msra.mxu0 0.0
    %989 = vmatprep.subr.mxu0 0.0
    %990 = vmatpush1.msra.mxu0 0.0
    %991 = vmatprep.subr.mxu0 0.0
    %992 = vmatpush1.msra.mxu0 0.0
    %993 = vmatprep.subr.mxu0 0.0
    %994 = vmatpush1.msra.mxu0 0.0
    %995 = vmatprep.subr.mxu0 0.0
    %996 = vmatpush1.msra.mxu0 0.0
    %997 = vmatprep.subr.mxu0 0.0
    %998 = vmatpush1.msra.mxu0 0.0
    %999 = vmatprep.subr.mxu0 0.0
    %1000 = vmatpush1.msra.mxu0 0.0
    %1001 = vmatprep.subr.mxu0 0.0
    %1002 = vmatpush1.msra.mxu0 0.0
    %1003 = vmatprep.subr.mxu0 0.0
    %1004 = vmatpush1.msra.mxu0 0.0
    %1005 = vmatprep.subr.mxu0 0.0
    %1006 = vmatpush1.msra.mxu0 0.0
    %1007 = vmatprep.subr.mxu0 0.0
    %1008 = vmatpush1.msra.mxu0 0.0
    %1009 = vmatprep.subr.mxu0 0.0
    %1010 = vmatpush1.msra.mxu0 0.0
    %1011 = vmatprep.subr.mxu0 0.0
    %1012 = vmatpush1.msra.mxu0 0.0
    %1013 = vmatprep.subr.mxu0 0.0
    %1014 = vmatpush1.msra.mxu0 0.0
    %1015 = vmatprep.subr.mxu0 0.0
    %1016 = vmatpush1.msra.mxu0 0.0
    %1017 = vmatprep.subr.mxu0 0.0
    %1018 = vmatpush1.msra.mxu0 0.0
    %1019 = vmatprep.subr.mxu0 0.0
    %1020 = vmatpush1.msra.mxu0 0.0
    %1021 = vmatprep.subr.mxu0 0.0
    %1022 = vmatpush1.msra.mxu0 0.0
    %1023 = vmatprep.subr.mxu0 0.0
    %1024 = vmatpush1.msra.mxu0 0.0
    %1025 = vmatprep.subr.mxu0 0.0
    %1026 = vmatpush1.msra.mxu0 0.0
    %1027 = vmatprep.subr.mxu0 0.0
    %1028 = vmatpush1.msra.mxu0 0.0
    %1029 = vmatprep.subr.mxu0 0.0
    %1030 = vmatpush1.msra.mxu0 0.0
    %1031 = vmatprep.mubr.f32.mxu0 0.0
    %v1032 = vand.u32 %v146, 4294901760
    %v1033 = vsub.f32 %v146, %v1032
    %v1034 = vand.u32 %v1033, 4294901760
    %v1035 = vsub.f32 %v1033, %v1034
    %v1036 = vand.u32 %v1035, 4294901760
    %1037 = vmatmul.mubr.f32.gmra.mrb[0].mxu0 %v1036
    %v1038 = vpop.f32.mrb[0].mxu0
    %v1039 = vadd.f32 0.0, %v1038
    %v1040 = vpop.f32.mrb[0].mxu0
    %v1041 = vadd.f32 0.0, %v1040
    %1042 = vmatprep.mubr.f32.mxu0 0.0
    %v1043 = vand.u32 %v149, 4294901760
    %v1044 = vsub.f32 %v149, %v1043
    %v1045 = vand.u32 %v1044, 4294901760
    %v1046 = vsub.f32 %v1044, %v1045
    %v1047 = vand.u32 %v1046, 4294901760
    %1048 = vmatmul.mubr.f32.gmra.mrb[0].mxu0 %v1047
    %v1049 = vpop.f32.mrb[0].mxu0
    %v1050 = vadd.f32 0.0, %v1049
    %v1051 = vpop.f32.mrb[0].mxu0
    %v1052 = vadd.f32 0.0, %v1051
    %1053 = vmatprep.mubr.f32.mxu0 0.0
    %v1054 = vand.u32 %v152, 4294901760
    %v1055 = vsub.f32 %v152, %v1054
    %v1056 = vand.u32 %v1055, 4294901760
    %v1057 = vsub.f32 %v1055, %v1056
    %v1058 = vand.u32 %v1057, 4294901760
    %1059 = vmatmul.mubr.f32.gmra.mrb[0].mxu0 %v1058
    %v1060 = vpop.f32.mrb[0].mxu0
    %v1061 = vadd.f32 0.0, %v1060
    %v1062 = vpop.f32.mrb[0].mxu0
    %v1063 = vadd.f32 0.0, %v1062
    %1064 = vmatprep.mubr.f32.mxu0 0.0
    %v1065 = vand.u32 %v155, 4294901760
    %v1066 = vsub.f32 %v155, %v1065
    %v1067 = vand.u32 %v1066, 4294901760
    %v1068 = vsub.f32 %v1066, %v1067
    %v1069 = vand.u32 %v1068, 4294901760
    %1070 = vmatmul.mubr.f32.gmra.mrb[0].mxu0 %v1069
    %v1071 = vpop.f32.mrb[0].mxu0
    %v1072 = vadd.f32 0.0, %v1071
    %v1073 = vpop.f32.mrb[0].mxu0
    %v1074 = vadd.f32 0.0, %v1073
    %1075 = vdwg.mxu0
    %v1076 = vand.u32 %v116, 4294901760
    %v1077 = vsub.f32 %v116, %v1076
    %v1078 = vand.u32 %v1077, 4294901760
    %v1079 = vsub.f32 %v1077, %v1078
    %v1080 = vand.u32 %v1079, 4294901760
    %1081 = vmatprep.subr.mxu0 %v1080
    %v1082 = vand.u32 %v115, 4294901760
    %v1083 = vsub.f32 %v115, %v1082
    %v1084 = vand.u32 %v1083, 4294901760
    %v1085 = vsub.f32 %v1083, %v1084
    %v1086 = vand.u32 %v1085, 4294901760
    %1087 = vmatpush1.msra.mxu0 %v1086
    %v1088 = vand.u32 %v120, 4294901760
    %v1089 = vsub.f32 %v120, %v1088
    %v1090 = vand.u32 %v1089, 4294901760
    %v1091 = vsub.f32 %v1089, %v1090
    %v1092 = vand.u32 %v1091, 4294901760
    %1093 = vmatprep.subr.mxu0 %v1092
    %v1094 = vand.u32 %v119, 4294901760
    %v1095 = vsub.f32 %v119, %v1094
    %v1096 = vand.u32 %v1095, 4294901760
    %v1097 = vsub.f32 %v1095, %v1096
    %v1098 = vand.u32 %v1097, 4294901760
    %1099 = vmatpush1.msra.mxu0 %v1098
    %v1100 = vand.u32 %v124, 4294901760
    %v1101 = vsub.f32 %v124, %v1100
    %v1102 = vand.u32 %v1101, 4294901760
    %v1103 = vsub.f32 %v1101, %v1102
    %v1104 = vand.u32 %v1103, 4294901760
    %1105 = vmatprep.subr.mxu0 %v1104
    %v1106 = vand.u32 %v123, 4294901760
    %v1107 = vsub.f32 %v123, %v1106
    %v1108 = vand.u32 %v1107, 4294901760
    %v1109 = vsub.f32 %v1107, %v1108
    %v1110 = vand.u32 %v1109, 4294901760
    %1111 = vmatpush1.msra.mxu0 %v1110
    %v1112 = vand.u32 %v128, 4294901760
    %v1113 = vsub.f32 %v128, %v1112
    %v1114 = vand.u32 %v1113, 4294901760
    %v1115 = vsub.f32 %v1113, %v1114
    %v1116 = vand.u32 %v1115, 4294901760
    %1117 = vmatprep.subr.mxu0 %v1116
    %v1118 = vand.u32 %v127, 4294901760
    %v1119 = vsub.f32 %v127, %v1118
    %v1120 = vand.u32 %v1119, 4294901760
    %v1121 = vsub.f32 %v1119, %v1120
    %v1122 = vand.u32 %v1121, 4294901760
    %1123 = vmatpush1.msra.mxu0 %v1122
    %v1124 = vand.u32 %v132, 4294901760
    %v1125 = vsub.f32 %v132, %v1124
    %v1126 = vand.u32 %v1125, 4294901760
    %v1127 = vsub.f32 %v1125, %v1126
    %v1128 = vand.u32 %v1127, 4294901760
    %1129 = vmatprep.subr.mxu0 %v1128
    %v1130 = vand.u32 %v131, 4294901760
    %v1131 = vsub.f32 %v131, %v1130
    %v1132 = vand.u32 %v1131, 4294901760
    %v1133 = vsub.f32 %v1131, %v1132
    %v1134 = vand.u32 %v1133, 4294901760
    %1135 = vmatpush1.msra.mxu0 %v1134
    %v1136 = vand.u32 %v136, 4294901760
    %v1137 = vsub.f32 %v136, %v1136
    %v1138 = vand.u32 %v1137, 4294901760
    %v1139 = vsub.f32 %v1137, %v1138
    %v1140 = vand.u32 %v1139, 4294901760
    %1141 = vmatprep.subr.mxu0 %v1140
    %v1142 = vand.u32 %v135, 4294901760
    %v1143 = vsub.f32 %v135, %v1142
    %v1144 = vand.u32 %v1143, 4294901760
    %v1145 = vsub.f32 %v1143, %v1144
    %v1146 = vand.u32 %v1145, 4294901760
    %1147 = vmatpush1.msra.mxu0 %v1146
    %v1148 = vand.u32 %v140, 4294901760
    %v1149 = vsub.f32 %v140, %v1148
    %v1150 = vand.u32 %v1149, 4294901760
    %v1151 = vsub.f32 %v1149, %v1150
    %v1152 = vand.u32 %v1151, 4294901760
    %1153 = vmatprep.subr.mxu0 %v1152
    %v1154 = vand.u32 %v139, 4294901760
    %v1155 = vsub.f32 %v139, %v1154
    %v1156 = vand.u32 %v1155, 4294901760
    %v1157 = vsub.f32 %v1155, %v1156
    %v1158 = vand.u32 %v1157, 4294901760
    %1159 = vmatpush1.msra.mxu0 %v1158
    %v1160 = vand.u32 %v144, 4294901760
    %v1161 = vsub.f32 %v144, %v1160
    %v1162 = vand.u32 %v1161, 4294901760
    %v1163 = vsub.f32 %v1161, %v1162
    %v1164 = vand.u32 %v1163, 4294901760
    %1165 = vmatprep.subr.mxu0 %v1164
    %v1166 = vand.u32 %v143, 4294901760
    %v1167 = vsub.f32 %v143, %v1166
    %v1168 = vand.u32 %v1167, 4294901760
    %v1169 = vsub.f32 %v1167, %v1168
    %v1170 = vand.u32 %v1169, 4294901760
    %1171 = vmatpush1.msra.mxu0 %v1170
    %1172 = vmatprep.subr.mxu0 0.0
    %1173 = vmatpush1.msra.mxu0 0.0
    %1174 = vmatprep.subr.mxu0 0.0
    %1175 = vmatpush1.msra.mxu0 0.0
    %1176 = vmatprep.subr.mxu0 0.0
    %1177 = vmatpush1.msra.mxu0 0.0
    %1178 = vmatprep.subr.mxu0 0.0
    %1179 = vmatpush1.msra.mxu0 0.0
    %1180 = vmatprep.subr.mxu0 0.0
    %1181 = vmatpush1.msra.mxu0 0.0
    %1182 = vmatprep.subr.mxu0 0.0
    %1183 = vmatpush1.msra.mxu0 0.0
    %1184 = vmatprep.subr.mxu0 0.0
    %1185 = vmatpush1.msra.mxu0 0.0
    %1186 = vmatprep.subr.mxu0 0.0
    %1187 = vmatpush1.msra.mxu0 0.0
    %1188 = vmatprep.subr.mxu0 0.0
    %1189 = vmatpush1.msra.mxu0 0.0
    %1190 = vmatprep.subr.mxu0 0.0
    %1191 = vmatpush1.msra.mxu0 0.0
    %1192 = vmatprep.subr.mxu0 0.0
    %1193 = vmatpush1.msra.mxu0 0.0
    %1194 = vmatprep.subr.mxu0 0.0
    %1195 = vmatpush1.msra.mxu0 0.0
    %1196 = vmatprep.subr.mxu0 0.0
    %1197 = vmatpush1.msra.mxu0 0.0
    %1198 = vmatprep.subr.mxu0 0.0
    %1199 = vmatpush1.msra.mxu0 0.0
    %1200 = vmatprep.subr.mxu0 0.0
    %1201 = vmatpush1.msra.mxu0 0.0
    %1202 = vmatprep.subr.mxu0 0.0
    %1203 = vmatpush1.msra.mxu0 0.0
    %1204 = vmatprep.subr.mxu0 0.0
    %1205 = vmatpush1.msra.mxu0 0.0
    %1206 = vmatprep.subr.mxu0 0.0
    %1207 = vmatpush1.msra.mxu0 0.0
    %1208 = vmatprep.subr.mxu0 0.0
    %1209 = vmatpush1.msra.mxu0 0.0
    %1210 = vmatprep.subr.mxu0 0.0
    %1211 = vmatpush1.msra.mxu0 0.0
    %1212 = vmatprep.subr.mxu0 0.0
    %1213 = vmatpush1.msra.mxu0 0.0
    %1214 = vmatprep.subr.mxu0 0.0
    %1215 = vmatpush1.msra.mxu0 0.0
    %1216 = vmatprep.subr.mxu0 0.0
    %1217 = vmatpush1.msra.mxu0 0.0
    %1218 = vmatprep.subr.mxu0 0.0
    %1219 = vmatpush1.msra.mxu0 0.0
    %1220 = vmatprep.mubr.f32.mxu0 0.0
    %v1221 = vand.u32 %v146, 4294901760
    %1222 = vmatmul.mubr.f32.gmra.mrb[0].mxu0 %v1221
    %v1223 = vpop.f32.mrb[0].mxu0
    %v1224 = vadd.f32 %v1039, %v1223
    %v1225 = vpop.f32.mrb[0].mxu0
    %v1226 = vadd.f32 %v1041, %v1225
    %1227 = vmatprep.mubr.f32.mxu0 0.0
    %v1228 = vand.u32 %v149, 4294901760
    %1229 = vmatmul.mubr.f32.gmra.mrb[0].mxu0 %v1228
    %v1230 = vpop.f32.mrb[0].mxu0
    %v1231 = vadd.f32 %v1050, %v1230
    %v1232 = vpop.f32.mrb[0].mxu0
    %v1233 = vadd.f32 %v1052, %v1232
    %1234 = vmatprep.mubr.f32.mxu0 0.0
    %v1235 = vand.u32 %v152, 4294901760
    %1236 = vmatmul.mubr.f32.gmra.mrb[0].mxu0 %v1235
    %v1237 = vpop.f32.mrb[0].mxu0
    %v1238 = vadd.f32 %v1061, %v1237
    %v1239 = vpop.f32.mrb[0].mxu0
    %v1240 = vadd.f32 %v1063, %v1239
    %1241 = vmatprep.mubr.f32.mxu0 0.0
    %v1242 = vand.u32 %v155, 4294901760
    %1243 = vmatmul.mubr.f32.gmra.mrb[0].mxu0 %v1242
    %v1244 = vpop.f32.mrb[0].mxu0
    %v1245 = vadd.f32 %v1072, %v1244
    %v1246 = vpop.f32.mrb[0].mxu0
    %v1247 = vadd.f32 %v1074, %v1246
    %1248 = vdwg.mxu0
    %v1249 = vand.u32 %v116, 4294901760
    %v1250 = vsub.f32 %v116, %v1249
    %1251 = vmatprep.subr.mxu0 %v1250
    %v1252 = vand.u32 %v115, 4294901760
    %v1253 = vsub.f32 %v115, %v1252
    %1254 = vmatpush1.msra.mxu0 %v1253
    %v1255 = vand.u32 %v120, 4294901760
    %v1256 = vsub.f32 %v120, %v1255
    %1257 = vmatprep.subr.mxu0 %v1256
    %v1258 = vand.u32 %v119, 4294901760
    %v1259 = vsub.f32 %v119, %v1258
    %1260 = vmatpush1.msra.mxu0 %v1259
    %v1261 = vand.u32 %v124, 4294901760
    %v1262 = vsub.f32 %v124, %v1261
    %1263 = vmatprep.subr.mxu0 %v1262
    %v1264 = vand.u32 %v123, 4294901760
    %v1265 = vsub.f32 %v123, %v1264
    %1266 = vmatpush1.msra.mxu0 %v1265
    %v1267 = vand.u32 %v128, 4294901760
    %v1268 = vsub.f32 %v128, %v1267
    %1269 = vmatprep.subr.mxu0 %v1268
    %v1270 = vand.u32 %v127, 4294901760
    %v1271 = vsub.f32 %v127, %v1270
    %1272 = vmatpush1.msra.mxu0 %v1271
    %v1273 = vand.u32 %v132, 4294901760
    %v1274 = vsub.f32 %v132, %v1273
    %1275 = vmatprep.subr.mxu0 %v1274
    %v1276 = vand.u32 %v131, 4294901760
    %v1277 = vsub.f32 %v131, %v1276
    %1278 = vmatpush1.msra.mxu0 %v1277
    %v1279 = vand.u32 %v136, 4294901760
    %v1280 = vsub.f32 %v136, %v1279
    %1281 = vmatprep.subr.mxu0 %v1280
    %v1282 = vand.u32 %v135, 4294901760
    %v1283 = vsub.f32 %v135, %v1282
    %1284 = vmatpush1.msra.mxu0 %v1283
    %v1285 = vand.u32 %v140, 4294901760
    %v1286 = vsub.f32 %v140, %v1285
    %1287 = vmatprep.subr.mxu0 %v1286
    %v1288 = vand.u32 %v139, 4294901760
    %v1289 = vsub.f32 %v139, %v1288
    %1290 = vmatpush1.msra.mxu0 %v1289
    %v1291 = vand.u32 %v144, 4294901760
    %v1292 = vsub.f32 %v144, %v1291
    %1293 = vmatprep.subr.mxu0 %v1292
    %v1294 = vand.u32 %v143, 4294901760
    %v1295 = vsub.f32 %v143, %v1294
    %1296 = vmatpush1.msra.mxu0 %v1295
    %1297 = vmatprep.subr.mxu0 0.0
    %1298 = vmatpush1.msra.mxu0 0.0
    %1299 = vmatprep.subr.mxu0 0.0
    %1300 = vmatpush1.msra.mxu0 0.0
    %1301 = vmatprep.subr.mxu0 0.0
    %1302 = vmatpush1.msra.mxu0 0.0
    %1303 = vmatprep.subr.mxu0 0.0
    %1304 = vmatpush1.msra.mxu0 0.0
    %1305 = vmatprep.subr.mxu0 0.0
    %1306 = vmatpush1.msra.mxu0 0.0
    %1307 = vmatprep.subr.mxu0 0.0
    %1308 = vmatpush1.msra.mxu0 0.0
    %1309 = vmatprep.subr.mxu0 0.0
    %1310 = vmatpush1.msra.mxu0 0.0
    %1311 = vmatprep.subr.mxu0 0.0
    %1312 = vmatpush1.msra.mxu0 0.0
    %1313 = vmatprep.subr.mxu0 0.0
    %1314 = vmatpush1.msra.mxu0 0.0
    %1315 = vmatprep.subr.mxu0 0.0
    %1316 = vmatpush1.msra.mxu0 0.0
    %1317 = vmatprep.subr.mxu0 0.0
    %1318 = vmatpush1.msra.mxu0 0.0
    %1319 = vmatprep.subr.mxu0 0.0
    %1320 = vmatpush1.msra.mxu0 0.0
    %1321 = vmatprep.subr.mxu0 0.0
    %1322 = vmatpush1.msra.mxu0 0.0
    %1323 = vmatprep.subr.mxu0 0.0
    %1324 = vmatpush1.msra.mxu0 0.0
    %1325 = vmatprep.subr.mxu0 0.0
    %1326 = vmatpush1.msra.mxu0 0.0
    %1327 = vmatprep.subr.mxu0 0.0
    %1328 = vmatpush1.msra.mxu0 0.0
    %1329 = vmatprep.subr.mxu0 0.0
    %1330 = vmatpush1.msra.mxu0 0.0
    %1331 = vmatprep.subr.mxu0 0.0
    %1332 = vmatpush1.msra.mxu0 0.0
    %1333 = vmatprep.subr.mxu0 0.0
    %1334 = vmatpush1.msra.mxu0 0.0
    %1335 = vmatprep.subr.mxu0 0.0
    %1336 = vmatpush1.msra.mxu0 0.0
    %1337 = vmatprep.subr.mxu0 0.0
    %1338 = vmatpush1.msra.mxu0 0.0
    %1339 = vmatprep.subr.mxu0 0.0
    %1340 = vmatpush1.msra.mxu0 0.0
    %1341 = vmatprep.subr.mxu0 0.0
    %1342 = vmatpush1.msra.mxu0 0.0
    %1343 = vmatprep.subr.mxu0 0.0
    %1344 = vmatpush1.msra.mxu0 0.0
    %1345 = vmatprep.mubr.f32.mxu0 0.0
    %v1346 = vand.u32 %v146, 4294901760
    %v1347 = vsub.f32 %v146, %v1346
    %1348 = vmatmul.mubr.f32.gmra.mrb[0].mxu0 %v1347
    %v1349 = vpop.f32.mrb[0].mxu0
    %v1350 = vadd.f32 %v1224, %v1349
    %v1351 = vpop.f32.mrb[0].mxu0
    %v1352 = vadd.f32 %v1226, %v1351
    %1353 = vmatprep.mubr.f32.mxu0 0.0
    %v1354 = vand.u32 %v149, 4294901760
    %v1355 = vsub.f32 %v149, %v1354
    %1356 = vmatmul.mubr.f32.gmra.mrb[0].mxu0 %v1355
    %v1357 = vpop.f32.mrb[0].mxu0
    %v1358 = vadd.f32 %v1231, %v1357
    %v1359 = vpop.f32.mrb[0].mxu0
    %v1360 = vadd.f32 %v1233, %v1359
    %1361 = vmatprep.mubr.f32.mxu0 0.0
    %v1362 = vand.u32 %v152, 4294901760
    %v1363 = vsub.f32 %v152, %v1362
    %1364 = vmatmul.mubr.f32.gmra.mrb[0].mxu0 %v1363
    %v1365 = vpop.f32.mrb[0].mxu0
    %v1366 = vadd.f32 %v1238, %v1365
    %v1367 = vpop.f32.mrb[0].mxu0
    %v1368 = vadd.f32 %v1240, %v1367
    %1369 = vmatprep.mubr.f32.mxu0 0.0
    %v1370 = vand.u32 %v155, 4294901760
    %v1371 = vsub.f32 %v155, %v1370
    %1372 = vmatmul.mubr.f32.gmra.mrb[0].mxu0 %v1371
    %v1373 = vpop.f32.mrb[0].mxu0
    %v1374 = vadd.f32 %v1245, %v1373
    %v1375 = vpop.f32.mrb[0].mxu0
    %v1376 = vadd.f32 %v1247, %v1375
    %1377 = vdwg.mxu0
    %v1378 = vand.u32 %v116, 4294901760
    %1379 = vmatprep.subr.mxu0 %v1378
    %v1380 = vand.u32 %v115, 4294901760
    %1381 = vmatpush1.msra.mxu0 %v1380
    %v1382 = vand.u32 %v120, 4294901760
    %1383 = vmatprep.subr.mxu0 %v1382
    %v1384 = vand.u32 %v119, 4294901760
    %1385 = vmatpush1.msra.mxu0 %v1384
    %v1386 = vand.u32 %v124, 4294901760
    %1387 = vmatprep.subr.mxu0 %v1386
    %v1388 = vand.u32 %v123, 4294901760
    %1389 = vmatpush1.msra.mxu0 %v1388
    %v1390 = vand.u32 %v128, 4294901760
    %1391 = vmatprep.subr.mxu0 %v1390
    %v1392 = vand.u32 %v127, 4294901760
    %1393 = vmatpush1.msra.mxu0 %v1392
    %v1394 = vand.u32 %v132, 4294901760
    %1395 = vmatprep.subr.mxu0 %v1394
    %v1396 = vand.u32 %v131, 4294901760
    %1397 = vmatpush1.msra.mxu0 %v1396
    %v1398 = vand.u32 %v136, 4294901760
    %1399 = vmatprep.subr.mxu0 %v1398
    %v1400 = vand.u32 %v135, 4294901760
    %1401 = vmatpush1.msra.mxu0 %v1400
    %v1402 = vand.u32 %v140, 4294901760
    %1403 = vmatprep.subr.mxu0 %v1402
    %v1404 = vand.u32 %v139, 4294901760
    %1405 = vmatpush1.msra.mxu0 %v1404
    %v1406 = vand.u32 %v144, 4294901760
    %1407 = vmatprep.subr.mxu0 %v1406
    %v1408 = vand.u32 %v143, 4294901760
    %1409 = vmatpush1.msra.mxu0 %v1408
    %1410 = vmatprep.subr.mxu0 0.0
    %1411 = vmatpush1.msra.mxu0 0.0
    %1412 = vmatprep.subr.mxu0 0.0
    %1413 = vmatpush1.msra.mxu0 0.0
    %1414 = vmatprep.subr.mxu0 0.0
    %1415 = vmatpush1.msra.mxu0 0.0
    %1416 = vmatprep.subr.mxu0 0.0
    %1417 = vmatpush1.msra.mxu0 0.0
    %1418 = vmatprep.subr.mxu0 0.0
    %1419 = vmatpush1.msra.mxu0 0.0
    %1420 = vmatprep.subr.mxu0 0.0
    %1421 = vmatpush1.msra.mxu0 0.0
    %1422 = vmatprep.subr.mxu0 0.0
    %1423 = vmatpush1.msra.mxu0 0.0
    %1424 = vmatprep.subr.mxu0 0.0
    %1425 = vmatpush1.msra.mxu0 0.0
    %1426 = vmatprep.subr.mxu0 0.0
    %1427 = vmatpush1.msra.mxu0 0.0
    %1428 = vmatprep.subr.mxu0 0.0
    %1429 = vmatpush1.msra.mxu0 0.0
    %1430 = vmatprep.subr.mxu0 0.0
    %1431 = vmatpush1.msra.mxu0 0.0
    %1432 = vmatprep.subr.mxu0 0.0
    %1433 = vmatpush1.msra.mxu0 0.0
    %1434 = vmatprep.subr.mxu0 0.0
    %1435 = vmatpush1.msra.mxu0 0.0
    %1436 = vmatprep.subr.mxu0 0.0
    %1437 = vmatpush1.msra.mxu0 0.0
    %1438 = vmatprep.subr.mxu0 0.0
    %1439 = vmatpush1.msra.mxu0 0.0
    %1440 = vmatprep.subr.mxu0 0.0
    %1441 = vmatpush1.msra.mxu0 0.0
    %1442 = vmatprep.subr.mxu0 0.0
    %1443 = vmatpush1.msra.mxu0 0.0
    %1444 = vmatprep.subr.mxu0 0.0
    %1445 = vmatpush1.msra.mxu0 0.0
    %1446 = vmatprep.subr.mxu0 0.0
    %1447 = vmatpush1.msra.mxu0 0.0
    %1448 = vmatprep.subr.mxu0 0.0
    %1449 = vmatpush1.msra.mxu0 0.0
    %1450 = vmatprep.subr.mxu0 0.0
    %1451 = vmatpush1.msra.mxu0 0.0
    %1452 = vmatprep.subr.mxu0 0.0
    %1453 = vmatpush1.msra.mxu0 0.0
    %1454 = vmatprep.subr.mxu0 0.0
    %1455 = vmatpush1.msra.mxu0 0.0
    %1456 = vmatprep.subr.mxu0 0.0
    %1457 = vmatpush1.msra.mxu0 0.0
    %1458 = vmatprep.mubr.f32.mxu0 0.0
    %v1459 = vand.u32 %v146, 4294901760
    %v1460 = vsub.f32 %v146, %v1459
    %v1461 = vand.u32 %v1460, 4294901760
    %1462 = vmatmul.mubr.f32.gmra.mrb[0].mxu0 %v1461
    %v1463 = vpop.f32.mrb[0].mxu0
    %v1464 = vadd.f32 %v1350, %v1463
    %v1465 = vpop.f32.mrb[0].mxu0
    %v1466 = vadd.f32 %v1352, %v1465
    %1467 = vmatprep.mubr.f32.mxu0 0.0
    %v1468 = vand.u32 %v149, 4294901760
    %v1469 = vsub.f32 %v149, %v1468
    %v1470 = vand.u32 %v1469, 4294901760
    %1471 = vmatmul.mubr.f32.gmra.mrb[0].mxu0 %v1470
    %v1472 = vpop.f32.mrb[0].mxu0
    %v1473 = vadd.f32 %v1358, %v1472
    %v1474 = vpop.f32.mrb[0].mxu0
    %v1475 = vadd.f32 %v1360, %v1474
    %1476 = vmatprep.mubr.f32.mxu0 0.0
    %v1477 = vand.u32 %v152, 4294901760
    %v1478 = vsub.f32 %v152, %v1477
    %v1479 = vand.u32 %v1478, 4294901760
    %1480 = vmatmul.mubr.f32.gmra.mrb[0].mxu0 %v1479
    %v1481 = vpop.f32.mrb[0].mxu0
    %v1482 = vadd.f32 %v1366, %v1481
    %v1483 = vpop.f32.mrb[0].mxu0
    %v1484 = vadd.f32 %v1368, %v1483
    %1485 = vmatprep.mubr.f32.mxu0 0.0
    %v1486 = vand.u32 %v155, 4294901760
    %v1487 = vsub.f32 %v155, %v1486
    %v1488 = vand.u32 %v1487, 4294901760
    %1489 = vmatmul.mubr.f32.gmra.mrb[0].mxu0 %v1488
    %v1490 = vpop.f32.mrb[0].mxu0
    %v1491 = vadd.f32 %v1374, %v1490
    %v1492 = vpop.f32.mrb[0].mxu0
    %v1493 = vadd.f32 %v1376, %v1492
    %1494 = vdwg.mxu0
    %v1495 = vand.u32 %v116, 4294901760
    %v1496 = vsub.f32 %v116, %v1495
    %v1497 = vand.u32 %v1496, 4294901760
    %1498 = vmatprep.subr.mxu0 %v1497
    %v1499 = vand.u32 %v115, 4294901760
    %v1500 = vsub.f32 %v115, %v1499
    %v1501 = vand.u32 %v1500, 4294901760
    %1502 = vmatpush1.msra.mxu0 %v1501
    %v1503 = vand.u32 %v120, 4294901760
    %v1504 = vsub.f32 %v120, %v1503
    %v1505 = vand.u32 %v1504, 4294901760
    %1506 = vmatprep.subr.mxu0 %v1505
    %v1507 = vand.u32 %v119, 4294901760
    %v1508 = vsub.f32 %v119, %v1507
    %v1509 = vand.u32 %v1508, 4294901760
    %1510 = vmatpush1.msra.mxu0 %v1509
    %v1511 = vand.u32 %v124, 4294901760
    %v1512 = vsub.f32 %v124, %v1511
    %v1513 = vand.u32 %v1512, 4294901760
    %1514 = vmatprep.subr.mxu0 %v1513
    %v1515 = vand.u32 %v123, 4294901760
    %v1516 = vsub.f32 %v123, %v1515
    %v1517 = vand.u32 %v1516, 4294901760
    %1518 = vmatpush1.msra.mxu0 %v1517
    %v1519 = vand.u32 %v128, 4294901760
    %v1520 = vsub.f32 %v128, %v1519
    %v1521 = vand.u32 %v1520, 4294901760
    %1522 = vmatprep.subr.mxu0 %v1521
    %v1523 = vand.u32 %v127, 4294901760
    %v1524 = vsub.f32 %v127, %v1523
    %v1525 = vand.u32 %v1524, 4294901760
    %1526 = vmatpush1.msra.mxu0 %v1525
    %v1527 = vand.u32 %v132, 4294901760
    %v1528 = vsub.f32 %v132, %v1527
    %v1529 = vand.u32 %v1528, 4294901760
    %1530 = vmatprep.subr.mxu0 %v1529
    %v1531 = vand.u32 %v131, 4294901760
    %v1532 = vsub.f32 %v131, %v1531
    %v1533 = vand.u32 %v1532, 4294901760
    %1534 = vmatpush1.msra.mxu0 %v1533
    %v1535 = vand.u32 %v136, 4294901760
    %v1536 = vsub.f32 %v136, %v1535
    %v1537 = vand.u32 %v1536, 4294901760
    %1538 = vmatprep.subr.mxu0 %v1537
    %v1539 = vand.u32 %v135, 4294901760
    %v1540 = vsub.f32 %v135, %v1539
    %v1541 = vand.u32 %v1540, 4294901760
    %1542 = vmatpush1.msra.mxu0 %v1541
    %v1543 = vand.u32 %v140, 4294901760
    %v1544 = vsub.f32 %v140, %v1543
    %v1545 = vand.u32 %v1544, 4294901760
    %1546 = vmatprep.subr.mxu0 %v1545
    %v1547 = vand.u32 %v139, 4294901760
    %v1548 = vsub.f32 %v139, %v1547
    %v1549 = vand.u32 %v1548, 4294901760
    %1550 = vmatpush1.msra.mxu0 %v1549
    %v1551 = vand.u32 %v144, 4294901760
    %v1552 = vsub.f32 %v144, %v1551
    %v1553 = vand.u32 %v1552, 4294901760
    %1554 = vmatprep.subr.mxu0 %v1553
    %v1555 = vand.u32 %v143, 4294901760
    %v1556 = vsub.f32 %v143, %v1555
    %v1557 = vand.u32 %v1556, 4294901760
    %1558 = vmatpush1.msra.mxu0 %v1557
    %1559 = vmatprep.subr.mxu0 0.0
    %1560 = vmatpush1.msra.mxu0 0.0
    %1561 = vmatprep.subr.mxu0 0.0
    %1562 = vmatpush1.msra.mxu0 0.0
    %1563 = vmatprep.subr.mxu0 0.0
    %1564 = vmatpush1.msra.mxu0 0.0
    %1565 = vmatprep.subr.mxu0 0.0
    %1566 = vmatpush1.msra.mxu0 0.0
    %1567 = vmatprep.subr.mxu0 0.0
    %1568 = vmatpush1.msra.mxu0 0.0
    %1569 = vmatprep.subr.mxu0 0.0
    %1570 = vmatpush1.msra.mxu0 0.0
    %1571 = vmatprep.subr.mxu0 0.0
    %1572 = vmatpush1.msra.mxu0 0.0
    %1573 = vmatprep.subr.mxu0 0.0
    %1574 = vmatpush1.msra.mxu0 0.0
    %1575 = vmatprep.subr.mxu0 0.0
    %1576 = vmatpush1.msra.mxu0 0.0
    %1577 = vmatprep.subr.mxu0 0.0
    %1578 = vmatpush1.msra.mxu0 0.0
    %1579 = vmatprep.subr.mxu0 0.0
    %1580 = vmatpush1.msra.mxu0 0.0
    %1581 = vmatprep.subr.mxu0 0.0
    %1582 = vmatpush1.msra.mxu0 0.0
    %1583 = vmatprep.subr.mxu0 0.0
    %1584 = vmatpush1.msra.mxu0 0.0
    %1585 = vmatprep.subr.mxu0 0.0
    %1586 = vmatpush1.msra.mxu0 0.0
    %1587 = vmatprep.subr.mxu0 0.0
    %1588 = vmatpush1.msra.mxu0 0.0
    %1589 = vmatprep.subr.mxu0 0.0
    %1590 = vmatpush1.msra.mxu0 0.0
    %1591 = vmatprep.subr.mxu0 0.0
    %1592 = vmatpush1.msra.mxu0 0.0
    %1593 = vmatprep.subr.mxu0 0.0
    %1594 = vmatpush1.msra.mxu0 0.0
    %1595 = vmatprep.subr.mxu0 0.0
    %1596 = vmatpush1.msra.mxu0 0.0
    %1597 = vmatprep.subr.mxu0 0.0
    %1598 = vmatpush1.msra.mxu0 0.0
    %1599 = vmatprep.subr.mxu0 0.0
    %1600 = vmatpush1.msra.mxu0 0.0
    %1601 = vmatprep.subr.mxu0 0.0
    %1602 = vmatpush1.msra.mxu0 0.0
    %1603 = vmatprep.subr.mxu0 0.0
    %1604 = vmatpush1.msra.mxu0 0.0
    %1605 = vmatprep.subr.mxu0 0.0
    %1606 = vmatpush1.msra.mxu0 0.0
    %1607 = vmatprep.mubr.f32.mxu0 0.0
    %v1608 = vand.u32 %v146, 4294901760
    %1609 = vmatmul.mubr.f32.gmra.mrb[0].mxu0 %v1608
    %v1610 = vpop.f32.mrb[0].mxu0
    %v1611 = vadd.f32 %v1464, %v1610
    %v1612 = vpop.f32.mrb[0].mxu0
    %v1613 = vadd.f32 %v1466, %v1612
    %1614 = vmatprep.mubr.f32.mxu0 0.0
    %v1615 = vand.u32 %v149, 4294901760
    %1616 = vmatmul.mubr.f32.gmra.mrb[0].mxu0 %v1615
    %v1617 = vpop.f32.mrb[0].mxu0
    %v1618 = vadd.f32 %v1473, %v1617
    %v1619 = vpop.f32.mrb[0].mxu0
    %v1620 = vadd.f32 %v1475, %v1619
    %1621 = vmatprep.mubr.f32.mxu0 0.0
    %v1622 = vand.u32 %v152, 4294901760
    %1623 = vmatmul.mubr.f32.gmra.mrb[0].mxu0 %v1622
    %v1624 = vpop.f32.mrb[0].mxu0
    %v1625 = vadd.f32 %v1482, %v1624
    %v1626 = vpop.f32.mrb[0].mxu0
    %v1627 = vadd.f32 %v1484, %v1626
    %1628 = vmatprep.mubr.f32.mxu0 0.0
    %v1629 = vand.u32 %v155, 4294901760
    %1630 = vmatmul.mubr.f32.gmra.mrb[0].mxu0 %v1629
    %v1631 = vpop.f32.mrb[0].mxu0
    %v1632 = vadd.f32 %v1491, %v1631
    %v1633 = vpop.f32.mrb[0].mxu0
    %v1634 = vadd.f32 %v1493, %v1633
    %1635 = vdwg.mxu0
    %v1636 = vand.u32 %v116, 4294901760
    %1637 = vmatprep.subr.mxu0 %v1636
    %v1638 = vand.u32 %v115, 4294901760
    %1639 = vmatpush1.msra.mxu0 %v1638
    %v1640 = vand.u32 %v120, 4294901760
    %1641 = vmatprep.subr.mxu0 %v1640
    %v1642 = vand.u32 %v119, 4294901760
    %1643 = vmatpush1.msra.mxu0 %v1642
    %v1644 = vand.u32 %v124, 4294901760
    %1645 = vmatprep.subr.mxu0 %v1644
    %v1646 = vand.u32 %v123, 4294901760
    %1647 = vmatpush1.msra.mxu0 %v1646
    %v1648 = vand.u32 %v128, 4294901760
    %1649 = vmatprep.subr.mxu0 %v1648
    %v1650 = vand.u32 %v127, 4294901760
    %1651 = vmatpush1.msra.mxu0 %v1650
    %v1652 = vand.u32 %v132, 4294901760
    %1653 = vmatprep.subr.mxu0 %v1652
    %v1654 = vand.u32 %v131, 4294901760
    %1655 = vmatpush1.msra.mxu0 %v1654
    %v1656 = vand.u32 %v136, 4294901760
    %1657 = vmatprep.subr.mxu0 %v1656
    %v1658 = vand.u32 %v135, 4294901760
    %1659 = vmatpush1.msra.mxu0 %v1658
    %v1660 = vand.u32 %v140, 4294901760
    %1661 = vmatprep.subr.mxu0 %v1660
    %v1662 = vand.u32 %v139, 4294901760
    %1663 = vmatpush1.msra.mxu0 %v1662
    %v1664 = vand.u32 %v144, 4294901760
    %1665 = vmatprep.subr.mxu0 %v1664
    %v1666 = vand.u32 %v143, 4294901760
    %1667 = vmatpush1.msra.mxu0 %v1666
    %1668 = vmatprep.subr.mxu0 0.0
    %1669 = vmatpush1.msra.mxu0 0.0
    %1670 = vmatprep.subr.mxu0 0.0
    %1671 = vmatpush1.msra.mxu0 0.0
    %1672 = vmatprep.subr.mxu0 0.0
    %1673 = vmatpush1.msra.mxu0 0.0
    %1674 = vmatprep.subr.mxu0 0.0
    %1675 = vmatpush1.msra.mxu0 0.0
    %1676 = vmatprep.subr.mxu0 0.0
    %1677 = vmatpush1.msra.mxu0 0.0
    %1678 = vmatprep.subr.mxu0 0.0
    %1679 = vmatpush1.msra.mxu0 0.0
    %1680 = vmatprep.subr.mxu0 0.0
    %1681 = vmatpush1.msra.mxu0 0.0
    %1682 = vmatprep.subr.mxu0 0.0
    %1683 = vmatpush1.msra.mxu0 0.0
    %1684 = vmatprep.subr.mxu0 0.0
    %1685 = vmatpush1.msra.mxu0 0.0
    %1686 = vmatprep.subr.mxu0 0.0
    %1687 = vmatpush1.msra.mxu0 0.0
    %1688 = vmatprep.subr.mxu0 0.0
    %1689 = vmatpush1.msra.mxu0 0.0
    %1690 = vmatprep.subr.mxu0 0.0
    %1691 = vmatpush1.msra.mxu0 0.0
    %1692 = vmatprep.subr.mxu0 0.0
    %1693 = vmatpush1.msra.mxu0 0.0
    %1694 = vmatprep.subr.mxu0 0.0
    %1695 = vmatpush1.msra.mxu0 0.0
    %1696 = vmatprep.subr.mxu0 0.0
    %1697 = vmatpush1.msra.mxu0 0.0
    %1698 = vmatprep.subr.mxu0 0.0
    %1699 = vmatpush1.msra.mxu0 0.0
    %1700 = vmatprep.subr.mxu0 0.0
    %1701 = vmatpush1.msra.mxu0 0.0
    %1702 = vmatprep.subr.mxu0 0.0
    %1703 = vmatpush1.msra.mxu0 0.0
    %1704 = vmatprep.subr.mxu0 0.0
    %1705 = vmatpush1.msra.mxu0 0.0
    %1706 = vmatprep.subr.mxu0 0.0
    %1707 = vmatpush1.msra.mxu0 0.0
    %1708 = vmatprep.subr.mxu0 0.0
    %1709 = vmatpush1.msra.mxu0 0.0
    %1710 = vmatprep.subr.mxu0 0.0
    %1711 = vmatpush1.msra.mxu0 0.0
    %1712 = vmatprep.subr.mxu0 0.0
    %1713 = vmatpush1.msra.mxu0 0.0
    %1714 = vmatprep.subr.mxu0 0.0
    %1715 = vmatpush1.msra.mxu0 0.0
    %1716 = vmatprep.mubr.f32.mxu0 0.0
    %v1717 = vand.u32 %v146, 4294901760
    %1718 = vmatmul.mubr.f32.gmra.mrb[0].mxu0 %v1717
    %v1719 = vpop.f32.mrb[0].mxu0
    %v1720 = vadd.f32 %v1611, %v1719
    %v1721 = vpop.f32.mrb[0].mxu0
    %v1722 = vadd.f32 %v1613, %v1721
    %1723 = vmatprep.mubr.f32.mxu0 0.0
    %v1724 = vand.u32 %v149, 4294901760
    %1725 = vmatmul.mubr.f32.gmra.mrb[0].mxu0 %v1724
    %v1726 = vpop.f32.mrb[0].mxu0
    %v1727 = vadd.f32 %v1618, %v1726
    %v1728 = vpop.f32.mrb[0].mxu0
    %v1729 = vadd.f32 %v1620, %v1728
    %1730 = vmatprep.mubr.f32.mxu0 0.0
    %v1731 = vand.u32 %v152, 4294901760
    %1732 = vmatmul.mubr.f32.gmra.mrb[0].mxu0 %v1731
    %v1733 = vpop.f32.mrb[0].mxu0
    %v1734 = vadd.f32 %v1625, %v1733
    %v1735 = vpop.f32.mrb[0].mxu0
    %v1736 = vadd.f32 %v1627, %v1735
    %1737 = vmatprep.mubr.f32.mxu0 0.0
    %v1738 = vand.u32 %v155, 4294901760
    %1739 = vmatmul.mubr.f32.gmra.mrb[0].mxu0 %v1738
    %v1740 = vpop.f32.mrb[0].mxu0
    %v1741 = vadd.f32 %v1632, %v1740
    %v1742 = vpop.f32.mrb[0].mxu0
    %v1743 = vadd.f32 %v1634, %v1742
    %1744 = vdwg.mxu0
    %v1745 = vld [vmem:[#allocation2 + $0x2] sm:$0xff]
    %v1746 = vld [vmem:[#allocation2 + $0xa] sm:$0xff]
    %v1747 = vld [vmem:[#allocation2 + $0x1a] sm:$0xff]
    %v1748 = vld [vmem:[#allocation2 + $0x22] sm:$0xff]
    %s1749 = scalar_lea.vmem [#allocation6], 512
    %v1750 = vld [vmem:[%s1749] sm:$0xff]
    %v1751 = vld [vmem:[%s1749 + $0x8] sm:$0xff]
    %v1752 = vld [vmem:[%s1749 + $0x10] sm:$0xff]
    %v1753 = vld [vmem:[%s1749 + $0x18] sm:$0xff]
    %v1754 = vld [vmem:[%s1749 + $0x20] sm:$0xff]
    %v1755 = vld [vmem:[%s1749 + $0x28] sm:$0xff]
    %v1756 = vld [vmem:[%s1749 + $0x30] sm:$0xff]
    %v1757 = vld [vmem:[%s1749 + $0x38] sm:$0xff]
    %v1758 = vld [vmem:[%s1749 + $0x40] sm:$0xff]
    %v1759 = vld [vmem:[%s1749 + $0x48] sm:$0xff]
    %v1760 = vld [vmem:[%s1749 + $0x50] sm:$0xff]
    %v1761 = vld [vmem:[%s1749 + $0x58] sm:$0xff]
    %v1762 = vld [vmem:[%s1749 + $0x60] sm:$0xff]
    %v1763 = vld [vmem:[%s1749 + $0x68] sm:$0xff]
    %v1764 = vld [vmem:[%s1749 + $0x70] sm:$0xff]
    %v1765 = vld [vmem:[%s1749 + $0x78] sm:$0xff]
    %v1766 = vld [vmem:[%s1749 + $0x80] sm:$0xff]
    %v1767 = vld [vmem:[%s1749 + $0x88] sm:$0xff]
    %v1768 = vld [vmem:[%s1749 + $0x90] sm:$0xff]
    %v1769 = vld [vmem:[%s1749 + $0x98] sm:$0xff]
    %v1770 = vld [vmem:[%s1749 + $0xa0] sm:$0xff]
    %v1771 = vld [vmem:[%s1749 + $0xa8] sm:$0xff]
    %v1772 = vld [vmem:[%s1749 + $0xb0] sm:$0xff]
    %v1773 = vld [vmem:[%s1749 + $0xb8] sm:$0xff]
    %v1774 = vld [vmem:[%s1749 + $0xc0] sm:$0xff]
    %v1775 = vld [vmem:[%s1749 + $0xc8] sm:$0xff]
    %v1776 = vld [vmem:[%s1749 + $0xd0] sm:$0xff]
    %v1777 = vld [vmem:[%s1749 + $0xd8] sm:$0xff]
    %v1778 = vld [vmem:[%s1749 + $0xe0] sm:$0xff]
    %v1779 = vld [vmem:[%s1749 + $0xe8] sm:$0xff]
    %v1780 = vld [vmem:[%s1749 + $0xf0] sm:$0xff]
    %v1781 = vld [vmem:[%s1749 + $0xf8] sm:$0xff]
    %v1783 = vsel %vm56, %v1745, 0
    %v1786 = vsel %vm56, %v1746, 0
    %v1789 = vsel %vm56, %v1747, 0
    %v1792 = vsel %vm56, %v1748, 0
    %v1794 = vand.u32 %v1751, 4294901760
    %1795 = vmatprep.subr.mxu0 %v1794
    %v1796 = vand.u32 %v1750, 4294901760
    %1797 = vmatpush1.msra.mxu0 %v1796
    %v1798 = vand.u32 %v1755, 4294901760
    %1799 = vmatprep.subr.mxu0 %v1798
    %v1800 = vand.u32 %v1754, 4294901760
    %1801 = vmatpush1.msra.mxu0 %v1800
    %v1802 = vand.u32 %v1759, 4294901760
    %1803 = vmatprep.subr.mxu0 %v1802
    %v1804 = vand.u32 %v1758, 4294901760
    %1805 = vmatpush1.msra.mxu0 %v1804
    %v1806 = vand.u32 %v1763, 4294901760
    %1807 = vmatprep.subr.mxu0 %v1806
    %v1808 = vand.u32 %v1762, 4294901760
    %1809 = vmatpush1.msra.mxu0 %v1808
    %v1810 = vand.u32 %v1767, 4294901760
    %1811 = vmatprep.subr.mxu0 %v1810
    %v1812 = vand.u32 %v1766, 4294901760
    %1813 = vmatpush1.msra.mxu0 %v1812
    %v1814 = vand.u32 %v1771, 4294901760
    %1815 = vmatprep.subr.mxu0 %v1814
    %v1816 = vand.u32 %v1770, 4294901760
    %1817 = vmatpush1.msra.mxu0 %v1816
    %v1818 = vand.u32 %v1775, 4294901760
    %1819 = vmatprep.subr.mxu0 %v1818
    %v1820 = vand.u32 %v1774, 4294901760
    %1821 = vmatpush1.msra.mxu0 %v1820
    %v1822 = vand.u32 %v1779, 4294901760
    %1823 = vmatprep.subr.mxu0 %v1822
    %v1824 = vand.u32 %v1778, 4294901760
    %1825 = vmatpush1.msra.mxu0 %v1824
    %1826 = vmatprep.subr.mxu0 0.0
    %1827 = vmatpush1.msra.mxu0 0.0
    %1828 = vmatprep.subr.mxu0 0.0
    %1829 = vmatpush1.msra.mxu0 0.0
    %1830 = vmatprep.subr.mxu0 0.0
    %1831 = vmatpush1.msra.mxu0 0.0
    %1832 = vmatprep.subr.mxu0 0.0
    %1833 = vmatpush1.msra.mxu0 0.0
    %1834 = vmatprep.subr.mxu0 0.0
    %1835 = vmatpush1.msra.mxu0 0.0
    %1836 = vmatprep.subr.mxu0 0.0
    %1837 = vmatpush1.msra.mxu0 0.0
    %1838 = vmatprep.subr.mxu0 0.0
    %1839 = vmatpush1.msra.mxu0 0.0
    %1840 = vmatprep.subr.mxu0 0.0
    %1841 = vmatpush1.msra.mxu0 0.0
    %1842 = vmatprep.subr.mxu0 0.0
    %1843 = vmatpush1.msra.mxu0 0.0
    %1844 = vmatprep.subr.mxu0 0.0
    %1845 = vmatpush1.msra.mxu0 0.0
    %1846 = vmatprep.subr.mxu0 0.0
    %1847 = vmatpush1.msra.mxu0 0.0
    %1848 = vmatprep.subr.mxu0 0.0
    %1849 = vmatpush1.msra.mxu0 0.0
    %1850 = vmatprep.subr.mxu0 0.0
    %1851 = vmatpush1.msra.mxu0 0.0
    %1852 = vmatprep.subr.mxu0 0.0
    %1853 = vmatpush1.msra.mxu0 0.0
    %1854 = vmatprep.subr.mxu0 0.0
    %1855 = vmatpush1.msra.mxu0 0.0
    %1856 = vmatprep.subr.mxu0 0.0
    %1857 = vmatpush1.msra.mxu0 0.0
    %1858 = vmatprep.subr.mxu0 0.0
    %1859 = vmatpush1.msra.mxu0 0.0
    %1860 = vmatprep.subr.mxu0 0.0
    %1861 = vmatpush1.msra.mxu0 0.0
    %1862 = vmatprep.subr.mxu0 0.0
    %1863 = vmatpush1.msra.mxu0 0.0
    %1864 = vmatprep.subr.mxu0 0.0
    %1865 = vmatpush1.msra.mxu0 0.0
    %1866 = vmatprep.subr.mxu0 0.0
    %1867 = vmatpush1.msra.mxu0 0.0
    %1868 = vmatprep.subr.mxu0 0.0
    %1869 = vmatpush1.msra.mxu0 0.0
    %1870 = vmatprep.subr.mxu0 0.0
    %1871 = vmatpush1.msra.mxu0 0.0
    %1872 = vmatprep.subr.mxu0 0.0
    %1873 = vmatpush1.msra.mxu0 0.0
    %1874 = vmatprep.mubr.f32.mxu0 0.0
    %v1875 = vand.u32 %v1783, 4294901760
    %v1876 = vsub.f32 %v1783, %v1875
    %v1877 = vand.u32 %v1876, 4294901760
    %v1878 = vsub.f32 %v1876, %v1877
    %v1879 = vand.u32 %v1878, 4294901760
    %1880 = vmatmul.mubr.f32.gmra.mrb[0].mxu0 %v1879
    %v1881 = vpop.f32.mrb[0].mxu0
    %v1882 = vadd.f32 0.0, %v1881
    %v1883 = vpop.f32.mrb[0].mxu0
    %v1884 = vadd.f32 0.0, %v1883
    %1885 = vmatprep.mubr.f32.mxu0 0.0
    %v1886 = vand.u32 %v1786, 4294901760
    %v1887 = vsub.f32 %v1786, %v1886
    %v1888 = vand.u32 %v1887, 4294901760
    %v1889 = vsub.f32 %v1887, %v1888
    %v1890 = vand.u32 %v1889, 4294901760
    %1891 = vmatmul.mubr.f32.gmra.mrb[0].mxu0 %v1890
    %v1892 = vpop.f32.mrb[0].mxu0
    %v1893 = vadd.f32 0.0, %v1892
    %v1894 = vpop.f32.mrb[0].mxu0
    %v1895 = vadd.f32 0.0, %v1894
    %1896 = vmatprep.mubr.f32.mxu0 0.0
    %v1897 = vand.u32 %v1789, 4294901760
    %v1898 = vsub.f32 %v1789, %v1897
    %v1899 = vand.u32 %v1898, 4294901760
    %v1900 = vsub.f32 %v1898, %v1899
    %v1901 = vand.u32 %v1900, 4294901760
    %1902 = vmatmul.mubr.f32.gmra.mrb[0].mxu0 %v1901
    %v1903 = vpop.f32.mrb[0].mxu0
    %v1904 = vadd.f32 0.0, %v1903
    %v1905 = vpop.f32.mrb[0].mxu0
    %v1906 = vadd.f32 0.0, %v1905
    %1907 = vmatprep.mubr.f32.mxu0 0.0
    %v1908 = vand.u32 %v1792, 4294901760
    %v1909 = vsub.f32 %v1792, %v1908
    %v1910 = vand.u32 %v1909, 4294901760
    %v1911 = vsub.f32 %v1909, %v1910
    %v1912 = vand.u32 %v1911, 4294901760
    %1913 = vmatmul.mubr.f32.gmra.mrb[0].mxu0 %v1912
    %v1914 = vpop.f32.mrb[0].mxu0
    %v1915 = vadd.f32 0.0, %v1914
    %v1916 = vpop.f32.mrb[0].mxu0
    %v1917 = vadd.f32 0.0, %v1916
    %1918 = vdwg.mxu0
    %v1919 = vand.u32 %v1751, 4294901760
    %v1920 = vsub.f32 %v1751, %v1919
    %v1921 = vand.u32 %v1920, 4294901760
    %v1922 = vsub.f32 %v1920, %v1921
    %v1923 = vand.u32 %v1922, 4294901760
    %1924 = vmatprep.subr.mxu0 %v1923
    %v1925 = vand.u32 %v1750, 4294901760
    %v1926 = vsub.f32 %v1750, %v1925
    %v1927 = vand.u32 %v1926, 4294901760
    %v1928 = vsub.f32 %v1926, %v1927
    %v1929 = vand.u32 %v1928, 4294901760
    %1930 = vmatpush1.msra.mxu0 %v1929
    %v1931 = vand.u32 %v1755, 4294901760
    %v1932 = vsub.f32 %v1755, %v1931
    %v1933 = vand.u32 %v1932, 4294901760
    %v1934 = vsub.f32 %v1932, %v1933
    %v1935 = vand.u32 %v1934, 4294901760
    %1936 = vmatprep.subr.mxu0 %v1935
    %v1937 = vand.u32 %v1754, 4294901760
    %v1938 = vsub.f32 %v1754, %v1937
    %v1939 = vand.u32 %v1938, 4294901760
    %v1940 = vsub.f32 %v1938, %v1939
    %v1941 = vand.u32 %v1940, 4294901760
    %1942 = vmatpush1.msra.mxu0 %v1941
    %v1943 = vand.u32 %v1759, 4294901760
    %v1944 = vsub.f32 %v1759, %v1943
    %v1945 = vand.u32 %v1944, 4294901760
    %v1946 = vsub.f32 %v1944, %v1945
    %v1947 = vand.u32 %v1946, 4294901760
    %1948 = vmatprep.subr.mxu0 %v1947
    %v1949 = vand.u32 %v1758, 4294901760
    %v1950 = vsub.f32 %v1758, %v1949
    %v1951 = vand.u32 %v1950, 4294901760
    %v1952 = vsub.f32 %v1950, %v1951
    %v1953 = vand.u32 %v1952, 4294901760
    %1954 = vmatpush1.msra.mxu0 %v1953
    %v1955 = vand.u32 %v1763, 4294901760
    %v1956 = vsub.f32 %v1763, %v1955
    %v1957 = vand.u32 %v1956, 4294901760
    %v1958 = vsub.f32 %v1956, %v1957
    %v1959 = vand.u32 %v1958, 4294901760
    %1960 = vmatprep.subr.mxu0 %v1959
    %v1961 = vand.u32 %v1762, 4294901760
    %v1962 = vsub.f32 %v1762, %v1961
    %v1963 = vand.u32 %v1962, 4294901760
    %v1964 = vsub.f32 %v1962, %v1963
    %v1965 = vand.u32 %v1964, 4294901760
    %1966 = vmatpush1.msra.mxu0 %v1965
    %v1967 = vand.u32 %v1767, 4294901760
    %v1968 = vsub.f32 %v1767, %v1967
    %v1969 = vand.u32 %v1968, 4294901760
    %v1970 = vsub.f32 %v1968, %v1969
    %v1971 = vand.u32 %v1970, 4294901760
    %1972 = vmatprep.subr.mxu0 %v1971
    %v1973 = vand.u32 %v1766, 4294901760
    %v1974 = vsub.f32 %v1766, %v1973
    %v1975 = vand.u32 %v1974, 4294901760
    %v1976 = vsub.f32 %v1974, %v1975
    %v1977 = vand.u32 %v1976, 4294901760
    %1978 = vmatpush1.msra.mxu0 %v1977
    %v1979 = vand.u32 %v1771, 4294901760
    %v1980 = vsub.f32 %v1771, %v1979
    %v1981 = vand.u32 %v1980, 4294901760
    %v1982 = vsub.f32 %v1980, %v1981
    %v1983 = vand.u32 %v1982, 4294901760
    %1984 = vmatprep.subr.mxu0 %v1983
    %v1985 = vand.u32 %v1770, 4294901760
    %v1986 = vsub.f32 %v1770, %v1985
    %v1987 = vand.u32 %v1986, 4294901760
    %v1988 = vsub.f32 %v1986, %v1987
    %v1989 = vand.u32 %v1988, 4294901760
    %1990 = vmatpush1.msra.mxu0 %v1989
    %v1991 = vand.u32 %v1775, 4294901760
    %v1992 = vsub.f32 %v1775, %v1991
    %v1993 = vand.u32 %v1992, 4294901760
    %v1994 = vsub.f32 %v1992, %v1993
    %v1995 = vand.u32 %v1994, 4294901760
    %1996 = vmatprep.subr.mxu0 %v1995
    %v1997 = vand.u32 %v1774, 4294901760
    %v1998 = vsub.f32 %v1774, %v1997
    %v1999 = vand.u32 %v1998, 4294901760
    %v2000 = vsub.f32 %v1998, %v1999
    %v2001 = vand.u32 %v2000, 4294901760
    %2002 = vmatpush1.msra.mxu0 %v2001
    %v2003 = vand.u32 %v1779, 4294901760
    %v2004 = vsub.f32 %v1779, %v2003
    %v2005 = vand.u32 %v2004, 4294901760
    %v2006 = vsub.f32 %v2004, %v2005
    %v2007 = vand.u32 %v2006, 4294901760
    %2008 = vmatprep.subr.mxu0 %v2007
    %v2009 = vand.u32 %v1778, 4294901760
    %v2010 = vsub.f32 %v1778, %v2009
    %v2011 = vand.u32 %v2010, 4294901760
    %v2012 = vsub.f32 %v2010, %v2011
    %v2013 = vand.u32 %v2012, 4294901760
    %2014 = vmatpush1.msra.mxu0 %v2013
    %2015 = vmatprep.subr.mxu0 0.0
    %2016 = vmatpush1.msra.mxu0 0.0
    %2017 = vmatprep.subr.mxu0 0.0
    %2018 = vmatpush1.msra.mxu0 0.0
    %2019 = vmatprep.subr.mxu0 0.0
    %2020 = vmatpush1.msra.mxu0 0.0
    %2021 = vmatprep.subr.mxu0 0.0
    %2022 = vmatpush1.msra.mxu0 0.0
    %2023 = vmatprep.subr.mxu0 0.0
    %2024 = vmatpush1.msra.mxu0 0.0
    %2025 = vmatprep.subr.mxu0 0.0
    %2026 = vmatpush1.msra.mxu0 0.0
    %2027 = vmatprep.subr.mxu0 0.0
    %2028 = vmatpush1.msra.mxu0 0.0
    %2029 = vmatprep.subr.mxu0 0.0
    %2030 = vmatpush1.msra.mxu0 0.0
    %2031 = vmatprep.subr.mxu0 0.0
    %2032 = vmatpush1.msra.mxu0 0.0
    %2033 = vmatprep.subr.mxu0 0.0
    %2034 = vmatpush1.msra.mxu0 0.0
    %2035 = vmatprep.subr.mxu0 0.0
    %2036 = vmatpush1.msra.mxu0 0.0
    %2037 = vmatprep.subr.mxu0 0.0
    %2038 = vmatpush1.msra.mxu0 0.0
    %2039 = vmatprep.subr.mxu0 0.0
    %2040 = vmatpush1.msra.mxu0 0.0
    %2041 = vmatprep.subr.mxu0 0.0
    %2042 = vmatpush1.msra.mxu0 0.0
    %2043 = vmatprep.subr.mxu0 0.0
    %2044 = vmatpush1.msra.mxu0 0.0
    %2045 = vmatprep.subr.mxu0 0.0
    %2046 = vmatpush1.msra.mxu0 0.0
    %2047 = vmatprep.subr.mxu0 0.0
    %2048 = vmatpush1.msra.mxu0 0.0
    %2049 = vmatprep.subr.mxu0 0.0
    %2050 = vmatpush1.msra.mxu0 0.0
    %2051 = vmatprep.subr.mxu0 0.0
    %2052 = vmatpush1.msra.mxu0 0.0
    %2053 = vmatprep.subr.mxu0 0.0
    %2054 = vmatpush1.msra.mxu0 0.0
    %2055 = vmatprep.subr.mxu0 0.0
    %2056 = vmatpush1.msra.mxu0 0.0
    %2057 = vmatprep.subr.mxu0 0.0
    %2058 = vmatpush1.msra.mxu0 0.0
    %2059 = vmatprep.subr.mxu0 0.0
    %2060 = vmatpush1.msra.mxu0 0.0
    %2061 = vmatprep.subr.mxu0 0.0
    %2062 = vmatpush1.msra.mxu0 0.0
    %2063 = vmatprep.mubr.f32.mxu0 0.0
    %v2064 = vand.u32 %v1783, 4294901760
    %2065 = vmatmul.mubr.f32.gmra.mrb[0].mxu0 %v2064
    %v2066 = vpop.f32.mrb[0].mxu0
    %v2067 = vadd.f32 %v1882, %v2066
    %v2068 = vpop.f32.mrb[0].mxu0
    %v2069 = vadd.f32 %v1884, %v2068
    %2070 = vmatprep.mubr.f32.mxu0 0.0
    %v2071 = vand.u32 %v1786, 4294901760
    %2072 = vmatmul.mubr.f32.gmra.mrb[0].mxu0 %v2071
    %v2073 = vpop.f32.mrb[0].mxu0
    %v2074 = vadd.f32 %v1893, %v2073
    %v2075 = vpop.f32.mrb[0].mxu0
    %v2076 = vadd.f32 %v1895, %v2075
    %2077 = vmatprep.mubr.f32.mxu0 0.0
    %v2078 = vand.u32 %v1789, 4294901760
    %2079 = vmatmul.mubr.f32.gmra.mrb[0].mxu0 %v2078
    %v2080 = vpop.f32.mrb[0].mxu0
    %v2081 = vadd.f32 %v1904, %v2080
    %v2082 = vpop.f32.mrb[0].mxu0
    %v2083 = vadd.f32 %v1906, %v2082
    %2084 = vmatprep.mubr.f32.mxu0 0.0
    %v2085 = vand.u32 %v1792, 4294901760
    %2086 = vmatmul.mubr.f32.gmra.mrb[0].mxu0 %v2085
    %v2087 = vpop.f32.mrb[0].mxu0
    %v2088 = vadd.f32 %v1915, %v2087
    %v2089 = vpop.f32.mrb[0].mxu0
    %v2090 = vadd.f32 %v1917, %v2089
    %2091 = vdwg.mxu0
    %v2092 = vand.u32 %v1751, 4294901760
    %v2093 = vsub.f32 %v1751, %v2092
    %2094 = vmatprep.subr.mxu0 %v2093
    %v2095 = vand.u32 %v1750, 4294901760
    %v2096 = vsub.f32 %v1750, %v2095
    %2097 = vmatpush1.msra.mxu0 %v2096
    %v2098 = vand.u32 %v1755, 4294901760
    %v2099 = vsub.f32 %v1755, %v2098
    %2100 = vmatprep.subr.mxu0 %v2099
    %v2101 = vand.u32 %v1754, 4294901760
    %v2102 = vsub.f32 %v1754, %v2101
    %2103 = vmatpush1.msra.mxu0 %v2102
    %v2104 = vand.u32 %v1759, 4294901760
    %v2105 = vsub.f32 %v1759, %v2104
    %2106 = vmatprep.subr.mxu0 %v2105
    %v2107 = vand.u32 %v1758, 4294901760
    %v2108 = vsub.f32 %v1758, %v2107
    %2109 = vmatpush1.msra.mxu0 %v2108
    %v2110 = vand.u32 %v1763, 4294901760
    %v2111 = vsub.f32 %v1763, %v2110
    %2112 = vmatprep.subr.mxu0 %v2111
    %v2113 = vand.u32 %v1762, 4294901760
    %v2114 = vsub.f32 %v1762, %v2113
    %2115 = vmatpush1.msra.mxu0 %v2114
    %v2116 = vand.u32 %v1767, 4294901760
    %v2117 = vsub.f32 %v1767, %v2116
    %2118 = vmatprep.subr.mxu0 %v2117
    %v2119 = vand.u32 %v1766, 4294901760
    %v2120 = vsub.f32 %v1766, %v2119
    %2121 = vmatpush1.msra.mxu0 %v2120
    %v2122 = vand.u32 %v1771, 4294901760
    %v2123 = vsub.f32 %v1771, %v2122
    %2124 = vmatprep.subr.mxu0 %v2123
    %v2125 = vand.u32 %v1770, 4294901760
    %v2126 = vsub.f32 %v1770, %v2125
    %2127 = vmatpush1.msra.mxu0 %v2126
    %v2128 = vand.u32 %v1775, 4294901760
    %v2129 = vsub.f32 %v1775, %v2128
    %2130 = vmatprep.subr.mxu0 %v2129
    %v2131 = vand.u32 %v1774, 4294901760
    %v2132 = vsub.f32 %v1774, %v2131
    %2133 = vmatpush1.msra.mxu0 %v2132
    %v2134 = vand.u32 %v1779, 4294901760
    %v2135 = vsub.f32 %v1779, %v2134
    %2136 = vmatprep.subr.mxu0 %v2135
    %v2137 = vand.u32 %v1778, 4294901760
    %v2138 = vsub.f32 %v1778, %v2137
    %2139 = vmatpush1.msra.mxu0 %v2138
    %2140 = vmatprep.subr.mxu0 0.0
    %2141 = vmatpush1.msra.mxu0 0.0
    %2142 = vmatprep.subr.mxu0 0.0
    %2143 = vmatpush1.msra.mxu0 0.0
    %2144 = vmatprep.subr.mxu0 0.0
    %2145 = vmatpush1.msra.mxu0 0.0
    %2146 = vmatprep.subr.mxu0 0.0
    %2147 = vmatpush1.msra.mxu0 0.0
    %2148 = vmatprep.subr.mxu0 0.0
    %2149 = vmatpush1.msra.mxu0 0.0
    %2150 = vmatprep.subr.mxu0 0.0
    %2151 = vmatpush1.msra.mxu0 0.0
    %2152 = vmatprep.subr.mxu0 0.0
    %2153 = vmatpush1.msra.mxu0 0.0
    %2154 = vmatprep.subr.mxu0 0.0
    %2155 = vmatpush1.msra.mxu0 0.0
    %2156 = vmatprep.subr.mxu0 0.0
    %2157 = vmatpush1.msra.mxu0 0.0
    %2158 = vmatprep.subr.mxu0 0.0
    %2159 = vmatpush1.msra.mxu0 0.0
    %2160 = vmatprep.subr.mxu0 0.0
    %2161 = vmatpush1.msra.mxu0 0.0
    %2162 = vmatprep.subr.mxu0 0.0
    %2163 = vmatpush1.msra.mxu0 0.0
    %2164 = vmatprep.subr.mxu0 0.0
    %2165 = vmatpush1.msra.mxu0 0.0
    %2166 = vmatprep.subr.mxu0 0.0
    %2167 = vmatpush1.msra.mxu0 0.0
    %2168 = vmatprep.subr.mxu0 0.0
    %2169 = vmatpush1.msra.mxu0 0.0
    %2170 = vmatprep.subr.mxu0 0.0
    %2171 = vmatpush1.msra.mxu0 0.0
    %2172 = vmatprep.subr.mxu0 0.0
    %2173 = vmatpush1.msra.mxu0 0.0
    %2174 = vmatprep.subr.mxu0 0.0
    %2175 = vmatpush1.msra.mxu0 0.0
    %2176 = vmatprep.subr.mxu0 0.0
    %2177 = vmatpush1.msra.mxu0 0.0
    %2178 = vmatprep.subr.mxu0 0.0
    %2179 = vmatpush1.msra.mxu0 0.0
    %2180 = vmatprep.subr.mxu0 0.0
    %2181 = vmatpush1.msra.mxu0 0.0
    %2182 = vmatprep.subr.mxu0 0.0
    %2183 = vmatpush1.msra.mxu0 0.0
    %2184 = vmatprep.subr.mxu0 0.0
    %2185 = vmatpush1.msra.mxu0 0.0
    %2186 = vmatprep.subr.mxu0 0.0
    %2187 = vmatpush1.msra.mxu0 0.0
    %2188 = vmatprep.mubr.f32.mxu0 0.0
    %v2189 = vand.u32 %v1783, 4294901760
    %v2190 = vsub.f32 %v1783, %v2189
    %2191 = vmatmul.mubr.f32.gmra.mrb[0].mxu0 %v2190
    %v2192 = vpop.f32.mrb[0].mxu0
    %v2193 = vadd.f32 %v2067, %v2192
    %v2194 = vpop.f32.mrb[0].mxu0
    %v2195 = vadd.f32 %v2069, %v2194
    %2196 = vmatprep.mubr.f32.mxu0 0.0
    %v2197 = vand.u32 %v1786, 4294901760
    %v2198 = vsub.f32 %v1786, %v2197
    %2199 = vmatmul.mubr.f32.gmra.mrb[0].mxu0 %v2198
    %v2200 = vpop.f32.mrb[0].mxu0
    %v2201 = vadd.f32 %v2074, %v2200
    %v2202 = vpop.f32.mrb[0].mxu0
    %v2203 = vadd.f32 %v2076, %v2202
    %2204 = vmatprep.mubr.f32.mxu0 0.0
    %v2205 = vand.u32 %v1789, 4294901760
    %v2206 = vsub.f32 %v1789, %v2205
    %2207 = vmatmul.mubr.f32.gmra.mrb[0].mxu0 %v2206
    %v2208 = vpop.f32.mrb[0].mxu0
    %v2209 = vadd.f32 %v2081, %v2208
    %v2210 = vpop.f32.mrb[0].mxu0
    %v2211 = vadd.f32 %v2083, %v2210
    %2212 = vmatprep.mubr.f32.mxu0 0.0
    %v2213 = vand.u32 %v1792, 4294901760
    %v2214 = vsub.f32 %v1792, %v2213
    %2215 = vmatmul.mubr.f32.gmra.mrb[0].mxu0 %v2214
    %v2216 = vpop.f32.mrb[0].mxu0
    %v2217 = vadd.f32 %v2088, %v2216
    %v2218 = vpop.f32.mrb[0].mxu0
    %v2219 = vadd.f32 %v2090, %v2218
    %2220 = vdwg.mxu0
    %v2221 = vand.u32 %v1751, 4294901760
    %2222 = vmatprep.subr.mxu0 %v2221
    %v2223 = vand.u32 %v1750, 4294901760
    %2224 = vmatpush1.msra.mxu0 %v2223
    %v2225 = vand.u32 %v1755, 4294901760
    %2226 = vmatprep.subr.mxu0 %v2225
    %v2227 = vand.u32 %v1754, 4294901760
    %2228 = vmatpush1.msra.mxu0 %v2227
    %v2229 = vand.u32 %v1759, 4294901760
    %2230 = vmatprep.subr.mxu0 %v2229
    %v2231 = vand.u32 %v1758, 4294901760
    %2232 = vmatpush1.msra.mxu0 %v2231
    %v2233 = vand.u32 %v1763, 4294901760
    %2234 = vmatprep.subr.mxu0 %v2233
    %v2235 = vand.u32 %v1762, 4294901760
    %2236 = vmatpush1.msra.mxu0 %v2235
    %v2237 = vand.u32 %v1767, 4294901760
    %2238 = vmatprep.subr.mxu0 %v2237
    %v2239 = vand.u32 %v1766, 4294901760
    %2240 = vmatpush1.msra.mxu0 %v2239
    %v2241 = vand.u32 %v1771, 4294901760
    %2242 = vmatprep.subr.mxu0 %v2241
    %v2243 = vand.u32 %v1770, 4294901760
    %2244 = vmatpush1.msra.mxu0 %v2243
    %v2245 = vand.u32 %v1775, 4294901760
    %2246 = vmatprep.subr.mxu0 %v2245
    %v2247 = vand.u32 %v1774, 4294901760
    %2248 = vmatpush1.msra.mxu0 %v2247
    %v2249 = vand.u32 %v1779, 4294901760
    %2250 = vmatprep.subr.mxu0 %v2249
    %v2251 = vand.u32 %v1778, 4294901760
    %2252 = vmatpush1.msra.mxu0 %v2251
    %2253 = vmatprep.subr.mxu0 0.0
    %2254 = vmatpush1.msra.mxu0 0.0
    %2255 = vmatprep.subr.mxu0 0.0
    %2256 = vmatpush1.msra.mxu0 0.0
    %2257 = vmatprep.subr.mxu0 0.0
    %2258 = vmatpush1.msra.mxu0 0.0
    %2259 = vmatprep.subr.mxu0 0.0
    %2260 = vmatpush1.msra.mxu0 0.0
    %2261 = vmatprep.subr.mxu0 0.0
    %2262 = vmatpush1.msra.mxu0 0.0
    %2263 = vmatprep.subr.mxu0 0.0
    %2264 = vmatpush1.msra.mxu0 0.0
    %2265 = vmatprep.subr.mxu0 0.0
    %2266 = vmatpush1.msra.mxu0 0.0
    %2267 = vmatprep.subr.mxu0 0.0
    %2268 = vmatpush1.msra.mxu0 0.0
    %2269 = vmatprep.subr.mxu0 0.0
    %2270 = vmatpush1.msra.mxu0 0.0
    %2271 = vmatprep.subr.mxu0 0.0
    %2272 = vmatpush1.msra.mxu0 0.0
    %2273 = vmatprep.subr.mxu0 0.0
    %2274 = vmatpush1.msra.mxu0 0.0
    %2275 = vmatprep.subr.mxu0 0.0
    %2276 = vmatpush1.msra.mxu0 0.0
    %2277 = vmatprep.subr.mxu0 0.0
    %2278 = vmatpush1.msra.mxu0 0.0
    %2279 = vmatprep.subr.mxu0 0.0
    %2280 = vmatpush1.msra.mxu0 0.0
    %2281 = vmatprep.subr.mxu0 0.0
    %2282 = vmatpush1.msra.mxu0 0.0
    %2283 = vmatprep.subr.mxu0 0.0
    %2284 = vmatpush1.msra.mxu0 0.0
    %2285 = vmatprep.subr.mxu0 0.0
    %2286 = vmatpush1.msra.mxu0 0.0
    %2287 = vmatprep.subr.mxu0 0.0
    %2288 = vmatpush1.msra.mxu0 0.0
    %2289 = vmatprep.subr.mxu0 0.0
    %2290 = vmatpush1.msra.mxu0 0.0
    %2291 = vmatprep.subr.mxu0 0.0
    %2292 = vmatpush1.msra.mxu0 0.0
    %2293 = vmatprep.subr.mxu0 0.0
    %2294 = vmatpush1.msra.mxu0 0.0
    %2295 = vmatprep.subr.mxu0 0.0
    %2296 = vmatpush1.msra.mxu0 0.0
    %2297 = vmatprep.subr.mxu0 0.0
    %2298 = vmatpush1.msra.mxu0 0.0
    %2299 = vmatprep.subr.mxu0 0.0
    %2300 = vmatpush1.msra.mxu0 0.0
    %2301 = vmatprep.mubr.f32.mxu0 0.0
    %v2302 = vand.u32 %v1783, 4294901760
    %v2303 = vsub.f32 %v1783, %v2302
    %v2304 = vand.u32 %v2303, 4294901760
    %2305 = vmatmul.mubr.f32.gmra.mrb[0].mxu0 %v2304
    %v2306 = vpop.f32.mrb[0].mxu0
    %v2307 = vadd.f32 %v2193, %v2306
    %v2308 = vpop.f32.mrb[0].mxu0
    %v2309 = vadd.f32 %v2195, %v2308
    %2310 = vmatprep.mubr.f32.mxu0 0.0
    %v2311 = vand.u32 %v1786, 4294901760
    %v2312 = vsub.f32 %v1786, %v2311
    %v2313 = vand.u32 %v2312, 4294901760
    %2314 = vmatmul.mubr.f32.gmra.mrb[0].mxu0 %v2313
    %v2315 = vpop.f32.mrb[0].mxu0
    %v2316 = vadd.f32 %v2201, %v2315
    %v2317 = vpop.f32.mrb[0].mxu0
    %v2318 = vadd.f32 %v2203, %v2317
    %2319 = vmatprep.mubr.f32.mxu0 0.0
    %v2320 = vand.u32 %v1789, 4294901760
    %v2321 = vsub.f32 %v1789, %v2320
    %v2322 = vand.u32 %v2321, 4294901760
    %2323 = vmatmul.mubr.f32.gmra.mrb[0].mxu0 %v2322
    %v2324 = vpop.f32.mrb[0].mxu0
    %v2325 = vadd.f32 %v2209, %v2324
    %v2326 = vpop.f32.mrb[0].mxu0
    %v2327 = vadd.f32 %v2211, %v2326
    %2328 = vmatprep.mubr.f32.mxu0 0.0
    %v2329 = vand.u32 %v1792, 4294901760
    %v2330 = vsub.f32 %v1792, %v2329
    %v2331 = vand.u32 %v2330, 4294901760
    %2332 = vmatmul.mubr.f32.gmra.mrb[0].mxu0 %v2331
    %v2333 = vpop.f32.mrb[0].mxu0
    %v2334 = vadd.f32 %v2217, %v2333
    %v2335 = vpop.f32.mrb[0].mxu0
    %v2336 = vadd.f32 %v2219, %v2335
    %2337 = vdwg.mxu0
    %v2338 = vand.u32 %v1751, 4294901760
    %v2339 = vsub.f32 %v1751, %v2338
    %v2340 = vand.u32 %v2339, 4294901760
    %2341 = vmatprep.subr.mxu0 %v2340
    %v2342 = vand.u32 %v1750, 4294901760
    %v2343 = vsub.f32 %v1750, %v2342
    %v2344 = vand.u32 %v2343, 4294901760
    %2345 = vmatpush1.msra.mxu0 %v2344
    %v2346 = vand.u32 %v1755, 4294901760
    %v2347 = vsub.f32 %v1755, %v2346
    %v2348 = vand.u32 %v2347, 4294901760
    %2349 = vmatprep.subr.mxu0 %v2348
    %v2350 = vand.u32 %v1754, 4294901760
    %v2351 = vsub.f32 %v1754, %v2350
    %v2352 = vand.u32 %v2351, 4294901760
    %2353 = vmatpush1.msra.mxu0 %v2352
    %v2354 = vand.u32 %v1759, 4294901760
    %v2355 = vsub.f32 %v1759, %v2354
    %v2356 = vand.u32 %v2355, 4294901760
    %2357 = vmatprep.subr.mxu0 %v2356
    %v2358 = vand.u32 %v1758, 4294901760
    %v2359 = vsub.f32 %v1758, %v2358
    %v2360 = vand.u32 %v2359, 4294901760
    %2361 = vmatpush1.msra.mxu0 %v2360
    %v2362 = vand.u32 %v1763, 4294901760
    %v2363 = vsub.f32 %v1763, %v2362
    %v2364 = vand.u32 %v2363, 4294901760
    %2365 = vmatprep.subr.mxu0 %v2364
    %v2366 = vand.u32 %v1762, 4294901760
    %v2367 = vsub.f32 %v1762, %v2366
    %v2368 = vand.u32 %v2367, 4294901760
    %2369 = vmatpush1.msra.mxu0 %v2368
    %v2370 = vand.u32 %v1767, 4294901760
    %v2371 = vsub.f32 %v1767, %v2370
    %v2372 = vand.u32 %v2371, 4294901760
    %2373 = vmatprep.subr.mxu0 %v2372
    %v2374 = vand.u32 %v1766, 4294901760
    %v2375 = vsub.f32 %v1766, %v2374
    %v2376 = vand.u32 %v2375, 4294901760
    %2377 = vmatpush1.msra.mxu0 %v2376
    %v2378 = vand.u32 %v1771, 4294901760
    %v2379 = vsub.f32 %v1771, %v2378
    %v2380 = vand.u32 %v2379, 4294901760
    %2381 = vmatprep.subr.mxu0 %v2380
    %v2382 = vand.u32 %v1770, 4294901760
    %v2383 = vsub.f32 %v1770, %v2382
    %v2384 = vand.u32 %v2383, 4294901760
    %2385 = vmatpush1.msra.mxu0 %v2384
    %v2386 = vand.u32 %v1775, 4294901760
    %v2387 = vsub.f32 %v1775, %v2386
    %v2388 = vand.u32 %v2387, 4294901760
    %2389 = vmatprep.subr.mxu0 %v2388
    %v2390 = vand.u32 %v1774, 4294901760
    %v2391 = vsub.f32 %v1774, %v2390
    %v2392 = vand.u32 %v2391, 4294901760
    %2393 = vmatpush1.msra.mxu0 %v2392
    %v2394 = vand.u32 %v1779, 4294901760
    %v2395 = vsub.f32 %v1779, %v2394
    %v2396 = vand.u32 %v2395, 4294901760
    %2397 = vmatprep.subr.mxu0 %v2396
    %v2398 = vand.u32 %v1778, 4294901760
    %v2399 = vsub.f32 %v1778, %v2398
    %v2400 = vand.u32 %v2399, 4294901760
    %2401 = vmatpush1.msra.mxu0 %v2400
    %2402 = vmatprep.subr.mxu0 0.0
    %2403 = vmatpush1.msra.mxu0 0.0
    %2404 = vmatprep.subr.mxu0 0.0
    %2405 = vmatpush1.msra.mxu0 0.0
    %2406 = vmatprep.subr.mxu0 0.0
    %2407 = vmatpush1.msra.mxu0 0.0
    %2408 = vmatprep.subr.mxu0 0.0
    %2409 = vmatpush1.msra.mxu0 0.0
    %2410 = vmatprep.subr.mxu0 0.0
    %2411 = vmatpush1.msra.mxu0 0.0
    %2412 = vmatprep.subr.mxu0 0.0
    %2413 = vmatpush1.msra.mxu0 0.0
    %2414 = vmatprep.subr.mxu0 0.0
    %2415 = vmatpush1.msra.mxu0 0.0
    %2416 = vmatprep.subr.mxu0 0.0
    %2417 = vmatpush1.msra.mxu0 0.0
    %2418 = vmatprep.subr.mxu0 0.0
    %2419 = vmatpush1.msra.mxu0 0.0
    %2420 = vmatprep.subr.mxu0 0.0
    %2421 = vmatpush1.msra.mxu0 0.0
    %2422 = vmatprep.subr.mxu0 0.0
    %2423 = vmatpush1.msra.mxu0 0.0
    %2424 = vmatprep.subr.mxu0 0.0
    %2425 = vmatpush1.msra.mxu0 0.0
    %2426 = vmatprep.subr.mxu0 0.0
    %2427 = vmatpush1.msra.mxu0 0.0
    %2428 = vmatprep.subr.mxu0 0.0
    %2429 = vmatpush1.msra.mxu0 0.0
    %2430 = vmatprep.subr.mxu0 0.0
    %2431 = vmatpush1.msra.mxu0 0.0
    %2432 = vmatprep.subr.mxu0 0.0
    %2433 = vmatpush1.msra.mxu0 0.0
    %2434 = vmatprep.subr.mxu0 0.0
    %2435 = vmatpush1.msra.mxu0 0.0
    %2436 = vmatprep.subr.mxu0 0.0
    %2437 = vmatpush1.msra.mxu0 0.0
    %2438 = vmatprep.subr.mxu0 0.0
    %2439 = vmatpush1.msra.mxu0 0.0
    %2440 = vmatprep.subr.mxu0 0.0
    %2441 = vmatpush1.msra.mxu0 0.0
    %2442 = vmatprep.subr.mxu0 0.0
    %2443 = vmatpush1.msra.mxu0 0.0
    %2444 = vmatprep.subr.mxu0 0.0
    %2445 = vmatpush1.msra.mxu0 0.0
    %2446 = vmatprep.subr.mxu0 0.0
    %2447 = vmatpush1.msra.mxu0 0.0
    %2448 = vmatprep.subr.mxu0 0.0
    %2449 = vmatpush1.msra.mxu0 0.0
    %2450 = vmatprep.mubr.f32.mxu0 0.0
    %v2451 = vand.u32 %v1783, 4294901760
    %2452 = vmatmul.mubr.f32.gmra.mrb[0].mxu0 %v2451
    %v2453 = vpop.f32.mrb[0].mxu0
    %v2454 = vadd.f32 %v2307, %v2453
    %v2455 = vpop.f32.mrb[0].mxu0
    %v2456 = vadd.f32 %v2309, %v2455
    %2457 = vmatprep.mubr.f32.mxu0 0.0
    %v2458 = vand.u32 %v1786, 4294901760
    %2459 = vmatmul.mubr.f32.gmra.mrb[0].mxu0 %v2458
    %v2460 = vpop.f32.mrb[0].mxu0
    %v2461 = vadd.f32 %v2316, %v2460
    %v2462 = vpop.f32.mrb[0].mxu0
    %v2463 = vadd.f32 %v2318, %v2462
    %2464 = vmatprep.mubr.f32.mxu0 0.0
    %v2465 = vand.u32 %v1789, 4294901760
    %2466 = vmatmul.mubr.f32.gmra.mrb[0].mxu0 %v2465
    %v2467 = vpop.f32.mrb[0].mxu0
    %v2468 = vadd.f32 %v2325, %v2467
    %v2469 = vpop.f32.mrb[0].mxu0
    %v2470 = vadd.f32 %v2327, %v2469
    %2471 = vmatprep.mubr.f32.mxu0 0.0
    %v2472 = vand.u32 %v1792, 4294901760
    %2473 = vmatmul.mubr.f32.gmra.mrb[0].mxu0 %v2472
    %v2474 = vpop.f32.mrb[0].mxu0
    %v2475 = vadd.f32 %v2334, %v2474
    %v2476 = vpop.f32.mrb[0].mxu0
    %v2477 = vadd.f32 %v2336, %v2476
    %2478 = vdwg.mxu0
    %v2479 = vand.u32 %v1751, 4294901760
    %2480 = vmatprep.subr.mxu0 %v2479
    %v2481 = vand.u32 %v1750, 4294901760
    %2482 = vmatpush1.msra.mxu0 %v2481
    %v2483 = vand.u32 %v1755, 4294901760
    %2484 = vmatprep.subr.mxu0 %v2483
    %v2485 = vand.u32 %v1754, 4294901760
    %2486 = vmatpush1.msra.mxu0 %v2485
    %v2487 = vand.u32 %v1759, 4294901760
    %2488 = vmatprep.subr.mxu0 %v2487
    %v2489 = vand.u32 %v1758, 4294901760
    %2490 = vmatpush1.msra.mxu0 %v2489
    %v2491 = vand.u32 %v1763, 4294901760
    %2492 = vmatprep.subr.mxu0 %v2491
    %v2493 = vand.u32 %v1762, 4294901760
    %2494 = vmatpush1.msra.mxu0 %v2493
    %v2495 = vand.u32 %v1767, 4294901760
    %2496 = vmatprep.subr.mxu0 %v2495
    %v2497 = vand.u32 %v1766, 4294901760
    %2498 = vmatpush1.msra.mxu0 %v2497
    %v2499 = vand.u32 %v1771, 4294901760
    %2500 = vmatprep.subr.mxu0 %v2499
    %v2501 = vand.u32 %v1770, 4294901760
    %2502 = vmatpush1.msra.mxu0 %v2501
    %v2503 = vand.u32 %v1775, 4294901760
    %2504 = vmatprep.subr.mxu0 %v2503
    %v2505 = vand.u32 %v1774, 4294901760
    %2506 = vmatpush1.msra.mxu0 %v2505
    %v2507 = vand.u32 %v1779, 4294901760
    %2508 = vmatprep.subr.mxu0 %v2507
    %v2509 = vand.u32 %v1778, 4294901760
    %2510 = vmatpush1.msra.mxu0 %v2509
    %2511 = vmatprep.subr.mxu0 0.0
    %2512 = vmatpush1.msra.mxu0 0.0
    %2513 = vmatprep.subr.mxu0 0.0
    %2514 = vmatpush1.msra.mxu0 0.0
    %2515 = vmatprep.subr.mxu0 0.0
    %2516 = vmatpush1.msra.mxu0 0.0
    %2517 = vmatprep.subr.mxu0 0.0
    %2518 = vmatpush1.msra.mxu0 0.0
    %2519 = vmatprep.subr.mxu0 0.0
    %2520 = vmatpush1.msra.mxu0 0.0
    %2521 = vmatprep.subr.mxu0 0.0
    %2522 = vmatpush1.msra.mxu0 0.0
    %2523 = vmatprep.subr.mxu0 0.0
    %2524 = vmatpush1.msra.mxu0 0.0
    %2525 = vmatprep.subr.mxu0 0.0
    %2526 = vmatpush1.msra.mxu0 0.0
    %2527 = vmatprep.subr.mxu0 0.0
    %2528 = vmatpush1.msra.mxu0 0.0
    %2529 = vmatprep.subr.mxu0 0.0
    %2530 = vmatpush1.msra.mxu0 0.0
    %2531 = vmatprep.subr.mxu0 0.0
    %2532 = vmatpush1.msra.mxu0 0.0
    %2533 = vmatprep.subr.mxu0 0.0
    %2534 = vmatpush1.msra.mxu0 0.0
    %2535 = vmatprep.subr.mxu0 0.0
    %2536 = vmatpush1.msra.mxu0 0.0
    %2537 = vmatprep.subr.mxu0 0.0
    %2538 = vmatpush1.msra.mxu0 0.0
    %2539 = vmatprep.subr.mxu0 0.0
    %2540 = vmatpush1.msra.mxu0 0.0
    %2541 = vmatprep.subr.mxu0 0.0
    %2542 = vmatpush1.msra.mxu0 0.0
    %2543 = vmatprep.subr.mxu0 0.0
    %2544 = vmatpush1.msra.mxu0 0.0
    %2545 = vmatprep.subr.mxu0 0.0
    %2546 = vmatpush1.msra.mxu0 0.0
    %2547 = vmatprep.subr.mxu0 0.0
    %2548 = vmatpush1.msra.mxu0 0.0
    %2549 = vmatprep.subr.mxu0 0.0
    %2550 = vmatpush1.msra.mxu0 0.0
    %2551 = vmatprep.subr.mxu0 0.0
    %2552 = vmatpush1.msra.mxu0 0.0
    %2553 = vmatprep.subr.mxu0 0.0
    %2554 = vmatpush1.msra.mxu0 0.0
    %2555 = vmatprep.subr.mxu0 0.0
    %2556 = vmatpush1.msra.mxu0 0.0
    %2557 = vmatprep.subr.mxu0 0.0
    %2558 = vmatpush1.msra.mxu0 0.0
    %2559 = vmatprep.mubr.f32.mxu0 0.0
    %v2560 = vand.u32 %v1783, 4294901760
    %2561 = vmatmul.mubr.f32.gmra.mrb[0].mxu0 %v2560
    %v2562 = vpop.f32.mrb[0].mxu0
    %v2563 = vadd.f32 %v2454, %v2562
    %v2564 = vpop.f32.mrb[0].mxu0
    %v2565 = vadd.f32 %v2456, %v2564
    %2566 = vmatprep.mubr.f32.mxu0 0.0
    %v2567 = vand.u32 %v1786, 4294901760
    %2568 = vmatmul.mubr.f32.gmra.mrb[0].mxu0 %v2567
    %v2569 = vpop.f32.mrb[0].mxu0
    %v2570 = vadd.f32 %v2461, %v2569
    %v2571 = vpop.f32.mrb[0].mxu0
    %v2572 = vadd.f32 %v2463, %v2571
    %2573 = vmatprep.mubr.f32.mxu0 0.0
    %v2574 = vand.u32 %v1789, 4294901760
    %2575 = vmatmul.mubr.f32.gmra.mrb[0].mxu0 %v2574
    %v2576 = vpop.f32.mrb[0].mxu0
    %v2577 = vadd.f32 %v2468, %v2576
    %v2578 = vpop.f32.mrb[0].mxu0
    %v2579 = vadd.f32 %v2470, %v2578
    %2580 = vmatprep.mubr.f32.mxu0 0.0
    %v2581 = vand.u32 %v1792, 4294901760
    %2582 = vmatmul.mubr.f32.gmra.mrb[0].mxu0 %v2581
    %v2583 = vpop.f32.mrb[0].mxu0
    %v2584 = vadd.f32 %v2475, %v2583
    %v2585 = vpop.f32.mrb[0].mxu0
    %v2586 = vadd.f32 %v2477, %v2585
    %2587 = vdwg.mxu0
    %v2588 = vand.u32 %v1753, 4294901760
    %2589 = vmatprep.subr.mxu0 %v2588
    %v2590 = vand.u32 %v1752, 4294901760
    %2591 = vmatpush1.msra.mxu0 %v2590
    %v2592 = vand.u32 %v1757, 4294901760
    %2593 = vmatprep.subr.mxu0 %v2592
    %v2594 = vand.u32 %v1756, 4294901760
    %2595 = vmatpush1.msra.mxu0 %v2594
    %v2596 = vand.u32 %v1761, 4294901760
    %2597 = vmatprep.subr.mxu0 %v2596
    %v2598 = vand.u32 %v1760, 4294901760
    %2599 = vmatpush1.msra.mxu0 %v2598
    %v2600 = vand.u32 %v1765, 4294901760
    %2601 = vmatprep.subr.mxu0 %v2600
    %v2602 = vand.u32 %v1764, 4294901760
    %2603 = vmatpush1.msra.mxu0 %v2602
    %v2604 = vand.u32 %v1769, 4294901760
    %2605 = vmatprep.subr.mxu0 %v2604
    %v2606 = vand.u32 %v1768, 4294901760
    %2607 = vmatpush1.msra.mxu0 %v2606
    %v2608 = vand.u32 %v1773, 4294901760
    %2609 = vmatprep.subr.mxu0 %v2608
    %v2610 = vand.u32 %v1772, 4294901760
    %2611 = vmatpush1.msra.mxu0 %v2610
    %v2612 = vand.u32 %v1777, 4294901760
    %2613 = vmatprep.subr.mxu0 %v2612
    %v2614 = vand.u32 %v1776, 4294901760
    %2615 = vmatpush1.msra.mxu0 %v2614
    %v2616 = vand.u32 %v1781, 4294901760
    %2617 = vmatprep.subr.mxu0 %v2616
    %v2618 = vand.u32 %v1780, 4294901760
    %2619 = vmatpush1.msra.mxu0 %v2618
    %2620 = vmatprep.subr.mxu0 0.0
    %2621 = vmatpush1.msra.mxu0 0.0
    %2622 = vmatprep.subr.mxu0 0.0
    %2623 = vmatpush1.msra.mxu0 0.0
    %2624 = vmatprep.subr.mxu0 0.0
    %2625 = vmatpush1.msra.mxu0 0.0
    %2626 = vmatprep.subr.mxu0 0.0
    %2627 = vmatpush1.msra.mxu0 0.0
    %2628 = vmatprep.subr.mxu0 0.0
    %2629 = vmatpush1.msra.mxu0 0.0
    %2630 = vmatprep.subr.mxu0 0.0
    %2631 = vmatpush1.msra.mxu0 0.0
    %2632 = vmatprep.subr.mxu0 0.0
    %2633 = vmatpush1.msra.mxu0 0.0
    %2634 = vmatprep.subr.mxu0 0.0
    %2635 = vmatpush1.msra.mxu0 0.0
    %2636 = vmatprep.subr.mxu0 0.0
    %2637 = vmatpush1.msra.mxu0 0.0
    %2638 = vmatprep.subr.mxu0 0.0
    %2639 = vmatpush1.msra.mxu0 0.0
    %2640 = vmatprep.subr.mxu0 0.0
    %2641 = vmatpush1.msra.mxu0 0.0
    %2642 = vmatprep.subr.mxu0 0.0
    %2643 = vmatpush1.msra.mxu0 0.0
    %2644 = vmatprep.subr.mxu0 0.0
    %2645 = vmatpush1.msra.mxu0 0.0
    %2646 = vmatprep.subr.mxu0 0.0
    %2647 = vmatpush1.msra.mxu0 0.0
    %2648 = vmatprep.subr.mxu0 0.0
    %2649 = vmatpush1.msra.mxu0 0.0
    %2650 = vmatprep.subr.mxu0 0.0
    %2651 = vmatpush1.msra.mxu0 0.0
    %2652 = vmatprep.subr.mxu0 0.0
    %2653 = vmatpush1.msra.mxu0 0.0
    %2654 = vmatprep.subr.mxu0 0.0
    %2655 = vmatpush1.msra.mxu0 0.0
    %2656 = vmatprep.subr.mxu0 0.0
    %2657 = vmatpush1.msra.mxu0 0.0
    %2658 = vmatprep.subr.mxu0 0.0
    %2659 = vmatpush1.msra.mxu0 0.0
    %2660 = vmatprep.subr.mxu0 0.0
    %2661 = vmatpush1.msra.mxu0 0.0
    %2662 = vmatprep.subr.mxu0 0.0
    %2663 = vmatpush1.msra.mxu0 0.0
    %2664 = vmatprep.subr.mxu0 0.0
    %2665 = vmatpush1.msra.mxu0 0.0
    %2666 = vmatprep.subr.mxu0 0.0
    %2667 = vmatpush1.msra.mxu0 0.0
    %2668 = vmatprep.mubr.f32.mxu0 0.0
    %v2669 = vand.u32 %v1783, 4294901760
    %v2670 = vsub.f32 %v1783, %v2669
    %v2671 = vand.u32 %v2670, 4294901760
    %v2672 = vsub.f32 %v2670, %v2671
    %v2673 = vand.u32 %v2672, 4294901760
    %2674 = vmatmul.mubr.f32.gmra.mrb[0].mxu0 %v2673
    %v2675 = vpop.f32.mrb[0].mxu0
    %v2676 = vadd.f32 0.0, %v2675
    %v2677 = vpop.f32.mrb[0].mxu0
    %v2678 = vadd.f32 0.0, %v2677
    %2679 = vmatprep.mubr.f32.mxu0 0.0
    %v2680 = vand.u32 %v1786, 4294901760
    %v2681 = vsub.f32 %v1786, %v2680
    %v2682 = vand.u32 %v2681, 4294901760
    %v2683 = vsub.f32 %v2681, %v2682
    %v2684 = vand.u32 %v2683, 4294901760
    %2685 = vmatmul.mubr.f32.gmra.mrb[0].mxu0 %v2684
    %v2686 = vpop.f32.mrb[0].mxu0
    %v2687 = vadd.f32 0.0, %v2686
    %v2688 = vpop.f32.mrb[0].mxu0
    %v2689 = vadd.f32 0.0, %v2688
    %2690 = vmatprep.mubr.f32.mxu0 0.0
    %v2691 = vand.u32 %v1789, 4294901760
    %v2692 = vsub.f32 %v1789, %v2691
    %v2693 = vand.u32 %v2692, 4294901760
    %v2694 = vsub.f32 %v2692, %v2693
    %v2695 = vand.u32 %v2694, 4294901760
    %2696 = vmatmul.mubr.f32.gmra.mrb[0].mxu0 %v2695
    %v2697 = vpop.f32.mrb[0].mxu0
    %v2698 = vadd.f32 0.0, %v2697
    %v2699 = vpop.f32.mrb[0].mxu0
    %v2700 = vadd.f32 0.0, %v2699
    %2701 = vmatprep.mubr.f32.mxu0 0.0
    %v2702 = vand.u32 %v1792, 4294901760
    %v2703 = vsub.f32 %v1792, %v2702
    %v2704 = vand.u32 %v2703, 4294901760
    %v2705 = vsub.f32 %v2703, %v2704
    %v2706 = vand.u32 %v2705, 4294901760
    %2707 = vmatmul.mubr.f32.gmra.mrb[0].mxu0 %v2706
    %v2708 = vpop.f32.mrb[0].mxu0
    %v2709 = vadd.f32 0.0, %v2708
    %v2710 = vpop.f32.mrb[0].mxu0
    %v2711 = vadd.f32 0.0, %v2710
    %2712 = vdwg.mxu0
    %v2713 = vand.u32 %v1753, 4294901760
    %v2714 = vsub.f32 %v1753, %v2713
    %v2715 = vand.u32 %v2714, 4294901760
    %v2716 = vsub.f32 %v2714, %v2715
    %v2717 = vand.u32 %v2716, 4294901760
    %2718 = vmatprep.subr.mxu0 %v2717
    %v2719 = vand.u32 %v1752, 4294901760
    %v2720 = vsub.f32 %v1752, %v2719
    %v2721 = vand.u32 %v2720, 4294901760
    %v2722 = vsub.f32 %v2720, %v2721
    %v2723 = vand.u32 %v2722, 4294901760
    %2724 = vmatpush1.msra.mxu0 %v2723
    %v2725 = vand.u32 %v1757, 4294901760
    %v2726 = vsub.f32 %v1757, %v2725
    %v2727 = vand.u32 %v2726, 4294901760
    %v2728 = vsub.f32 %v2726, %v2727
    %v2729 = vand.u32 %v2728, 4294901760
    %2730 = vmatprep.subr.mxu0 %v2729
    %v2731 = vand.u32 %v1756, 4294901760
    %v2732 = vsub.f32 %v1756, %v2731
    %v2733 = vand.u32 %v2732, 4294901760
    %v2734 = vsub.f32 %v2732, %v2733
    %v2735 = vand.u32 %v2734, 4294901760
    %2736 = vmatpush1.msra.mxu0 %v2735
    %v2737 = vand.u32 %v1761, 4294901760
    %v2738 = vsub.f32 %v1761, %v2737
    %v2739 = vand.u32 %v2738, 4294901760
    %v2740 = vsub.f32 %v2738, %v2739
    %v2741 = vand.u32 %v2740, 4294901760
    %2742 = vmatprep.subr.mxu0 %v2741
    %v2743 = vand.u32 %v1760, 4294901760
    %v2744 = vsub.f32 %v1760, %v2743
    %v2745 = vand.u32 %v2744, 4294901760
    %v2746 = vsub.f32 %v2744, %v2745
    %v2747 = vand.u32 %v2746, 4294901760
    %2748 = vmatpush1.msra.mxu0 %v2747
    %v2749 = vand.u32 %v1765, 4294901760
    %v2750 = vsub.f32 %v1765, %v2749
    %v2751 = vand.u32 %v2750, 4294901760
    %v2752 = vsub.f32 %v2750, %v2751
    %v2753 = vand.u32 %v2752, 4294901760
    %2754 = vmatprep.subr.mxu0 %v2753
    %v2755 = vand.u32 %v1764, 4294901760
    %v2756 = vsub.f32 %v1764, %v2755
    %v2757 = vand.u32 %v2756, 4294901760
    %v2758 = vsub.f32 %v2756, %v2757
    %v2759 = vand.u32 %v2758, 4294901760
    %2760 = vmatpush1.msra.mxu0 %v2759
    %v2761 = vand.u32 %v1769, 4294901760
    %v2762 = vsub.f32 %v1769, %v2761
    %v2763 = vand.u32 %v2762, 4294901760
    %v2764 = vsub.f32 %v2762, %v2763
    %v2765 = vand.u32 %v2764, 4294901760
    %2766 = vmatprep.subr.mxu0 %v2765
    %v2767 = vand.u32 %v1768, 4294901760
    %v2768 = vsub.f32 %v1768, %v2767
    %v2769 = vand.u32 %v2768, 4294901760
    %v2770 = vsub.f32 %v2768, %v2769
    %v2771 = vand.u32 %v2770, 4294901760
    %2772 = vmatpush1.msra.mxu0 %v2771
    %v2773 = vand.u32 %v1773, 4294901760
    %v2774 = vsub.f32 %v1773, %v2773
    %v2775 = vand.u32 %v2774, 4294901760
    %v2776 = vsub.f32 %v2774, %v2775
    %v2777 = vand.u32 %v2776, 4294901760
    %2778 = vmatprep.subr.mxu0 %v2777
    %v2779 = vand.u32 %v1772, 4294901760
    %v2780 = vsub.f32 %v1772, %v2779
    %v2781 = vand.u32 %v2780, 4294901760
    %v2782 = vsub.f32 %v2780, %v2781
    %v2783 = vand.u32 %v2782, 4294901760
    %2784 = vmatpush1.msra.mxu0 %v2783
    %v2785 = vand.u32 %v1777, 4294901760
    %v2786 = vsub.f32 %v1777, %v2785
    %v2787 = vand.u32 %v2786, 4294901760
    %v2788 = vsub.f32 %v2786, %v2787
    %v2789 = vand.u32 %v2788, 4294901760
    %2790 = vmatprep.subr.mxu0 %v2789
    %v2791 = vand.u32 %v1776, 4294901760
    %v2792 = vsub.f32 %v1776, %v2791
    %v2793 = vand.u32 %v2792, 4294901760
    %v2794 = vsub.f32 %v2792, %v2793
    %v2795 = vand.u32 %v2794, 4294901760
    %2796 = vmatpush1.msra.mxu0 %v2795
    %v2797 = vand.u32 %v1781, 4294901760
    %v2798 = vsub.f32 %v1781, %v2797
    %v2799 = vand.u32 %v2798, 4294901760
    %v2800 = vsub.f32 %v2798, %v2799
    %v2801 = vand.u32 %v2800, 4294901760
    %2802 = vmatprep.subr.mxu0 %v2801
    %v2803 = vand.u32 %v1780, 4294901760
    %v2804 = vsub.f32 %v1780, %v2803
    %v2805 = vand.u32 %v2804, 4294901760
    %v2806 = vsub.f32 %v2804, %v2805
    %v2807 = vand.u32 %v2806, 4294901760
    %2808 = vmatpush1.msra.mxu0 %v2807
    %2809 = vmatprep.subr.mxu0 0.0
    %2810 = vmatpush1.msra.mxu0 0.0
    %2811 = vmatprep.subr.mxu0 0.0
    %2812 = vmatpush1.msra.mxu0 0.0
    %2813 = vmatprep.subr.mxu0 0.0
    %2814 = vmatpush1.msra.mxu0 0.0
    %2815 = vmatprep.subr.mxu0 0.0
    %2816 = vmatpush1.msra.mxu0 0.0
    %2817 = vmatprep.subr.mxu0 0.0
    %2818 = vmatpush1.msra.mxu0 0.0
    %2819 = vmatprep.subr.mxu0 0.0
    %2820 = vmatpush1.msra.mxu0 0.0
    %2821 = vmatprep.subr.mxu0 0.0
    %2822 = vmatpush1.msra.mxu0 0.0
    %2823 = vmatprep.subr.mxu0 0.0
    %2824 = vmatpush1.msra.mxu0 0.0
    %2825 = vmatprep.subr.mxu0 0.0
    %2826 = vmatpush1.msra.mxu0 0.0
    %2827 = vmatprep.subr.mxu0 0.0
    %2828 = vmatpush1.msra.mxu0 0.0
    %2829 = vmatprep.subr.mxu0 0.0
    %2830 = vmatpush1.msra.mxu0 0.0
    %2831 = vmatprep.subr.mxu0 0.0
    %2832 = vmatpush1.msra.mxu0 0.0
    %2833 = vmatprep.subr.mxu0 0.0
    %2834 = vmatpush1.msra.mxu0 0.0
    %2835 = vmatprep.subr.mxu0 0.0
    %2836 = vmatpush1.msra.mxu0 0.0
    %2837 = vmatprep.subr.mxu0 0.0
    %2838 = vmatpush1.msra.mxu0 0.0
    %2839 = vmatprep.subr.mxu0 0.0
    %2840 = vmatpush1.msra.mxu0 0.0
    %2841 = vmatprep.subr.mxu0 0.0
    %2842 = vmatpush1.msra.mxu0 0.0
    %2843 = vmatprep.subr.mxu0 0.0
    %2844 = vmatpush1.msra.mxu0 0.0
    %2845 = vmatprep.subr.mxu0 0.0
    %2846 = vmatpush1.msra.mxu0 0.0
    %2847 = vmatprep.subr.mxu0 0.0
    %2848 = vmatpush1.msra.mxu0 0.0
    %2849 = vmatprep.subr.mxu0 0.0
    %2850 = vmatpush1.msra.mxu0 0.0
    %2851 = vmatprep.subr.mxu0 0.0
    %2852 = vmatpush1.msra.mxu0 0.0
    %2853 = vmatprep.subr.mxu0 0.0
    %2854 = vmatpush1.msra.mxu0 0.0
    %2855 = vmatprep.subr.mxu0 0.0
    %2856 = vmatpush1.msra.mxu0 0.0
    %2857 = vmatprep.mubr.f32.mxu0 0.0
    %v2858 = vand.u32 %v1783, 4294901760
    %2859 = vmatmul.mubr.f32.gmra.mrb[0].mxu0 %v2858
    %v2860 = vpop.f32.mrb[0].mxu0
    %v2861 = vadd.f32 %v2676, %v2860
    %v2862 = vpop.f32.mrb[0].mxu0
    %v2863 = vadd.f32 %v2678, %v2862
    %2864 = vmatprep.mubr.f32.mxu0 0.0
    %v2865 = vand.u32 %v1786, 4294901760
    %2866 = vmatmul.mubr.f32.gmra.mrb[0].mxu0 %v2865
    %v2867 = vpop.f32.mrb[0].mxu0
    %v2868 = vadd.f32 %v2687, %v2867
    %v2869 = vpop.f32.mrb[0].mxu0
    %v2870 = vadd.f32 %v2689, %v2869
    %2871 = vmatprep.mubr.f32.mxu0 0.0
    %v2872 = vand.u32 %v1789, 4294901760
    %2873 = vmatmul.mubr.f32.gmra.mrb[0].mxu0 %v2872
    %v2874 = vpop.f32.mrb[0].mxu0
    %v2875 = vadd.f32 %v2698, %v2874
    %v2876 = vpop.f32.mrb[0].mxu0
    %v2877 = vadd.f32 %v2700, %v2876
    %2878 = vmatprep.mubr.f32.mxu0 0.0
    %v2879 = vand.u32 %v1792, 4294901760
    %2880 = vmatmul.mubr.f32.gmra.mrb[0].mxu0 %v2879
    %v2881 = vpop.f32.mrb[0].mxu0
    %v2882 = vadd.f32 %v2709, %v2881
    %v2883 = vpop.f32.mrb[0].mxu0
    %v2884 = vadd.f32 %v2711, %v2883
    %2885 = vdwg.mxu0
    %v2886 = vand.u32 %v1753, 4294901760
    %v2887 = vsub.f32 %v1753, %v2886
    %2888 = vmatprep.subr.mxu0 %v2887
    %v2889 = vand.u32 %v1752, 4294901760
    %v2890 = vsub.f32 %v1752, %v2889
    %2891 = vmatpush1.msra.mxu0 %v2890
    %v2892 = vand.u32 %v1757, 4294901760
    %v2893 = vsub.f32 %v1757, %v2892
    %2894 = vmatprep.subr.mxu0 %v2893
    %v2895 = vand.u32 %v1756, 4294901760
    %v2896 = vsub.f32 %v1756, %v2895
    %2897 = vmatpush1.msra.mxu0 %v2896
    %v2898 = vand.u32 %v1761, 4294901760
    %v2899 = vsub.f32 %v1761, %v2898
    %2900 = vmatprep.subr.mxu0 %v2899
    %v2901 = vand.u32 %v1760, 4294901760
    %v2902 = vsub.f32 %v1760, %v2901
    %2903 = vmatpush1.msra.mxu0 %v2902
    %v2904 = vand.u32 %v1765, 4294901760
    %v2905 = vsub.f32 %v1765, %v2904
    %2906 = vmatprep.subr.mxu0 %v2905
    %v2907 = vand.u32 %v1764, 4294901760
    %v2908 = vsub.f32 %v1764, %v2907
    %2909 = vmatpush1.msra.mxu0 %v2908
    %v2910 = vand.u32 %v1769, 4294901760
    %v2911 = vsub.f32 %v1769, %v2910
    %2912 = vmatprep.subr.mxu0 %v2911
    %v2913 = vand.u32 %v1768, 4294901760
    %v2914 = vsub.f32 %v1768, %v2913
    %2915 = vmatpush1.msra.mxu0 %v2914
    %v2916 = vand.u32 %v1773, 4294901760
    %v2917 = vsub.f32 %v1773, %v2916
    %2918 = vmatprep.subr.mxu0 %v2917
    %v2919 = vand.u32 %v1772, 4294901760
    %v2920 = vsub.f32 %v1772, %v2919
    %2921 = vmatpush1.msra.mxu0 %v2920
    %v2922 = vand.u32 %v1777, 4294901760
    %v2923 = vsub.f32 %v1777, %v2922
    %2924 = vmatprep.subr.mxu0 %v2923
    %v2925 = vand.u32 %v1776, 4294901760
    %v2926 = vsub.f32 %v1776, %v2925
    %2927 = vmatpush1.msra.mxu0 %v2926
    %v2928 = vand.u32 %v1781, 4294901760
    %v2929 = vsub.f32 %v1781, %v2928
    %2930 = vmatprep.subr.mxu0 %v2929
    %v2931 = vand.u32 %v1780, 4294901760
    %v2932 = vsub.f32 %v1780, %v2931
    %2933 = vmatpush1.msra.mxu0 %v2932
    %2934 = vmatprep.subr.mxu0 0.0
    %2935 = vmatpush1.msra.mxu0 0.0
    %2936 = vmatprep.subr.mxu0 0.0
    %2937 = vmatpush1.msra.mxu0 0.0
    %2938 = vmatprep.subr.mxu0 0.0
    %2939 = vmatpush1.msra.mxu0 0.0
    %2940 = vmatprep.subr.mxu0 0.0
    %2941 = vmatpush1.msra.mxu0 0.0
    %2942 = vmatprep.subr.mxu0 0.0
    %2943 = vmatpush1.msra.mxu0 0.0
    %2944 = vmatprep.subr.mxu0 0.0
    %2945 = vmatpush1.msra.mxu0 0.0
    %2946 = vmatprep.subr.mxu0 0.0
    %2947 = vmatpush1.msra.mxu0 0.0
    %2948 = vmatprep.subr.mxu0 0.0
    %2949 = vmatpush1.msra.mxu0 0.0
    %2950 = vmatprep.subr.mxu0 0.0
    %2951 = vmatpush1.msra.mxu0 0.0
    %2952 = vmatprep.subr.mxu0 0.0
    %2953 = vmatpush1.msra.mxu0 0.0
    %2954 = vmatprep.subr.mxu0 0.0
    %2955 = vmatpush1.msra.mxu0 0.0
    %2956 = vmatprep.subr.mxu0 0.0
    %2957 = vmatpush1.msra.mxu0 0.0
    %2958 = vmatprep.subr.mxu0 0.0
    %2959 = vmatpush1.msra.mxu0 0.0
    %2960 = vmatprep.subr.mxu0 0.0
    %2961 = vmatpush1.msra.mxu0 0.0
    %2962 = vmatprep.subr.mxu0 0.0
    %2963 = vmatpush1.msra.mxu0 0.0
    %2964 = vmatprep.subr.mxu0 0.0
    %2965 = vmatpush1.msra.mxu0 0.0
    %2966 = vmatprep.subr.mxu0 0.0
    %2967 = vmatpush1.msra.mxu0 0.0
    %2968 = vmatprep.subr.mxu0 0.0
    %2969 = vmatpush1.msra.mxu0 0.0
    %2970 = vmatprep.subr.mxu0 0.0
    %2971 = vmatpush1.msra.mxu0 0.0
    %2972 = vmatprep.subr.mxu0 0.0
    %2973 = vmatpush1.msra.mxu0 0.0
    %2974 = vmatprep.subr.mxu0 0.0
    %2975 = vmatpush1.msra.mxu0 0.0
    %2976 = vmatprep.subr.mxu0 0.0
    %2977 = vmatpush1.msra.mxu0 0.0
    %2978 = vmatprep.subr.mxu0 0.0
    %2979 = vmatpush1.msra.mxu0 0.0
    %2980 = vmatprep.subr.mxu0 0.0
    %2981 = vmatpush1.msra.mxu0 0.0
    %2982 = vmatprep.mubr.f32.mxu0 0.0
    %v2983 = vand.u32 %v1783, 4294901760
    %v2984 = vsub.f32 %v1783, %v2983
    %2985 = vmatmul.mubr.f32.gmra.mrb[0].mxu0 %v2984
    %v2986 = vpop.f32.mrb[0].mxu0
    %v2987 = vadd.f32 %v2861, %v2986
    %v2988 = vpop.f32.mrb[0].mxu0
    %v2989 = vadd.f32 %v2863, %v2988
    %2990 = vmatprep.mubr.f32.mxu0 0.0
    %v2991 = vand.u32 %v1786, 4294901760
    %v2992 = vsub.f32 %v1786, %v2991
    %2993 = vmatmul.mubr.f32.gmra.mrb[0].mxu0 %v2992
    %v2994 = vpop.f32.mrb[0].mxu0
    %v2995 = vadd.f32 %v2868, %v2994
    %v2996 = vpop.f32.mrb[0].mxu0
    %v2997 = vadd.f32 %v2870, %v2996
    %2998 = vmatprep.mubr.f32.mxu0 0.0
    %v2999 = vand.u32 %v1789, 4294901760
    %v3000 = vsub.f32 %v1789, %v2999
    %3001 = vmatmul.mubr.f32.gmra.mrb[0].mxu0 %v3000
    %v3002 = vpop.f32.mrb[0].mxu0
    %v3003 = vadd.f32 %v2875, %v3002
    %v3004 = vpop.f32.mrb[0].mxu0
    %v3005 = vadd.f32 %v2877, %v3004
    %3006 = vmatprep.mubr.f32.mxu0 0.0
    %v3007 = vand.u32 %v1792, 4294901760
    %v3008 = vsub.f32 %v1792, %v3007
    %3009 = vmatmul.mubr.f32.gmra.mrb[0].mxu0 %v3008
    %v3010 = vpop.f32.mrb[0].mxu0
    %v3011 = vadd.f32 %v2882, %v3010
    %v3012 = vpop.f32.mrb[0].mxu0
    %v3013 = vadd.f32 %v2884, %v3012
    %3014 = vdwg.mxu0
    %v3015 = vand.u32 %v1753, 4294901760
    %3016 = vmatprep.subr.mxu0 %v3015
    %v3017 = vand.u32 %v1752, 4294901760
    %3018 = vmatpush1.msra.mxu0 %v3017
    %v3019 = vand.u32 %v1757, 4294901760
    %3020 = vmatprep.subr.mxu0 %v3019
    %v3021 = vand.u32 %v1756, 4294901760
    %3022 = vmatpush1.msra.mxu0 %v3021
    %v3023 = vand.u32 %v1761, 4294901760
    %3024 = vmatprep.subr.mxu0 %v3023
    %v3025 = vand.u32 %v1760, 4294901760
    %3026 = vmatpush1.msra.mxu0 %v3025
    %v3027 = vand.u32 %v1765, 4294901760
    %3028 = vmatprep.subr.mxu0 %v3027
    %v3029 = vand.u32 %v1764, 4294901760
    %3030 = vmatpush1.msra.mxu0 %v3029
    %v3031 = vand.u32 %v1769, 4294901760
    %3032 = vmatprep.subr.mxu0 %v3031
    %v3033 = vand.u32 %v1768, 4294901760
    %3034 = vmatpush1.msra.mxu0 %v3033
    %v3035 = vand.u32 %v1773, 4294901760
    %3036 = vmatprep.subr.mxu0 %v3035
    %v3037 = vand.u32 %v1772, 4294901760
    %3038 = vmatpush1.msra.mxu0 %v3037
    %v3039 = vand.u32 %v1777, 4294901760
    %3040 = vmatprep.subr.mxu0 %v3039
    %v3041 = vand.u32 %v1776, 4294901760
    %3042 = vmatpush1.msra.mxu0 %v3041
    %v3043 = vand.u32 %v1781, 4294901760
    %3044 = vmatprep.subr.mxu0 %v3043
    %v3045 = vand.u32 %v1780, 4294901760
    %3046 = vmatpush1.msra.mxu0 %v3045
    %3047 = vmatprep.subr.mxu0 0.0
    %3048 = vmatpush1.msra.mxu0 0.0
    %3049 = vmatprep.subr.mxu0 0.0
    %3050 = vmatpush1.msra.mxu0 0.0
    %3051 = vmatprep.subr.mxu0 0.0
    %3052 = vmatpush1.msra.mxu0 0.0
    %3053 = vmatprep.subr.mxu0 0.0
    %3054 = vmatpush1.msra.mxu0 0.0
    %3055 = vmatprep.subr.mxu0 0.0
    %3056 = vmatpush1.msra.mxu0 0.0
    %3057 = vmatprep.subr.mxu0 0.0
    %3058 = vmatpush1.msra.mxu0 0.0
    %3059 = vmatprep.subr.mxu0 0.0
    %3060 = vmatpush1.msra.mxu0 0.0
    %3061 = vmatprep.subr.mxu0 0.0
    %3062 = vmatpush1.msra.mxu0 0.0
    %3063 = vmatprep.subr.mxu0 0.0
    %3064 = vmatpush1.msra.mxu0 0.0
    %3065 = vmatprep.subr.mxu0 0.0
    %3066 = vmatpush1.msra.mxu0 0.0
    %3067 = vmatprep.subr.mxu0 0.0
    %3068 = vmatpush1.msra.mxu0 0.0
    %3069 = vmatprep.subr.mxu0 0.0
    %3070 = vmatpush1.msra.mxu0 0.0
    %3071 = vmatprep.subr.mxu0 0.0
    %3072 = vmatpush1.msra.mxu0 0.0
    %3073 = vmatprep.subr.mxu0 0.0
    %3074 = vmatpush1.msra.mxu0 0.0
    %3075 = vmatprep.subr.mxu0 0.0
    %3076 = vmatpush1.msra.mxu0 0.0
    %3077 = vmatprep.subr.mxu0 0.0
    %3078 = vmatpush1.msra.mxu0 0.0
    %3079 = vmatprep.subr.mxu0 0.0
    %3080 = vmatpush1.msra.mxu0 0.0
    %3081 = vmatprep.subr.mxu0 0.0
    %3082 = vmatpush1.msra.mxu0 0.0
    %3083 = vmatprep.subr.mxu0 0.0
    %3084 = vmatpush1.msra.mxu0 0.0
    %3085 = vmatprep.subr.mxu0 0.0
    %3086 = vmatpush1.msra.mxu0 0.0
    %3087 = vmatprep.subr.mxu0 0.0
    %3088 = vmatpush1.msra.mxu0 0.0
    %3089 = vmatprep.subr.mxu0 0.0
    %3090 = vmatpush1.msra.mxu0 0.0
    %3091 = vmatprep.subr.mxu0 0.0
    %3092 = vmatpush1.msra.mxu0 0.0
    %3093 = vmatprep.subr.mxu0 0.0
    %3094 = vmatpush1.msra.mxu0 0.0
    %3095 = vmatprep.mubr.f32.mxu0 0.0
    %v3096 = vand.u32 %v1783, 4294901760
    %v3097 = vsub.f32 %v1783, %v3096
    %v3098 = vand.u32 %v3097, 4294901760
    %3099 = vmatmul.mubr.f32.gmra.mrb[0].mxu0 %v3098
    %v3100 = vpop.f32.mrb[0].mxu0
    %v3101 = vadd.f32 %v2987, %v3100
    %v3102 = vpop.f32.mrb[0].mxu0
    %v3103 = vadd.f32 %v2989, %v3102
    %3104 = vmatprep.mubr.f32.mxu0 0.0
    %v3105 = vand.u32 %v1786, 4294901760
    %v3106 = vsub.f32 %v1786, %v3105
    %v3107 = vand.u32 %v3106, 4294901760
    %3108 = vmatmul.mubr.f32.gmra.mrb[0].mxu0 %v3107
    %v3109 = vpop.f32.mrb[0].mxu0
    %v3110 = vadd.f32 %v2995, %v3109
    %v3111 = vpop.f32.mrb[0].mxu0
    %v3112 = vadd.f32 %v2997, %v3111
    %3113 = vmatprep.mubr.f32.mxu0 0.0
    %v3114 = vand.u32 %v1789, 4294901760
    %v3115 = vsub.f32 %v1789, %v3114
    %v3116 = vand.u32 %v3115, 4294901760
    %3117 = vmatmul.mubr.f32.gmra.mrb[0].mxu0 %v3116
    %v3118 = vpop.f32.mrb[0].mxu0
    %v3119 = vadd.f32 %v3003, %v3118
    %v3120 = vpop.f32.mrb[0].mxu0
    %v3121 = vadd.f32 %v3005, %v3120
    %3122 = vmatprep.mubr.f32.mxu0 0.0
    %v3123 = vand.u32 %v1792, 4294901760
    %v3124 = vsub.f32 %v1792, %v3123
    %v3125 = vand.u32 %v3124, 4294901760
    %3126 = vmatmul.mubr.f32.gmra.mrb[0].mxu0 %v3125
    %v3127 = vpop.f32.mrb[0].mxu0
    %v3128 = vadd.f32 %v3011, %v3127
    %v3129 = vpop.f32.mrb[0].mxu0
    %v3130 = vadd.f32 %v3013, %v3129
    %3131 = vdwg.mxu0
    %v3132 = vand.u32 %v1753, 4294901760
    %v3133 = vsub.f32 %v1753, %v3132
    %v3134 = vand.u32 %v3133, 4294901760
    %3135 = vmatprep.subr.mxu0 %v3134
    %v3136 = vand.u32 %v1752, 4294901760
    %v3137 = vsub.f32 %v1752, %v3136
    %v3138 = vand.u32 %v3137, 4294901760
    %3139 = vmatpush1.msra.mxu0 %v3138
    %v3140 = vand.u32 %v1757, 4294901760
    %v3141 = vsub.f32 %v1757, %v3140
    %v3142 = vand.u32 %v3141, 4294901760
    %3143 = vmatprep.subr.mxu0 %v3142
    %v3144 = vand.u32 %v1756, 4294901760
    %v3145 = vsub.f32 %v1756, %v3144
    %v3146 = vand.u32 %v3145, 4294901760
    %3147 = vmatpush1.msra.mxu0 %v3146
    %v3148 = vand.u32 %v1761, 4294901760
    %v3149 = vsub.f32 %v1761, %v3148
    %v3150 = vand.u32 %v3149, 4294901760
    %3151 = vmatprep.subr.mxu0 %v3150
    %v3152 = vand.u32 %v1760, 4294901760
    %v3153 = vsub.f32 %v1760, %v3152
    %v3154 = vand.u32 %v3153, 4294901760
    %3155 = vmatpush1.msra.mxu0 %v3154
    %v3156 = vand.u32 %v1765, 4294901760
    %v3157 = vsub.f32 %v1765, %v3156
    %v3158 = vand.u32 %v3157, 4294901760
    %3159 = vmatprep.subr.mxu0 %v3158
    %v3160 = vand.u32 %v1764, 4294901760
    %v3161 = vsub.f32 %v1764, %v3160
    %v3162 = vand.u32 %v3161, 4294901760
    %3163 = vmatpush1.msra.mxu0 %v3162
    %v3164 = vand.u32 %v1769, 4294901760
    %v3165 = vsub.f32 %v1769, %v3164
    %v3166 = vand.u32 %v3165, 4294901760
    %3167 = vmatprep.subr.mxu0 %v3166
    %v3168 = vand.u32 %v1768, 4294901760
    %v3169 = vsub.f32 %v1768, %v3168
    %v3170 = vand.u32 %v3169, 4294901760
    %3171 = vmatpush1.msra.mxu0 %v3170
    %v3172 = vand.u32 %v1773, 4294901760
    %v3173 = vsub.f32 %v1773, %v3172
    %v3174 = vand.u32 %v3173, 4294901760
    %3175 = vmatprep.subr.mxu0 %v3174
    %v3176 = vand.u32 %v1772, 4294901760
    %v3177 = vsub.f32 %v1772, %v3176
    %v3178 = vand.u32 %v3177, 4294901760
    %3179 = vmatpush1.msra.mxu0 %v3178
    %v3180 = vand.u32 %v1777, 4294901760
    %v3181 = vsub.f32 %v1777, %v3180
    %v3182 = vand.u32 %v3181, 4294901760
    %3183 = vmatprep.subr.mxu0 %v3182
    %v3184 = vand.u32 %v1776, 4294901760
    %v3185 = vsub.f32 %v1776, %v3184
    %v3186 = vand.u32 %v3185, 4294901760
    %3187 = vmatpush1.msra.mxu0 %v3186
    %v3188 = vand.u32 %v1781, 4294901760
    %v3189 = vsub.f32 %v1781, %v3188
    %v3190 = vand.u32 %v3189, 4294901760
    %3191 = vmatprep.subr.mxu0 %v3190
    %v3192 = vand.u32 %v1780, 4294901760
    %v3193 = vsub.f32 %v1780, %v3192
    %v3194 = vand.u32 %v3193, 4294901760
    %3195 = vmatpush1.msra.mxu0 %v3194
    %3196 = vmatprep.subr.mxu0 0.0
    %3197 = vmatpush1.msra.mxu0 0.0
    %3198 = vmatprep.subr.mxu0 0.0
    %3199 = vmatpush1.msra.mxu0 0.0
    %3200 = vmatprep.subr.mxu0 0.0
    %3201 = vmatpush1.msra.mxu0 0.0
    %3202 = vmatprep.subr.mxu0 0.0
    %3203 = vmatpush1.msra.mxu0 0.0
    %3204 = vmatprep.subr.mxu0 0.0
    %3205 = vmatpush1.msra.mxu0 0.0
    %3206 = vmatprep.subr.mxu0 0.0
    %3207 = vmatpush1.msra.mxu0 0.0
    %3208 = vmatprep.subr.mxu0 0.0
    %3209 = vmatpush1.msra.mxu0 0.0
    %3210 = vmatprep.subr.mxu0 0.0
    %3211 = vmatpush1.msra.mxu0 0.0
    %3212 = vmatprep.subr.mxu0 0.0
    %3213 = vmatpush1.msra.mxu0 0.0
    %3214 = vmatprep.subr.mxu0 0.0
    %3215 = vmatpush1.msra.mxu0 0.0
    %3216 = vmatprep.subr.mxu0 0.0
    %3217 = vmatpush1.msra.mxu0 0.0
    %3218 = vmatprep.subr.mxu0 0.0
    %3219 = vmatpush1.msra.mxu0 0.0
    %3220 = vmatprep.subr.mxu0 0.0
    %3221 = vmatpush1.msra.mxu0 0.0
    %3222 = vmatprep.subr.mxu0 0.0
    %3223 = vmatpush1.msra.mxu0 0.0
    %3224 = vmatprep.subr.mxu0 0.0
    %3225 = vmatpush1.msra.mxu0 0.0
    %3226 = vmatprep.subr.mxu0 0.0
    %3227 = vmatpush1.msra.mxu0 0.0
    %3228 = vmatprep.subr.mxu0 0.0
    %3229 = vmatpush1.msra.mxu0 0.0
    %3230 = vmatprep.subr.mxu0 0.0
    %3231 = vmatpush1.msra.mxu0 0.0
    %3232 = vmatprep.subr.mxu0 0.0
    %3233 = vmatpush1.msra.mxu0 0.0
    %3234 = vmatprep.subr.mxu0 0.0
    %3235 = vmatpush1.msra.mxu0 0.0
    %3236 = vmatprep.subr.mxu0 0.0
    %3237 = vmatpush1.msra.mxu0 0.0
    %3238 = vmatprep.subr.mxu0 0.0
    %3239 = vmatpush1.msra.mxu0 0.0
    %3240 = vmatprep.subr.mxu0 0.0
    %3241 = vmatpush1.msra.mxu0 0.0
    %3242 = vmatprep.subr.mxu0 0.0
    %3243 = vmatpush1.msra.mxu0 0.0
    %3244 = vmatprep.mubr.f32.mxu0 0.0
    %v3245 = vand.u32 %v1783, 4294901760
    %3246 = vmatmul.mubr.f32.gmra.mrb[0].mxu0 %v3245
    %v3247 = vpop.f32.mrb[0].mxu0
    %v3248 = vadd.f32 %v3101, %v3247
    %v3249 = vpop.f32.mrb[0].mxu0
    %v3250 = vadd.f32 %v3103, %v3249
    %3251 = vmatprep.mubr.f32.mxu0 0.0
    %v3252 = vand.u32 %v1786, 4294901760
    %3253 = vmatmul.mubr.f32.gmra.mrb[0].mxu0 %v3252
    %v3254 = vpop.f32.mrb[0].mxu0
    %v3255 = vadd.f32 %v3110, %v3254
    %v3256 = vpop.f32.mrb[0].mxu0
    %v3257 = vadd.f32 %v3112, %v3256
    %3258 = vmatprep.mubr.f32.mxu0 0.0
    %v3259 = vand.u32 %v1789, 4294901760
    %3260 = vmatmul.mubr.f32.gmra.mrb[0].mxu0 %v3259
    %v3261 = vpop.f32.mrb[0].mxu0
    %v3262 = vadd.f32 %v3119, %v3261
    %v3263 = vpop.f32.mrb[0].mxu0
    %v3264 = vadd.f32 %v3121, %v3263
    %3265 = vmatprep.mubr.f32.mxu0 0.0
    %v3266 = vand.u32 %v1792, 4294901760
    %3267 = vmatmul.mubr.f32.gmra.mrb[0].mxu0 %v3266
    %v3268 = vpop.f32.mrb[0].mxu0
    %v3269 = vadd.f32 %v3128, %v3268
    %v3270 = vpop.f32.mrb[0].mxu0
    %v3271 = vadd.f32 %v3130, %v3270
    %3272 = vdwg.mxu0
    %v3273 = vand.u32 %v1753, 4294901760
    %3274 = vmatprep.subr.mxu0 %v3273
    %v3275 = vand.u32 %v1752, 4294901760
    %3276 = vmatpush1.msra.mxu0 %v3275
    %v3277 = vand.u32 %v1757, 4294901760
    %3278 = vmatprep.subr.mxu0 %v3277
    %v3279 = vand.u32 %v1756, 4294901760
    %3280 = vmatpush1.msra.mxu0 %v3279
    %v3281 = vand.u32 %v1761, 4294901760
    %3282 = vmatprep.subr.mxu0 %v3281
    %v3283 = vand.u32 %v1760, 4294901760
    %3284 = vmatpush1.msra.mxu0 %v3283
    %v3285 = vand.u32 %v1765, 4294901760
    %3286 = vmatprep.subr.mxu0 %v3285
    %v3287 = vand.u32 %v1764, 4294901760
    %3288 = vmatpush1.msra.mxu0 %v3287
    %v3289 = vand.u32 %v1769, 4294901760
    %3290 = vmatprep.subr.mxu0 %v3289
    %v3291 = vand.u32 %v1768, 4294901760
    %3292 = vmatpush1.msra.mxu0 %v3291
    %v3293 = vand.u32 %v1773, 4294901760
    %3294 = vmatprep.subr.mxu0 %v3293
    %v3295 = vand.u32 %v1772, 4294901760
    %3296 = vmatpush1.msra.mxu0 %v3295
    %v3297 = vand.u32 %v1777, 4294901760
    %3298 = vmatprep.subr.mxu0 %v3297
    %v3299 = vand.u32 %v1776, 4294901760
    %3300 = vmatpush1.msra.mxu0 %v3299
    %v3301 = vand.u32 %v1781, 4294901760
    %3302 = vmatprep.subr.mxu0 %v3301
    %v3303 = vand.u32 %v1780, 4294901760
    %3304 = vmatpush1.msra.mxu0 %v3303
    %3305 = vmatprep.subr.mxu0 0.0
    %3306 = vmatpush1.msra.mxu0 0.0
    %3307 = vmatprep.subr.mxu0 0.0
    %3308 = vmatpush1.msra.mxu0 0.0
    %3309 = vmatprep.subr.mxu0 0.0
    %3310 = vmatpush1.msra.mxu0 0.0
    %3311 = vmatprep.subr.mxu0 0.0
    %3312 = vmatpush1.msra.mxu0 0.0
    %3313 = vmatprep.subr.mxu0 0.0
    %3314 = vmatpush1.msra.mxu0 0.0
    %3315 = vmatprep.subr.mxu0 0.0
    %3316 = vmatpush1.msra.mxu0 0.0
    %3317 = vmatprep.subr.mxu0 0.0
    %3318 = vmatpush1.msra.mxu0 0.0
    %3319 = vmatprep.subr.mxu0 0.0
    %3320 = vmatpush1.msra.mxu0 0.0
    %3321 = vmatprep.subr.mxu0 0.0
    %3322 = vmatpush1.msra.mxu0 0.0
    %3323 = vmatprep.subr.mxu0 0.0
    %3324 = vmatpush1.msra.mxu0 0.0
    %3325 = vmatprep.subr.mxu0 0.0
    %3326 = vmatpush1.msra.mxu0 0.0
    %3327 = vmatprep.subr.mxu0 0.0
    %3328 = vmatpush1.msra.mxu0 0.0
    %3329 = vmatprep.subr.mxu0 0.0
    %3330 = vmatpush1.msra.mxu0 0.0
    %3331 = vmatprep.subr.mxu0 0.0
    %3332 = vmatpush1.msra.mxu0 0.0
    %3333 = vmatprep.subr.mxu0 0.0
    %3334 = vmatpush1.msra.mxu0 0.0
    %3335 = vmatprep.subr.mxu0 0.0
    %3336 = vmatpush1.msra.mxu0 0.0
    %3337 = vmatprep.subr.mxu0 0.0
    %3338 = vmatpush1.msra.mxu0 0.0
    %3339 = vmatprep.subr.mxu0 0.0
    %3340 = vmatpush1.msra.mxu0 0.0
    %3341 = vmatprep.subr.mxu0 0.0
    %3342 = vmatpush1.msra.mxu0 0.0
    %3343 = vmatprep.subr.mxu0 0.0
    %3344 = vmatpush1.msra.mxu0 0.0
    %3345 = vmatprep.subr.mxu0 0.0
    %3346 = vmatpush1.msra.mxu0 0.0
    %3347 = vmatprep.subr.mxu0 0.0
    %3348 = vmatpush1.msra.mxu0 0.0
    %3349 = vmatprep.subr.mxu0 0.0
    %3350 = vmatpush1.msra.mxu0 0.0
    %3351 = vmatprep.subr.mxu0 0.0
    %3352 = vmatpush1.msra.mxu0 0.0
    %3353 = vmatprep.mubr.f32.mxu0 0.0
    %v3354 = vand.u32 %v1783, 4294901760
    %3355 = vmatmul.mubr.f32.gmra.mrb[0].mxu0 %v3354
    %v3356 = vpop.f32.mrb[0].mxu0
    %v3357 = vadd.f32 %v3248, %v3356
    %v3358 = vpop.f32.mrb[0].mxu0
    %v3359 = vadd.f32 %v3250, %v3358
    %3360 = vmatprep.mubr.f32.mxu0 0.0
    %v3361 = vand.u32 %v1786, 4294901760
    %3362 = vmatmul.mubr.f32.gmra.mrb[0].mxu0 %v3361
    %v3363 = vpop.f32.mrb[0].mxu0
    %v3364 = vadd.f32 %v3255, %v3363
    %v3365 = vpop.f32.mrb[0].mxu0
    %v3366 = vadd.f32 %v3257, %v3365
    %3367 = vmatprep.mubr.f32.mxu0 0.0
    %v3368 = vand.u32 %v1789, 4294901760
    %3369 = vmatmul.mubr.f32.gmra.mrb[0].mxu0 %v3368
    %v3370 = vpop.f32.mrb[0].mxu0
    %v3371 = vadd.f32 %v3262, %v3370
    %v3372 = vpop.f32.mrb[0].mxu0
    %v3373 = vadd.f32 %v3264, %v3372
    %3374 = vmatprep.mubr.f32.mxu0 0.0
    %v3375 = vand.u32 %v1792, 4294901760
    %3376 = vmatmul.mubr.f32.gmra.mrb[0].mxu0 %v3375
    %v3377 = vpop.f32.mrb[0].mxu0
    %v3378 = vadd.f32 %v3269, %v3377
    %v3379 = vpop.f32.mrb[0].mxu0
    %v3380 = vadd.f32 %v3271, %v3379
    %3381 = vdwg.mxu0
    %v3383 = vsel %vm56, %v72, 0
    %v3386 = vsel %vm56, %v73, 0
    %v3389 = vsel %vm56, %v74, 0
    %v3392 = vsel %vm56, %v75, 0
    %v3394 = vand.u32 %v77, 4294901760
    %3395 = vmatprep.subr.mxu0 %v3394
    %v3396 = vand.u32 %v76, 4294901760
    %3397 = vmatpush1.msra.mxu0 %v3396
    %v3398 = vand.u32 %v81, 4294901760
    %3399 = vmatprep.subr.mxu0 %v3398
    %v3400 = vand.u32 %v80, 4294901760
    %3401 = vmatpush1.msra.mxu0 %v3400
    %v3402 = vand.u32 %v85, 4294901760
    %3403 = vmatprep.subr.mxu0 %v3402
    %v3404 = vand.u32 %v84, 4294901760
    %3405 = vmatpush1.msra.mxu0 %v3404
    %v3406 = vand.u32 %v89, 4294901760
    %3407 = vmatprep.subr.mxu0 %v3406
    %v3408 = vand.u32 %v88, 4294901760
    %3409 = vmatpush1.msra.mxu0 %v3408
    %v3410 = vand.u32 %v93, 4294901760
    %3411 = vmatprep.subr.mxu0 %v3410
    %v3412 = vand.u32 %v92, 4294901760
    %3413 = vmatpush1.msra.mxu0 %v3412
    %v3414 = vand.u32 %v97, 4294901760
    %3415 = vmatprep.subr.mxu0 %v3414
    %v3416 = vand.u32 %v96, 4294901760
    %3417 = vmatpush1.msra.mxu0 %v3416
    %v3418 = vand.u32 %v101, 4294901760
    %3419 = vmatprep.subr.mxu0 %v3418
    %v3420 = vand.u32 %v100, 4294901760
    %3421 = vmatpush1.msra.mxu0 %v3420
    %v3422 = vand.u32 %v105, 4294901760
    %3423 = vmatprep.subr.mxu0 %v3422
    %v3424 = vand.u32 %v104, 4294901760
    %3425 = vmatpush1.msra.mxu0 %v3424
    %3426 = vmatprep.subr.mxu0 0.0
    %3427 = vmatpush1.msra.mxu0 0.0
    %3428 = vmatprep.subr.mxu0 0.0
    %3429 = vmatpush1.msra.mxu0 0.0
    %3430 = vmatprep.subr.mxu0 0.0
    %3431 = vmatpush1.msra.mxu0 0.0
    %3432 = vmatprep.subr.mxu0 0.0
    %3433 = vmatpush1.msra.mxu0 0.0
    %3434 = vmatprep.subr.mxu0 0.0
    %3435 = vmatpush1.msra.mxu0 0.0
    %3436 = vmatprep.subr.mxu0 0.0
    %3437 = vmatpush1.msra.mxu0 0.0
    %3438 = vmatprep.subr.mxu0 0.0
    %3439 = vmatpush1.msra.mxu0 0.0
    %3440 = vmatprep.subr.mxu0 0.0
    %3441 = vmatpush1.msra.mxu0 0.0
    %3442 = vmatprep.subr.mxu0 0.0
    %3443 = vmatpush1.msra.mxu0 0.0
    %3444 = vmatprep.subr.mxu0 0.0
    %3445 = vmatpush1.msra.mxu0 0.0
    %3446 = vmatprep.subr.mxu0 0.0
    %3447 = vmatpush1.msra.mxu0 0.0
    %3448 = vmatprep.subr.mxu0 0.0
    %3449 = vmatpush1.msra.mxu0 0.0
    %3450 = vmatprep.subr.mxu0 0.0
    %3451 = vmatpush1.msra.mxu0 0.0
    %3452 = vmatprep.subr.mxu0 0.0
    %3453 = vmatpush1.msra.mxu0 0.0
    %3454 = vmatprep.subr.mxu0 0.0
    %3455 = vmatpush1.msra.mxu0 0.0
    %3456 = vmatprep.subr.mxu0 0.0
    %3457 = vmatpush1.msra.mxu0 0.0
    %3458 = vmatprep.subr.mxu0 0.0
    %3459 = vmatpush1.msra.mxu0 0.0
    %3460 = vmatprep.subr.mxu0 0.0
    %3461 = vmatpush1.msra.mxu0 0.0
    %3462 = vmatprep.subr.mxu0 0.0
    %3463 = vmatpush1.msra.mxu0 0.0
    %3464 = vmatprep.subr.mxu0 0.0
    %3465 = vmatpush1.msra.mxu0 0.0
    %3466 = vmatprep.subr.mxu0 0.0
    %3467 = vmatpush1.msra.mxu0 0.0
    %3468 = vmatprep.subr.mxu0 0.0
    %3469 = vmatpush1.msra.mxu0 0.0
    %3470 = vmatprep.subr.mxu0 0.0
    %3471 = vmatpush1.msra.mxu0 0.0
    %3472 = vmatprep.subr.mxu0 0.0
    %3473 = vmatpush1.msra.mxu0 0.0
    %3474 = vmatprep.mubr.f32.mxu0 0.0
    %v3475 = vand.u32 %v3383, 4294901760
    %v3476 = vsub.f32 %v3383, %v3475
    %v3477 = vand.u32 %v3476, 4294901760
    %v3478 = vsub.f32 %v3476, %v3477
    %v3479 = vand.u32 %v3478, 4294901760
    %3480 = vmatmul.mubr.f32.gmra.mrb[0].mxu0 %v3479
    %v3481 = vpop.f32.mrb[0].mxu0
    %v3482 = vadd.f32 %v926, %v3481
    %v3483 = vpop.f32.mrb[0].mxu0
    %v3484 = vadd.f32 %v928, %v3483
    %3485 = vmatprep.mubr.f32.mxu0 0.0
    %v3486 = vand.u32 %v3386, 4294901760
    %v3487 = vsub.f32 %v3386, %v3486
    %v3488 = vand.u32 %v3487, 4294901760
    %v3489 = vsub.f32 %v3487, %v3488
    %v3490 = vand.u32 %v3489, 4294901760
    %3491 = vmatmul.mubr.f32.gmra.mrb[0].mxu0 %v3490
    %v3492 = vpop.f32.mrb[0].mxu0
    %v3493 = vadd.f32 %v933, %v3492
    %v3494 = vpop.f32.mrb[0].mxu0
    %v3495 = vadd.f32 %v935, %v3494
    %3496 = vmatprep.mubr.f32.mxu0 0.0
    %v3497 = vand.u32 %v3389, 4294901760
    %v3498 = vsub.f32 %v3389, %v3497
    %v3499 = vand.u32 %v3498, 4294901760
    %v3500 = vsub.f32 %v3498, %v3499
    %v3501 = vand.u32 %v3500, 4294901760
    %3502 = vmatmul.mubr.f32.gmra.mrb[0].mxu0 %v3501
    %v3503 = vpop.f32.mrb[0].mxu0
    %v3504 = vadd.f32 %v940, %v3503
    %v3505 = vpop.f32.mrb[0].mxu0
    %v3506 = vadd.f32 %v942, %v3505
    %3507 = vmatprep.mubr.f32.mxu0 0.0
    %v3508 = vand.u32 %v3392, 4294901760
    %v3509 = vsub.f32 %v3392, %v3508
    %v3510 = vand.u32 %v3509, 4294901760
    %v3511 = vsub.f32 %v3509, %v3510
    %v3512 = vand.u32 %v3511, 4294901760
    %3513 = vmatmul.mubr.f32.gmra.mrb[0].mxu0 %v3512
    %v3514 = vpop.f32.mrb[0].mxu0
    %v3515 = vadd.f32 %v947, %v3514
    %v3516 = vpop.f32.mrb[0].mxu0
    %v3517 = vadd.f32 %v949, %v3516
    %3518 = vdwg.mxu0
    %v3519 = vand.u32 %v77, 4294901760
    %v3520 = vsub.f32 %v77, %v3519
    %v3521 = vand.u32 %v3520, 4294901760
    %v3522 = vsub.f32 %v3520, %v3521
    %v3523 = vand.u32 %v3522, 4294901760
    %3524 = vmatprep.subr.mxu0 %v3523
    %v3525 = vand.u32 %v76, 4294901760
    %v3526 = vsub.f32 %v76, %v3525
    %v3527 = vand.u32 %v3526, 4294901760
    %v3528 = vsub.f32 %v3526, %v3527
    %v3529 = vand.u32 %v3528, 4294901760
    %3530 = vmatpush1.msra.mxu0 %v3529
    %v3531 = vand.u32 %v81, 4294901760
    %v3532 = vsub.f32 %v81, %v3531
    %v3533 = vand.u32 %v3532, 4294901760
    %v3534 = vsub.f32 %v3532, %v3533
    %v3535 = vand.u32 %v3534, 4294901760
    %3536 = vmatprep.subr.mxu0 %v3535
    %v3537 = vand.u32 %v80, 4294901760
    %v3538 = vsub.f32 %v80, %v3537
    %v3539 = vand.u32 %v3538, 4294901760
    %v3540 = vsub.f32 %v3538, %v3539
    %v3541 = vand.u32 %v3540, 4294901760
    %3542 = vmatpush1.msra.mxu0 %v3541
    %v3543 = vand.u32 %v85, 4294901760
    %v3544 = vsub.f32 %v85, %v3543
    %v3545 = vand.u32 %v3544, 4294901760
    %v3546 = vsub.f32 %v3544, %v3545
    %v3547 = vand.u32 %v3546, 4294901760
    %3548 = vmatprep.subr.mxu0 %v3547
    %v3549 = vand.u32 %v84, 4294901760
    %v3550 = vsub.f32 %v84, %v3549
    %v3551 = vand.u32 %v3550, 4294901760
    %v3552 = vsub.f32 %v3550, %v3551
    %v3553 = vand.u32 %v3552, 4294901760
    %3554 = vmatpush1.msra.mxu0 %v3553
    %v3555 = vand.u32 %v89, 4294901760
    %v3556 = vsub.f32 %v89, %v3555
    %v3557 = vand.u32 %v3556, 4294901760
    %v3558 = vsub.f32 %v3556, %v3557
    %v3559 = vand.u32 %v3558, 4294901760
    %3560 = vmatprep.subr.mxu0 %v3559
    %v3561 = vand.u32 %v88, 4294901760
    %v3562 = vsub.f32 %v88, %v3561
    %v3563 = vand.u32 %v3562, 4294901760
    %v3564 = vsub.f32 %v3562, %v3563
    %v3565 = vand.u32 %v3564, 4294901760
    %3566 = vmatpush1.msra.mxu0 %v3565
    %v3567 = vand.u32 %v93, 4294901760
    %v3568 = vsub.f32 %v93, %v3567
    %v3569 = vand.u32 %v3568, 4294901760
    %v3570 = vsub.f32 %v3568, %v3569
    %v3571 = vand.u32 %v3570, 4294901760
    %3572 = vmatprep.subr.mxu0 %v3571
    %v3573 = vand.u32 %v92, 4294901760
    %v3574 = vsub.f32 %v92, %v3573
    %v3575 = vand.u32 %v3574, 4294901760
    %v3576 = vsub.f32 %v3574, %v3575
    %v3577 = vand.u32 %v3576, 4294901760
    %3578 = vmatpush1.msra.mxu0 %v3577
    %v3579 = vand.u32 %v97, 4294901760
    %v3580 = vsub.f32 %v97, %v3579
    %v3581 = vand.u32 %v3580, 4294901760
    %v3582 = vsub.f32 %v3580, %v3581
    %v3583 = vand.u32 %v3582, 4294901760
    %3584 = vmatprep.subr.mxu0 %v3583
    %v3585 = vand.u32 %v96, 4294901760
    %v3586 = vsub.f32 %v96, %v3585
    %v3587 = vand.u32 %v3586, 4294901760
    %v3588 = vsub.f32 %v3586, %v3587
    %v3589 = vand.u32 %v3588, 4294901760
    %3590 = vmatpush1.msra.mxu0 %v3589
    %v3591 = vand.u32 %v101, 4294901760
    %v3592 = vsub.f32 %v101, %v3591
    %v3593 = vand.u32 %v3592, 4294901760
    %v3594 = vsub.f32 %v3592, %v3593
    %v3595 = vand.u32 %v3594, 4294901760
    %3596 = vmatprep.subr.mxu0 %v3595
    %v3597 = vand.u32 %v100, 4294901760
    %v3598 = vsub.f32 %v100, %v3597
    %v3599 = vand.u32 %v3598, 4294901760
    %v3600 = vsub.f32 %v3598, %v3599
    %v3601 = vand.u32 %v3600, 4294901760
    %3602 = vmatpush1.msra.mxu0 %v3601
    %v3603 = vand.u32 %v105, 4294901760
    %v3604 = vsub.f32 %v105, %v3603
    %v3605 = vand.u32 %v3604, 4294901760
    %v3606 = vsub.f32 %v3604, %v3605
    %v3607 = vand.u32 %v3606, 4294901760
    %3608 = vmatprep.subr.mxu0 %v3607
    %v3609 = vand.u32 %v104, 4294901760
    %v3610 = vsub.f32 %v104, %v3609
    %v3611 = vand.u32 %v3610, 4294901760
    %v3612 = vsub.f32 %v3610, %v3611
    %v3613 = vand.u32 %v3612, 4294901760
    %3614 = vmatpush1.msra.mxu0 %v3613
    %3615 = vmatprep.subr.mxu0 0.0
    %3616 = vmatpush1.msra.mxu0 0.0
    %3617 = vmatprep.subr.mxu0 0.0
    %3618 = vmatpush1.msra.mxu0 0.0
    %3619 = vmatprep.subr.mxu0 0.0
    %3620 = vmatpush1.msra.mxu0 0.0
    %3621 = vmatprep.subr.mxu0 0.0
    %3622 = vmatpush1.msra.mxu0 0.0
    %3623 = vmatprep.subr.mxu0 0.0
    %3624 = vmatpush1.msra.mxu0 0.0
    %3625 = vmatprep.subr.mxu0 0.0
    %3626 = vmatpush1.msra.mxu0 0.0
    %3627 = vmatprep.subr.mxu0 0.0
    %3628 = vmatpush1.msra.mxu0 0.0
    %3629 = vmatprep.subr.mxu0 0.0
    %3630 = vmatpush1.msra.mxu0 0.0
    %3631 = vmatprep.subr.mxu0 0.0
    %3632 = vmatpush1.msra.mxu0 0.0
    %3633 = vmatprep.subr.mxu0 0.0
    %3634 = vmatpush1.msra.mxu0 0.0
    %3635 = vmatprep.subr.mxu0 0.0
    %3636 = vmatpush1.msra.mxu0 0.0
    %3637 = vmatprep.subr.mxu0 0.0
    %3638 = vmatpush1.msra.mxu0 0.0
    %3639 = vmatprep.subr.mxu0 0.0
    %3640 = vmatpush1.msra.mxu0 0.0
    %3641 = vmatprep.subr.mxu0 0.0
    %3642 = vmatpush1.msra.mxu0 0.0
    %3643 = vmatprep.subr.mxu0 0.0
    %3644 = vmatpush1.msra.mxu0 0.0
    %3645 = vmatprep.subr.mxu0 0.0
    %3646 = vmatpush1.msra.mxu0 0.0
    %3647 = vmatprep.subr.mxu0 0.0
    %3648 = vmatpush1.msra.mxu0 0.0
    %3649 = vmatprep.subr.mxu0 0.0
    %3650 = vmatpush1.msra.mxu0 0.0
    %3651 = vmatprep.subr.mxu0 0.0
    %3652 = vmatpush1.msra.mxu0 0.0
    %3653 = vmatprep.subr.mxu0 0.0
    %3654 = vmatpush1.msra.mxu0 0.0
    %3655 = vmatprep.subr.mxu0 0.0
    %3656 = vmatpush1.msra.mxu0 0.0
    %3657 = vmatprep.subr.mxu0 0.0
    %3658 = vmatpush1.msra.mxu0 0.0
    %3659 = vmatprep.subr.mxu0 0.0
    %3660 = vmatpush1.msra.mxu0 0.0
    %3661 = vmatprep.subr.mxu0 0.0
    %3662 = vmatpush1.msra.mxu0 0.0
    %3663 = vmatprep.mubr.f32.mxu0 0.0
    %v3664 = vand.u32 %v3383, 4294901760
    %3665 = vmatmul.mubr.f32.gmra.mrb[0].mxu0 %v3664
    %v3666 = vpop.f32.mrb[0].mxu0
    %v3667 = vadd.f32 %v3482, %v3666
    %v3668 = vpop.f32.mrb[0].mxu0
    %v3669 = vadd.f32 %v3484, %v3668
    %3670 = vmatprep.mubr.f32.mxu0 0.0
    %v3671 = vand.u32 %v3386, 4294901760
    %3672 = vmatmul.mubr.f32.gmra.mrb[0].mxu0 %v3671
    %v3673 = vpop.f32.mrb[0].mxu0
    %v3674 = vadd.f32 %v3493, %v3673
    %v3675 = vpop.f32.mrb[0].mxu0
    %v3676 = vadd.f32 %v3495, %v3675
    %3677 = vmatprep.mubr.f32.mxu0 0.0
    %v3678 = vand.u32 %v3389, 4294901760
    %3679 = vmatmul.mubr.f32.gmra.mrb[0].mxu0 %v3678
    %v3680 = vpop.f32.mrb[0].mxu0
    %v3681 = vadd.f32 %v3504, %v3680
    %v3682 = vpop.f32.mrb[0].mxu0
    %v3683 = vadd.f32 %v3506, %v3682
    %3684 = vmatprep.mubr.f32.mxu0 0.0
    %v3685 = vand.u32 %v3392, 4294901760
    %3686 = vmatmul.mubr.f32.gmra.mrb[0].mxu0 %v3685
    %v3687 = vpop.f32.mrb[0].mxu0
    %v3688 = vadd.f32 %v3515, %v3687
    %v3689 = vpop.f32.mrb[0].mxu0
    %v3690 = vadd.f32 %v3517, %v3689
    %3691 = vdwg.mxu0
    %v3692 = vand.u32 %v77, 4294901760
    %v3693 = vsub.f32 %v77, %v3692
    %3694 = vmatprep.subr.mxu0 %v3693
    %v3695 = vand.u32 %v76, 4294901760
    %v3696 = vsub.f32 %v76, %v3695
    %3697 = vmatpush1.msra.mxu0 %v3696
    %v3698 = vand.u32 %v81, 4294901760
    %v3699 = vsub.f32 %v81, %v3698
    %3700 = vmatprep.subr.mxu0 %v3699
    %v3701 = vand.u32 %v80, 4294901760
    %v3702 = vsub.f32 %v80, %v3701
    %3703 = vmatpush1.msra.mxu0 %v3702
    %v3704 = vand.u32 %v85, 4294901760
    %v3705 = vsub.f32 %v85, %v3704
    %3706 = vmatprep.subr.mxu0 %v3705
    %v3707 = vand.u32 %v84, 4294901760
    %v3708 = vsub.f32 %v84, %v3707
    %3709 = vmatpush1.msra.mxu0 %v3708
    %v3710 = vand.u32 %v89, 4294901760
    %v3711 = vsub.f32 %v89, %v3710
    %3712 = vmatprep.subr.mxu0 %v3711
    %v3713 = vand.u32 %v88, 4294901760
    %v3714 = vsub.f32 %v88, %v3713
    %3715 = vmatpush1.msra.mxu0 %v3714
    %v3716 = vand.u32 %v93, 4294901760
    %v3717 = vsub.f32 %v93, %v3716
    %3718 = vmatprep.subr.mxu0 %v3717
    %v3719 = vand.u32 %v92, 4294901760
    %v3720 = vsub.f32 %v92, %v3719
    %3721 = vmatpush1.msra.mxu0 %v3720
    %v3722 = vand.u32 %v97, 4294901760
    %v3723 = vsub.f32 %v97, %v3722
    %3724 = vmatprep.subr.mxu0 %v3723
    %v3725 = vand.u32 %v96, 4294901760
    %v3726 = vsub.f32 %v96, %v3725
    %3727 = vmatpush1.msra.mxu0 %v3726
    %v3728 = vand.u32 %v101, 4294901760
    %v3729 = vsub.f32 %v101, %v3728
    %3730 = vmatprep.subr.mxu0 %v3729
    %v3731 = vand.u32 %v100, 4294901760
    %v3732 = vsub.f32 %v100, %v3731
    %3733 = vmatpush1.msra.mxu0 %v3732
    %v3734 = vand.u32 %v105, 4294901760
    %v3735 = vsub.f32 %v105, %v3734
    %3736 = vmatprep.subr.mxu0 %v3735
    %v3737 = vand.u32 %v104, 4294901760
    %v3738 = vsub.f32 %v104, %v3737
    %3739 = vmatpush1.msra.mxu0 %v3738
    %3740 = vmatprep.subr.mxu0 0.0
    %3741 = vmatpush1.msra.mxu0 0.0
    %3742 = vmatprep.subr.mxu0 0.0
    %3743 = vmatpush1.msra.mxu0 0.0
    %3744 = vmatprep.subr.mxu0 0.0
    %3745 = vmatpush1.msra.mxu0 0.0
    %3746 = vmatprep.subr.mxu0 0.0
    %3747 = vmatpush1.msra.mxu0 0.0
    %3748 = vmatprep.subr.mxu0 0.0
    %3749 = vmatpush1.msra.mxu0 0.0
    %3750 = vmatprep.subr.mxu0 0.0
    %3751 = vmatpush1.msra.mxu0 0.0
    %3752 = vmatprep.subr.mxu0 0.0
    %3753 = vmatpush1.msra.mxu0 0.0
    %3754 = vmatprep.subr.mxu0 0.0
    %3755 = vmatpush1.msra.mxu0 0.0
    %3756 = vmatprep.subr.mxu0 0.0
    %3757 = vmatpush1.msra.mxu0 0.0
    %3758 = vmatprep.subr.mxu0 0.0
    %3759 = vmatpush1.msra.mxu0 0.0
    %3760 = vmatprep.subr.mxu0 0.0
    %3761 = vmatpush1.msra.mxu0 0.0
    %3762 = vmatprep.subr.mxu0 0.0
    %3763 = vmatpush1.msra.mxu0 0.0
    %3764 = vmatprep.subr.mxu0 0.0
    %3765 = vmatpush1.msra.mxu0 0.0
    %3766 = vmatprep.subr.mxu0 0.0
    %3767 = vmatpush1.msra.mxu0 0.0
    %3768 = vmatprep.subr.mxu0 0.0
    %3769 = vmatpush1.msra.mxu0 0.0
    %3770 = vmatprep.subr.mxu0 0.0
    %3771 = vmatpush1.msra.mxu0 0.0
    %3772 = vmatprep.subr.mxu0 0.0
    %3773 = vmatpush1.msra.mxu0 0.0
    %3774 = vmatprep.subr.mxu0 0.0
    %3775 = vmatpush1.msra.mxu0 0.0
    %3776 = vmatprep.subr.mxu0 0.0
    %3777 = vmatpush1.msra.mxu0 0.0
    %3778 = vmatprep.subr.mxu0 0.0
    %3779 = vmatpush1.msra.mxu0 0.0
    %3780 = vmatprep.subr.mxu0 0.0
    %3781 = vmatpush1.msra.mxu0 0.0
    %3782 = vmatprep.subr.mxu0 0.0
    %3783 = vmatpush1.msra.mxu0 0.0
    %3784 = vmatprep.subr.mxu0 0.0
    %3785 = vmatpush1.msra.mxu0 0.0
    %3786 = vmatprep.subr.mxu0 0.0
    %3787 = vmatpush1.msra.mxu0 0.0
    %3788 = vmatprep.mubr.f32.mxu0 0.0
    %v3789 = vand.u32 %v3383, 4294901760
    %v3790 = vsub.f32 %v3383, %v3789
    %3791 = vmatmul.mubr.f32.gmra.mrb[0].mxu0 %v3790
    %v3792 = vpop.f32.mrb[0].mxu0
    %v3793 = vadd.f32 %v3667, %v3792
    %v3794 = vpop.f32.mrb[0].mxu0
    %v3795 = vadd.f32 %v3669, %v3794
    %3796 = vmatprep.mubr.f32.mxu0 0.0
    %v3797 = vand.u32 %v3386, 4294901760
    %v3798 = vsub.f32 %v3386, %v3797
    %3799 = vmatmul.mubr.f32.gmra.mrb[0].mxu0 %v3798
    %v3800 = vpop.f32.mrb[0].mxu0
    %v3801 = vadd.f32 %v3674, %v3800
    %v3802 = vpop.f32.mrb[0].mxu0
    %v3803 = vadd.f32 %v3676, %v3802
    %3804 = vmatprep.mubr.f32.mxu0 0.0
    %v3805 = vand.u32 %v3389, 4294901760
    %v3806 = vsub.f32 %v3389, %v3805
    %3807 = vmatmul.mubr.f32.gmra.mrb[0].mxu0 %v3806
    %v3808 = vpop.f32.mrb[0].mxu0
    %v3809 = vadd.f32 %v3681, %v3808
    %v3810 = vpop.f32.mrb[0].mxu0
    %v3811 = vadd.f32 %v3683, %v3810
    %3812 = vmatprep.mubr.f32.mxu0 0.0
    %v3813 = vand.u32 %v3392, 4294901760
    %v3814 = vsub.f32 %v3392, %v3813
    %3815 = vmatmul.mubr.f32.gmra.mrb[0].mxu0 %v3814
    %v3816 = vpop.f32.mrb[0].mxu0
    %v3817 = vadd.f32 %v3688, %v3816
    %v3818 = vpop.f32.mrb[0].mxu0
    %v3819 = vadd.f32 %v3690, %v3818
    %3820 = vdwg.mxu0
    %v3821 = vand.u32 %v77, 4294901760
    %3822 = vmatprep.subr.mxu0 %v3821
    %v3823 = vand.u32 %v76, 4294901760
    %3824 = vmatpush1.msra.mxu0 %v3823
    %v3825 = vand.u32 %v81, 4294901760
    %3826 = vmatprep.subr.mxu0 %v3825
    %v3827 = vand.u32 %v80, 4294901760
    %3828 = vmatpush1.msra.mxu0 %v3827
    %v3829 = vand.u32 %v85, 4294901760
    %3830 = vmatprep.subr.mxu0 %v3829
    %v3831 = vand.u32 %v84, 4294901760
    %3832 = vmatpush1.msra.mxu0 %v3831
    %v3833 = vand.u32 %v89, 4294901760
    %3834 = vmatprep.subr.mxu0 %v3833
    %v3835 = vand.u32 %v88, 4294901760
    %3836 = vmatpush1.msra.mxu0 %v3835
    %v3837 = vand.u32 %v93, 4294901760
    %3838 = vmatprep.subr.mxu0 %v3837
    %v3839 = vand.u32 %v92, 4294901760
    %3840 = vmatpush1.msra.mxu0 %v3839
    %v3841 = vand.u32 %v97, 4294901760
    %3842 = vmatprep.subr.mxu0 %v3841
    %v3843 = vand.u32 %v96, 4294901760
    %3844 = vmatpush1.msra.mxu0 %v3843
    %v3845 = vand.u32 %v101, 4294901760
    %3846 = vmatprep.subr.mxu0 %v3845
    %v3847 = vand.u32 %v100, 4294901760
    %3848 = vmatpush1.msra.mxu0 %v3847
    %v3849 = vand.u32 %v105, 4294901760
    %3850 = vmatprep.subr.mxu0 %v3849
    %v3851 = vand.u32 %v104, 4294901760
    %3852 = vmatpush1.msra.mxu0 %v3851
    %3853 = vmatprep.subr.mxu0 0.0
    %3854 = vmatpush1.msra.mxu0 0.0
    %3855 = vmatprep.subr.mxu0 0.0
    %3856 = vmatpush1.msra.mxu0 0.0
    %3857 = vmatprep.subr.mxu0 0.0
    %3858 = vmatpush1.msra.mxu0 0.0
    %3859 = vmatprep.subr.mxu0 0.0
    %3860 = vmatpush1.msra.mxu0 0.0
    %3861 = vmatprep.subr.mxu0 0.0
    %3862 = vmatpush1.msra.mxu0 0.0
    %3863 = vmatprep.subr.mxu0 0.0
    %3864 = vmatpush1.msra.mxu0 0.0
    %3865 = vmatprep.subr.mxu0 0.0
    %3866 = vmatpush1.msra.mxu0 0.0
    %3867 = vmatprep.subr.mxu0 0.0
    %3868 = vmatpush1.msra.mxu0 0.0
    %3869 = vmatprep.subr.mxu0 0.0
    %3870 = vmatpush1.msra.mxu0 0.0
    %3871 = vmatprep.subr.mxu0 0.0
    %3872 = vmatpush1.msra.mxu0 0.0
    %3873 = vmatprep.subr.mxu0 0.0
    %3874 = vmatpush1.msra.mxu0 0.0
    %3875 = vmatprep.subr.mxu0 0.0
    %3876 = vmatpush1.msra.mxu0 0.0
    %3877 = vmatprep.subr.mxu0 0.0
    %3878 = vmatpush1.msra.mxu0 0.0
    %3879 = vmatprep.subr.mxu0 0.0
    %3880 = vmatpush1.msra.mxu0 0.0
    %3881 = vmatprep.subr.mxu0 0.0
    %3882 = vmatpush1.msra.mxu0 0.0
    %3883 = vmatprep.subr.mxu0 0.0
    %3884 = vmatpush1.msra.mxu0 0.0
    %3885 = vmatprep.subr.mxu0 0.0
    %3886 = vmatpush1.msra.mxu0 0.0
    %3887 = vmatprep.subr.mxu0 0.0
    %3888 = vmatpush1.msra.mxu0 0.0
    %3889 = vmatprep.subr.mxu0 0.0
    %3890 = vmatpush1.msra.mxu0 0.0
    %3891 = vmatprep.subr.mxu0 0.0
    %3892 = vmatpush1.msra.mxu0 0.0
    %3893 = vmatprep.subr.mxu0 0.0
    %3894 = vmatpush1.msra.mxu0 0.0
    %3895 = vmatprep.subr.mxu0 0.0
    %3896 = vmatpush1.msra.mxu0 0.0
    %3897 = vmatprep.subr.mxu0 0.0
    %3898 = vmatpush1.msra.mxu0 0.0
    %3899 = vmatprep.subr.mxu0 0.0
    %3900 = vmatpush1.msra.mxu0 0.0
    %3901 = vmatprep.mubr.f32.mxu0 0.0
    %v3902 = vand.u32 %v3383, 4294901760
    %v3903 = vsub.f32 %v3383, %v3902
    %v3904 = vand.u32 %v3903, 4294901760
    %3905 = vmatmul.mubr.f32.gmra.mrb[0].mxu0 %v3904
    %v3906 = vpop.f32.mrb[0].mxu0
    %v3907 = vadd.f32 %v3793, %v3906
    %v3908 = vpop.f32.mrb[0].mxu0
    %v3909 = vadd.f32 %v3795, %v3908
    %3910 = vmatprep.mubr.f32.mxu0 0.0
    %v3911 = vand.u32 %v3386, 4294901760
    %v3912 = vsub.f32 %v3386, %v3911
    %v3913 = vand.u32 %v3912, 4294901760
    %3914 = vmatmul.mubr.f32.gmra.mrb[0].mxu0 %v3913
    %v3915 = vpop.f32.mrb[0].mxu0
    %v3916 = vadd.f32 %v3801, %v3915
    %v3917 = vpop.f32.mrb[0].mxu0
    %v3918 = vadd.f32 %v3803, %v3917
    %3919 = vmatprep.mubr.f32.mxu0 0.0
    %v3920 = vand.u32 %v3389, 4294901760
    %v3921 = vsub.f32 %v3389, %v3920
    %v3922 = vand.u32 %v3921, 4294901760
    %3923 = vmatmul.mubr.f32.gmra.mrb[0].mxu0 %v3922
    %v3924 = vpop.f32.mrb[0].mxu0
    %v3925 = vadd.f32 %v3809, %v3924
    %v3926 = vpop.f32.mrb[0].mxu0
    %v3927 = vadd.f32 %v3811, %v3926
    %3928 = vmatprep.mubr.f32.mxu0 0.0
    %v3929 = vand.u32 %v3392, 4294901760
    %v3930 = vsub.f32 %v3392, %v3929
    %v3931 = vand.u32 %v3930, 4294901760
    %3932 = vmatmul.mubr.f32.gmra.mrb[0].mxu0 %v3931
    %v3933 = vpop.f32.mrb[0].mxu0
    %v3934 = vadd.f32 %v3817, %v3933
    %v3935 = vpop.f32.mrb[0].mxu0
    %v3936 = vadd.f32 %v3819, %v3935
    %3937 = vdwg.mxu0
    %v3938 = vand.u32 %v77, 4294901760
    %v3939 = vsub.f32 %v77, %v3938
    %v3940 = vand.u32 %v3939, 4294901760
    %3941 = vmatprep.subr.mxu0 %v3940
    %v3942 = vand.u32 %v76, 4294901760
    %v3943 = vsub.f32 %v76, %v3942
    %v3944 = vand.u32 %v3943, 4294901760
    %3945 = vmatpush1.msra.mxu0 %v3944
    %v3946 = vand.u32 %v81, 4294901760
    %v3947 = vsub.f32 %v81, %v3946
    %v3948 = vand.u32 %v3947, 4294901760
    %3949 = vmatprep.subr.mxu0 %v3948
    %v3950 = vand.u32 %v80, 4294901760
    %v3951 = vsub.f32 %v80, %v3950
    %v3952 = vand.u32 %v3951, 4294901760
    %3953 = vmatpush1.msra.mxu0 %v3952
    %v3954 = vand.u32 %v85, 4294901760
    %v3955 = vsub.f32 %v85, %v3954
    %v3956 = vand.u32 %v3955, 4294901760
    %3957 = vmatprep.subr.mxu0 %v3956
    %v3958 = vand.u32 %v84, 4294901760
    %v3959 = vsub.f32 %v84, %v3958
    %v3960 = vand.u32 %v3959, 4294901760
    %3961 = vmatpush1.msra.mxu0 %v3960
    %v3962 = vand.u32 %v89, 4294901760
    %v3963 = vsub.f32 %v89, %v3962
    %v3964 = vand.u32 %v3963, 4294901760
    %3965 = vmatprep.subr.mxu0 %v3964
    %v3966 = vand.u32 %v88, 4294901760
    %v3967 = vsub.f32 %v88, %v3966
    %v3968 = vand.u32 %v3967, 4294901760
    %3969 = vmatpush1.msra.mxu0 %v3968
    %v3970 = vand.u32 %v93, 4294901760
    %v3971 = vsub.f32 %v93, %v3970
    %v3972 = vand.u32 %v3971, 4294901760
    %3973 = vmatprep.subr.mxu0 %v3972
    %v3974 = vand.u32 %v92, 4294901760
    %v3975 = vsub.f32 %v92, %v3974
    %v3976 = vand.u32 %v3975, 4294901760
    %3977 = vmatpush1.msra.mxu0 %v3976
    %v3978 = vand.u32 %v97, 4294901760
    %v3979 = vsub.f32 %v97, %v3978
    %v3980 = vand.u32 %v3979, 4294901760
    %3981 = vmatprep.subr.mxu0 %v3980
    %v3982 = vand.u32 %v96, 4294901760
    %v3983 = vsub.f32 %v96, %v3982
    %v3984 = vand.u32 %v3983, 4294901760
    %3985 = vmatpush1.msra.mxu0 %v3984
    %v3986 = vand.u32 %v101, 4294901760
    %v3987 = vsub.f32 %v101, %v3986
    %v3988 = vand.u32 %v3987, 4294901760
    %3989 = vmatprep.subr.mxu0 %v3988
    %v3990 = vand.u32 %v100, 4294901760
    %v3991 = vsub.f32 %v100, %v3990
    %v3992 = vand.u32 %v3991, 4294901760
    %3993 = vmatpush1.msra.mxu0 %v3992
    %v3994 = vand.u32 %v105, 4294901760
    %v3995 = vsub.f32 %v105, %v3994
    %v3996 = vand.u32 %v3995, 4294901760
    %3997 = vmatprep.subr.mxu0 %v3996
    %v3998 = vand.u32 %v104, 4294901760
    %v3999 = vsub.f32 %v104, %v3998
    %v4000 = vand.u32 %v3999, 4294901760
    %4001 = vmatpush1.msra.mxu0 %v4000
    %4002 = vmatprep.subr.mxu0 0.0
    %4003 = vmatpush1.msra.mxu0 0.0
    %4004 = vmatprep.subr.mxu0 0.0
    %4005 = vmatpush1.msra.mxu0 0.0
    %4006 = vmatprep.subr.mxu0 0.0
    %4007 = vmatpush1.msra.mxu0 0.0
    %4008 = vmatprep.subr.mxu0 0.0
    %4009 = vmatpush1.msra.mxu0 0.0
    %4010 = vmatprep.subr.mxu0 0.0
    %4011 = vmatpush1.msra.mxu0 0.0
    %4012 = vmatprep.subr.mxu0 0.0
    %4013 = vmatpush1.msra.mxu0 0.0
    %4014 = vmatprep.subr.mxu0 0.0
    %4015 = vmatpush1.msra.mxu0 0.0
    %4016 = vmatprep.subr.mxu0 0.0
    %4017 = vmatpush1.msra.mxu0 0.0
    %4018 = vmatprep.subr.mxu0 0.0
    %4019 = vmatpush1.msra.mxu0 0.0
    %4020 = vmatprep.subr.mxu0 0.0
    %4021 = vmatpush1.msra.mxu0 0.0
    %4022 = vmatprep.subr.mxu0 0.0
    %4023 = vmatpush1.msra.mxu0 0.0
    %4024 = vmatprep.subr.mxu0 0.0
    %4025 = vmatpush1.msra.mxu0 0.0
    %4026 = vmatprep.subr.mxu0 0.0
    %4027 = vmatpush1.msra.mxu0 0.0
    %4028 = vmatprep.subr.mxu0 0.0
    %4029 = vmatpush1.msra.mxu0 0.0
    %4030 = vmatprep.subr.mxu0 0.0
    %4031 = vmatpush1.msra.mxu0 0.0
    %4032 = vmatprep.subr.mxu0 0.0
    %4033 = vmatpush1.msra.mxu0 0.0
    %4034 = vmatprep.subr.mxu0 0.0
    %4035 = vmatpush1.msra.mxu0 0.0
    %4036 = vmatprep.subr.mxu0 0.0
    %4037 = vmatpush1.msra.mxu0 0.0
    %4038 = vmatprep.subr.mxu0 0.0
    %4039 = vmatpush1.msra.mxu0 0.0
    %4040 = vmatprep.subr.mxu0 0.0
    %4041 = vmatpush1.msra.mxu0 0.0
    %4042 = vmatprep.subr.mxu0 0.0
    %4043 = vmatpush1.msra.mxu0 0.0
    %4044 = vmatprep.subr.mxu0 0.0
    %4045 = vmatpush1.msra.mxu0 0.0
    %4046 = vmatprep.subr.mxu0 0.0
    %4047 = vmatpush1.msra.mxu0 0.0
    %4048 = vmatprep.subr.mxu0 0.0
    %4049 = vmatpush1.msra.mxu0 0.0
    %4050 = vmatprep.mubr.f32.mxu0 0.0
    %v4051 = vand.u32 %v3383, 4294901760
    %4052 = vmatmul.mubr.f32.gmra.mrb[0].mxu0 %v4051
    %v4053 = vpop.f32.mrb[0].mxu0
    %v4054 = vadd.f32 %v3907, %v4053
    %v4055 = vpop.f32.mrb[0].mxu0
    %v4056 = vadd.f32 %v3909, %v4055
    %4057 = vmatprep.mubr.f32.mxu0 0.0
    %v4058 = vand.u32 %v3386, 4294901760
    %4059 = vmatmul.mubr.f32.gmra.mrb[0].mxu0 %v4058
    %v4060 = vpop.f32.mrb[0].mxu0
    %v4061 = vadd.f32 %v3916, %v4060
    %v4062 = vpop.f32.mrb[0].mxu0
    %v4063 = vadd.f32 %v3918, %v4062
    %4064 = vmatprep.mubr.f32.mxu0 0.0
    %v4065 = vand.u32 %v3389, 4294901760
    %4066 = vmatmul.mubr.f32.gmra.mrb[0].mxu0 %v4065
    %v4067 = vpop.f32.mrb[0].mxu0
    %v4068 = vadd.f32 %v3925, %v4067
    %v4069 = vpop.f32.mrb[0].mxu0
    %v4070 = vadd.f32 %v3927, %v4069
    %4071 = vmatprep.mubr.f32.mxu0 0.0
    %v4072 = vand.u32 %v3392, 4294901760
    %4073 = vmatmul.mubr.f32.gmra.mrb[0].mxu0 %v4072
    %v4074 = vpop.f32.mrb[0].mxu0
    %v4075 = vadd.f32 %v3934, %v4074
    %v4076 = vpop.f32.mrb[0].mxu0
    %v4077 = vadd.f32 %v3936, %v4076
    %4078 = vdwg.mxu0
    %v4079 = vand.u32 %v77, 4294901760
    %4080 = vmatprep.subr.mxu0 %v4079
    %v4081 = vand.u32 %v76, 4294901760
    %4082 = vmatpush1.msra.mxu0 %v4081
    %v4083 = vand.u32 %v81, 4294901760
    %4084 = vmatprep.subr.mxu0 %v4083
    %v4085 = vand.u32 %v80, 4294901760
    %4086 = vmatpush1.msra.mxu0 %v4085
    %v4087 = vand.u32 %v85, 4294901760
    %4088 = vmatprep.subr.mxu0 %v4087
    %v4089 = vand.u32 %v84, 4294901760
    %4090 = vmatpush1.msra.mxu0 %v4089
    %v4091 = vand.u32 %v89, 4294901760
    %4092 = vmatprep.subr.mxu0 %v4091
    %v4093 = vand.u32 %v88, 4294901760
    %4094 = vmatpush1.msra.mxu0 %v4093
    %v4095 = vand.u32 %v93, 4294901760
    %4096 = vmatprep.subr.mxu0 %v4095
    %v4097 = vand.u32 %v92, 4294901760
    %4098 = vmatpush1.msra.mxu0 %v4097
    %v4099 = vand.u32 %v97, 4294901760
    %4100 = vmatprep.subr.mxu0 %v4099
    %v4101 = vand.u32 %v96, 4294901760
    %4102 = vmatpush1.msra.mxu0 %v4101
    %v4103 = vand.u32 %v101, 4294901760
    %4104 = vmatprep.subr.mxu0 %v4103
    %v4105 = vand.u32 %v100, 4294901760
    %4106 = vmatpush1.msra.mxu0 %v4105
    %v4107 = vand.u32 %v105, 4294901760
    %4108 = vmatprep.subr.mxu0 %v4107
    %v4109 = vand.u32 %v104, 4294901760
    %4110 = vmatpush1.msra.mxu0 %v4109
    %4111 = vmatprep.subr.mxu0 0.0
    %4112 = vmatpush1.msra.mxu0 0.0
    %4113 = vmatprep.subr.mxu0 0.0
    %4114 = vmatpush1.msra.mxu0 0.0
    %4115 = vmatprep.subr.mxu0 0.0
    %4116 = vmatpush1.msra.mxu0 0.0
    %4117 = vmatprep.subr.mxu0 0.0
    %4118 = vmatpush1.msra.mxu0 0.0
    %4119 = vmatprep.subr.mxu0 0.0
    %4120 = vmatpush1.msra.mxu0 0.0
    %4121 = vmatprep.subr.mxu0 0.0
    %4122 = vmatpush1.msra.mxu0 0.0
    %4123 = vmatprep.subr.mxu0 0.0
    %4124 = vmatpush1.msra.mxu0 0.0
    %4125 = vmatprep.subr.mxu0 0.0
    %4126 = vmatpush1.msra.mxu0 0.0
    %4127 = vmatprep.subr.mxu0 0.0
    %4128 = vmatpush1.msra.mxu0 0.0
    %4129 = vmatprep.subr.mxu0 0.0
    %4130 = vmatpush1.msra.mxu0 0.0
    %4131 = vmatprep.subr.mxu0 0.0
    %4132 = vmatpush1.msra.mxu0 0.0
    %4133 = vmatprep.subr.mxu0 0.0
    %4134 = vmatpush1.msra.mxu0 0.0
    %4135 = vmatprep.subr.mxu0 0.0
    %4136 = vmatpush1.msra.mxu0 0.0
    %4137 = vmatprep.subr.mxu0 0.0
    %4138 = vmatpush1.msra.mxu0 0.0
    %4139 = vmatprep.subr.mxu0 0.0
    %4140 = vmatpush1.msra.mxu0 0.0
    %4141 = vmatprep.subr.mxu0 0.0
    %4142 = vmatpush1.msra.mxu0 0.0
    %4143 = vmatprep.subr.mxu0 0.0
    %4144 = vmatpush1.msra.mxu0 0.0
    %4145 = vmatprep.subr.mxu0 0.0
    %4146 = vmatpush1.msra.mxu0 0.0
    %4147 = vmatprep.subr.mxu0 0.0
    %4148 = vmatpush1.msra.mxu0 0.0
    %4149 = vmatprep.subr.mxu0 0.0
    %4150 = vmatpush1.msra.mxu0 0.0
    %4151 = vmatprep.subr.mxu0 0.0
    %4152 = vmatpush1.msra.mxu0 0.0
    %4153 = vmatprep.subr.mxu0 0.0
    %4154 = vmatpush1.msra.mxu0 0.0
    %4155 = vmatprep.subr.mxu0 0.0
    %4156 = vmatpush1.msra.mxu0 0.0
    %4157 = vmatprep.subr.mxu0 0.0
    %4158 = vmatpush1.msra.mxu0 0.0
    %4159 = vmatprep.mubr.f32.mxu0 0.0
    %v4160 = vand.u32 %v3383, 4294901760
    %4161 = vmatmul.mubr.f32.gmra.mrb[0].mxu0 %v4160
    %v4162 = vpop.f32.mrb[0].mxu0
    %v4163 = vadd.f32 %v4054, %v4162
    %v4164 = vpop.f32.mrb[0].mxu0
    %v4165 = vadd.f32 %v4056, %v4164
    %4166 = vmatprep.mubr.f32.mxu0 0.0
    %v4167 = vand.u32 %v3386, 4294901760
    %4168 = vmatmul.mubr.f32.gmra.mrb[0].mxu0 %v4167
    %v4169 = vpop.f32.mrb[0].mxu0
    %v4170 = vadd.f32 %v4061, %v4169
    %v4171 = vpop.f32.mrb[0].mxu0
    %v4172 = vadd.f32 %v4063, %v4171
    %4173 = vmatprep.mubr.f32.mxu0 0.0
    %v4174 = vand.u32 %v3389, 4294901760
    %4175 = vmatmul.mubr.f32.gmra.mrb[0].mxu0 %v4174
    %v4176 = vpop.f32.mrb[0].mxu0
    %v4177 = vadd.f32 %v4068, %v4176
    %v4178 = vpop.f32.mrb[0].mxu0
    %v4179 = vadd.f32 %v4070, %v4178
    %4180 = vmatprep.mubr.f32.mxu0 0.0
    %v4181 = vand.u32 %v3392, 4294901760
    %4182 = vmatmul.mubr.f32.gmra.mrb[0].mxu0 %v4181
    %v4183 = vpop.f32.mrb[0].mxu0
    %v4184 = vadd.f32 %v4075, %v4183
    %v4185 = vpop.f32.mrb[0].mxu0
    %v4186 = vadd.f32 %v4077, %v4185
    %4187 = vdwg.mxu0
    %v4188 = vand.u32 %v79, 4294901760
    %4189 = vmatprep.subr.mxu0 %v4188
    %v4190 = vand.u32 %v78, 4294901760
    %4191 = vmatpush1.msra.mxu0 %v4190
    %v4192 = vand.u32 %v83, 4294901760
    %4193 = vmatprep.subr.mxu0 %v4192
    %v4194 = vand.u32 %v82, 4294901760
    %4195 = vmatpush1.msra.mxu0 %v4194
    %v4196 = vand.u32 %v87, 4294901760
    %4197 = vmatprep.subr.mxu0 %v4196
    %v4198 = vand.u32 %v86, 4294901760
    %4199 = vmatpush1.msra.mxu0 %v4198
    %v4200 = vand.u32 %v91, 4294901760
    %4201 = vmatprep.subr.mxu0 %v4200
    %v4202 = vand.u32 %v90, 4294901760
    %4203 = vmatpush1.msra.mxu0 %v4202
    %v4204 = vand.u32 %v95, 4294901760
    %4205 = vmatprep.subr.mxu0 %v4204
    %v4206 = vand.u32 %v94, 4294901760
    %4207 = vmatpush1.msra.mxu0 %v4206
    %v4208 = vand.u32 %v99, 4294901760
    %4209 = vmatprep.subr.mxu0 %v4208
    %v4210 = vand.u32 %v98, 4294901760
    %4211 = vmatpush1.msra.mxu0 %v4210
    %v4212 = vand.u32 %v103, 4294901760
    %4213 = vmatprep.subr.mxu0 %v4212
    %v4214 = vand.u32 %v102, 4294901760
    %4215 = vmatpush1.msra.mxu0 %v4214
    %v4216 = vand.u32 %v107, 4294901760
    %4217 = vmatprep.subr.mxu0 %v4216
    %v4218 = vand.u32 %v106, 4294901760
    %4219 = vmatpush1.msra.mxu0 %v4218
    %4220 = vmatprep.subr.mxu0 0.0
    %4221 = vmatpush1.msra.mxu0 0.0
    %4222 = vmatprep.subr.mxu0 0.0
    %4223 = vmatpush1.msra.mxu0 0.0
    %4224 = vmatprep.subr.mxu0 0.0
    %4225 = vmatpush1.msra.mxu0 0.0
    %4226 = vmatprep.subr.mxu0 0.0
    %4227 = vmatpush1.msra.mxu0 0.0
    %4228 = vmatprep.subr.mxu0 0.0
    %4229 = vmatpush1.msra.mxu0 0.0
    %4230 = vmatprep.subr.mxu0 0.0
    %4231 = vmatpush1.msra.mxu0 0.0
    %4232 = vmatprep.subr.mxu0 0.0
    %4233 = vmatpush1.msra.mxu0 0.0
    %4234 = vmatprep.subr.mxu0 0.0
    %4235 = vmatpush1.msra.mxu0 0.0
    %4236 = vmatprep.subr.mxu0 0.0
    %4237 = vmatpush1.msra.mxu0 0.0
    %4238 = vmatprep.subr.mxu0 0.0
    %4239 = vmatpush1.msra.mxu0 0.0
    %4240 = vmatprep.subr.mxu0 0.0
    %4241 = vmatpush1.msra.mxu0 0.0
    %4242 = vmatprep.subr.mxu0 0.0
    %4243 = vmatpush1.msra.mxu0 0.0
    %4244 = vmatprep.subr.mxu0 0.0
    %4245 = vmatpush1.msra.mxu0 0.0
    %4246 = vmatprep.subr.mxu0 0.0
    %4247 = vmatpush1.msra.mxu0 0.0
    %4248 = vmatprep.subr.mxu0 0.0
    %4249 = vmatpush1.msra.mxu0 0.0
    %4250 = vmatprep.subr.mxu0 0.0
    %4251 = vmatpush1.msra.mxu0 0.0
    %4252 = vmatprep.subr.mxu0 0.0
    %4253 = vmatpush1.msra.mxu0 0.0
    %4254 = vmatprep.subr.mxu0 0.0
    %4255 = vmatpush1.msra.mxu0 0.0
    %4256 = vmatprep.subr.mxu0 0.0
    %4257 = vmatpush1.msra.mxu0 0.0
    %4258 = vmatprep.subr.mxu0 0.0
    %4259 = vmatpush1.msra.mxu0 0.0
    %4260 = vmatprep.subr.mxu0 0.0
    %4261 = vmatpush1.msra.mxu0 0.0
    %4262 = vmatprep.subr.mxu0 0.0
    %4263 = vmatpush1.msra.mxu0 0.0
    %4264 = vmatprep.subr.mxu0 0.0
    %4265 = vmatpush1.msra.mxu0 0.0
    %4266 = vmatprep.subr.mxu0 0.0
    %4267 = vmatpush1.msra.mxu0 0.0
    %4268 = vmatprep.mubr.f32.mxu0 0.0
    %v4269 = vand.u32 %v3383, 4294901760
    %v4270 = vsub.f32 %v3383, %v4269
    %v4271 = vand.u32 %v4270, 4294901760
    %v4272 = vsub.f32 %v4270, %v4271
    %v4273 = vand.u32 %v4272, 4294901760
    %4274 = vmatmul.mubr.f32.gmra.mrb[0].mxu0 %v4273
    %v4275 = vpop.f32.mrb[0].mxu0
    %v4276 = vadd.f32 %v1720, %v4275
    %v4277 = vpop.f32.mrb[0].mxu0
    %v4278 = vadd.f32 %v1722, %v4277
    %4279 = vmatprep.mubr.f32.mxu0 0.0
    %v4280 = vand.u32 %v3386, 4294901760
    %v4281 = vsub.f32 %v3386, %v4280
    %v4282 = vand.u32 %v4281, 4294901760
    %v4283 = vsub.f32 %v4281, %v4282
    %v4284 = vand.u32 %v4283, 4294901760
    %4285 = vmatmul.mubr.f32.gmra.mrb[0].mxu0 %v4284
    %v4286 = vpop.f32.mrb[0].mxu0
    %v4287 = vadd.f32 %v1727, %v4286
    %v4288 = vpop.f32.mrb[0].mxu0
    %v4289 = vadd.f32 %v1729, %v4288
    %4290 = vmatprep.mubr.f32.mxu0 0.0
    %v4291 = vand.u32 %v3389, 4294901760
    %v4292 = vsub.f32 %v3389, %v4291
    %v4293 = vand.u32 %v4292, 4294901760
    %v4294 = vsub.f32 %v4292, %v4293
    %v4295 = vand.u32 %v4294, 4294901760
    %4296 = vmatmul.mubr.f32.gmra.mrb[0].mxu0 %v4295
    %v4297 = vpop.f32.mrb[0].mxu0
    %v4298 = vadd.f32 %v1734, %v4297
    %v4299 = vpop.f32.mrb[0].mxu0
    %v4300 = vadd.f32 %v1736, %v4299
    %4301 = vmatprep.mubr.f32.mxu0 0.0
    %v4302 = vand.u32 %v3392, 4294901760
    %v4303 = vsub.f32 %v3392, %v4302
    %v4304 = vand.u32 %v4303, 4294901760
    %v4305 = vsub.f32 %v4303, %v4304
    %v4306 = vand.u32 %v4305, 4294901760
    %4307 = vmatmul.mubr.f32.gmra.mrb[0].mxu0 %v4306
    %v4308 = vpop.f32.mrb[0].mxu0
    %v4309 = vadd.f32 %v1741, %v4308
    %v4310 = vpop.f32.mrb[0].mxu0
    %v4311 = vadd.f32 %v1743, %v4310
    %4312 = vdwg.mxu0
    %v4313 = vand.u32 %v79, 4294901760
    %v4314 = vsub.f32 %v79, %v4313
    %v4315 = vand.u32 %v4314, 4294901760
    %v4316 = vsub.f32 %v4314, %v4315
    %v4317 = vand.u32 %v4316, 4294901760
    %4318 = vmatprep.subr.mxu0 %v4317
    %v4319 = vand.u32 %v78, 4294901760
    %v4320 = vsub.f32 %v78, %v4319
    %v4321 = vand.u32 %v4320, 4294901760
    %v4322 = vsub.f32 %v4320, %v4321
    %v4323 = vand.u32 %v4322, 4294901760
    %4324 = vmatpush1.msra.mxu0 %v4323
    %v4325 = vand.u32 %v83, 4294901760
    %v4326 = vsub.f32 %v83, %v4325
    %v4327 = vand.u32 %v4326, 4294901760
    %v4328 = vsub.f32 %v4326, %v4327
    %v4329 = vand.u32 %v4328, 4294901760
    %4330 = vmatprep.subr.mxu0 %v4329
    %v4331 = vand.u32 %v82, 4294901760
    %v4332 = vsub.f32 %v82, %v4331
    %v4333 = vand.u32 %v4332, 4294901760
    %v4334 = vsub.f32 %v4332, %v4333
    %v4335 = vand.u32 %v4334, 4294901760
    %4336 = vmatpush1.msra.mxu0 %v4335
    %v4337 = vand.u32 %v87, 4294901760
    %v4338 = vsub.f32 %v87, %v4337
    %v4339 = vand.u32 %v4338, 4294901760
    %v4340 = vsub.f32 %v4338, %v4339
    %v4341 = vand.u32 %v4340, 4294901760
    %4342 = vmatprep.subr.mxu0 %v4341
    %v4343 = vand.u32 %v86, 4294901760
    %v4344 = vsub.f32 %v86, %v4343
    %v4345 = vand.u32 %v4344, 4294901760
    %v4346 = vsub.f32 %v4344, %v4345
    %v4347 = vand.u32 %v4346, 4294901760
    %4348 = vmatpush1.msra.mxu0 %v4347
    %v4349 = vand.u32 %v91, 4294901760
    %v4350 = vsub.f32 %v91, %v4349
    %v4351 = vand.u32 %v4350, 4294901760
    %v4352 = vsub.f32 %v4350, %v4351
    %v4353 = vand.u32 %v4352, 4294901760
    %4354 = vmatprep.subr.mxu0 %v4353
    %v4355 = vand.u32 %v90, 4294901760
    %v4356 = vsub.f32 %v90, %v4355
    %v4357 = vand.u32 %v4356, 4294901760
    %v4358 = vsub.f32 %v4356, %v4357
    %v4359 = vand.u32 %v4358, 4294901760
    %4360 = vmatpush1.msra.mxu0 %v4359
    %v4361 = vand.u32 %v95, 4294901760
    %v4362 = vsub.f32 %v95, %v4361
    %v4363 = vand.u32 %v4362, 4294901760
    %v4364 = vsub.f32 %v4362, %v4363
    %v4365 = vand.u32 %v4364, 4294901760
    %4366 = vmatprep.subr.mxu0 %v4365
    %v4367 = vand.u32 %v94, 4294901760
    %v4368 = vsub.f32 %v94, %v4367
    %v4369 = vand.u32 %v4368, 4294901760
    %v4370 = vsub.f32 %v4368, %v4369
    %v4371 = vand.u32 %v4370, 4294901760
    %4372 = vmatpush1.msra.mxu0 %v4371
    %v4373 = vand.u32 %v99, 4294901760
    %v4374 = vsub.f32 %v99, %v4373
    %v4375 = vand.u32 %v4374, 4294901760
    %v4376 = vsub.f32 %v4374, %v4375
    %v4377 = vand.u32 %v4376, 4294901760
    %4378 = vmatprep.subr.mxu0 %v4377
    %v4379 = vand.u32 %v98, 4294901760
    %v4380 = vsub.f32 %v98, %v4379
    %v4381 = vand.u32 %v4380, 4294901760
    %v4382 = vsub.f32 %v4380, %v4381
    %v4383 = vand.u32 %v4382, 4294901760
    %4384 = vmatpush1.msra.mxu0 %v4383
    %v4385 = vand.u32 %v103, 4294901760
    %v4386 = vsub.f32 %v103, %v4385
    %v4387 = vand.u32 %v4386, 4294901760
    %v4388 = vsub.f32 %v4386, %v4387
    %v4389 = vand.u32 %v4388, 4294901760
    %4390 = vmatprep.subr.mxu0 %v4389
    %v4391 = vand.u32 %v102, 4294901760
    %v4392 = vsub.f32 %v102, %v4391
    %v4393 = vand.u32 %v4392, 4294901760
    %v4394 = vsub.f32 %v4392, %v4393
    %v4395 = vand.u32 %v4394, 4294901760
    %4396 = vmatpush1.msra.mxu0 %v4395
    %v4397 = vand.u32 %v107, 4294901760
    %v4398 = vsub.f32 %v107, %v4397
    %v4399 = vand.u32 %v4398, 4294901760
    %v4400 = vsub.f32 %v4398, %v4399
    %v4401 = vand.u32 %v4400, 4294901760
    %4402 = vmatprep.subr.mxu0 %v4401
    %v4403 = vand.u32 %v106, 4294901760
    %v4404 = vsub.f32 %v106, %v4403
    %v4405 = vand.u32 %v4404, 4294901760
    %v4406 = vsub.f32 %v4404, %v4405
    %v4407 = vand.u32 %v4406, 4294901760
    %4408 = vmatpush1.msra.mxu0 %v4407
    %4409 = vmatprep.subr.mxu0 0.0
    %4410 = vmatpush1.msra.mxu0 0.0
    %4411 = vmatprep.subr.mxu0 0.0
    %4412 = vmatpush1.msra.mxu0 0.0
    %4413 = vmatprep.subr.mxu0 0.0
    %4414 = vmatpush1.msra.mxu0 0.0
    %4415 = vmatprep.subr.mxu0 0.0
    %4416 = vmatpush1.msra.mxu0 0.0
    %4417 = vmatprep.subr.mxu0 0.0
    %4418 = vmatpush1.msra.mxu0 0.0
    %4419 = vmatprep.subr.mxu0 0.0
    %4420 = vmatpush1.msra.mxu0 0.0
    %4421 = vmatprep.subr.mxu0 0.0
    %4422 = vmatpush1.msra.mxu0 0.0
    %4423 = vmatprep.subr.mxu0 0.0
    %4424 = vmatpush1.msra.mxu0 0.0
    %4425 = vmatprep.subr.mxu0 0.0
    %4426 = vmatpush1.msra.mxu0 0.0
    %4427 = vmatprep.subr.mxu0 0.0
    %4428 = vmatpush1.msra.mxu0 0.0
    %4429 = vmatprep.subr.mxu0 0.0
    %4430 = vmatpush1.msra.mxu0 0.0
    %4431 = vmatprep.subr.mxu0 0.0
    %4432 = vmatpush1.msra.mxu0 0.0
    %4433 = vmatprep.subr.mxu0 0.0
    %4434 = vmatpush1.msra.mxu0 0.0
    %4435 = vmatprep.subr.mxu0 0.0
    %4436 = vmatpush1.msra.mxu0 0.0
    %4437 = vmatprep.subr.mxu0 0.0
    %4438 = vmatpush1.msra.mxu0 0.0
    %4439 = vmatprep.subr.mxu0 0.0
    %4440 = vmatpush1.msra.mxu0 0.0
    %4441 = vmatprep.subr.mxu0 0.0
    %4442 = vmatpush1.msra.mxu0 0.0
    %4443 = vmatprep.subr.mxu0 0.0
    %4444 = vmatpush1.msra.mxu0 0.0
    %4445 = vmatprep.subr.mxu0 0.0
    %4446 = vmatpush1.msra.mxu0 0.0
    %4447 = vmatprep.subr.mxu0 0.0
    %4448 = vmatpush1.msra.mxu0 0.0
    %4449 = vmatprep.subr.mxu0 0.0
    %4450 = vmatpush1.msra.mxu0 0.0
    %4451 = vmatprep.subr.mxu0 0.0
    %4452 = vmatpush1.msra.mxu0 0.0
    %4453 = vmatprep.subr.mxu0 0.0
    %4454 = vmatpush1.msra.mxu0 0.0
    %4455 = vmatprep.subr.mxu0 0.0
    %4456 = vmatpush1.msra.mxu0 0.0
    %4457 = vmatprep.mubr.f32.mxu0 0.0
    %v4458 = vand.u32 %v3383, 4294901760
    %4459 = vmatmul.mubr.f32.gmra.mrb[0].mxu0 %v4458
    %v4460 = vpop.f32.mrb[0].mxu0
    %v4461 = vadd.f32 %v4276, %v4460
    %v4462 = vpop.f32.mrb[0].mxu0
    %v4463 = vadd.f32 %v4278, %v4462
    %4464 = vmatprep.mubr.f32.mxu0 0.0
    %v4465 = vand.u32 %v3386, 4294901760
    %4466 = vmatmul.mubr.f32.gmra.mrb[0].mxu0 %v4465
    %v4467 = vpop.f32.mrb[0].mxu0
    %v4468 = vadd.f32 %v4287, %v4467
    %v4469 = vpop.f32.mrb[0].mxu0
    %v4470 = vadd.f32 %v4289, %v4469
    %4471 = vmatprep.mubr.f32.mxu0 0.0
    %v4472 = vand.u32 %v3389, 4294901760
    %4473 = vmatmul.mubr.f32.gmra.mrb[0].mxu0 %v4472
    %v4474 = vpop.f32.mrb[0].mxu0
    %v4475 = vadd.f32 %v4298, %v4474
    %v4476 = vpop.f32.mrb[0].mxu0
    %v4477 = vadd.f32 %v4300, %v4476
    %4478 = vmatprep.mubr.f32.mxu0 0.0
    %v4479 = vand.u32 %v3392, 4294901760
    %4480 = vmatmul.mubr.f32.gmra.mrb[0].mxu0 %v4479
    %v4481 = vpop.f32.mrb[0].mxu0
    %v4482 = vadd.f32 %v4309, %v4481
    %v4483 = vpop.f32.mrb[0].mxu0
    %v4484 = vadd.f32 %v4311, %v4483
    %4485 = vdwg.mxu0
    %v4486 = vand.u32 %v79, 4294901760
    %v4487 = vsub.f32 %v79, %v4486
    %4488 = vmatprep.subr.mxu0 %v4487
    %v4489 = vand.u32 %v78, 4294901760
    %v4490 = vsub.f32 %v78, %v4489
    %4491 = vmatpush1.msra.mxu0 %v4490
    %v4492 = vand.u32 %v83, 4294901760
    %v4493 = vsub.f32 %v83, %v4492
    %4494 = vmatprep.subr.mxu0 %v4493
    %v4495 = vand.u32 %v82, 4294901760
    %v4496 = vsub.f32 %v82, %v4495
    %4497 = vmatpush1.msra.mxu0 %v4496
    %v4498 = vand.u32 %v87, 4294901760
    %v4499 = vsub.f32 %v87, %v4498
    %4500 = vmatprep.subr.mxu0 %v4499
    %v4501 = vand.u32 %v86, 4294901760
    %v4502 = vsub.f32 %v86, %v4501
    %4503 = vmatpush1.msra.mxu0 %v4502
    %v4504 = vand.u32 %v91, 4294901760
    %v4505 = vsub.f32 %v91, %v4504
    %4506 = vmatprep.subr.mxu0 %v4505
    %v4507 = vand.u32 %v90, 4294901760
    %v4508 = vsub.f32 %v90, %v4507
    %4509 = vmatpush1.msra.mxu0 %v4508
    %v4510 = vand.u32 %v95, 4294901760
    %v4511 = vsub.f32 %v95, %v4510
    %4512 = vmatprep.subr.mxu0 %v4511
    %v4513 = vand.u32 %v94, 4294901760
    %v4514 = vsub.f32 %v94, %v4513
    %4515 = vmatpush1.msra.mxu0 %v4514
    %v4516 = vand.u32 %v99, 4294901760
    %v4517 = vsub.f32 %v99, %v4516
    %4518 = vmatprep.subr.mxu0 %v4517
    %v4519 = vand.u32 %v98, 4294901760
    %v4520 = vsub.f32 %v98, %v4519
    %4521 = vmatpush1.msra.mxu0 %v4520
    %v4522 = vand.u32 %v103, 4294901760
    %v4523 = vsub.f32 %v103, %v4522
    %4524 = vmatprep.subr.mxu0 %v4523
    %v4525 = vand.u32 %v102, 4294901760
    %v4526 = vsub.f32 %v102, %v4525
    %4527 = vmatpush1.msra.mxu0 %v4526
    %v4528 = vand.u32 %v107, 4294901760
    %v4529 = vsub.f32 %v107, %v4528
    %4530 = vmatprep.subr.mxu0 %v4529
    %v4531 = vand.u32 %v106, 4294901760
    %v4532 = vsub.f32 %v106, %v4531
    %4533 = vmatpush1.msra.mxu0 %v4532
    %4534 = vmatprep.subr.mxu0 0.0
    %4535 = vmatpush1.msra.mxu0 0.0
    %4536 = vmatprep.subr.mxu0 0.0
    %4537 = vmatpush1.msra.mxu0 0.0
    %4538 = vmatprep.subr.mxu0 0.0
    %4539 = vmatpush1.msra.mxu0 0.0
    %4540 = vmatprep.subr.mxu0 0.0
    %4541 = vmatpush1.msra.mxu0 0.0
    %4542 = vmatprep.subr.mxu0 0.0
    %4543 = vmatpush1.msra.mxu0 0.0
    %4544 = vmatprep.subr.mxu0 0.0
    %4545 = vmatpush1.msra.mxu0 0.0
    %4546 = vmatprep.subr.mxu0 0.0
    %4547 = vmatpush1.msra.mxu0 0.0
    %4548 = vmatprep.subr.mxu0 0.0
    %4549 = vmatpush1.msra.mxu0 0.0
    %4550 = vmatprep.subr.mxu0 0.0
    %4551 = vmatpush1.msra.mxu0 0.0
    %4552 = vmatprep.subr.mxu0 0.0
    %4553 = vmatpush1.msra.mxu0 0.0
    %4554 = vmatprep.subr.mxu0 0.0
    %4555 = vmatpush1.msra.mxu0 0.0
    %4556 = vmatprep.subr.mxu0 0.0
    %4557 = vmatpush1.msra.mxu0 0.0
    %4558 = vmatprep.subr.mxu0 0.0
    %4559 = vmatpush1.msra.mxu0 0.0
    %4560 = vmatprep.subr.mxu0 0.0
    %4561 = vmatpush1.msra.mxu0 0.0
    %4562 = vmatprep.subr.mxu0 0.0
    %4563 = vmatpush1.msra.mxu0 0.0
    %4564 = vmatprep.subr.mxu0 0.0
    %4565 = vmatpush1.msra.mxu0 0.0
    %4566 = vmatprep.subr.mxu0 0.0
    %4567 = vmatpush1.msra.mxu0 0.0
    %4568 = vmatprep.subr.mxu0 0.0
    %4569 = vmatpush1.msra.mxu0 0.0
    %4570 = vmatprep.subr.mxu0 0.0
    %4571 = vmatpush1.msra.mxu0 0.0
    %4572 = vmatprep.subr.mxu0 0.0
    %4573 = vmatpush1.msra.mxu0 0.0
    %4574 = vmatprep.subr.mxu0 0.0
    %4575 = vmatpush1.msra.mxu0 0.0
    %4576 = vmatprep.subr.mxu0 0.0
    %4577 = vmatpush1.msra.mxu0 0.0
    %4578 = vmatprep.subr.mxu0 0.0
    %4579 = vmatpush1.msra.mxu0 0.0
    %4580 = vmatprep.subr.mxu0 0.0
    %4581 = vmatpush1.msra.mxu0 0.0
    %4582 = vmatprep.mubr.f32.mxu0 0.0
    %v4583 = vand.u32 %v3383, 4294901760
    %v4584 = vsub.f32 %v3383, %v4583
    %4585 = vmatmul.mubr.f32.gmra.mrb[0].mxu0 %v4584
    %v4586 = vpop.f32.mrb[0].mxu0
    %v4587 = vadd.f32 %v4461, %v4586
    %v4588 = vpop.f32.mrb[0].mxu0
    %v4589 = vadd.f32 %v4463, %v4588
    %4590 = vmatprep.mubr.f32.mxu0 0.0
    %v4591 = vand.u32 %v3386, 4294901760
    %v4592 = vsub.f32 %v3386, %v4591
    %4593 = vmatmul.mubr.f32.gmra.mrb[0].mxu0 %v4592
    %v4594 = vpop.f32.mrb[0].mxu0
    %v4595 = vadd.f32 %v4468, %v4594
    %v4596 = vpop.f32.mrb[0].mxu0
    %v4597 = vadd.f32 %v4470, %v4596
    %4598 = vmatprep.mubr.f32.mxu0 0.0
    %v4599 = vand.u32 %v3389, 4294901760
    %v4600 = vsub.f32 %v3389, %v4599
    %4601 = vmatmul.mubr.f32.gmra.mrb[0].mxu0 %v4600
    %v4602 = vpop.f32.mrb[0].mxu0
    %v4603 = vadd.f32 %v4475, %v4602
    %v4604 = vpop.f32.mrb[0].mxu0
    %v4605 = vadd.f32 %v4477, %v4604
    %4606 = vmatprep.mubr.f32.mxu0 0.0
    %v4607 = vand.u32 %v3392, 4294901760
    %v4608 = vsub.f32 %v3392, %v4607
    %4609 = vmatmul.mubr.f32.gmra.mrb[0].mxu0 %v4608
    %v4610 = vpop.f32.mrb[0].mxu0
    %v4611 = vadd.f32 %v4482, %v4610
    %v4612 = vpop.f32.mrb[0].mxu0
    %v4613 = vadd.f32 %v4484, %v4612
    %4614 = vdwg.mxu0
    %v4615 = vand.u32 %v79, 4294901760
    %4616 = vmatprep.subr.mxu0 %v4615
    %v4617 = vand.u32 %v78, 4294901760
    %4618 = vmatpush1.msra.mxu0 %v4617
    %v4619 = vand.u32 %v83, 4294901760
    %4620 = vmatprep.subr.mxu0 %v4619
    %v4621 = vand.u32 %v82, 4294901760
    %4622 = vmatpush1.msra.mxu0 %v4621
    %v4623 = vand.u32 %v87, 4294901760
    %4624 = vmatprep.subr.mxu0 %v4623
    %v4625 = vand.u32 %v86, 4294901760
    %4626 = vmatpush1.msra.mxu0 %v4625
    %v4627 = vand.u32 %v91, 4294901760
    %4628 = vmatprep.subr.mxu0 %v4627
    %v4629 = vand.u32 %v90, 4294901760
    %4630 = vmatpush1.msra.mxu0 %v4629
    %v4631 = vand.u32 %v95, 4294901760
    %4632 = vmatprep.subr.mxu0 %v4631
    %v4633 = vand.u32 %v94, 4294901760
    %4634 = vmatpush1.msra.mxu0 %v4633
    %v4635 = vand.u32 %v99, 4294901760
    %4636 = vmatprep.subr.mxu0 %v4635
    %v4637 = vand.u32 %v98, 4294901760
    %4638 = vmatpush1.msra.mxu0 %v4637
    %v4639 = vand.u32 %v103, 4294901760
    %4640 = vmatprep.subr.mxu0 %v4639
    %v4641 = vand.u32 %v102, 4294901760
    %4642 = vmatpush1.msra.mxu0 %v4641
    %v4643 = vand.u32 %v107, 4294901760
    %4644 = vmatprep.subr.mxu0 %v4643
    %v4645 = vand.u32 %v106, 4294901760
    %4646 = vmatpush1.msra.mxu0 %v4645
    %4647 = vmatprep.subr.mxu0 0.0
    %4648 = vmatpush1.msra.mxu0 0.0
    %4649 = vmatprep.subr.mxu0 0.0
    %4650 = vmatpush1.msra.mxu0 0.0
    %4651 = vmatprep.subr.mxu0 0.0
    %4652 = vmatpush1.msra.mxu0 0.0
    %4653 = vmatprep.subr.mxu0 0.0
    %4654 = vmatpush1.msra.mxu0 0.0
    %4655 = vmatprep.subr.mxu0 0.0
    %4656 = vmatpush1.msra.mxu0 0.0
    %4657 = vmatprep.subr.mxu0 0.0
    %4658 = vmatpush1.msra.mxu0 0.0
    %4659 = vmatprep.subr.mxu0 0.0
    %4660 = vmatpush1.msra.mxu0 0.0
    %4661 = vmatprep.subr.mxu0 0.0
    %4662 = vmatpush1.msra.mxu0 0.0
    %4663 = vmatprep.subr.mxu0 0.0
    %4664 = vmatpush1.msra.mxu0 0.0
    %4665 = vmatprep.subr.mxu0 0.0
    %4666 = vmatpush1.msra.mxu0 0.0
    %4667 = vmatprep.subr.mxu0 0.0
    %4668 = vmatpush1.msra.mxu0 0.0
    %4669 = vmatprep.subr.mxu0 0.0
    %4670 = vmatpush1.msra.mxu0 0.0
    %4671 = vmatprep.subr.mxu0 0.0
    %4672 = vmatpush1.msra.mxu0 0.0
    %4673 = vmatprep.subr.mxu0 0.0
    %4674 = vmatpush1.msra.mxu0 0.0
    %4675 = vmatprep.subr.mxu0 0.0
    %4676 = vmatpush1.msra.mxu0 0.0
    %4677 = vmatprep.subr.mxu0 0.0
    %4678 = vmatpush1.msra.mxu0 0.0
    %4679 = vmatprep.subr.mxu0 0.0
    %4680 = vmatpush1.msra.mxu0 0.0
    %4681 = vmatprep.subr.mxu0 0.0
    %4682 = vmatpush1.msra.mxu0 0.0
    %4683 = vmatprep.subr.mxu0 0.0
    %4684 = vmatpush1.msra.mxu0 0.0
    %4685 = vmatprep.subr.mxu0 0.0
    %4686 = vmatpush1.msra.mxu0 0.0
    %4687 = vmatprep.subr.mxu0 0.0
    %4688 = vmatpush1.msra.mxu0 0.0
    %4689 = vmatprep.subr.mxu0 0.0
    %4690 = vmatpush1.msra.mxu0 0.0
    %4691 = vmatprep.subr.mxu0 0.0
    %4692 = vmatpush1.msra.mxu0 0.0
    %4693 = vmatprep.subr.mxu0 0.0
    %4694 = vmatpush1.msra.mxu0 0.0
    %4695 = vmatprep.mubr.f32.mxu0 0.0
    %v4696 = vand.u32 %v3383, 4294901760
    %v4697 = vsub.f32 %v3383, %v4696
    %v4698 = vand.u32 %v4697, 4294901760
    %4699 = vmatmul.mubr.f32.gmra.mrb[0].mxu0 %v4698
    %v4700 = vpop.f32.mrb[0].mxu0
    %v4701 = vadd.f32 %v4587, %v4700
    %v4702 = vpop.f32.mrb[0].mxu0
    %v4703 = vadd.f32 %v4589, %v4702
    %4704 = vmatprep.mubr.f32.mxu0 0.0
    %v4705 = vand.u32 %v3386, 4294901760
    %v4706 = vsub.f32 %v3386, %v4705
    %v4707 = vand.u32 %v4706, 4294901760
    %4708 = vmatmul.mubr.f32.gmra.mrb[0].mxu0 %v4707
    %v4709 = vpop.f32.mrb[0].mxu0
    %v4710 = vadd.f32 %v4595, %v4709
    %v4711 = vpop.f32.mrb[0].mxu0
    %v4712 = vadd.f32 %v4597, %v4711
    %4713 = vmatprep.mubr.f32.mxu0 0.0
    %v4714 = vand.u32 %v3389, 4294901760
    %v4715 = vsub.f32 %v3389, %v4714
    %v4716 = vand.u32 %v4715, 4294901760
    %4717 = vmatmul.mubr.f32.gmra.mrb[0].mxu0 %v4716
    %v4718 = vpop.f32.mrb[0].mxu0
    %v4719 = vadd.f32 %v4603, %v4718
    %v4720 = vpop.f32.mrb[0].mxu0
    %v4721 = vadd.f32 %v4605, %v4720
    %4722 = vmatprep.mubr.f32.mxu0 0.0
    %v4723 = vand.u32 %v3392, 4294901760
    %v4724 = vsub.f32 %v3392, %v4723
    %v4725 = vand.u32 %v4724, 4294901760
    %4726 = vmatmul.mubr.f32.gmra.mrb[0].mxu0 %v4725
    %v4727 = vpop.f32.mrb[0].mxu0
    %v4728 = vadd.f32 %v4611, %v4727
    %v4729 = vpop.f32.mrb[0].mxu0
    %v4730 = vadd.f32 %v4613, %v4729
    %4731 = vdwg.mxu0
    %v4732 = vand.u32 %v79, 4294901760
    %v4733 = vsub.f32 %v79, %v4732
    %v4734 = vand.u32 %v4733, 4294901760
    %4735 = vmatprep.subr.mxu0 %v4734
    %v4736 = vand.u32 %v78, 4294901760
    %v4737 = vsub.f32 %v78, %v4736
    %v4738 = vand.u32 %v4737, 4294901760
    %4739 = vmatpush1.msra.mxu0 %v4738
    %v4740 = vand.u32 %v83, 4294901760
    %v4741 = vsub.f32 %v83, %v4740
    %v4742 = vand.u32 %v4741, 4294901760
    %4743 = vmatprep.subr.mxu0 %v4742
    %v4744 = vand.u32 %v82, 4294901760
    %v4745 = vsub.f32 %v82, %v4744
    %v4746 = vand.u32 %v4745, 4294901760
    %4747 = vmatpush1.msra.mxu0 %v4746
    %v4748 = vand.u32 %v87, 4294901760
    %v4749 = vsub.f32 %v87, %v4748
    %v4750 = vand.u32 %v4749, 4294901760
    %4751 = vmatprep.subr.mxu0 %v4750
    %v4752 = vand.u32 %v86, 4294901760
    %v4753 = vsub.f32 %v86, %v4752
    %v4754 = vand.u32 %v4753, 4294901760
    %4755 = vmatpush1.msra.mxu0 %v4754
    %v4756 = vand.u32 %v91, 4294901760
    %v4757 = vsub.f32 %v91, %v4756
    %v4758 = vand.u32 %v4757, 4294901760
    %4759 = vmatprep.subr.mxu0 %v4758
    %v4760 = vand.u32 %v90, 4294901760
    %v4761 = vsub.f32 %v90, %v4760
    %v4762 = vand.u32 %v4761, 4294901760
    %4763 = vmatpush1.msra.mxu0 %v4762
    %v4764 = vand.u32 %v95, 4294901760
    %v4765 = vsub.f32 %v95, %v4764
    %v4766 = vand.u32 %v4765, 4294901760
    %4767 = vmatprep.subr.mxu0 %v4766
    %v4768 = vand.u32 %v94, 4294901760
    %v4769 = vsub.f32 %v94, %v4768
    %v4770 = vand.u32 %v4769, 4294901760
    %4771 = vmatpush1.msra.mxu0 %v4770
    %v4772 = vand.u32 %v99, 4294901760
    %v4773 = vsub.f32 %v99, %v4772
    %v4774 = vand.u32 %v4773, 4294901760
    %4775 = vmatprep.subr.mxu0 %v4774
    %v4776 = vand.u32 %v98, 4294901760
    %v4777 = vsub.f32 %v98, %v4776
    %v4778 = vand.u32 %v4777, 4294901760
    %4779 = vmatpush1.msra.mxu0 %v4778
    %v4780 = vand.u32 %v103, 4294901760
    %v4781 = vsub.f32 %v103, %v4780
    %v4782 = vand.u32 %v4781, 4294901760
    %4783 = vmatprep.subr.mxu0 %v4782
    %v4784 = vand.u32 %v102, 4294901760
    %v4785 = vsub.f32 %v102, %v4784
    %v4786 = vand.u32 %v4785, 4294901760
    %4787 = vmatpush1.msra.mxu0 %v4786
    %v4788 = vand.u32 %v107, 4294901760
    %v4789 = vsub.f32 %v107, %v4788
    %v4790 = vand.u32 %v4789, 4294901760
    %4791 = vmatprep.subr.mxu0 %v4790
    %v4792 = vand.u32 %v106, 4294901760
    %v4793 = vsub.f32 %v106, %v4792
    %v4794 = vand.u32 %v4793, 4294901760
    %4795 = vmatpush1.msra.mxu0 %v4794
    %4796 = vmatprep.subr.mxu0 0.0
    %4797 = vmatpush1.msra.mxu0 0.0
    %4798 = vmatprep.subr.mxu0 0.0
    %4799 = vmatpush1.msra.mxu0 0.0
    %4800 = vmatprep.subr.mxu0 0.0
    %4801 = vmatpush1.msra.mxu0 0.0
    %4802 = vmatprep.subr.mxu0 0.0
    %4803 = vmatpush1.msra.mxu0 0.0
    %4804 = vmatprep.subr.mxu0 0.0
    %4805 = vmatpush1.msra.mxu0 0.0
    %4806 = vmatprep.subr.mxu0 0.0
    %4807 = vmatpush1.msra.mxu0 0.0
    %4808 = vmatprep.subr.mxu0 0.0
    %4809 = vmatpush1.msra.mxu0 0.0
    %4810 = vmatprep.subr.mxu0 0.0
    %4811 = vmatpush1.msra.mxu0 0.0
    %4812 = vmatprep.subr.mxu0 0.0
    %4813 = vmatpush1.msra.mxu0 0.0
    %4814 = vmatprep.subr.mxu0 0.0
    %4815 = vmatpush1.msra.mxu0 0.0
    %4816 = vmatprep.subr.mxu0 0.0
    %4817 = vmatpush1.msra.mxu0 0.0
    %4818 = vmatprep.subr.mxu0 0.0
    %4819 = vmatpush1.msra.mxu0 0.0
    %4820 = vmatprep.subr.mxu0 0.0
    %4821 = vmatpush1.msra.mxu0 0.0
    %4822 = vmatprep.subr.mxu0 0.0
    %4823 = vmatpush1.msra.mxu0 0.0
    %4824 = vmatprep.subr.mxu0 0.0
    %4825 = vmatpush1.msra.mxu0 0.0
    %4826 = vmatprep.subr.mxu0 0.0
    %4827 = vmatpush1.msra.mxu0 0.0
    %4828 = vmatprep.subr.mxu0 0.0
    %4829 = vmatpush1.msra.mxu0 0.0
    %4830 = vmatprep.subr.mxu0 0.0
    %4831 = vmatpush1.msra.mxu0 0.0
    %4832 = vmatprep.subr.mxu0 0.0
    %4833 = vmatpush1.msra.mxu0 0.0
    %4834 = vmatprep.subr.mxu0 0.0
    %4835 = vmatpush1.msra.mxu0 0.0
    %4836 = vmatprep.subr.mxu0 0.0
    %4837 = vmatpush1.msra.mxu0 0.0
    %4838 = vmatprep.subr.mxu0 0.0
    %4839 = vmatpush1.msra.mxu0 0.0
    %4840 = vmatprep.subr.mxu0 0.0
    %4841 = vmatpush1.msra.mxu0 0.0
    %4842 = vmatprep.subr.mxu0 0.0
    %4843 = vmatpush1.msra.mxu0 0.0
    %4844 = vmatprep.mubr.f32.mxu0 0.0
    %v4845 = vand.u32 %v3383, 4294901760
    %4846 = vmatmul.mubr.f32.gmra.mrb[0].mxu0 %v4845
    %v4847 = vpop.f32.mrb[0].mxu0
    %v4848 = vadd.f32 %v4701, %v4847
    %v4849 = vpop.f32.mrb[0].mxu0
    %v4850 = vadd.f32 %v4703, %v4849
    %4851 = vmatprep.mubr.f32.mxu0 0.0
    %v4852 = vand.u32 %v3386, 4294901760
    %4853 = vmatmul.mubr.f32.gmra.mrb[0].mxu0 %v4852
    %v4854 = vpop.f32.mrb[0].mxu0
    %v4855 = vadd.f32 %v4710, %v4854
    %v4856 = vpop.f32.mrb[0].mxu0
    %v4857 = vadd.f32 %v4712, %v4856
    %4858 = vmatprep.mubr.f32.mxu0 0.0
    %v4859 = vand.u32 %v3389, 4294901760
    %4860 = vmatmul.mubr.f32.gmra.mrb[0].mxu0 %v4859
    %v4861 = vpop.f32.mrb[0].mxu0
    %v4862 = vadd.f32 %v4719, %v4861
    %v4863 = vpop.f32.mrb[0].mxu0
    %v4864 = vadd.f32 %v4721, %v4863
    %4865 = vmatprep.mubr.f32.mxu0 0.0
    %v4866 = vand.u32 %v3392, 4294901760
    %4867 = vmatmul.mubr.f32.gmra.mrb[0].mxu0 %v4866
    %v4868 = vpop.f32.mrb[0].mxu0
    %v4869 = vadd.f32 %v4728, %v4868
    %v4870 = vpop.f32.mrb[0].mxu0
    %v4871 = vadd.f32 %v4730, %v4870
    %4872 = vdwg.mxu0
    %v4873 = vand.u32 %v79, 4294901760
    %4874 = vmatprep.subr.mxu0 %v4873
    %v4875 = vand.u32 %v78, 4294901760
    %4876 = vmatpush1.msra.mxu0 %v4875
    %v4877 = vand.u32 %v83, 4294901760
    %4878 = vmatprep.subr.mxu0 %v4877
    %v4879 = vand.u32 %v82, 4294901760
    %4880 = vmatpush1.msra.mxu0 %v4879
    %v4881 = vand.u32 %v87, 4294901760
    %4882 = vmatprep.subr.mxu0 %v4881
    %v4883 = vand.u32 %v86, 4294901760
    %4884 = vmatpush1.msra.mxu0 %v4883
    %v4885 = vand.u32 %v91, 4294901760
    %4886 = vmatprep.subr.mxu0 %v4885
    %v4887 = vand.u32 %v90, 4294901760
    %4888 = vmatpush1.msra.mxu0 %v4887
    %v4889 = vand.u32 %v95, 4294901760
    %4890 = vmatprep.subr.mxu0 %v4889
    %v4891 = vand.u32 %v94, 4294901760
    %4892 = vmatpush1.msra.mxu0 %v4891
    %v4893 = vand.u32 %v99, 4294901760
    %4894 = vmatprep.subr.mxu0 %v4893
    %v4895 = vand.u32 %v98, 4294901760
    %4896 = vmatpush1.msra.mxu0 %v4895
    %v4897 = vand.u32 %v103, 4294901760
    %4898 = vmatprep.subr.mxu0 %v4897
    %v4899 = vand.u32 %v102, 4294901760
    %4900 = vmatpush1.msra.mxu0 %v4899
    %v4901 = vand.u32 %v107, 4294901760
    %4902 = vmatprep.subr.mxu0 %v4901
    %v4903 = vand.u32 %v106, 4294901760
    %4904 = vmatpush1.msra.mxu0 %v4903
    %4905 = vmatprep.subr.mxu0 0.0
    %4906 = vmatpush1.msra.mxu0 0.0
    %4907 = vmatprep.subr.mxu0 0.0
    %4908 = vmatpush1.msra.mxu0 0.0
    %4909 = vmatprep.subr.mxu0 0.0
    %4910 = vmatpush1.msra.mxu0 0.0
    %4911 = vmatprep.subr.mxu0 0.0
    %4912 = vmatpush1.msra.mxu0 0.0
    %4913 = vmatprep.subr.mxu0 0.0
    %4914 = vmatpush1.msra.mxu0 0.0
    %4915 = vmatprep.subr.mxu0 0.0
    %4916 = vmatpush1.msra.mxu0 0.0
    %4917 = vmatprep.subr.mxu0 0.0
    %4918 = vmatpush1.msra.mxu0 0.0
    %4919 = vmatprep.subr.mxu0 0.0
    %4920 = vmatpush1.msra.mxu0 0.0
    %4921 = vmatprep.subr.mxu0 0.0
    %4922 = vmatpush1.msra.mxu0 0.0
    %4923 = vmatprep.subr.mxu0 0.0
    %4924 = vmatpush1.msra.mxu0 0.0
    %4925 = vmatprep.subr.mxu0 0.0
    %4926 = vmatpush1.msra.mxu0 0.0
    %4927 = vmatprep.subr.mxu0 0.0
    %4928 = vmatpush1.msra.mxu0 0.0
    %4929 = vmatprep.subr.mxu0 0.0
    %4930 = vmatpush1.msra.mxu0 0.0
    %4931 = vmatprep.subr.mxu0 0.0
    %4932 = vmatpush1.msra.mxu0 0.0
    %4933 = vmatprep.subr.mxu0 0.0
    %4934 = vmatpush1.msra.mxu0 0.0
    %4935 = vmatprep.subr.mxu0 0.0
    %4936 = vmatpush1.msra.mxu0 0.0
    %4937 = vmatprep.subr.mxu0 0.0
    %4938 = vmatpush1.msra.mxu0 0.0
    %4939 = vmatprep.subr.mxu0 0.0
    %4940 = vmatpush1.msra.mxu0 0.0
    %4941 = vmatprep.subr.mxu0 0.0
    %4942 = vmatpush1.msra.mxu0 0.0
    %4943 = vmatprep.subr.mxu0 0.0
    %4944 = vmatpush1.msra.mxu0 0.0
    %4945 = vmatprep.subr.mxu0 0.0
    %4946 = vmatpush1.msra.mxu0 0.0
    %4947 = vmatprep.subr.mxu0 0.0
    %4948 = vmatpush1.msra.mxu0 0.0
    %4949 = vmatprep.subr.mxu0 0.0
    %4950 = vmatpush1.msra.mxu0 0.0
    %4951 = vmatprep.subr.mxu0 0.0
    %4952 = vmatpush1.msra.mxu0 0.0
    %4953 = vmatprep.mubr.f32.mxu0 0.0
    %v4954 = vand.u32 %v3383, 4294901760
    %4955 = vmatmul.mubr.f32.gmra.mrb[0].mxu0 %v4954
    %v4956 = vpop.f32.mrb[0].mxu0
    %v4957 = vadd.f32 %v4848, %v4956
    %v4958 = vpop.f32.mrb[0].mxu0
    %v4959 = vadd.f32 %v4850, %v4958
    %4960 = vmatprep.mubr.f32.mxu0 0.0
    %v4961 = vand.u32 %v3386, 4294901760
    %4962 = vmatmul.mubr.f32.gmra.mrb[0].mxu0 %v4961
    %v4963 = vpop.f32.mrb[0].mxu0
    %v4964 = vadd.f32 %v4855, %v4963
    %v4965 = vpop.f32.mrb[0].mxu0
    %v4966 = vadd.f32 %v4857, %v4965
    %4967 = vmatprep.mubr.f32.mxu0 0.0
    %v4968 = vand.u32 %v3389, 4294901760
    %4969 = vmatmul.mubr.f32.gmra.mrb[0].mxu0 %v4968
    %v4970 = vpop.f32.mrb[0].mxu0
    %v4971 = vadd.f32 %v4862, %v4970
    %v4972 = vpop.f32.mrb[0].mxu0
    %v4973 = vadd.f32 %v4864, %v4972
    %4974 = vmatprep.mubr.f32.mxu0 0.0
    %v4975 = vand.u32 %v3392, 4294901760
    %4976 = vmatmul.mubr.f32.gmra.mrb[0].mxu0 %v4975
    %v4977 = vpop.f32.mrb[0].mxu0
    %v4978 = vadd.f32 %v4869, %v4977
    %v4979 = vpop.f32.mrb[0].mxu0
    %v4980 = vadd.f32 %v4871, %v4979
    %4981 = vdwg.mxu0
    %v4982 = vadd.f32 %v4163, %v2563
    %v4983 = vadd.f32 %v4165, %v2565
    %v4984 = vadd.f32 %v4957, %v3357
    %v4985 = vadd.f32 %v4959, %v3359
    %v4986 = vadd.f32 %v4170, %v2570
    %v4987 = vadd.f32 %v4172, %v2572
    %v4988 = vadd.f32 %v4964, %v3364
    %v4989 = vadd.f32 %v4966, %v3366
    %v4990 = vadd.f32 %v4177, %v2577
    %v4991 = vadd.f32 %v4179, %v2579
    %v4992 = vadd.f32 %v4971, %v3371
    %v4993 = vadd.f32 %v4973, %v3373
    %v4994 = vadd.f32 %v4184, %v2584
    %v4995 = vadd.f32 %v4186, %v2586
    %v4996 = vadd.f32 %v4978, %v3378
    %v4997 = vadd.f32 %v4980, %v3380
    %v4998 = vadd.f32 %v4982, %v4986
    %v4999 = vadd.f32 %v4998, %v4990
    %v5000 = vadd.f32 %v4999, %v4994
    %v5001 = vrot.slane %v5000, 4
    %v5002 = vadd.f32 %v5000, %v5001
    %v5003 = vrot.slane %v5002, 2
    %v5004 = vadd.f32 %v5002, %v5003
    %v5005 = vrot.slane %v5004, 1
    %v5006 = vadd.f32 %v5004, %v5005
    %v5007 = vadd.f32 %v4983, %v4987
    %v5008 = vadd.f32 %v5007, %v4991
    %v5009 = vadd.f32 %v5008, %v4995
    %v5010 = vrot.slane %v5009, 4
    %v5011 = vadd.f32 %v5009, %v5010
    %v5012 = vrot.slane %v5011, 2
    %v5013 = vadd.f32 %v5011, %v5012
    %v5014 = vrot.slane %v5013, 1
    %v5015 = vadd.f32 %v5013, %v5014
    %v5016 = vadd.f32 %v4984, %v4988
    %v5017 = vadd.f32 %v5016, %v4992
    %v5018 = vadd.f32 %v5017, %v4996
    %v5019 = vrot.slane %v5018, 4
    %v5020 = vadd.f32 %v5018, %v5019
    %v5021 = vrot.slane %v5020, 2
    %v5022 = vadd.f32 %v5020, %v5021
    %v5023 = vrot.slane %v5022, 1
    %v5024 = vadd.f32 %v5022, %v5023
    %v5025 = vadd.f32 %v4985, %v4989
    %v5026 = vadd.f32 %v5025, %v4993
    %v5027 = vadd.f32 %v5026, %v4997
    %v5028 = vrot.slane %v5027, 4
    %v5029 = vadd.f32 %v5027, %v5028
    %v5030 = vrot.slane %v5029, 2
    %v5031 = vadd.f32 %v5029, %v5030
    %v5032 = vrot.slane %v5031, 1
    %v5033 = vadd.f32 %v5031, %v5032
    %v5034 = vmul.f32 %v4982, %v4982
    %v5035 = vmul.f32 %v4983, %v4983
    %v5036 = vmul.f32 %v4984, %v4984
    %v5037 = vmul.f32 %v4985, %v4985
    %v5038 = vmul.f32 %v4986, %v4986
    %v5039 = vmul.f32 %v4987, %v4987
    %v5040 = vmul.f32 %v4988, %v4988
    %v5041 = vmul.f32 %v4989, %v4989
    %v5042 = vmul.f32 %v4990, %v4990
    %v5043 = vmul.f32 %v4991, %v4991
    %v5044 = vmul.f32 %v4992, %v4992
    %v5045 = vmul.f32 %v4993, %v4993
    %v5046 = vmul.f32 %v4994, %v4994
    %v5047 = vmul.f32 %v4995, %v4995
    %v5048 = vmul.f32 %v4996, %v4996
    %v5049 = vmul.f32 %v4997, %v4997
    %v5050 = vadd.f32 %v5034, %v5038
    %v5051 = vadd.f32 %v5050, %v5042
    %v5052 = vadd.f32 %v5051, %v5046
    %v5053 = vrot.slane %v5052, 4
    %v5054 = vadd.f32 %v5052, %v5053
    %v5055 = vrot.slane %v5054, 2
    %v5056 = vadd.f32 %v5054, %v5055
    %v5057 = vrot.slane %v5056, 1
    %v5058 = vadd.f32 %v5056, %v5057
    %v5059 = vadd.f32 %v5035, %v5039
    %v5060 = vadd.f32 %v5059, %v5043
    %v5061 = vadd.f32 %v5060, %v5047
    %v5062 = vrot.slane %v5061, 4
    %v5063 = vadd.f32 %v5061, %v5062
    %v5064 = vrot.slane %v5063, 2
    %v5065 = vadd.f32 %v5063, %v5064
    %v5066 = vrot.slane %v5065, 1
    %v5067 = vadd.f32 %v5065, %v5066
    %v5068 = vadd.f32 %v5036, %v5040
    %v5069 = vadd.f32 %v5068, %v5044
    %v5070 = vadd.f32 %v5069, %v5048
    %v5071 = vrot.slane %v5070, 4
    %v5072 = vadd.f32 %v5070, %v5071
    %v5073 = vrot.slane %v5072, 2
    %v5074 = vadd.f32 %v5072, %v5073
    %v5075 = vrot.slane %v5074, 1
    %v5076 = vadd.f32 %v5074, %v5075
    %v5077 = vadd.f32 %v5037, %v5041
    %v5078 = vadd.f32 %v5077, %v5045
    %v5079 = vadd.f32 %v5078, %v5049
    %v5080 = vrot.slane %v5079, 4
    %v5081 = vadd.f32 %v5079, %v5080
    %v5082 = vrot.slane %v5081, 2
    %v5083 = vadd.f32 %v5081, %v5082
    %v5084 = vrot.slane %v5083, 1
    %v5085 = vadd.f32 %v5083, %v5084
    %v5086 = vld [vmem:[#allocation8] sm:$0xff]
    %v5087 = vld [vmem:[#allocation8 + $0x8] sm:$0xff]
    %v5088 = vld [vmem:[#allocation8 + $0x10] sm:$0xff]
    %v5089 = vld [vmem:[#allocation8 + $0x18] sm:$0xff]
    %v5090 = vld [vmem:[#allocation8 + $0x20] sm:$0xff]
    %v5091 = vld [vmem:[#allocation8 + $0x28] sm:$0xff]
    %v5092 = vld [vmem:[#allocation8 + $0x30] sm:$0xff]
    %v5093 = vld [vmem:[#allocation8 + $0x38] sm:$0xff]
    %v5094 = vld [vmem:[#allocation8 + $0x40] sm:$0xff]
    %v5095 = vld [vmem:[#allocation8 + $0x48] sm:$0xff]
    %v5096 = vld [vmem:[#allocation8 + $0x50] sm:$0xff]
    %v5097 = vld [vmem:[#allocation8 + $0x58] sm:$0xff]
    %v5098 = vld [vmem:[#allocation8 + $0x60] sm:$0xff]
    %v5099 = vld [vmem:[#allocation8 + $0x68] sm:$0xff]
    %v5100 = vld [vmem:[#allocation8 + $0x70] sm:$0xff]
    %v5101 = vld [vmem:[#allocation8 + $0x78] sm:$0xff]
    %v5102 = vand.u32 %v5087, 4294901760
    %5103 = vmatprep.subr.mxu0 %v5102
    %v5104 = vand.u32 %v5086, 4294901760
    %5105 = vmatpush1.xpose.msra.mxu0 %v5104
    %v5106 = vand.u32 %v5091, 4294901760
    %5107 = vmatprep.subr.mxu0 %v5106
    %v5108 = vand.u32 %v5090, 4294901760
    %5109 = vmatpush1.xpose.msra.mxu0 %v5108
    %v5110 = vand.u32 %v5095, 4294901760
    %5111 = vmatprep.subr.mxu0 %v5110
    %v5112 = vand.u32 %v5094, 4294901760
    %5113 = vmatpush1.xpose.msra.mxu0 %v5112
    %v5114 = vand.u32 %v5099, 4294901760
    %5115 = vmatprep.subr.mxu0 %v5114
    %v5116 = vand.u32 %v5098, 4294901760
    %5117 = vmatpush1.xpose.msra.mxu0 %v5116
    %5118 = vmatprep.subr.mxu0 0.0
    %5119 = vmatpush1.xpose.msra.mxu0 0.0
    %5120 = vmatprep.subr.mxu0 0.0
    %5121 = vmatpush1.xpose.msra.mxu0 0.0
    %5122 = vmatprep.subr.mxu0 0.0
    %5123 = vmatpush1.xpose.msra.mxu0 0.0
    %5124 = vmatprep.subr.mxu0 0.0
    %5125 = vmatpush1.xpose.msra.mxu0 0.0
    %5126 = vmatprep.subr.mxu0 0.0
    %5127 = vmatpush1.xpose.msra.mxu0 0.0
    %5128 = vmatprep.subr.mxu0 0.0
    %5129 = vmatpush1.xpose.msra.mxu0 0.0
    %5130 = vmatprep.subr.mxu0 0.0
    %5131 = vmatpush1.xpose.msra.mxu0 0.0
    %5132 = vmatprep.subr.mxu0 0.0
    %5133 = vmatpush1.xpose.msra.mxu0 0.0
    %5134 = vmatprep.subr.mxu0 0.0
    %5135 = vmatpush1.xpose.msra.mxu0 0.0
    %5136 = vmatprep.subr.mxu0 0.0
    %5137 = vmatpush1.xpose.msra.mxu0 0.0
    %5138 = vmatprep.subr.mxu0 0.0
    %5139 = vmatpush1.xpose.msra.mxu0 0.0
    %5140 = vmatprep.subr.mxu0 0.0
    %5141 = vmatpush1.xpose.msra.mxu0 0.0
    %5142 = vmatprep.subr.mxu0 0.0
    %5143 = vmatpush1.xpose.msra.mxu0 0.0
    %5144 = vmatprep.subr.mxu0 0.0
    %5145 = vmatpush1.xpose.msra.mxu0 0.0
    %5146 = vmatprep.subr.mxu0 0.0
    %5147 = vmatpush1.xpose.msra.mxu0 0.0
    %5148 = vmatprep.subr.mxu0 0.0
    %5149 = vmatpush1.xpose.msra.mxu0 0.0
    %5150 = vmatprep.subr.mxu0 0.0
    %5151 = vmatpush1.xpose.msra.mxu0 0.0
    %5152 = vmatprep.subr.mxu0 0.0
    %5153 = vmatpush1.xpose.msra.mxu0 0.0
    %5154 = vmatprep.subr.mxu0 0.0
    %5155 = vmatpush1.xpose.msra.mxu0 0.0
    %5156 = vmatprep.subr.mxu0 0.0
    %5157 = vmatpush1.xpose.msra.mxu0 0.0
    %5158 = vmatprep.subr.mxu0 0.0
    %5159 = vmatpush1.xpose.msra.mxu0 0.0
    %5160 = vmatprep.subr.mxu0 0.0
    %5161 = vmatpush1.xpose.msra.mxu0 0.0
    %5162 = vmatprep.subr.mxu0 0.0
    %5163 = vmatpush1.xpose.msra.mxu0 0.0
    %5164 = vmatprep.subr.mxu0 0.0
    %5165 = vmatpush1.xpose.msra.mxu0 0.0
    %5166 = vmatprep.subr.mxu0 0.0
    %5167 = vmatpush1.xpose.msra.mxu0 0.0
    %5168 = vmatprep.subr.mxu0 0.0
    %5169 = vmatpush1.xpose.msra.mxu0 0.0
    %5170 = vmatprep.subr.mxu0 0.0
    %5171 = vmatpush1.xpose.msra.mxu0 0.0
    %5172 = vmatprep.subr.mxu0 0.0
    %5173 = vmatpush1.xpose.msra.mxu0 0.0
    %v5174 = vand.u32 %v5015, 4294901760
    %v5175 = vsub.f32 %v5015, %v5174
    %v5176 = vand.u32 %v5175, 4294901760
    %v5177 = vsub.f32 %v5175, %v5176
    %v5178 = vand.u32 %v5177, 4294901760
    %5179 = vmatprep.mubr.f32.mxu0 %v5178
    %v5180 = vand.u32 %v5006, 4294901760
    %v5181 = vsub.f32 %v5006, %v5180
    %v5182 = vand.u32 %v5181, 4294901760
    %v5183 = vsub.f32 %v5181, %v5182
    %v5184 = vand.u32 %v5183, 4294901760
    %5185 = vmatmul.mubr.f32.gmra.mrb[0].mxu0 %v5184
    %v5186 = vpop.f32.mrb[0].mxu0
    %v5187 = vadd.f32 0.0, %v5186
    %v5188 = vpop.f32.mrb[0].mxu0
    %5189 = vdwg.mxu0
    %v5190 = vand.u32 %v5087, 4294901760
    %v5191 = vsub.f32 %v5087, %v5190
    %v5192 = vand.u32 %v5191, 4294901760
    %v5193 = vsub.f32 %v5191, %v5192
    %v5194 = vand.u32 %v5193, 4294901760
    %5195 = vmatprep.subr.mxu0 %v5194
    %v5196 = vand.u32 %v5086, 4294901760
    %v5197 = vsub.f32 %v5086, %v5196
    %v5198 = vand.u32 %v5197, 4294901760
    %v5199 = vsub.f32 %v5197, %v5198
    %v5200 = vand.u32 %v5199, 4294901760
    %5201 = vmatpush1.xpose.msra.mxu0 %v5200
    %v5202 = vand.u32 %v5091, 4294901760
    %v5203 = vsub.f32 %v5091, %v5202
    %v5204 = vand.u32 %v5203, 4294901760
    %v5205 = vsub.f32 %v5203, %v5204
    %v5206 = vand.u32 %v5205, 4294901760
    %5207 = vmatprep.subr.mxu0 %v5206
    %v5208 = vand.u32 %v5090, 4294901760
    %v5209 = vsub.f32 %v5090, %v5208
    %v5210 = vand.u32 %v5209, 4294901760
    %v5211 = vsub.f32 %v5209, %v5210
    %v5212 = vand.u32 %v5211, 4294901760
    %5213 = vmatpush1.xpose.msra.mxu0 %v5212
    %v5214 = vand.u32 %v5095, 4294901760
    %v5215 = vsub.f32 %v5095, %v5214
    %v5216 = vand.u32 %v5215, 4294901760
    %v5217 = vsub.f32 %v5215, %v5216
    %v5218 = vand.u32 %v5217, 4294901760
    %5219 = vmatprep.subr.mxu0 %v5218
    %v5220 = vand.u32 %v5094, 4294901760
    %v5221 = vsub.f32 %v5094, %v5220
    %v5222 = vand.u32 %v5221, 4294901760
    %v5223 = vsub.f32 %v5221, %v5222
    %v5224 = vand.u32 %v5223, 4294901760
    %5225 = vmatpush1.xpose.msra.mxu0 %v5224
    %v5226 = vand.u32 %v5099, 4294901760
    %v5227 = vsub.f32 %v5099, %v5226
    %v5228 = vand.u32 %v5227, 4294901760
    %v5229 = vsub.f32 %v5227, %v5228
    %v5230 = vand.u32 %v5229, 4294901760
    %5231 = vmatprep.subr.mxu0 %v5230
    %v5232 = vand.u32 %v5098, 4294901760
    %v5233 = vsub.f32 %v5098, %v5232
    %v5234 = vand.u32 %v5233, 4294901760
    %v5235 = vsub.f32 %v5233, %v5234
    %v5236 = vand.u32 %v5235, 4294901760
    %5237 = vmatpush1.xpose.msra.mxu0 %v5236
    %5238 = vmatprep.subr.mxu0 0.0
    %5239 = vmatpush1.xpose.msra.mxu0 0.0
    %5240 = vmatprep.subr.mxu0 0.0
    %5241 = vmatpush1.xpose.msra.mxu0 0.0
    %5242 = vmatprep.subr.mxu0 0.0
    %5243 = vmatpush1.xpose.msra.mxu0 0.0
    %5244 = vmatprep.subr.mxu0 0.0
    %5245 = vmatpush1.xpose.msra.mxu0 0.0
    %5246 = vmatprep.subr.mxu0 0.0
    %5247 = vmatpush1.xpose.msra.mxu0 0.0
    %5248 = vmatprep.subr.mxu0 0.0
    %5249 = vmatpush1.xpose.msra.mxu0 0.0
    %5250 = vmatprep.subr.mxu0 0.0
    %5251 = vmatpush1.xpose.msra.mxu0 0.0
    %5252 = vmatprep.subr.mxu0 0.0
    %5253 = vmatpush1.xpose.msra.mxu0 0.0
    %5254 = vmatprep.subr.mxu0 0.0
    %5255 = vmatpush1.xpose.msra.mxu0 0.0
    %5256 = vmatprep.subr.mxu0 0.0
    %5257 = vmatpush1.xpose.msra.mxu0 0.0
    %5258 = vmatprep.subr.mxu0 0.0
    %5259 = vmatpush1.xpose.msra.mxu0 0.0
    %5260 = vmatprep.subr.mxu0 0.0
    %5261 = vmatpush1.xpose.msra.mxu0 0.0
    %5262 = vmatprep.subr.mxu0 0.0
    %5263 = vmatpush1.xpose.msra.mxu0 0.0
    %5264 = vmatprep.subr.mxu0 0.0
    %5265 = vmatpush1.xpose.msra.mxu0 0.0
    %5266 = vmatprep.subr.mxu0 0.0
    %5267 = vmatpush1.xpose.msra.mxu0 0.0
    %5268 = vmatprep.subr.mxu0 0.0
    %5269 = vmatpush1.xpose.msra.mxu0 0.0
    %5270 = vmatprep.subr.mxu0 0.0
    %5271 = vmatpush1.xpose.msra.mxu0 0.0
    %5272 = vmatprep.subr.mxu0 0.0
    %5273 = vmatpush1.xpose.msra.mxu0 0.0
    %5274 = vmatprep.subr.mxu0 0.0
    %5275 = vmatpush1.xpose.msra.mxu0 0.0
    %5276 = vmatprep.subr.mxu0 0.0
    %5277 = vmatpush1.xpose.msra.mxu0 0.0
    %5278 = vmatprep.subr.mxu0 0.0
    %5279 = vmatpush1.xpose.msra.mxu0 0.0
    %5280 = vmatprep.subr.mxu0 0.0
    %5281 = vmatpush1.xpose.msra.mxu0 0.0
    %5282 = vmatprep.subr.mxu0 0.0
    %5283 = vmatpush1.xpose.msra.mxu0 0.0
    %5284 = vmatprep.subr.mxu0 0.0
    %5285 = vmatpush1.xpose.msra.mxu0 0.0
    %5286 = vmatprep.subr.mxu0 0.0
    %5287 = vmatpush1.xpose.msra.mxu0 0.0
    %5288 = vmatprep.subr.mxu0 0.0
    %5289 = vmatpush1.xpose.msra.mxu0 0.0
    %5290 = vmatprep.subr.mxu0 0.0
    %5291 = vmatpush1.xpose.msra.mxu0 0.0
    %5292 = vmatprep.subr.mxu0 0.0
    %5293 = vmatpush1.xpose.msra.mxu0 0.0
    %v5294 = vand.u32 %v5015, 4294901760
    %5295 = vmatprep.mubr.f32.mxu0 %v5294
    %v5296 = vand.u32 %v5006, 4294901760
    %5297 = vmatmul.mubr.f32.gmra.mrb[0].mxu0 %v5296
    %v5298 = vpop.f32.mrb[0].mxu0
    %v5299 = vadd.f32 %v5187, %v5298
    %v5300 = vpop.f32.mrb[0].mxu0
    %5301 = vdwg.mxu0
    %v5302 = vand.u32 %v5087, 4294901760
    %v5303 = vsub.f32 %v5087, %v5302
    %5304 = vmatprep.subr.mxu0 %v5303
    %v5305 = vand.u32 %v5086, 4294901760
    %v5306 = vsub.f32 %v5086, %v5305
    %5307 = vmatpush1.xpose.msra.mxu0 %v5306
    %v5308 = vand.u32 %v5091, 4294901760
    %v5309 = vsub.f32 %v5091, %v5308
    %5310 = vmatprep.subr.mxu0 %v5309
    %v5311 = vand.u32 %v5090, 4294901760
    %v5312 = vsub.f32 %v5090, %v5311
    %5313 = vmatpush1.xpose.msra.mxu0 %v5312
    %v5314 = vand.u32 %v5095, 4294901760
    %v5315 = vsub.f32 %v5095, %v5314
    %5316 = vmatprep.subr.mxu0 %v5315
    %v5317 = vand.u32 %v5094, 4294901760
    %v5318 = vsub.f32 %v5094, %v5317
    %5319 = vmatpush1.xpose.msra.mxu0 %v5318
    %v5320 = vand.u32 %v5099, 4294901760
    %v5321 = vsub.f32 %v5099, %v5320
    %5322 = vmatprep.subr.mxu0 %v5321
    %v5323 = vand.u32 %v5098, 4294901760
    %v5324 = vsub.f32 %v5098, %v5323
    %5325 = vmatpush1.xpose.msra.mxu0 %v5324
    %5326 = vmatprep.subr.mxu0 0.0
    %5327 = vmatpush1.xpose.msra.mxu0 0.0
    %5328 = vmatprep.subr.mxu0 0.0
    %5329 = vmatpush1.xpose.msra.mxu0 0.0
    %5330 = vmatprep.subr.mxu0 0.0
    %5331 = vmatpush1.xpose.msra.mxu0 0.0
    %5332 = vmatprep.subr.mxu0 0.0
    %5333 = vmatpush1.xpose.msra.mxu0 0.0
    %5334 = vmatprep.subr.mxu0 0.0
    %5335 = vmatpush1.xpose.msra.mxu0 0.0
    %5336 = vmatprep.subr.mxu0 0.0
    %5337 = vmatpush1.xpose.msra.mxu0 0.0
    %5338 = vmatprep.subr.mxu0 0.0
    %5339 = vmatpush1.xpose.msra.mxu0 0.0
    %5340 = vmatprep.subr.mxu0 0.0
    %5341 = vmatpush1.xpose.msra.mxu0 0.0
    %5342 = vmatprep.subr.mxu0 0.0
    %5343 = vmatpush1.xpose.msra.mxu0 0.0
    %5344 = vmatprep.subr.mxu0 0.0
    %5345 = vmatpush1.xpose.msra.mxu0 0.0
    %5346 = vmatprep.subr.mxu0 0.0
    %5347 = vmatpush1.xpose.msra.mxu0 0.0
    %5348 = vmatprep.subr.mxu0 0.0
    %5349 = vmatpush1.xpose.msra.mxu0 0.0
    %5350 = vmatprep.subr.mxu0 0.0
    %5351 = vmatpush1.xpose.msra.mxu0 0.0
    %5352 = vmatprep.subr.mxu0 0.0
    %5353 = vmatpush1.xpose.msra.mxu0 0.0
    %5354 = vmatprep.subr.mxu0 0.0
    %5355 = vmatpush1.xpose.msra.mxu0 0.0
    %5356 = vmatprep.subr.mxu0 0.0
    %5357 = vmatpush1.xpose.msra.mxu0 0.0
    %5358 = vmatprep.subr.mxu0 0.0
    %5359 = vmatpush1.xpose.msra.mxu0 0.0
    %5360 = vmatprep.subr.mxu0 0.0
    %5361 = vmatpush1.xpose.msra.mxu0 0.0
    %5362 = vmatprep.subr.mxu0 0.0
    %5363 = vmatpush1.xpose.msra.mxu0 0.0
    %5364 = vmatprep.subr.mxu0 0.0
    %5365 = vmatpush1.xpose.msra.mxu0 0.0
    %5366 = vmatprep.subr.mxu0 0.0
    %5367 = vmatpush1.xpose.msra.mxu0 0.0
    %5368 = vmatprep.subr.mxu0 0.0
    %5369 = vmatpush1.xpose.msra.mxu0 0.0
    %5370 = vmatprep.subr.mxu0 0.0
    %5371 = vmatpush1.xpose.msra.mxu0 0.0
    %5372 = vmatprep.subr.mxu0 0.0
    %5373 = vmatpush1.xpose.msra.mxu0 0.0
    %5374 = vmatprep.subr.mxu0 0.0
    %5375 = vmatpush1.xpose.msra.mxu0 0.0
    %5376 = vmatprep.subr.mxu0 0.0
    %5377 = vmatpush1.xpose.msra.mxu0 0.0
    %5378 = vmatprep.subr.mxu0 0.0
    %5379 = vmatpush1.xpose.msra.mxu0 0.0
    %5380 = vmatprep.subr.mxu0 0.0
    %5381 = vmatpush1.xpose.msra.mxu0 0.0
    %v5382 = vand.u32 %v5015, 4294901760
    %v5383 = vsub.f32 %v5015, %v5382
    %5384 = vmatprep.mubr.f32.mxu0 %v5383
    %v5385 = vand.u32 %v5006, 4294901760
    %v5386 = vsub.f32 %v5006, %v5385
    %5387 = vmatmul.mubr.f32.gmra.mrb[0].mxu0 %v5386
    %v5388 = vpop.f32.mrb[0].mxu0
    %v5389 = vadd.f32 %v5299, %v5388
    %v5390 = vpop.f32.mrb[0].mxu0
    %5391 = vdwg.mxu0
    %v5392 = vand.u32 %v5087, 4294901760
    %5393 = vmatprep.subr.mxu0 %v5392
    %v5394 = vand.u32 %v5086, 4294901760
    %5395 = vmatpush1.xpose.msra.mxu0 %v5394
    %v5396 = vand.u32 %v5091, 4294901760
    %5397 = vmatprep.subr.mxu0 %v5396
    %v5398 = vand.u32 %v5090, 4294901760
    %5399 = vmatpush1.xpose.msra.mxu0 %v5398
    %v5400 = vand.u32 %v5095, 4294901760
    %5401 = vmatprep.subr.mxu0 %v5400
    %v5402 = vand.u32 %v5094, 4294901760
    %5403 = vmatpush1.xpose.msra.mxu0 %v5402
    %v5404 = vand.u32 %v5099, 4294901760
    %5405 = vmatprep.subr.mxu0 %v5404
    %v5406 = vand.u32 %v5098, 4294901760
    %5407 = vmatpush1.xpose.msra.mxu0 %v5406
    %5408 = vmatprep.subr.mxu0 0.0
    %5409 = vmatpush1.xpose.msra.mxu0 0.0
    %5410 = vmatprep.subr.mxu0 0.0
    %5411 = vmatpush1.xpose.msra.mxu0 0.0
    %5412 = vmatprep.subr.mxu0 0.0
    %5413 = vmatpush1.xpose.msra.mxu0 0.0
    %5414 = vmatprep.subr.mxu0 0.0
    %5415 = vmatpush1.xpose.msra.mxu0 0.0
    %5416 = vmatprep.subr.mxu0 0.0
    %5417 = vmatpush1.xpose.msra.mxu0 0.0
    %5418 = vmatprep.subr.mxu0 0.0
    %5419 = vmatpush1.xpose.msra.mxu0 0.0
    %5420 = vmatprep.subr.mxu0 0.0
    %5421 = vmatpush1.xpose.msra.mxu0 0.0
    %5422 = vmatprep.subr.mxu0 0.0
    %5423 = vmatpush1.xpose.msra.mxu0 0.0
    %5424 = vmatprep.subr.mxu0 0.0
    %5425 = vmatpush1.xpose.msra.mxu0 0.0
    %5426 = vmatprep.subr.mxu0 0.0
    %5427 = vmatpush1.xpose.msra.mxu0 0.0
    %5428 = vmatprep.subr.mxu0 0.0
    %5429 = vmatpush1.xpose.msra.mxu0 0.0
    %5430 = vmatprep.subr.mxu0 0.0
    %5431 = vmatpush1.xpose.msra.mxu0 0.0
    %5432 = vmatprep.subr.mxu0 0.0
    %5433 = vmatpush1.xpose.msra.mxu0 0.0
    %5434 = vmatprep.subr.mxu0 0.0
    %5435 = vmatpush1.xpose.msra.mxu0 0.0
    %5436 = vmatprep.subr.mxu0 0.0
    %5437 = vmatpush1.xpose.msra.mxu0 0.0
    %5438 = vmatprep.subr.mxu0 0.0
    %5439 = vmatpush1.xpose.msra.mxu0 0.0
    %5440 = vmatprep.subr.mxu0 0.0
    %5441 = vmatpush1.xpose.msra.mxu0 0.0
    %5442 = vmatprep.subr.mxu0 0.0
    %5443 = vmatpush1.xpose.msra.mxu0 0.0
    %5444 = vmatprep.subr.mxu0 0.0
    %5445 = vmatpush1.xpose.msra.mxu0 0.0
    %5446 = vmatprep.subr.mxu0 0.0
    %5447 = vmatpush1.xpose.msra.mxu0 0.0
    %5448 = vmatprep.subr.mxu0 0.0
    %5449 = vmatpush1.xpose.msra.mxu0 0.0
    %5450 = vmatprep.subr.mxu0 0.0
    %5451 = vmatpush1.xpose.msra.mxu0 0.0
    %5452 = vmatprep.subr.mxu0 0.0
    %5453 = vmatpush1.xpose.msra.mxu0 0.0
    %5454 = vmatprep.subr.mxu0 0.0
    %5455 = vmatpush1.xpose.msra.mxu0 0.0
    %5456 = vmatprep.subr.mxu0 0.0
    %5457 = vmatpush1.xpose.msra.mxu0 0.0
    %5458 = vmatprep.subr.mxu0 0.0
    %5459 = vmatpush1.xpose.msra.mxu0 0.0
    %5460 = vmatprep.subr.mxu0 0.0
    %5461 = vmatpush1.xpose.msra.mxu0 0.0
    %5462 = vmatprep.subr.mxu0 0.0
    %5463 = vmatpush1.xpose.msra.mxu0 0.0
    %v5464 = vand.u32 %v5015, 4294901760
    %v5465 = vsub.f32 %v5015, %v5464
    %v5466 = vand.u32 %v5465, 4294901760
    %5467 = vmatprep.mubr.f32.mxu0 %v5466
    %v5468 = vand.u32 %v5006, 4294901760
    %v5469 = vsub.f32 %v5006, %v5468
    %v5470 = vand.u32 %v5469, 4294901760
    %5471 = vmatmul.mubr.f32.gmra.mrb[0].mxu0 %v5470
    %v5472 = vpop.f32.mrb[0].mxu0
    %v5473 = vadd.f32 %v5389, %v5472
    %v5474 = vpop.f32.mrb[0].mxu0
    %5475 = vdwg.mxu0
    %v5476 = vand.u32 %v5087, 4294901760
    %v5477 = vsub.f32 %v5087, %v5476
    %v5478 = vand.u32 %v5477, 4294901760
    %5479 = vmatprep.subr.mxu0 %v5478
    %v5480 = vand.u32 %v5086, 4294901760
    %v5481 = vsub.f32 %v5086, %v5480
    %v5482 = vand.u32 %v5481, 4294901760
    %5483 = vmatpush1.xpose.msra.mxu0 %v5482
    %v5484 = vand.u32 %v5091, 4294901760
    %v5485 = vsub.f32 %v5091, %v5484
    %v5486 = vand.u32 %v5485, 4294901760
    %5487 = vmatprep.subr.mxu0 %v5486
    %v5488 = vand.u32 %v5090, 4294901760
    %v5489 = vsub.f32 %v5090, %v5488
    %v5490 = vand.u32 %v5489, 4294901760
    %5491 = vmatpush1.xpose.msra.mxu0 %v5490
    %v5492 = vand.u32 %v5095, 4294901760
    %v5493 = vsub.f32 %v5095, %v5492
    %v5494 = vand.u32 %v5493, 4294901760
    %5495 = vmatprep.subr.mxu0 %v5494
    %v5496 = vand.u32 %v5094, 4294901760
    %v5497 = vsub.f32 %v5094, %v5496
    %v5498 = vand.u32 %v5497, 4294901760
    %5499 = vmatpush1.xpose.msra.mxu0 %v5498
    %v5500 = vand.u32 %v5099, 4294901760
    %v5501 = vsub.f32 %v5099, %v5500
    %v5502 = vand.u32 %v5501, 4294901760
    %5503 = vmatprep.subr.mxu0 %v5502
    %v5504 = vand.u32 %v5098, 4294901760
    %v5505 = vsub.f32 %v5098, %v5504
    %v5506 = vand.u32 %v5505, 4294901760
    %5507 = vmatpush1.xpose.msra.mxu0 %v5506
    %5508 = vmatprep.subr.mxu0 0.0
    %5509 = vmatpush1.xpose.msra.mxu0 0.0
    %5510 = vmatprep.subr.mxu0 0.0
    %5511 = vmatpush1.xpose.msra.mxu0 0.0
    %5512 = vmatprep.subr.mxu0 0.0
    %5513 = vmatpush1.xpose.msra.mxu0 0.0
    %5514 = vmatprep.subr.mxu0 0.0
    %5515 = vmatpush1.xpose.msra.mxu0 0.0
    %5516 = vmatprep.subr.mxu0 0.0
    %5517 = vmatpush1.xpose.msra.mxu0 0.0
    %5518 = vmatprep.subr.mxu0 0.0
    %5519 = vmatpush1.xpose.msra.mxu0 0.0
    %5520 = vmatprep.subr.mxu0 0.0
    %5521 = vmatpush1.xpose.msra.mxu0 0.0
    %5522 = vmatprep.subr.mxu0 0.0
    %5523 = vmatpush1.xpose.msra.mxu0 0.0
    %5524 = vmatprep.subr.mxu0 0.0
    %5525 = vmatpush1.xpose.msra.mxu0 0.0
    %5526 = vmatprep.subr.mxu0 0.0
    %5527 = vmatpush1.xpose.msra.mxu0 0.0
    %5528 = vmatprep.subr.mxu0 0.0
    %5529 = vmatpush1.xpose.msra.mxu0 0.0
    %5530 = vmatprep.subr.mxu0 0.0
    %5531 = vmatpush1.xpose.msra.mxu0 0.0
    %5532 = vmatprep.subr.mxu0 0.0
    %5533 = vmatpush1.xpose.msra.mxu0 0.0
    %5534 = vmatprep.subr.mxu0 0.0
    %5535 = vmatpush1.xpose.msra.mxu0 0.0
    %5536 = vmatprep.subr.mxu0 0.0
    %5537 = vmatpush1.xpose.msra.mxu0 0.0
    %5538 = vmatprep.subr.mxu0 0.0
    %5539 = vmatpush1.xpose.msra.mxu0 0.0
    %5540 = vmatprep.subr.mxu0 0.0
    %5541 = vmatpush1.xpose.msra.mxu0 0.0
    %5542 = vmatprep.subr.mxu0 0.0
    %5543 = vmatpush1.xpose.msra.mxu0 0.0
    %5544 = vmatprep.subr.mxu0 0.0
    %5545 = vmatpush1.xpose.msra.mxu0 0.0
    %5546 = vmatprep.subr.mxu0 0.0
    %5547 = vmatpush1.xpose.msra.mxu0 0.0
    %5548 = vmatprep.subr.mxu0 0.0
    %5549 = vmatpush1.xpose.msra.mxu0 0.0
    %5550 = vmatprep.subr.mxu0 0.0
    %5551 = vmatpush1.xpose.msra.mxu0 0.0
    %5552 = vmatprep.subr.mxu0 0.0
    %5553 = vmatpush1.xpose.msra.mxu0 0.0
    %5554 = vmatprep.subr.mxu0 0.0
    %5555 = vmatpush1.xpose.msra.mxu0 0.0
    %5556 = vmatprep.subr.mxu0 0.0
    %5557 = vmatpush1.xpose.msra.mxu0 0.0
    %5558 = vmatprep.subr.mxu0 0.0
    %5559 = vmatpush1.xpose.msra.mxu0 0.0
    %5560 = vmatprep.subr.mxu0 0.0
    %5561 = vmatpush1.xpose.msra.mxu0 0.0
    %5562 = vmatprep.subr.mxu0 0.0
    %5563 = vmatpush1.xpose.msra.mxu0 0.0
    %v5564 = vand.u32 %v5015, 4294901760
    %5565 = vmatprep.mubr.f32.mxu0 %v5564
    %v5566 = vand.u32 %v5006, 4294901760
    %5567 = vmatmul.mubr.f32.gmra.mrb[0].mxu0 %v5566
    %v5568 = vpop.f32.mrb[0].mxu0
    %v5569 = vadd.f32 %v5473, %v5568
    %v5570 = vpop.f32.mrb[0].mxu0
    %5571 = vdwg.mxu0
    %v5572 = vand.u32 %v5087, 4294901760
    %5573 = vmatprep.subr.mxu0 %v5572
    %v5574 = vand.u32 %v5086, 4294901760
    %5575 = vmatpush1.xpose.msra.mxu0 %v5574
    %v5576 = vand.u32 %v5091, 4294901760
    %5577 = vmatprep.subr.mxu0 %v5576
    %v5578 = vand.u32 %v5090, 4294901760
    %5579 = vmatpush1.xpose.msra.mxu0 %v5578
    %v5580 = vand.u32 %v5095, 4294901760
    %5581 = vmatprep.subr.mxu0 %v5580
    %v5582 = vand.u32 %v5094, 4294901760
    %5583 = vmatpush1.xpose.msra.mxu0 %v5582
    %v5584 = vand.u32 %v5099, 4294901760
    %5585 = vmatprep.subr.mxu0 %v5584
    %v5586 = vand.u32 %v5098, 4294901760
    %5587 = vmatpush1.xpose.msra.mxu0 %v5586
    %5588 = vmatprep.subr.mxu0 0.0
    %5589 = vmatpush1.xpose.msra.mxu0 0.0
    %5590 = vmatprep.subr.mxu0 0.0
    %5591 = vmatpush1.xpose.msra.mxu0 0.0
    %5592 = vmatprep.subr.mxu0 0.0
    %5593 = vmatpush1.xpose.msra.mxu0 0.0
    %5594 = vmatprep.subr.mxu0 0.0
    %5595 = vmatpush1.xpose.msra.mxu0 0.0
    %5596 = vmatprep.subr.mxu0 0.0
    %5597 = vmatpush1.xpose.msra.mxu0 0.0
    %5598 = vmatprep.subr.mxu0 0.0
    %5599 = vmatpush1.xpose.msra.mxu0 0.0
    %5600 = vmatprep.subr.mxu0 0.0
    %5601 = vmatpush1.xpose.msra.mxu0 0.0
    %5602 = vmatprep.subr.mxu0 0.0
    %5603 = vmatpush1.xpose.msra.mxu0 0.0
    %5604 = vmatprep.subr.mxu0 0.0
    %5605 = vmatpush1.xpose.msra.mxu0 0.0
    %5606 = vmatprep.subr.mxu0 0.0
    %5607 = vmatpush1.xpose.msra.mxu0 0.0
    %5608 = vmatprep.subr.mxu0 0.0
    %5609 = vmatpush1.xpose.msra.mxu0 0.0
    %5610 = vmatprep.subr.mxu0 0.0
    %5611 = vmatpush1.xpose.msra.mxu0 0.0
    %5612 = vmatprep.subr.mxu0 0.0
    %5613 = vmatpush1.xpose.msra.mxu0 0.0
    %5614 = vmatprep.subr.mxu0 0.0
    %5615 = vmatpush1.xpose.msra.mxu0 0.0
    %5616 = vmatprep.subr.mxu0 0.0
    %5617 = vmatpush1.xpose.msra.mxu0 0.0
    %5618 = vmatprep.subr.mxu0 0.0
    %5619 = vmatpush1.xpose.msra.mxu0 0.0
    %5620 = vmatprep.subr.mxu0 0.0
    %5621 = vmatpush1.xpose.msra.mxu0 0.0
    %5622 = vmatprep.subr.mxu0 0.0
    %5623 = vmatpush1.xpose.msra.mxu0 0.0
    %5624 = vmatprep.subr.mxu0 0.0
    %5625 = vmatpush1.xpose.msra.mxu0 0.0
    %5626 = vmatprep.subr.mxu0 0.0
    %5627 = vmatpush1.xpose.msra.mxu0 0.0
    %5628 = vmatprep.subr.mxu0 0.0
    %5629 = vmatpush1.xpose.msra.mxu0 0.0
    %5630 = vmatprep.subr.mxu0 0.0
    %5631 = vmatpush1.xpose.msra.mxu0 0.0
    %5632 = vmatprep.subr.mxu0 0.0
    %5633 = vmatpush1.xpose.msra.mxu0 0.0
    %5634 = vmatprep.subr.mxu0 0.0
    %5635 = vmatpush1.xpose.msra.mxu0 0.0
    %5636 = vmatprep.subr.mxu0 0.0
    %5637 = vmatpush1.xpose.msra.mxu0 0.0
    %5638 = vmatprep.subr.mxu0 0.0
    %5639 = vmatpush1.xpose.msra.mxu0 0.0
    %5640 = vmatprep.subr.mxu0 0.0
    %5641 = vmatpush1.xpose.msra.mxu0 0.0
    %5642 = vmatprep.subr.mxu0 0.0
    %5643 = vmatpush1.xpose.msra.mxu0 0.0
    %v5644 = vand.u32 %v5015, 4294901760
    %5645 = vmatprep.mubr.f32.mxu0 %v5644
    %v5646 = vand.u32 %v5006, 4294901760
    %5647 = vmatmul.mubr.f32.gmra.mrb[0].mxu0 %v5646
    %v5648 = vpop.f32.mrb[0].mxu0
    %v5649 = vadd.f32 %v5569, %v5648
    %v5650 = vpop.f32.mrb[0].mxu0
    %5651 = vdwg.mxu0
    %v5652 = vand.u32 %v5089, 4294901760
    %5653 = vmatprep.subr.mxu0 %v5652
    %v5654 = vand.u32 %v5088, 4294901760
    %5655 = vmatpush1.xpose.msra.mxu0 %v5654
    %v5656 = vand.u32 %v5093, 4294901760
    %5657 = vmatprep.subr.mxu0 %v5656
    %v5658 = vand.u32 %v5092, 4294901760
    %5659 = vmatpush1.xpose.msra.mxu0 %v5658
    %v5660 = vand.u32 %v5097, 4294901760
    %5661 = vmatprep.subr.mxu0 %v5660
    %v5662 = vand.u32 %v5096, 4294901760
    %5663 = vmatpush1.xpose.msra.mxu0 %v5662
    %v5664 = vand.u32 %v5101, 4294901760
    %5665 = vmatprep.subr.mxu0 %v5664
    %v5666 = vand.u32 %v5100, 4294901760
    %5667 = vmatpush1.xpose.msra.mxu0 %v5666
    %5668 = vmatprep.subr.mxu0 0.0
    %5669 = vmatpush1.xpose.msra.mxu0 0.0
    %5670 = vmatprep.subr.mxu0 0.0
    %5671 = vmatpush1.xpose.msra.mxu0 0.0
    %5672 = vmatprep.subr.mxu0 0.0
    %5673 = vmatpush1.xpose.msra.mxu0 0.0
    %5674 = vmatprep.subr.mxu0 0.0
    %5675 = vmatpush1.xpose.msra.mxu0 0.0
    %5676 = vmatprep.subr.mxu0 0.0
    %5677 = vmatpush1.xpose.msra.mxu0 0.0
    %5678 = vmatprep.subr.mxu0 0.0
    %5679 = vmatpush1.xpose.msra.mxu0 0.0
    %5680 = vmatprep.subr.mxu0 0.0
    %5681 = vmatpush1.xpose.msra.mxu0 0.0
    %5682 = vmatprep.subr.mxu0 0.0
    %5683 = vmatpush1.xpose.msra.mxu0 0.0
    %5684 = vmatprep.subr.mxu0 0.0
    %5685 = vmatpush1.xpose.msra.mxu0 0.0
    %5686 = vmatprep.subr.mxu0 0.0
    %5687 = vmatpush1.xpose.msra.mxu0 0.0
    %5688 = vmatprep.subr.mxu0 0.0
    %5689 = vmatpush1.xpose.msra.mxu0 0.0
    %5690 = vmatprep.subr.mxu0 0.0
    %5691 = vmatpush1.xpose.msra.mxu0 0.0
    %5692 = vmatprep.subr.mxu0 0.0
    %5693 = vmatpush1.xpose.msra.mxu0 0.0
    %5694 = vmatprep.subr.mxu0 0.0
    %5695 = vmatpush1.xpose.msra.mxu0 0.0
    %5696 = vmatprep.subr.mxu0 0.0
    %5697 = vmatpush1.xpose.msra.mxu0 0.0
    %5698 = vmatprep.subr.mxu0 0.0
    %5699 = vmatpush1.xpose.msra.mxu0 0.0
    %5700 = vmatprep.subr.mxu0 0.0
    %5701 = vmatpush1.xpose.msra.mxu0 0.0
    %5702 = vmatprep.subr.mxu0 0.0
    %5703 = vmatpush1.xpose.msra.mxu0 0.0
    %5704 = vmatprep.subr.mxu0 0.0
    %5705 = vmatpush1.xpose.msra.mxu0 0.0
    %5706 = vmatprep.subr.mxu0 0.0
    %5707 = vmatpush1.xpose.msra.mxu0 0.0
    %5708 = vmatprep.subr.mxu0 0.0
    %5709 = vmatpush1.xpose.msra.mxu0 0.0
    %5710 = vmatprep.subr.mxu0 0.0
    %5711 = vmatpush1.xpose.msra.mxu0 0.0
    %5712 = vmatprep.subr.mxu0 0.0
    %5713 = vmatpush1.xpose.msra.mxu0 0.0
    %5714 = vmatprep.subr.mxu0 0.0
    %5715 = vmatpush1.xpose.msra.mxu0 0.0
    %5716 = vmatprep.subr.mxu0 0.0
    %5717 = vmatpush1.xpose.msra.mxu0 0.0
    %5718 = vmatprep.subr.mxu0 0.0
    %5719 = vmatpush1.xpose.msra.mxu0 0.0
    %5720 = vmatprep.subr.mxu0 0.0
    %5721 = vmatpush1.xpose.msra.mxu0 0.0
    %5722 = vmatprep.subr.mxu0 0.0
    %5723 = vmatpush1.xpose.msra.mxu0 0.0
    %v5724 = vand.u32 %v5033, 4294901760
    %v5725 = vsub.f32 %v5033, %v5724
    %v5726 = vand.u32 %v5725, 4294901760
    %v5727 = vsub.f32 %v5725, %v5726
    %v5728 = vand.u32 %v5727, 4294901760
    %5729 = vmatprep.mubr.f32.mxu0 %v5728
    %v5730 = vand.u32 %v5024, 4294901760
    %v5731 = vsub.f32 %v5024, %v5730
    %v5732 = vand.u32 %v5731, 4294901760
    %v5733 = vsub.f32 %v5731, %v5732
    %v5734 = vand.u32 %v5733, 4294901760
    %5735 = vmatmul.mubr.f32.gmra.mrb[0].mxu0 %v5734
    %v5736 = vpop.f32.mrb[0].mxu0
    %v5737 = vadd.f32 %v5649, %v5736
    %v5738 = vpop.f32.mrb[0].mxu0
    %5739 = vdwg.mxu0
    %v5740 = vand.u32 %v5089, 4294901760
    %v5741 = vsub.f32 %v5089, %v5740
    %v5742 = vand.u32 %v5741, 4294901760
    %v5743 = vsub.f32 %v5741, %v5742
    %v5744 = vand.u32 %v5743, 4294901760
    %5745 = vmatprep.subr.mxu0 %v5744
    %v5746 = vand.u32 %v5088, 4294901760
    %v5747 = vsub.f32 %v5088, %v5746
    %v5748 = vand.u32 %v5747, 4294901760
    %v5749 = vsub.f32 %v5747, %v5748
    %v5750 = vand.u32 %v5749, 4294901760
    %5751 = vmatpush1.xpose.msra.mxu0 %v5750
    %v5752 = vand.u32 %v5093, 4294901760
    %v5753 = vsub.f32 %v5093, %v5752
    %v5754 = vand.u32 %v5753, 4294901760
    %v5755 = vsub.f32 %v5753, %v5754
    %v5756 = vand.u32 %v5755, 4294901760
    %5757 = vmatprep.subr.mxu0 %v5756
    %v5758 = vand.u32 %v5092, 4294901760
    %v5759 = vsub.f32 %v5092, %v5758
    %v5760 = vand.u32 %v5759, 4294901760
    %v5761 = vsub.f32 %v5759, %v5760
    %v5762 = vand.u32 %v5761, 4294901760
    %5763 = vmatpush1.xpose.msra.mxu0 %v5762
    %v5764 = vand.u32 %v5097, 4294901760
    %v5765 = vsub.f32 %v5097, %v5764
    %v5766 = vand.u32 %v5765, 4294901760
    %v5767 = vsub.f32 %v5765, %v5766
    %v5768 = vand.u32 %v5767, 4294901760
    %5769 = vmatprep.subr.mxu0 %v5768
    %v5770 = vand.u32 %v5096, 4294901760
    %v5771 = vsub.f32 %v5096, %v5770
    %v5772 = vand.u32 %v5771, 4294901760
    %v5773 = vsub.f32 %v5771, %v5772
    %v5774 = vand.u32 %v5773, 4294901760
    %5775 = vmatpush1.xpose.msra.mxu0 %v5774
    %v5776 = vand.u32 %v5101, 4294901760
    %v5777 = vsub.f32 %v5101, %v5776
    %v5778 = vand.u32 %v5777, 4294901760
    %v5779 = vsub.f32 %v5777, %v5778
    %v5780 = vand.u32 %v5779, 4294901760
    %5781 = vmatprep.subr.mxu0 %v5780
    %v5782 = vand.u32 %v5100, 4294901760
    %v5783 = vsub.f32 %v5100, %v5782
    %v5784 = vand.u32 %v5783, 4294901760
    %v5785 = vsub.f32 %v5783, %v5784
    %v5786 = vand.u32 %v5785, 4294901760
    %5787 = vmatpush1.xpose.msra.mxu0 %v5786
    %5788 = vmatprep.subr.mxu0 0.0
    %5789 = vmatpush1.xpose.msra.mxu0 0.0
    %5790 = vmatprep.subr.mxu0 0.0
    %5791 = vmatpush1.xpose.msra.mxu0 0.0
    %5792 = vmatprep.subr.mxu0 0.0
    %5793 = vmatpush1.xpose.msra.mxu0 0.0
    %5794 = vmatprep.subr.mxu0 0.0
    %5795 = vmatpush1.xpose.msra.mxu0 0.0
    %5796 = vmatprep.subr.mxu0 0.0
    %5797 = vmatpush1.xpose.msra.mxu0 0.0
    %5798 = vmatprep.subr.mxu0 0.0
    %5799 = vmatpush1.xpose.msra.mxu0 0.0
    %5800 = vmatprep.subr.mxu0 0.0
    %5801 = vmatpush1.xpose.msra.mxu0 0.0
    %5802 = vmatprep.subr.mxu0 0.0
    %5803 = vmatpush1.xpose.msra.mxu0 0.0
    %5804 = vmatprep.subr.mxu0 0.0
    %5805 = vmatpush1.xpose.msra.mxu0 0.0
    %5806 = vmatprep.subr.mxu0 0.0
    %5807 = vmatpush1.xpose.msra.mxu0 0.0
    %5808 = vmatprep.subr.mxu0 0.0
    %5809 = vmatpush1.xpose.msra.mxu0 0.0
    %5810 = vmatprep.subr.mxu0 0.0
    %5811 = vmatpush1.xpose.msra.mxu0 0.0
    %5812 = vmatprep.subr.mxu0 0.0
    %5813 = vmatpush1.xpose.msra.mxu0 0.0
    %5814 = vmatprep.subr.mxu0 0.0
    %5815 = vmatpush1.xpose.msra.mxu0 0.0
    %5816 = vmatprep.subr.mxu0 0.0
    %5817 = vmatpush1.xpose.msra.mxu0 0.0
    %5818 = vmatprep.subr.mxu0 0.0
    %5819 = vmatpush1.xpose.msra.mxu0 0.0
    %5820 = vmatprep.subr.mxu0 0.0
    %5821 = vmatpush1.xpose.msra.mxu0 0.0
    %5822 = vmatprep.subr.mxu0 0.0
    %5823 = vmatpush1.xpose.msra.mxu0 0.0
    %5824 = vmatprep.subr.mxu0 0.0
    %5825 = vmatpush1.xpose.msra.mxu0 0.0
    %5826 = vmatprep.subr.mxu0 0.0
    %5827 = vmatpush1.xpose.msra.mxu0 0.0
    %5828 = vmatprep.subr.mxu0 0.0
    %5829 = vmatpush1.xpose.msra.mxu0 0.0
    %5830 = vmatprep.subr.mxu0 0.0
    %5831 = vmatpush1.xpose.msra.mxu0 0.0
    %5832 = vmatprep.subr.mxu0 0.0
    %5833 = vmatpush1.xpose.msra.mxu0 0.0
    %5834 = vmatprep.subr.mxu0 0.0
    %5835 = vmatpush1.xpose.msra.mxu0 0.0
    %5836 = vmatprep.subr.mxu0 0.0
    %5837 = vmatpush1.xpose.msra.mxu0 0.0
    %5838 = vmatprep.subr.mxu0 0.0
    %5839 = vmatpush1.xpose.msra.mxu0 0.0
    %5840 = vmatprep.subr.mxu0 0.0
    %5841 = vmatpush1.xpose.msra.mxu0 0.0
    %5842 = vmatprep.subr.mxu0 0.0
    %5843 = vmatpush1.xpose.msra.mxu0 0.0
    %v5844 = vand.u32 %v5033, 4294901760
    %5845 = vmatprep.mubr.f32.mxu0 %v5844
    %v5846 = vand.u32 %v5024, 4294901760
    %5847 = vmatmul.mubr.f32.gmra.mrb[0].mxu0 %v5846
    %v5848 = vpop.f32.mrb[0].mxu0
    %v5849 = vadd.f32 %v5737, %v5848
    %v5850 = vpop.f32.mrb[0].mxu0
    %5851 = vdwg.mxu0
    %v5852 = vand.u32 %v5089, 4294901760
    %v5853 = vsub.f32 %v5089, %v5852
    %5854 = vmatprep.subr.mxu0 %v5853
    %v5855 = vand.u32 %v5088, 4294901760
    %v5856 = vsub.f32 %v5088, %v5855
    %5857 = vmatpush1.xpose.msra.mxu0 %v5856
    %v5858 = vand.u32 %v5093, 4294901760
    %v5859 = vsub.f32 %v5093, %v5858
    %5860 = vmatprep.subr.mxu0 %v5859
    %v5861 = vand.u32 %v5092, 4294901760
    %v5862 = vsub.f32 %v5092, %v5861
    %5863 = vmatpush1.xpose.msra.mxu0 %v5862
    %v5864 = vand.u32 %v5097, 4294901760
    %v5865 = vsub.f32 %v5097, %v5864
    %5866 = vmatprep.subr.mxu0 %v5865
    %v5867 = vand.u32 %v5096, 4294901760
    %v5868 = vsub.f32 %v5096, %v5867
    %5869 = vmatpush1.xpose.msra.mxu0 %v5868
    %v5870 = vand.u32 %v5101, 4294901760
    %v5871 = vsub.f32 %v5101, %v5870
    %5872 = vmatprep.subr.mxu0 %v5871
    %v5873 = vand.u32 %v5100, 4294901760
    %v5874 = vsub.f32 %v5100, %v5873
    %5875 = vmatpush1.xpose.msra.mxu0 %v5874
    %5876 = vmatprep.subr.mxu0 0.0
    %5877 = vmatpush1.xpose.msra.mxu0 0.0
    %5878 = vmatprep.subr.mxu0 0.0
    %5879 = vmatpush1.xpose.msra.mxu0 0.0
    %5880 = vmatprep.subr.mxu0 0.0
    %5881 = vmatpush1.xpose.msra.mxu0 0.0
    %5882 = vmatprep.subr.mxu0 0.0
    %5883 = vmatpush1.xpose.msra.mxu0 0.0
    %5884 = vmatprep.subr.mxu0 0.0
    %5885 = vmatpush1.xpose.msra.mxu0 0.0
    %5886 = vmatprep.subr.mxu0 0.0
    %5887 = vmatpush1.xpose.msra.mxu0 0.0
    %5888 = vmatprep.subr.mxu0 0.0
    %5889 = vmatpush1.xpose.msra.mxu0 0.0
    %5890 = vmatprep.subr.mxu0 0.0
    %5891 = vmatpush1.xpose.msra.mxu0 0.0
    %5892 = vmatprep.subr.mxu0 0.0
    %5893 = vmatpush1.xpose.msra.mxu0 0.0
    %5894 = vmatprep.subr.mxu0 0.0
    %5895 = vmatpush1.xpose.msra.mxu0 0.0
    %5896 = vmatprep.subr.mxu0 0.0
    %5897 = vmatpush1.xpose.msra.mxu0 0.0
    %5898 = vmatprep.subr.mxu0 0.0
    %5899 = vmatpush1.xpose.msra.mxu0 0.0
    %5900 = vmatprep.subr.mxu0 0.0
    %5901 = vmatpush1.xpose.msra.mxu0 0.0
    %5902 = vmatprep.subr.mxu0 0.0
    %5903 = vmatpush1.xpose.msra.mxu0 0.0
    %5904 = vmatprep.subr.mxu0 0.0
    %5905 = vmatpush1.xpose.msra.mxu0 0.0
    %5906 = vmatprep.subr.mxu0 0.0
    %5907 = vmatpush1.xpose.msra.mxu0 0.0
    %5908 = vmatprep.subr.mxu0 0.0
    %5909 = vmatpush1.xpose.msra.mxu0 0.0
    %5910 = vmatprep.subr.mxu0 0.0
    %5911 = vmatpush1.xpose.msra.mxu0 0.0
    %5912 = vmatprep.subr.mxu0 0.0
    %5913 = vmatpush1.xpose.msra.mxu0 0.0
    %5914 = vmatprep.subr.mxu0 0.0
    %5915 = vmatpush1.xpose.msra.mxu0 0.0
    %5916 = vmatprep.subr.mxu0 0.0
    %5917 = vmatpush1.xpose.msra.mxu0 0.0
    %5918 = vmatprep.subr.mxu0 0.0
    %5919 = vmatpush1.xpose.msra.mxu0 0.0
    %5920 = vmatprep.subr.mxu0 0.0
    %5921 = vmatpush1.xpose.msra.mxu0 0.0
    %5922 = vmatprep.subr.mxu0 0.0
    %5923 = vmatpush1.xpose.msra.mxu0 0.0
    %5924 = vmatprep.subr.mxu0 0.0
    %5925 = vmatpush1.xpose.msra.mxu0 0.0
    %5926 = vmatprep.subr.mxu0 0.0
    %5927 = vmatpush1.xpose.msra.mxu0 0.0
    %5928 = vmatprep.subr.mxu0 0.0
    %5929 = vmatpush1.xpose.msra.mxu0 0.0
    %5930 = vmatprep.subr.mxu0 0.0
    %5931 = vmatpush1.xpose.msra.mxu0 0.0
    %v5932 = vand.u32 %v5033, 4294901760
    %v5933 = vsub.f32 %v5033, %v5932
    %5934 = vmatprep.mubr.f32.mxu0 %v5933
    %v5935 = vand.u32 %v5024, 4294901760
    %v5936 = vsub.f32 %v5024, %v5935
    %5937 = vmatmul.mubr.f32.gmra.mrb[0].mxu0 %v5936
    %v5938 = vpop.f32.mrb[0].mxu0
    %v5939 = vadd.f32 %v5849, %v5938
    %v5940 = vpop.f32.mrb[0].mxu0
    %5941 = vdwg.mxu0
    %v5942 = vand.u32 %v5089, 4294901760
    %5943 = vmatprep.subr.mxu0 %v5942
    %v5944 = vand.u32 %v5088, 4294901760
    %5945 = vmatpush1.xpose.msra.mxu0 %v5944
    %v5946 = vand.u32 %v5093, 4294901760
    %5947 = vmatprep.subr.mxu0 %v5946
    %v5948 = vand.u32 %v5092, 4294901760
    %5949 = vmatpush1.xpose.msra.mxu0 %v5948
    %v5950 = vand.u32 %v5097, 4294901760
    %5951 = vmatprep.subr.mxu0 %v5950
    %v5952 = vand.u32 %v5096, 4294901760
    %5953 = vmatpush1.xpose.msra.mxu0 %v5952
    %v5954 = vand.u32 %v5101, 4294901760
    %5955 = vmatprep.subr.mxu0 %v5954
    %v5956 = vand.u32 %v5100, 4294901760
    %5957 = vmatpush1.xpose.msra.mxu0 %v5956
    %5958 = vmatprep.subr.mxu0 0.0
    %5959 = vmatpush1.xpose.msra.mxu0 0.0
    %5960 = vmatprep.subr.mxu0 0.0
    %5961 = vmatpush1.xpose.msra.mxu0 0.0
    %5962 = vmatprep.subr.mxu0 0.0
    %5963 = vmatpush1.xpose.msra.mxu0 0.0
    %5964 = vmatprep.subr.mxu0 0.0
    %5965 = vmatpush1.xpose.msra.mxu0 0.0
    %5966 = vmatprep.subr.mxu0 0.0
    %5967 = vmatpush1.xpose.msra.mxu0 0.0
    %5968 = vmatprep.subr.mxu0 0.0
    %5969 = vmatpush1.xpose.msra.mxu0 0.0
    %5970 = vmatprep.subr.mxu0 0.0
    %5971 = vmatpush1.xpose.msra.mxu0 0.0
    %5972 = vmatprep.subr.mxu0 0.0
    %5973 = vmatpush1.xpose.msra.mxu0 0.0
    %5974 = vmatprep.subr.mxu0 0.0
    %5975 = vmatpush1.xpose.msra.mxu0 0.0
    %5976 = vmatprep.subr.mxu0 0.0
    %5977 = vmatpush1.xpose.msra.mxu0 0.0
    %5978 = vmatprep.subr.mxu0 0.0
    %5979 = vmatpush1.xpose.msra.mxu0 0.0
    %5980 = vmatprep.subr.mxu0 0.0
    %5981 = vmatpush1.xpose.msra.mxu0 0.0
    %5982 = vmatprep.subr.mxu0 0.0
    %5983 = vmatpush1.xpose.msra.mxu0 0.0
    %5984 = vmatprep.subr.mxu0 0.0
    %5985 = vmatpush1.xpose.msra.mxu0 0.0
    %5986 = vmatprep.subr.mxu0 0.0
    %5987 = vmatpush1.xpose.msra.mxu0 0.0
    %5988 = vmatprep.subr.mxu0 0.0
    %5989 = vmatpush1.xpose.msra.mxu0 0.0
    %5990 = vmatprep.subr.mxu0 0.0
    %5991 = vmatpush1.xpose.msra.mxu0 0.0
    %5992 = vmatprep.subr.mxu0 0.0
    %5993 = vmatpush1.xpose.msra.mxu0 0.0
    %5994 = vmatprep.subr.mxu0 0.0
    %5995 = vmatpush1.xpose.msra.mxu0 0.0
    %5996 = vmatprep.subr.mxu0 0.0
    %5997 = vmatpush1.xpose.msra.mxu0 0.0
    %5998 = vmatprep.subr.mxu0 0.0
    %5999 = vmatpush1.xpose.msra.mxu0 0.0
    %6000 = vmatprep.subr.mxu0 0.0
    %6001 = vmatpush1.xpose.msra.mxu0 0.0
    %6002 = vmatprep.subr.mxu0 0.0
    %6003 = vmatpush1.xpose.msra.mxu0 0.0
    %6004 = vmatprep.subr.mxu0 0.0
    %6005 = vmatpush1.xpose.msra.mxu0 0.0
    %6006 = vmatprep.subr.mxu0 0.0
    %6007 = vmatpush1.xpose.msra.mxu0 0.0
    %6008 = vmatprep.subr.mxu0 0.0
    %6009 = vmatpush1.xpose.msra.mxu0 0.0
    %6010 = vmatprep.subr.mxu0 0.0
    %6011 = vmatpush1.xpose.msra.mxu0 0.0
    %6012 = vmatprep.subr.mxu0 0.0
    %6013 = vmatpush1.xpose.msra.mxu0 0.0
    %v6014 = vand.u32 %v5033, 4294901760
    %v6015 = vsub.f32 %v5033, %v6014
    %v6016 = vand.u32 %v6015, 4294901760
    %6017 = vmatprep.mubr.f32.mxu0 %v6016
    %v6018 = vand.u32 %v5024, 4294901760
    %v6019 = vsub.f32 %v5024, %v6018
    %v6020 = vand.u32 %v6019, 4294901760
    %6021 = vmatmul.mubr.f32.gmra.mrb[0].mxu0 %v6020
    %v6022 = vpop.f32.mrb[0].mxu0
    %v6023 = vadd.f32 %v5939, %v6022
    %v6024 = vpop.f32.mrb[0].mxu0
    %6025 = vdwg.mxu0
    %v6026 = vand.u32 %v5089, 4294901760
    %v6027 = vsub.f32 %v5089, %v6026
    %v6028 = vand.u32 %v6027, 4294901760
    %6029 = vmatprep.subr.mxu0 %v6028
    %v6030 = vand.u32 %v5088, 4294901760
    %v6031 = vsub.f32 %v5088, %v6030
    %v6032 = vand.u32 %v6031, 4294901760
    %6033 = vmatpush1.xpose.msra.mxu0 %v6032
    %v6034 = vand.u32 %v5093, 4294901760
    %v6035 = vsub.f32 %v5093, %v6034
    %v6036 = vand.u32 %v6035, 4294901760
    %6037 = vmatprep.subr.mxu0 %v6036
    %v6038 = vand.u32 %v5092, 4294901760
    %v6039 = vsub.f32 %v5092, %v6038
    %v6040 = vand.u32 %v6039, 4294901760
    %6041 = vmatpush1.xpose.msra.mxu0 %v6040
    %v6042 = vand.u32 %v5097, 4294901760
    %v6043 = vsub.f32 %v5097, %v6042
    %v6044 = vand.u32 %v6043, 4294901760
    %6045 = vmatprep.subr.mxu0 %v6044
    %v6046 = vand.u32 %v5096, 4294901760
    %v6047 = vsub.f32 %v5096, %v6046
    %v6048 = vand.u32 %v6047, 4294901760
    %6049 = vmatpush1.xpose.msra.mxu0 %v6048
    %v6050 = vand.u32 %v5101, 4294901760
    %v6051 = vsub.f32 %v5101, %v6050
    %v6052 = vand.u32 %v6051, 4294901760
    %6053 = vmatprep.subr.mxu0 %v6052
    %v6054 = vand.u32 %v5100, 4294901760
    %v6055 = vsub.f32 %v5100, %v6054
    %v6056 = vand.u32 %v6055, 4294901760
    %6057 = vmatpush1.xpose.msra.mxu0 %v6056
    %6058 = vmatprep.subr.mxu0 0.0
    %6059 = vmatpush1.xpose.msra.mxu0 0.0
    %6060 = vmatprep.subr.mxu0 0.0
    %6061 = vmatpush1.xpose.msra.mxu0 0.0
    %6062 = vmatprep.subr.mxu0 0.0
    %6063 = vmatpush1.xpose.msra.mxu0 0.0
    %6064 = vmatprep.subr.mxu0 0.0
    %6065 = vmatpush1.xpose.msra.mxu0 0.0
    %6066 = vmatprep.subr.mxu0 0.0
    %6067 = vmatpush1.xpose.msra.mxu0 0.0
    %6068 = vmatprep.subr.mxu0 0.0
    %6069 = vmatpush1.xpose.msra.mxu0 0.0
    %6070 = vmatprep.subr.mxu0 0.0
    %6071 = vmatpush1.xpose.msra.mxu0 0.0
    %6072 = vmatprep.subr.mxu0 0.0
    %6073 = vmatpush1.xpose.msra.mxu0 0.0
    %6074 = vmatprep.subr.mxu0 0.0
    %6075 = vmatpush1.xpose.msra.mxu0 0.0
    %6076 = vmatprep.subr.mxu0 0.0
    %6077 = vmatpush1.xpose.msra.mxu0 0.0
    %6078 = vmatprep.subr.mxu0 0.0
    %6079 = vmatpush1.xpose.msra.mxu0 0.0
    %6080 = vmatprep.subr.mxu0 0.0
    %6081 = vmatpush1.xpose.msra.mxu0 0.0
    %6082 = vmatprep.subr.mxu0 0.0
    %6083 = vmatpush1.xpose.msra.mxu0 0.0
    %6084 = vmatprep.subr.mxu0 0.0
    %6085 = vmatpush1.xpose.msra.mxu0 0.0
    %6086 = vmatprep.subr.mxu0 0.0
    %6087 = vmatpush1.xpose.msra.mxu0 0.0
    %6088 = vmatprep.subr.mxu0 0.0
    %6089 = vmatpush1.xpose.msra.mxu0 0.0
    %6090 = vmatprep.subr.mxu0 0.0
    %6091 = vmatpush1.xpose.msra.mxu0 0.0
    %6092 = vmatprep.subr.mxu0 0.0
    %6093 = vmatpush1.xpose.msra.mxu0 0.0
    %6094 = vmatprep.subr.mxu0 0.0
    %6095 = vmatpush1.xpose.msra.mxu0 0.0
    %6096 = vmatprep.subr.mxu0 0.0
    %6097 = vmatpush1.xpose.msra.mxu0 0.0
    %6098 = vmatprep.subr.mxu0 0.0
    %6099 = vmatpush1.xpose.msra.mxu0 0.0
    %6100 = vmatprep.subr.mxu0 0.0
    %6101 = vmatpush1.xpose.msra.mxu0 0.0
    %6102 = vmatprep.subr.mxu0 0.0
    %6103 = vmatpush1.xpose.msra.mxu0 0.0
    %6104 = vmatprep.subr.mxu0 0.0
    %6105 = vmatpush1.xpose.msra.mxu0 0.0
    %6106 = vmatprep.subr.mxu0 0.0
    %6107 = vmatpush1.xpose.msra.mxu0 0.0
    %6108 = vmatprep.subr.mxu0 0.0
    %6109 = vmatpush1.xpose.msra.mxu0 0.0
    %6110 = vmatprep.subr.mxu0 0.0
    %6111 = vmatpush1.xpose.msra.mxu0 0.0
    %6112 = vmatprep.subr.mxu0 0.0
    %6113 = vmatpush1.xpose.msra.mxu0 0.0
    %v6114 = vand.u32 %v5033, 4294901760
    %6115 = vmatprep.mubr.f32.mxu0 %v6114
    %v6116 = vand.u32 %v5024, 4294901760
    %6117 = vmatmul.mubr.f32.gmra.mrb[0].mxu0 %v6116
    %v6118 = vpop.f32.mrb[0].mxu0
    %v6119 = vadd.f32 %v6023, %v6118
    %v6120 = vpop.f32.mrb[0].mxu0
    %6121 = vdwg.mxu0
    %v6122 = vand.u32 %v5089, 4294901760
    %6123 = vmatprep.subr.mxu0 %v6122
    %v6124 = vand.u32 %v5088, 4294901760
    %6125 = vmatpush1.xpose.msra.mxu0 %v6124
    %v6126 = vand.u32 %v5093, 4294901760
    %6127 = vmatprep.subr.mxu0 %v6126
    %v6128 = vand.u32 %v5092, 4294901760
    %6129 = vmatpush1.xpose.msra.mxu0 %v6128
    %v6130 = vand.u32 %v5097, 4294901760
    %6131 = vmatprep.subr.mxu0 %v6130
    %v6132 = vand.u32 %v5096, 4294901760
    %6133 = vmatpush1.xpose.msra.mxu0 %v6132
    %v6134 = vand.u32 %v5101, 4294901760
    %6135 = vmatprep.subr.mxu0 %v6134
    %v6136 = vand.u32 %v5100, 4294901760
    %6137 = vmatpush1.xpose.msra.mxu0 %v6136
    %6138 = vmatprep.subr.mxu0 0.0
    %6139 = vmatpush1.xpose.msra.mxu0 0.0
    %6140 = vmatprep.subr.mxu0 0.0
    %6141 = vmatpush1.xpose.msra.mxu0 0.0
    %6142 = vmatprep.subr.mxu0 0.0
    %6143 = vmatpush1.xpose.msra.mxu0 0.0
    %6144 = vmatprep.subr.mxu0 0.0
    %6145 = vmatpush1.xpose.msra.mxu0 0.0
    %6146 = vmatprep.subr.mxu0 0.0
    %6147 = vmatpush1.xpose.msra.mxu0 0.0
    %6148 = vmatprep.subr.mxu0 0.0
    %6149 = vmatpush1.xpose.msra.mxu0 0.0
    %6150 = vmatprep.subr.mxu0 0.0
    %6151 = vmatpush1.xpose.msra.mxu0 0.0
    %6152 = vmatprep.subr.mxu0 0.0
    %6153 = vmatpush1.xpose.msra.mxu0 0.0
    %6154 = vmatprep.subr.mxu0 0.0
    %6155 = vmatpush1.xpose.msra.mxu0 0.0
    %6156 = vmatprep.subr.mxu0 0.0
    %6157 = vmatpush1.xpose.msra.mxu0 0.0
    %6158 = vmatprep.subr.mxu0 0.0
    %6159 = vmatpush1.xpose.msra.mxu0 0.0
    %6160 = vmatprep.subr.mxu0 0.0
    %6161 = vmatpush1.xpose.msra.mxu0 0.0
    %6162 = vmatprep.subr.mxu0 0.0
    %6163 = vmatpush1.xpose.msra.mxu0 0.0
    %6164 = vmatprep.subr.mxu0 0.0
    %6165 = vmatpush1.xpose.msra.mxu0 0.0
    %6166 = vmatprep.subr.mxu0 0.0
    %6167 = vmatpush1.xpose.msra.mxu0 0.0
    %6168 = vmatprep.subr.mxu0 0.0
    %6169 = vmatpush1.xpose.msra.mxu0 0.0
    %6170 = vmatprep.subr.mxu0 0.0
    %6171 = vmatpush1.xpose.msra.mxu0 0.0
    %6172 = vmatprep.subr.mxu0 0.0
    %6173 = vmatpush1.xpose.msra.mxu0 0.0
    %6174 = vmatprep.subr.mxu0 0.0
    %6175 = vmatpush1.xpose.msra.mxu0 0.0
    %6176 = vmatprep.subr.mxu0 0.0
    %6177 = vmatpush1.xpose.msra.mxu0 0.0
    %6178 = vmatprep.subr.mxu0 0.0
    %6179 = vmatpush1.xpose.msra.mxu0 0.0
    %6180 = vmatprep.subr.mxu0 0.0
    %6181 = vmatpush1.xpose.msra.mxu0 0.0
    %6182 = vmatprep.subr.mxu0 0.0
    %6183 = vmatpush1.xpose.msra.mxu0 0.0
    %6184 = vmatprep.subr.mxu0 0.0
    %6185 = vmatpush1.xpose.msra.mxu0 0.0
    %6186 = vmatprep.subr.mxu0 0.0
    %6187 = vmatpush1.xpose.msra.mxu0 0.0
    %6188 = vmatprep.subr.mxu0 0.0
    %6189 = vmatpush1.xpose.msra.mxu0 0.0
    %6190 = vmatprep.subr.mxu0 0.0
    %6191 = vmatpush1.xpose.msra.mxu0 0.0
    %6192 = vmatprep.subr.mxu0 0.0
    %6193 = vmatpush1.xpose.msra.mxu0 0.0
    %v6194 = vand.u32 %v5033, 4294901760
    %6195 = vmatprep.mubr.f32.mxu0 %v6194
    %v6196 = vand.u32 %v5024, 4294901760
    %6197 = vmatmul.mubr.f32.gmra.mrb[0].mxu0 %v6196
    %v6198 = vpop.f32.mrb[0].mxu0
    %v6199 = vadd.f32 %v6119, %v6198
    %v6200 = vpop.f32.mrb[0].mxu0
    %6201 = vdwg.mxu0
    %v6202 = vmul.f32 %v6199, 0.001953125
    %v6203 = vand.u32 %v5087, 4294901760
    %6204 = vmatprep.subr.mxu0 %v6203
    %v6205 = vand.u32 %v5086, 4294901760
    %6206 = vmatpush1.xpose.msra.mxu0 %v6205
    %v6207 = vand.u32 %v5091, 4294901760
    %6208 = vmatprep.subr.mxu0 %v6207
    %v6209 = vand.u32 %v5090, 4294901760
    %6210 = vmatpush1.xpose.msra.mxu0 %v6209
    %v6211 = vand.u32 %v5095, 4294901760
    %6212 = vmatprep.subr.mxu0 %v6211
    %v6213 = vand.u32 %v5094, 4294901760
    %6214 = vmatpush1.xpose.msra.mxu0 %v6213
    %v6215 = vand.u32 %v5099, 4294901760
    %6216 = vmatprep.subr.mxu0 %v6215
    %v6217 = vand.u32 %v5098, 4294901760
    %6218 = vmatpush1.xpose.msra.mxu0 %v6217
    %6219 = vmatprep.subr.mxu0 0.0
    %6220 = vmatpush1.xpose.msra.mxu0 0.0
    %6221 = vmatprep.subr.mxu0 0.0
    %6222 = vmatpush1.xpose.msra.mxu0 0.0
    %6223 = vmatprep.subr.mxu0 0.0
    %6224 = vmatpush1.xpose.msra.mxu0 0.0
    %6225 = vmatprep.subr.mxu0 0.0
    %6226 = vmatpush1.xpose.msra.mxu0 0.0
    %6227 = vmatprep.subr.mxu0 0.0
    %6228 = vmatpush1.xpose.msra.mxu0 0.0
    %6229 = vmatprep.subr.mxu0 0.0
    %6230 = vmatpush1.xpose.msra.mxu0 0.0
    %6231 = vmatprep.subr.mxu0 0.0
    %6232 = vmatpush1.xpose.msra.mxu0 0.0
    %6233 = vmatprep.subr.mxu0 0.0
    %6234 = vmatpush1.xpose.msra.mxu0 0.0
    %6235 = vmatprep.subr.mxu0 0.0
    %6236 = vmatpush1.xpose.msra.mxu0 0.0
    %6237 = vmatprep.subr.mxu0 0.0
    %6238 = vmatpush1.xpose.msra.mxu0 0.0
    %6239 = vmatprep.subr.mxu0 0.0
    %6240 = vmatpush1.xpose.msra.mxu0 0.0
    %6241 = vmatprep.subr.mxu0 0.0
    %6242 = vmatpush1.xpose.msra.mxu0 0.0
    %6243 = vmatprep.subr.mxu0 0.0
    %6244 = vmatpush1.xpose.msra.mxu0 0.0
    %6245 = vmatprep.subr.mxu0 0.0
    %6246 = vmatpush1.xpose.msra.mxu0 0.0
    %6247 = vmatprep.subr.mxu0 0.0
    %6248 = vmatpush1.xpose.msra.mxu0 0.0
    %6249 = vmatprep.subr.mxu0 0.0
    %6250 = vmatpush1.xpose.msra.mxu0 0.0
    %6251 = vmatprep.subr.mxu0 0.0
    %6252 = vmatpush1.xpose.msra.mxu0 0.0
    %6253 = vmatprep.subr.mxu0 0.0
    %6254 = vmatpush1.xpose.msra.mxu0 0.0
    %6255 = vmatprep.subr.mxu0 0.0
    %6256 = vmatpush1.xpose.msra.mxu0 0.0
    %6257 = vmatprep.subr.mxu0 0.0
    %6258 = vmatpush1.xpose.msra.mxu0 0.0
    %6259 = vmatprep.subr.mxu0 0.0
    %6260 = vmatpush1.xpose.msra.mxu0 0.0
    %6261 = vmatprep.subr.mxu0 0.0
    %6262 = vmatpush1.xpose.msra.mxu0 0.0
    %6263 = vmatprep.subr.mxu0 0.0
    %6264 = vmatpush1.xpose.msra.mxu0 0.0
    %6265 = vmatprep.subr.mxu0 0.0
    %6266 = vmatpush1.xpose.msra.mxu0 0.0
    %6267 = vmatprep.subr.mxu0 0.0
    %6268 = vmatpush1.xpose.msra.mxu0 0.0
    %6269 = vmatprep.subr.mxu0 0.0
    %6270 = vmatpush1.xpose.msra.mxu0 0.0
    %6271 = vmatprep.subr.mxu0 0.0
    %6272 = vmatpush1.xpose.msra.mxu0 0.0
    %6273 = vmatprep.subr.mxu0 0.0
    %6274 = vmatpush1.xpose.msra.mxu0 0.0
    %v6275 = vand.u32 %v5067, 4294901760
    %v6276 = vsub.f32 %v5067, %v6275
    %v6277 = vand.u32 %v6276, 4294901760
    %v6278 = vsub.f32 %v6276, %v6277
    %v6279 = vand.u32 %v6278, 4294901760
    %6280 = vmatprep.mubr.f32.mxu0 %v6279
    %v6281 = vand.u32 %v5058, 4294901760
    %v6282 = vsub.f32 %v5058, %v6281
    %v6283 = vand.u32 %v6282, 4294901760
    %v6284 = vsub.f32 %v6282, %v6283
    %v6285 = vand.u32 %v6284, 4294901760
    %6286 = vmatmul.mubr.f32.gmra.mrb[0].mxu0 %v6285
    %v6287 = vpop.f32.mrb[0].mxu0
    %v6288 = vadd.f32 0.0, %v6287
    %v6289 = vpop.f32.mrb[0].mxu0
    %6290 = vdwg.mxu0
    %v6291 = vand.u32 %v5087, 4294901760
    %v6292 = vsub.f32 %v5087, %v6291
    %v6293 = vand.u32 %v6292, 4294901760
    %v6294 = vsub.f32 %v6292, %v6293
    %v6295 = vand.u32 %v6294, 4294901760
    %6296 = vmatprep.subr.mxu0 %v6295
    %v6297 = vand.u32 %v5086, 4294901760
    %v6298 = vsub.f32 %v5086, %v6297
    %v6299 = vand.u32 %v6298, 4294901760
    %v6300 = vsub.f32 %v6298, %v6299
    %v6301 = vand.u32 %v6300, 4294901760
    %6302 = vmatpush1.xpose.msra.mxu0 %v6301
    %v6303 = vand.u32 %v5091, 4294901760
    %v6304 = vsub.f32 %v5091, %v6303
    %v6305 = vand.u32 %v6304, 4294901760
    %v6306 = vsub.f32 %v6304, %v6305
    %v6307 = vand.u32 %v6306, 4294901760
    %6308 = vmatprep.subr.mxu0 %v6307
    %v6309 = vand.u32 %v5090, 4294901760
    %v6310 = vsub.f32 %v5090, %v6309
    %v6311 = vand.u32 %v6310, 4294901760
    %v6312 = vsub.f32 %v6310, %v6311
    %v6313 = vand.u32 %v6312, 4294901760
    %6314 = vmatpush1.xpose.msra.mxu0 %v6313
    %v6315 = vand.u32 %v5095, 4294901760
    %v6316 = vsub.f32 %v5095, %v6315
    %v6317 = vand.u32 %v6316, 4294901760
    %v6318 = vsub.f32 %v6316, %v6317
    %v6319 = vand.u32 %v6318, 4294901760
    %6320 = vmatprep.subr.mxu0 %v6319
    %v6321 = vand.u32 %v5094, 4294901760
    %v6322 = vsub.f32 %v5094, %v6321
    %v6323 = vand.u32 %v6322, 4294901760
    %v6324 = vsub.f32 %v6322, %v6323
    %v6325 = vand.u32 %v6324, 4294901760
    %6326 = vmatpush1.xpose.msra.mxu0 %v6325
    %v6327 = vand.u32 %v5099, 4294901760
    %v6328 = vsub.f32 %v5099, %v6327
    %v6329 = vand.u32 %v6328, 4294901760
    %v6330 = vsub.f32 %v6328, %v6329
    %v6331 = vand.u32 %v6330, 4294901760
    %6332 = vmatprep.subr.mxu0 %v6331
    %v6333 = vand.u32 %v5098, 4294901760
    %v6334 = vsub.f32 %v5098, %v6333
    %v6335 = vand.u32 %v6334, 4294901760
    %v6336 = vsub.f32 %v6334, %v6335
    %v6337 = vand.u32 %v6336, 4294901760
    %6338 = vmatpush1.xpose.msra.mxu0 %v6337
    %6339 = vmatprep.subr.mxu0 0.0
    %6340 = vmatpush1.xpose.msra.mxu0 0.0
    %6341 = vmatprep.subr.mxu0 0.0
    %6342 = vmatpush1.xpose.msra.mxu0 0.0
    %6343 = vmatprep.subr.mxu0 0.0
    %6344 = vmatpush1.xpose.msra.mxu0 0.0
    %6345 = vmatprep.subr.mxu0 0.0
    %6346 = vmatpush1.xpose.msra.mxu0 0.0
    %6347 = vmatprep.subr.mxu0 0.0
    %6348 = vmatpush1.xpose.msra.mxu0 0.0
    %6349 = vmatprep.subr.mxu0 0.0
    %6350 = vmatpush1.xpose.msra.mxu0 0.0
    %6351 = vmatprep.subr.mxu0 0.0
    %6352 = vmatpush1.xpose.msra.mxu0 0.0
    %6353 = vmatprep.subr.mxu0 0.0
    %6354 = vmatpush1.xpose.msra.mxu0 0.0
    %6355 = vmatprep.subr.mxu0 0.0
    %6356 = vmatpush1.xpose.msra.mxu0 0.0
    %6357 = vmatprep.subr.mxu0 0.0
    %6358 = vmatpush1.xpose.msra.mxu0 0.0
    %6359 = vmatprep.subr.mxu0 0.0
    %6360 = vmatpush1.xpose.msra.mxu0 0.0
    %6361 = vmatprep.subr.mxu0 0.0
    %6362 = vmatpush1.xpose.msra.mxu0 0.0
    %6363 = vmatprep.subr.mxu0 0.0
    %6364 = vmatpush1.xpose.msra.mxu0 0.0
    %6365 = vmatprep.subr.mxu0 0.0
    %6366 = vmatpush1.xpose.msra.mxu0 0.0
    %6367 = vmatprep.subr.mxu0 0.0
    %6368 = vmatpush1.xpose.msra.mxu0 0.0
    %6369 = vmatprep.subr.mxu0 0.0
    %6370 = vmatpush1.xpose.msra.mxu0 0.0
    %6371 = vmatprep.subr.mxu0 0.0
    %6372 = vmatpush1.xpose.msra.mxu0 0.0
    %6373 = vmatprep.subr.mxu0 0.0
    %6374 = vmatpush1.xpose.msra.mxu0 0.0
    %6375 = vmatprep.subr.mxu0 0.0
    %6376 = vmatpush1.xpose.msra.mxu0 0.0
    %6377 = vmatprep.subr.mxu0 0.0
    %6378 = vmatpush1.xpose.msra.mxu0 0.0
    %6379 = vmatprep.subr.mxu0 0.0
    %6380 = vmatpush1.xpose.msra.mxu0 0.0
    %6381 = vmatprep.subr.mxu0 0.0
    %6382 = vmatpush1.xpose.msra.mxu0 0.0
    %6383 = vmatprep.subr.mxu0 0.0
    %6384 = vmatpush1.xpose.msra.mxu0 0.0
    %6385 = vmatprep.subr.mxu0 0.0
    %6386 = vmatpush1.xpose.msra.mxu0 0.0
    %6387 = vmatprep.subr.mxu0 0.0
    %6388 = vmatpush1.xpose.msra.mxu0 0.0
    %6389 = vmatprep.subr.mxu0 0.0
    %6390 = vmatpush1.xpose.msra.mxu0 0.0
    %6391 = vmatprep.subr.mxu0 0.0
    %6392 = vmatpush1.xpose.msra.mxu0 0.0
    %6393 = vmatprep.subr.mxu0 0.0
    %6394 = vmatpush1.xpose.msra.mxu0 0.0
    %v6395 = vand.u32 %v5067, 4294901760
    %6396 = vmatprep.mubr.f32.mxu0 %v6395
    %v6397 = vand.u32 %v5058, 4294901760
    %6398 = vmatmul.mubr.f32.gmra.mrb[0].mxu0 %v6397
    %v6399 = vpop.f32.mrb[0].mxu0
    %v6400 = vadd.f32 %v6288, %v6399
    %v6401 = vpop.f32.mrb[0].mxu0
    %6402 = vdwg.mxu0
    %v6403 = vand.u32 %v5087, 4294901760
    %v6404 = vsub.f32 %v5087, %v6403
    %6405 = vmatprep.subr.mxu0 %v6404
    %v6406 = vand.u32 %v5086, 4294901760
    %v6407 = vsub.f32 %v5086, %v6406
    %6408 = vmatpush1.xpose.msra.mxu0 %v6407
    %v6409 = vand.u32 %v5091, 4294901760
    %v6410 = vsub.f32 %v5091, %v6409
    %6411 = vmatprep.subr.mxu0 %v6410
    %v6412 = vand.u32 %v5090, 4294901760
    %v6413 = vsub.f32 %v5090, %v6412
    %6414 = vmatpush1.xpose.msra.mxu0 %v6413
    %v6415 = vand.u32 %v5095, 4294901760
    %v6416 = vsub.f32 %v5095, %v6415
    %6417 = vmatprep.subr.mxu0 %v6416
    %v6418 = vand.u32 %v5094, 4294901760
    %v6419 = vsub.f32 %v5094, %v6418
    %6420 = vmatpush1.xpose.msra.mxu0 %v6419
    %v6421 = vand.u32 %v5099, 4294901760
    %v6422 = vsub.f32 %v5099, %v6421
    %6423 = vmatprep.subr.mxu0 %v6422
    %v6424 = vand.u32 %v5098, 4294901760
    %v6425 = vsub.f32 %v5098, %v6424
    %6426 = vmatpush1.xpose.msra.mxu0 %v6425
    %6427 = vmatprep.subr.mxu0 0.0
    %6428 = vmatpush1.xpose.msra.mxu0 0.0
    %6429 = vmatprep.subr.mxu0 0.0
    %6430 = vmatpush1.xpose.msra.mxu0 0.0
    %6431 = vmatprep.subr.mxu0 0.0
    %6432 = vmatpush1.xpose.msra.mxu0 0.0
    %6433 = vmatprep.subr.mxu0 0.0
    %6434 = vmatpush1.xpose.msra.mxu0 0.0
    %6435 = vmatprep.subr.mxu0 0.0
    %6436 = vmatpush1.xpose.msra.mxu0 0.0
    %6437 = vmatprep.subr.mxu0 0.0
    %6438 = vmatpush1.xpose.msra.mxu0 0.0
    %6439 = vmatprep.subr.mxu0 0.0
    %6440 = vmatpush1.xpose.msra.mxu0 0.0
    %6441 = vmatprep.subr.mxu0 0.0
    %6442 = vmatpush1.xpose.msra.mxu0 0.0
    %6443 = vmatprep.subr.mxu0 0.0
    %6444 = vmatpush1.xpose.msra.mxu0 0.0
    %6445 = vmatprep.subr.mxu0 0.0
    %6446 = vmatpush1.xpose.msra.mxu0 0.0
    %6447 = vmatprep.subr.mxu0 0.0
    %6448 = vmatpush1.xpose.msra.mxu0 0.0
    %6449 = vmatprep.subr.mxu0 0.0
    %6450 = vmatpush1.xpose.msra.mxu0 0.0
    %6451 = vmatprep.subr.mxu0 0.0
    %6452 = vmatpush1.xpose.msra.mxu0 0.0
    %6453 = vmatprep.subr.mxu0 0.0
    %6454 = vmatpush1.xpose.msra.mxu0 0.0
    %6455 = vmatprep.subr.mxu0 0.0
    %6456 = vmatpush1.xpose.msra.mxu0 0.0
    %6457 = vmatprep.subr.mxu0 0.0
    %6458 = vmatpush1.xpose.msra.mxu0 0.0
    %6459 = vmatprep.subr.mxu0 0.0
    %6460 = vmatpush1.xpose.msra.mxu0 0.0
    %6461 = vmatprep.subr.mxu0 0.0
    %6462 = vmatpush1.xpose.msra.mxu0 0.0
    %6463 = vmatprep.subr.mxu0 0.0
    %6464 = vmatpush1.xpose.msra.mxu0 0.0
    %6465 = vmatprep.subr.mxu0 0.0
    %6466 = vmatpush1.xpose.msra.mxu0 0.0
    %6467 = vmatprep.subr.mxu0 0.0
    %6468 = vmatpush1.xpose.msra.mxu0 0.0
    %6469 = vmatprep.subr.mxu0 0.0
    %6470 = vmatpush1.xpose.msra.mxu0 0.0
    %6471 = vmatprep.subr.mxu0 0.0
    %6472 = vmatpush1.xpose.msra.mxu0 0.0
    %6473 = vmatprep.subr.mxu0 0.0
    %6474 = vmatpush1.xpose.msra.mxu0 0.0
    %6475 = vmatprep.subr.mxu0 0.0
    %6476 = vmatpush1.xpose.msra.mxu0 0.0
    %6477 = vmatprep.subr.mxu0 0.0
    %6478 = vmatpush1.xpose.msra.mxu0 0.0
    %6479 = vmatprep.subr.mxu0 0.0
    %6480 = vmatpush1.xpose.msra.mxu0 0.0
    %6481 = vmatprep.subr.mxu0 0.0
    %6482 = vmatpush1.xpose.msra.mxu0 0.0
    %v6483 = vand.u32 %v5067, 4294901760
    %v6484 = vsub.f32 %v5067, %v6483
    %6485 = vmatprep.mubr.f32.mxu0 %v6484
    %v6486 = vand.u32 %v5058, 4294901760
    %v6487 = vsub.f32 %v5058, %v6486
    %6488 = vmatmul.mubr.f32.gmra.mrb[0].mxu0 %v6487
    %v6489 = vpop.f32.mrb[0].mxu0
    %v6490 = vadd.f32 %v6400, %v6489
    %v6491 = vpop.f32.mrb[0].mxu0
    %6492 = vdwg.mxu0
    %v6493 = vand.u32 %v5087, 4294901760
    %6494 = vmatprep.subr.mxu0 %v6493
    %v6495 = vand.u32 %v5086, 4294901760
    %6496 = vmatpush1.xpose.msra.mxu0 %v6495
    %v6497 = vand.u32 %v5091, 4294901760
    %6498 = vmatprep.subr.mxu0 %v6497
    %v6499 = vand.u32 %v5090, 4294901760
    %6500 = vmatpush1.xpose.msra.mxu0 %v6499
    %v6501 = vand.u32 %v5095, 4294901760
    %6502 = vmatprep.subr.mxu0 %v6501
    %v6503 = vand.u32 %v5094, 4294901760
    %6504 = vmatpush1.xpose.msra.mxu0 %v6503
    %v6505 = vand.u32 %v5099, 4294901760
    %6506 = vmatprep.subr.mxu0 %v6505
    %v6507 = vand.u32 %v5098, 4294901760
    %6508 = vmatpush1.xpose.msra.mxu0 %v6507
    %6509 = vmatprep.subr.mxu0 0.0
    %6510 = vmatpush1.xpose.msra.mxu0 0.0
    %6511 = vmatprep.subr.mxu0 0.0
    %6512 = vmatpush1.xpose.msra.mxu0 0.0
    %6513 = vmatprep.subr.mxu0 0.0
    %6514 = vmatpush1.xpose.msra.mxu0 0.0
    %6515 = vmatprep.subr.mxu0 0.0
    %6516 = vmatpush1.xpose.msra.mxu0 0.0
    %6517 = vmatprep.subr.mxu0 0.0
    %6518 = vmatpush1.xpose.msra.mxu0 0.0
    %6519 = vmatprep.subr.mxu0 0.0
    %6520 = vmatpush1.xpose.msra.mxu0 0.0
    %6521 = vmatprep.subr.mxu0 0.0
    %6522 = vmatpush1.xpose.msra.mxu0 0.0
    %6523 = vmatprep.subr.mxu0 0.0
    %6524 = vmatpush1.xpose.msra.mxu0 0.0
    %6525 = vmatprep.subr.mxu0 0.0
    %6526 = vmatpush1.xpose.msra.mxu0 0.0
    %6527 = vmatprep.subr.mxu0 0.0
    %6528 = vmatpush1.xpose.msra.mxu0 0.0
    %6529 = vmatprep.subr.mxu0 0.0
    %6530 = vmatpush1.xpose.msra.mxu0 0.0
    %6531 = vmatprep.subr.mxu0 0.0
    %6532 = vmatpush1.xpose.msra.mxu0 0.0
    %6533 = vmatprep.subr.mxu0 0.0
    %6534 = vmatpush1.xpose.msra.mxu0 0.0
    %6535 = vmatprep.subr.mxu0 0.0
    %6536 = vmatpush1.xpose.msra.mxu0 0.0
    %6537 = vmatprep.subr.mxu0 0.0
    %6538 = vmatpush1.xpose.msra.mxu0 0.0
    %6539 = vmatprep.subr.mxu0 0.0
    %6540 = vmatpush1.xpose.msra.mxu0 0.0
    %6541 = vmatprep.subr.mxu0 0.0
    %6542 = vmatpush1.xpose.msra.mxu0 0.0
    %6543 = vmatprep.subr.mxu0 0.0
    %6544 = vmatpush1.xpose.msra.mxu0 0.0
    %6545 = vmatprep.subr.mxu0 0.0
    %6546 = vmatpush1.xpose.msra.mxu0 0.0
    %6547 = vmatprep.subr.mxu0 0.0
    %6548 = vmatpush1.xpose.msra.mxu0 0.0
    %6549 = vmatprep.subr.mxu0 0.0
    %6550 = vmatpush1.xpose.msra.mxu0 0.0
    %6551 = vmatprep.subr.mxu0 0.0
    %6552 = vmatpush1.xpose.msra.mxu0 0.0
    %6553 = vmatprep.subr.mxu0 0.0
    %6554 = vmatpush1.xpose.msra.mxu0 0.0
    %6555 = vmatprep.subr.mxu0 0.0
    %6556 = vmatpush1.xpose.msra.mxu0 0.0
    %6557 = vmatprep.subr.mxu0 0.0
    %6558 = vmatpush1.xpose.msra.mxu0 0.0
    %6559 = vmatprep.subr.mxu0 0.0
    %6560 = vmatpush1.xpose.msra.mxu0 0.0
    %6561 = vmatprep.subr.mxu0 0.0
    %6562 = vmatpush1.xpose.msra.mxu0 0.0
    %6563 = vmatprep.subr.mxu0 0.0
    %6564 = vmatpush1.xpose.msra.mxu0 0.0
    %v6565 = vand.u32 %v5067, 4294901760
    %v6566 = vsub.f32 %v5067, %v6565
    %v6567 = vand.u32 %v6566, 4294901760
    %6568 = vmatprep.mubr.f32.mxu0 %v6567
    %v6569 = vand.u32 %v5058, 4294901760
    %v6570 = vsub.f32 %v5058, %v6569
    %v6571 = vand.u32 %v6570, 4294901760
    %6572 = vmatmul.mubr.f32.gmra.mrb[0].mxu0 %v6571
    %v6573 = vpop.f32.mrb[0].mxu0
    %v6574 = vadd.f32 %v6490, %v6573
    %v6575 = vpop.f32.mrb[0].mxu0
    %6576 = vdwg.mxu0
    %v6577 = vand.u32 %v5087, 4294901760
    %v6578 = vsub.f32 %v5087, %v6577
    %v6579 = vand.u32 %v6578, 4294901760
    %6580 = vmatprep.subr.mxu0 %v6579
    %v6581 = vand.u32 %v5086, 4294901760
    %v6582 = vsub.f32 %v5086, %v6581
    %v6583 = vand.u32 %v6582, 4294901760
    %6584 = vmatpush1.xpose.msra.mxu0 %v6583
    %v6585 = vand.u32 %v5091, 4294901760
    %v6586 = vsub.f32 %v5091, %v6585
    %v6587 = vand.u32 %v6586, 4294901760
    %6588 = vmatprep.subr.mxu0 %v6587
    %v6589 = vand.u32 %v5090, 4294901760
    %v6590 = vsub.f32 %v5090, %v6589
    %v6591 = vand.u32 %v6590, 4294901760
    %6592 = vmatpush1.xpose.msra.mxu0 %v6591
    %v6593 = vand.u32 %v5095, 4294901760
    %v6594 = vsub.f32 %v5095, %v6593
    %v6595 = vand.u32 %v6594, 4294901760
    %6596 = vmatprep.subr.mxu0 %v6595
    %v6597 = vand.u32 %v5094, 4294901760
    %v6598 = vsub.f32 %v5094, %v6597
    %v6599 = vand.u32 %v6598, 4294901760
    %6600 = vmatpush1.xpose.msra.mxu0 %v6599
    %v6601 = vand.u32 %v5099, 4294901760
    %v6602 = vsub.f32 %v5099, %v6601
    %v6603 = vand.u32 %v6602, 4294901760
    %6604 = vmatprep.subr.mxu0 %v6603
    %v6605 = vand.u32 %v5098, 4294901760
    %v6606 = vsub.f32 %v5098, %v6605
    %v6607 = vand.u32 %v6606, 4294901760
    %6608 = vmatpush1.xpose.msra.mxu0 %v6607
    %6609 = vmatprep.subr.mxu0 0.0
    %6610 = vmatpush1.xpose.msra.mxu0 0.0
    %6611 = vmatprep.subr.mxu0 0.0
    %6612 = vmatpush1.xpose.msra.mxu0 0.0
    %6613 = vmatprep.subr.mxu0 0.0
    %6614 = vmatpush1.xpose.msra.mxu0 0.0
    %6615 = vmatprep.subr.mxu0 0.0
    %6616 = vmatpush1.xpose.msra.mxu0 0.0
    %6617 = vmatprep.subr.mxu0 0.0
    %6618 = vmatpush1.xpose.msra.mxu0 0.0
    %6619 = vmatprep.subr.mxu0 0.0
    %6620 = vmatpush1.xpose.msra.mxu0 0.0
    %6621 = vmatprep.subr.mxu0 0.0
    %6622 = vmatpush1.xpose.msra.mxu0 0.0
    %6623 = vmatprep.subr.mxu0 0.0
    %6624 = vmatpush1.xpose.msra.mxu0 0.0
    %6625 = vmatprep.subr.mxu0 0.0
    %6626 = vmatpush1.xpose.msra.mxu0 0.0
    %6627 = vmatprep.subr.mxu0 0.0
    %6628 = vmatpush1.xpose.msra.mxu0 0.0
    %6629 = vmatprep.subr.mxu0 0.0
    %6630 = vmatpush1.xpose.msra.mxu0 0.0
    %6631 = vmatprep.subr.mxu0 0.0
    %6632 = vmatpush1.xpose.msra.mxu0 0.0
    %6633 = vmatprep.subr.mxu0 0.0
    %6634 = vmatpush1.xpose.msra.mxu0 0.0
    %6635 = vmatprep.subr.mxu0 0.0
    %6636 = vmatpush1.xpose.msra.mxu0 0.0
    %6637 = vmatprep.subr.mxu0 0.0
    %6638 = vmatpush1.xpose.msra.mxu0 0.0
    %6639 = vmatprep.subr.mxu0 0.0
    %6640 = vmatpush1.xpose.msra.mxu0 0.0
    %6641 = vmatprep.subr.mxu0 0.0
    %6642 = vmatpush1.xpose.msra.mxu0 0.0
    %6643 = vmatprep.subr.mxu0 0.0
    %6644 = vmatpush1.xpose.msra.mxu0 0.0
    %6645 = vmatprep.subr.mxu0 0.0
    %6646 = vmatpush1.xpose.msra.mxu0 0.0
    %6647 = vmatprep.subr.mxu0 0.0
    %6648 = vmatpush1.xpose.msra.mxu0 0.0
    %6649 = vmatprep.subr.mxu0 0.0
    %6650 = vmatpush1.xpose.msra.mxu0 0.0
    %6651 = vmatprep.subr.mxu0 0.0
    %6652 = vmatpush1.xpose.msra.mxu0 0.0
    %6653 = vmatprep.subr.mxu0 0.0
    %6654 = vmatpush1.xpose.msra.mxu0 0.0
    %6655 = vmatprep.subr.mxu0 0.0
    %6656 = vmatpush1.xpose.msra.mxu0 0.0
    %6657 = vmatprep.subr.mxu0 0.0
    %6658 = vmatpush1.xpose.msra.mxu0 0.0
    %6659 = vmatprep.subr.mxu0 0.0
    %6660 = vmatpush1.xpose.msra.mxu0 0.0
    %6661 = vmatprep.subr.mxu0 0.0
    %6662 = vmatpush1.xpose.msra.mxu0 0.0
    %6663 = vmatprep.subr.mxu0 0.0
    %6664 = vmatpush1.xpose.msra.mxu0 0.0
    %v6665 = vand.u32 %v5067, 4294901760
    %6666 = vmatprep.mubr.f32.mxu0 %v6665
    %v6667 = vand.u32 %v5058, 4294901760
    %6668 = vmatmul.mubr.f32.gmra.mrb[0].mxu0 %v6667
    %v6669 = vpop.f32.mrb[0].mxu0
    %v6670 = vadd.f32 %v6574, %v6669
    %v6671 = vpop.f32.mrb[0].mxu0
    %6672 = vdwg.mxu0
    %v6673 = vand.u32 %v5087, 4294901760
    %6674 = vmatprep.subr.mxu0 %v6673
    %v6675 = vand.u32 %v5086, 4294901760
    %6676 = vmatpush1.xpose.msra.mxu0 %v6675
    %v6677 = vand.u32 %v5091, 4294901760
    %6678 = vmatprep.subr.mxu0 %v6677
    %v6679 = vand.u32 %v5090, 4294901760
    %6680 = vmatpush1.xpose.msra.mxu0 %v6679
    %v6681 = vand.u32 %v5095, 4294901760
    %6682 = vmatprep.subr.mxu0 %v6681
    %v6683 = vand.u32 %v5094, 4294901760
    %6684 = vmatpush1.xpose.msra.mxu0 %v6683
    %v6685 = vand.u32 %v5099, 4294901760
    %6686 = vmatprep.subr.mxu0 %v6685
    %v6687 = vand.u32 %v5098, 4294901760
    %6688 = vmatpush1.xpose.msra.mxu0 %v6687
    %6689 = vmatprep.subr.mxu0 0.0
    %6690 = vmatpush1.xpose.msra.mxu0 0.0
    %6691 = vmatprep.subr.mxu0 0.0
    %6692 = vmatpush1.xpose.msra.mxu0 0.0
    %6693 = vmatprep.subr.mxu0 0.0
    %6694 = vmatpush1.xpose.msra.mxu0 0.0
    %6695 = vmatprep.subr.mxu0 0.0
    %6696 = vmatpush1.xpose.msra.mxu0 0.0
    %6697 = vmatprep.subr.mxu0 0.0
    %6698 = vmatpush1.xpose.msra.mxu0 0.0
    %6699 = vmatprep.subr.mxu0 0.0
    %6700 = vmatpush1.xpose.msra.mxu0 0.0
    %6701 = vmatprep.subr.mxu0 0.0
    %6702 = vmatpush1.xpose.msra.mxu0 0.0
    %6703 = vmatprep.subr.mxu0 0.0
    %6704 = vmatpush1.xpose.msra.mxu0 0.0
    %6705 = vmatprep.subr.mxu0 0.0
    %6706 = vmatpush1.xpose.msra.mxu0 0.0
    %6707 = vmatprep.subr.mxu0 0.0
    %6708 = vmatpush1.xpose.msra.mxu0 0.0
    %6709 = vmatprep.subr.mxu0 0.0
    %6710 = vmatpush1.xpose.msra.mxu0 0.0
    %6711 = vmatprep.subr.mxu0 0.0
    %6712 = vmatpush1.xpose.msra.mxu0 0.0
    %6713 = vmatprep.subr.mxu0 0.0
    %6714 = vmatpush1.xpose.msra.mxu0 0.0
    %6715 = vmatprep.subr.mxu0 0.0
    %6716 = vmatpush1.xpose.msra.mxu0 0.0
    %6717 = vmatprep.subr.mxu0 0.0
    %6718 = vmatpush1.xpose.msra.mxu0 0.0
    %6719 = vmatprep.subr.mxu0 0.0
    %6720 = vmatpush1.xpose.msra.mxu0 0.0
    %6721 = vmatprep.subr.mxu0 0.0
    %6722 = vmatpush1.xpose.msra.mxu0 0.0
    %6723 = vmatprep.subr.mxu0 0.0
    %6724 = vmatpush1.xpose.msra.mxu0 0.0
    %6725 = vmatprep.subr.mxu0 0.0
    %6726 = vmatpush1.xpose.msra.mxu0 0.0
    %6727 = vmatprep.subr.mxu0 0.0
    %6728 = vmatpush1.xpose.msra.mxu0 0.0
    %6729 = vmatprep.subr.mxu0 0.0
    %6730 = vmatpush1.xpose.msra.mxu0 0.0
    %6731 = vmatprep.subr.mxu0 0.0
    %6732 = vmatpush1.xpose.msra.mxu0 0.0
    %6733 = vmatprep.subr.mxu0 0.0
    %6734 = vmatpush1.xpose.msra.mxu0 0.0
    %6735 = vmatprep.subr.mxu0 0.0
    %6736 = vmatpush1.xpose.msra.mxu0 0.0
    %6737 = vmatprep.subr.mxu0 0.0
    %6738 = vmatpush1.xpose.msra.mxu0 0.0
    %6739 = vmatprep.subr.mxu0 0.0
    %6740 = vmatpush1.xpose.msra.mxu0 0.0
    %6741 = vmatprep.subr.mxu0 0.0
    %6742 = vmatpush1.xpose.msra.mxu0 0.0
    %6743 = vmatprep.subr.mxu0 0.0
    %6744 = vmatpush1.xpose.msra.mxu0 0.0
    %v6745 = vand.u32 %v5067, 4294901760
    %6746 = vmatprep.mubr.f32.mxu0 %v6745
    %v6747 = vand.u32 %v5058, 4294901760
    %6748 = vmatmul.mubr.f32.gmra.mrb[0].mxu0 %v6747
    %v6749 = vpop.f32.mrb[0].mxu0
    %v6750 = vadd.f32 %v6670, %v6749
    %v6751 = vpop.f32.mrb[0].mxu0
    %6752 = vdwg.mxu0
    %v6753 = vand.u32 %v5089, 4294901760
    %6754 = vmatprep.subr.mxu0 %v6753
    %v6755 = vand.u32 %v5088, 4294901760
    %6756 = vmatpush1.xpose.msra.mxu0 %v6755
    %v6757 = vand.u32 %v5093, 4294901760
    %6758 = vmatprep.subr.mxu0 %v6757
    %v6759 = vand.u32 %v5092, 4294901760
    %6760 = vmatpush1.xpose.msra.mxu0 %v6759
    %v6761 = vand.u32 %v5097, 4294901760
    %6762 = vmatprep.subr.mxu0 %v6761
    %v6763 = vand.u32 %v5096, 4294901760
    %6764 = vmatpush1.xpose.msra.mxu0 %v6763
    %v6765 = vand.u32 %v5101, 4294901760
    %6766 = vmatprep.subr.mxu0 %v6765
    %v6767 = vand.u32 %v5100, 4294901760
    %6768 = vmatpush1.xpose.msra.mxu0 %v6767
    %6769 = vmatprep.subr.mxu0 0.0
    %6770 = vmatpush1.xpose.msra.mxu0 0.0
    %6771 = vmatprep.subr.mxu0 0.0
    %6772 = vmatpush1.xpose.msra.mxu0 0.0
    %6773 = vmatprep.subr.mxu0 0.0
    %6774 = vmatpush1.xpose.msra.mxu0 0.0
    %6775 = vmatprep.subr.mxu0 0.0
    %6776 = vmatpush1.xpose.msra.mxu0 0.0
    %6777 = vmatprep.subr.mxu0 0.0
    %6778 = vmatpush1.xpose.msra.mxu0 0.0
    %6779 = vmatprep.subr.mxu0 0.0
    %6780 = vmatpush1.xpose.msra.mxu0 0.0
    %6781 = vmatprep.subr.mxu0 0.0
    %6782 = vmatpush1.xpose.msra.mxu0 0.0
    %6783 = vmatprep.subr.mxu0 0.0
    %6784 = vmatpush1.xpose.msra.mxu0 0.0
    %6785 = vmatprep.subr.mxu0 0.0
    %6786 = vmatpush1.xpose.msra.mxu0 0.0
    %6787 = vmatprep.subr.mxu0 0.0
    %6788 = vmatpush1.xpose.msra.mxu0 0.0
    %6789 = vmatprep.subr.mxu0 0.0
    %6790 = vmatpush1.xpose.msra.mxu0 0.0
    %6791 = vmatprep.subr.mxu0 0.0
    %6792 = vmatpush1.xpose.msra.mxu0 0.0
    %6793 = vmatprep.subr.mxu0 0.0
    %6794 = vmatpush1.xpose.msra.mxu0 0.0
    %6795 = vmatprep.subr.mxu0 0.0
    %6796 = vmatpush1.xpose.msra.mxu0 0.0
    %6797 = vmatprep.subr.mxu0 0.0
    %6798 = vmatpush1.xpose.msra.mxu0 0.0
    %6799 = vmatprep.subr.mxu0 0.0
    %6800 = vmatpush1.xpose.msra.mxu0 0.0
    %6801 = vmatprep.subr.mxu0 0.0
    %6802 = vmatpush1.xpose.msra.mxu0 0.0
    %6803 = vmatprep.subr.mxu0 0.0
    %6804 = vmatpush1.xpose.msra.mxu0 0.0
    %6805 = vmatprep.subr.mxu0 0.0
    %6806 = vmatpush1.xpose.msra.mxu0 0.0
    %6807 = vmatprep.subr.mxu0 0.0
    %6808 = vmatpush1.xpose.msra.mxu0 0.0
    %6809 = vmatprep.subr.mxu0 0.0
    %6810 = vmatpush1.xpose.msra.mxu0 0.0
    %6811 = vmatprep.subr.mxu0 0.0
    %6812 = vmatpush1.xpose.msra.mxu0 0.0
    %6813 = vmatprep.subr.mxu0 0.0
    %6814 = vmatpush1.xpose.msra.mxu0 0.0
    %6815 = vmatprep.subr.mxu0 0.0
    %6816 = vmatpush1.xpose.msra.mxu0 0.0
    %6817 = vmatprep.subr.mxu0 0.0
    %6818 = vmatpush1.xpose.msra.mxu0 0.0
    %6819 = vmatprep.subr.mxu0 0.0
    %6820 = vmatpush1.xpose.msra.mxu0 0.0
    %6821 = vmatprep.subr.mxu0 0.0
    %6822 = vmatpush1.xpose.msra.mxu0 0.0
    %6823 = vmatprep.subr.mxu0 0.0
    %6824 = vmatpush1.xpose.msra.mxu0 0.0
    %v6825 = vand.u32 %v5085, 4294901760
    %v6826 = vsub.f32 %v5085, %v6825
    %v6827 = vand.u32 %v6826, 4294901760
    %v6828 = vsub.f32 %v6826, %v6827
    %v6829 = vand.u32 %v6828, 4294901760
    %6830 = vmatprep.mubr.f32.mxu0 %v6829
    %v6831 = vand.u32 %v5076, 4294901760
    %v6832 = vsub.f32 %v5076, %v6831
    %v6833 = vand.u32 %v6832, 4294901760
    %v6834 = vsub.f32 %v6832, %v6833
    %v6835 = vand.u32 %v6834, 4294901760
    %6836 = vmatmul.mubr.f32.gmra.mrb[0].mxu0 %v6835
    %v6837 = vpop.f32.mrb[0].mxu0
    %v6838 = vadd.f32 %v6750, %v6837
    %v6839 = vpop.f32.mrb[0].mxu0
    %6840 = vdwg.mxu0
    %v6841 = vand.u32 %v5089, 4294901760
    %v6842 = vsub.f32 %v5089, %v6841
    %v6843 = vand.u32 %v6842, 4294901760
    %v6844 = vsub.f32 %v6842, %v6843
    %v6845 = vand.u32 %v6844, 4294901760
    %6846 = vmatprep.subr.mxu0 %v6845
    %v6847 = vand.u32 %v5088, 4294901760
    %v6848 = vsub.f32 %v5088, %v6847
    %v6849 = vand.u32 %v6848, 4294901760
    %v6850 = vsub.f32 %v6848, %v6849
    %v6851 = vand.u32 %v6850, 4294901760
    %6852 = vmatpush1.xpose.msra.mxu0 %v6851
    %v6853 = vand.u32 %v5093, 4294901760
    %v6854 = vsub.f32 %v5093, %v6853
    %v6855 = vand.u32 %v6854, 4294901760
    %v6856 = vsub.f32 %v6854, %v6855
    %v6857 = vand.u32 %v6856, 4294901760
    %6858 = vmatprep.subr.mxu0 %v6857
    %v6859 = vand.u32 %v5092, 4294901760
    %v6860 = vsub.f32 %v5092, %v6859
    %v6861 = vand.u32 %v6860, 4294901760
    %v6862 = vsub.f32 %v6860, %v6861
    %v6863 = vand.u32 %v6862, 4294901760
    %6864 = vmatpush1.xpose.msra.mxu0 %v6863
    %v6865 = vand.u32 %v5097, 4294901760
    %v6866 = vsub.f32 %v5097, %v6865
    %v6867 = vand.u32 %v6866, 4294901760
    %v6868 = vsub.f32 %v6866, %v6867
    %v6869 = vand.u32 %v6868, 4294901760
    %6870 = vmatprep.subr.mxu0 %v6869
    %v6871 = vand.u32 %v5096, 4294901760
    %v6872 = vsub.f32 %v5096, %v6871
    %v6873 = vand.u32 %v6872, 4294901760
    %v6874 = vsub.f32 %v6872, %v6873
    %v6875 = vand.u32 %v6874, 4294901760
    %6876 = vmatpush1.xpose.msra.mxu0 %v6875
    %v6877 = vand.u32 %v5101, 4294901760
    %v6878 = vsub.f32 %v5101, %v6877
    %v6879 = vand.u32 %v6878, 4294901760
    %v6880 = vsub.f32 %v6878, %v6879
    %v6881 = vand.u32 %v6880, 4294901760
    %6882 = vmatprep.subr.mxu0 %v6881
    %v6883 = vand.u32 %v5100, 4294901760
    %v6884 = vsub.f32 %v5100, %v6883
    %v6885 = vand.u32 %v6884, 4294901760
    %v6886 = vsub.f32 %v6884, %v6885
    %v6887 = vand.u32 %v6886, 4294901760
    %6888 = vmatpush1.xpose.msra.mxu0 %v6887
    %6889 = vmatprep.subr.mxu0 0.0
    %6890 = vmatpush1.xpose.msra.mxu0 0.0
    %6891 = vmatprep.subr.mxu0 0.0
    %6892 = vmatpush1.xpose.msra.mxu0 0.0
    %6893 = vmatprep.subr.mxu0 0.0
    %6894 = vmatpush1.xpose.msra.mxu0 0.0
    %6895 = vmatprep.subr.mxu0 0.0
    %6896 = vmatpush1.xpose.msra.mxu0 0.0
    %6897 = vmatprep.subr.mxu0 0.0
    %6898 = vmatpush1.xpose.msra.mxu0 0.0
    %6899 = vmatprep.subr.mxu0 0.0
    %6900 = vmatpush1.xpose.msra.mxu0 0.0
    %6901 = vmatprep.subr.mxu0 0.0
    %6902 = vmatpush1.xpose.msra.mxu0 0.0
    %6903 = vmatprep.subr.mxu0 0.0
    %6904 = vmatpush1.xpose.msra.mxu0 0.0
    %6905 = vmatprep.subr.mxu0 0.0
    %6906 = vmatpush1.xpose.msra.mxu0 0.0
    %6907 = vmatprep.subr.mxu0 0.0
    %6908 = vmatpush1.xpose.msra.mxu0 0.0
    %6909 = vmatprep.subr.mxu0 0.0
    %6910 = vmatpush1.xpose.msra.mxu0 0.0
    %6911 = vmatprep.subr.mxu0 0.0
    %6912 = vmatpush1.xpose.msra.mxu0 0.0
    %6913 = vmatprep.subr.mxu0 0.0
    %6914 = vmatpush1.xpose.msra.mxu0 0.0
    %6915 = vmatprep.subr.mxu0 0.0
    %6916 = vmatpush1.xpose.msra.mxu0 0.0
    %6917 = vmatprep.subr.mxu0 0.0
    %6918 = vmatpush1.xpose.msra.mxu0 0.0
    %6919 = vmatprep.subr.mxu0 0.0
    %6920 = vmatpush1.xpose.msra.mxu0 0.0
    %6921 = vmatprep.subr.mxu0 0.0
    %6922 = vmatpush1.xpose.msra.mxu0 0.0
    %6923 = vmatprep.subr.mxu0 0.0
    %6924 = vmatpush1.xpose.msra.mxu0 0.0
    %6925 = vmatprep.subr.mxu0 0.0
    %6926 = vmatpush1.xpose.msra.mxu0 0.0
    %6927 = vmatprep.subr.mxu0 0.0
    %6928 = vmatpush1.xpose.msra.mxu0 0.0
    %6929 = vmatprep.subr.mxu0 0.0
    %6930 = vmatpush1.xpose.msra.mxu0 0.0
    %6931 = vmatprep.subr.mxu0 0.0
    %6932 = vmatpush1.xpose.msra.mxu0 0.0
    %6933 = vmatprep.subr.mxu0 0.0
    %6934 = vmatpush1.xpose.msra.mxu0 0.0
    %6935 = vmatprep.subr.mxu0 0.0
    %6936 = vmatpush1.xpose.msra.mxu0 0.0
    %6937 = vmatprep.subr.mxu0 0.0
    %6938 = vmatpush1.xpose.msra.mxu0 0.0
    %6939 = vmatprep.subr.mxu0 0.0
    %6940 = vmatpush1.xpose.msra.mxu0 0.0
    %6941 = vmatprep.subr.mxu0 0.0
    %6942 = vmatpush1.xpose.msra.mxu0 0.0
    %6943 = vmatprep.subr.mxu0 0.0
    %6944 = vmatpush1.xpose.msra.mxu0 0.0
    %v6945 = vand.u32 %v5085, 4294901760
    %6946 = vmatprep.mubr.f32.mxu0 %v6945
    %v6947 = vand.u32 %v5076, 4294901760
    %6948 = vmatmul.mubr.f32.gmra.mrb[0].mxu0 %v6947
    %v6949 = vpop.f32.mrb[0].mxu0
    %v6950 = vadd.f32 %v6838, %v6949
    %v6951 = vpop.f32.mrb[0].mxu0
    %6952 = vdwg.mxu0
    %v6953 = vand.u32 %v5089, 4294901760
    %v6954 = vsub.f32 %v5089, %v6953
    %6955 = vmatprep.subr.mxu0 %v6954
    %v6956 = vand.u32 %v5088, 4294901760
    %v6957 = vsub.f32 %v5088, %v6956
    %6958 = vmatpush1.xpose.msra.mxu0 %v6957
    %v6959 = vand.u32 %v5093, 4294901760
    %v6960 = vsub.f32 %v5093, %v6959
    %6961 = vmatprep.subr.mxu0 %v6960
    %v6962 = vand.u32 %v5092, 4294901760
    %v6963 = vsub.f32 %v5092, %v6962
    %6964 = vmatpush1.xpose.msra.mxu0 %v6963
    %v6965 = vand.u32 %v5097, 4294901760
    %v6966 = vsub.f32 %v5097, %v6965
    %6967 = vmatprep.subr.mxu0 %v6966
    %v6968 = vand.u32 %v5096, 4294901760
    %v6969 = vsub.f32 %v5096, %v6968
    %6970 = vmatpush1.xpose.msra.mxu0 %v6969
    %v6971 = vand.u32 %v5101, 4294901760
    %v6972 = vsub.f32 %v5101, %v6971
    %6973 = vmatprep.subr.mxu0 %v6972
    %v6974 = vand.u32 %v5100, 4294901760
    %v6975 = vsub.f32 %v5100, %v6974
    %6976 = vmatpush1.xpose.msra.mxu0 %v6975
    %6977 = vmatprep.subr.mxu0 0.0
    %6978 = vmatpush1.xpose.msra.mxu0 0.0
    %6979 = vmatprep.subr.mxu0 0.0
    %6980 = vmatpush1.xpose.msra.mxu0 0.0
    %6981 = vmatprep.subr.mxu0 0.0
    %6982 = vmatpush1.xpose.msra.mxu0 0.0
    %6983 = vmatprep.subr.mxu0 0.0
    %6984 = vmatpush1.xpose.msra.mxu0 0.0
    %6985 = vmatprep.subr.mxu0 0.0
    %6986 = vmatpush1.xpose.msra.mxu0 0.0
    %6987 = vmatprep.subr.mxu0 0.0
    %6988 = vmatpush1.xpose.msra.mxu0 0.0
    %6989 = vmatprep.subr.mxu0 0.0
    %6990 = vmatpush1.xpose.msra.mxu0 0.0
    %6991 = vmatprep.subr.mxu0 0.0
    %6992 = vmatpush1.xpose.msra.mxu0 0.0
    %6993 = vmatprep.subr.mxu0 0.0
    %6994 = vmatpush1.xpose.msra.mxu0 0.0
    %6995 = vmatprep.subr.mxu0 0.0
    %6996 = vmatpush1.xpose.msra.mxu0 0.0
    %6997 = vmatprep.subr.mxu0 0.0
    %6998 = vmatpush1.xpose.msra.mxu0 0.0
    %6999 = vmatprep.subr.mxu0 0.0
    %7000 = vmatpush1.xpose.msra.mxu0 0.0
    %7001 = vmatprep.subr.mxu0 0.0
    %7002 = vmatpush1.xpose.msra.mxu0 0.0
    %7003 = vmatprep.subr.mxu0 0.0
    %7004 = vmatpush1.xpose.msra.mxu0 0.0
    %7005 = vmatprep.subr.mxu0 0.0
    %7006 = vmatpush1.xpose.msra.mxu0 0.0
    %7007 = vmatprep.subr.mxu0 0.0
    %7008 = vmatpush1.xpose.msra.mxu0 0.0
    %7009 = vmatprep.subr.mxu0 0.0
    %7010 = vmatpush1.xpose.msra.mxu0 0.0
    %7011 = vmatprep.subr.mxu0 0.0
    %7012 = vmatpush1.xpose.msra.mxu0 0.0
    %7013 = vmatprep.subr.mxu0 0.0
    %7014 = vmatpush1.xpose.msra.mxu0 0.0
    %7015 = vmatprep.subr.mxu0 0.0
    %7016 = vmatpush1.xpose.msra.mxu0 0.0
    %7017 = vmatprep.subr.mxu0 0.0
    %7018 = vmatpush1.xpose.msra.mxu0 0.0
    %7019 = vmatprep.subr.mxu0 0.0
    %7020 = vmatpush1.xpose.msra.mxu0 0.0
    %7021 = vmatprep.subr.mxu0 0.0
    %7022 = vmatpush1.xpose.msra.mxu0 0.0
    %7023 = vmatprep.subr.mxu0 0.0
    %7024 = vmatpush1.xpose.msra.mxu0 0.0
    %7025 = vmatprep.subr.mxu0 0.0
    %7026 = vmatpush1.xpose.msra.mxu0 0.0
    %7027 = vmatprep.subr.mxu0 0.0
    %7028 = vmatpush1.xpose.msra.mxu0 0.0
    %7029 = vmatprep.subr.mxu0 0.0
    %7030 = vmatpush1.xpose.msra.mxu0 0.0
    %7031 = vmatprep.subr.mxu0 0.0
    %7032 = vmatpush1.xpose.msra.mxu0 0.0
    %v7033 = vand.u32 %v5085, 4294901760
    %v7034 = vsub.f32 %v5085, %v7033
    %7035 = vmatprep.mubr.f32.mxu0 %v7034
    %v7036 = vand.u32 %v5076, 4294901760
    %v7037 = vsub.f32 %v5076, %v7036
    %7038 = vmatmul.mubr.f32.gmra.mrb[0].mxu0 %v7037
    %v7039 = vpop.f32.mrb[0].mxu0
    %v7040 = vadd.f32 %v6950, %v7039
    %v7041 = vpop.f32.mrb[0].mxu0
    %7042 = vdwg.mxu0
    %v7043 = vand.u32 %v5089, 4294901760
    %7044 = vmatprep.subr.mxu0 %v7043
    %v7045 = vand.u32 %v5088, 4294901760
    %7046 = vmatpush1.xpose.msra.mxu0 %v7045
    %v7047 = vand.u32 %v5093, 4294901760
    %7048 = vmatprep.subr.mxu0 %v7047
    %v7049 = vand.u32 %v5092, 4294901760
    %7050 = vmatpush1.xpose.msra.mxu0 %v7049
    %v7051 = vand.u32 %v5097, 4294901760
    %7052 = vmatprep.subr.mxu0 %v7051
    %v7053 = vand.u32 %v5096, 4294901760
    %7054 = vmatpush1.xpose.msra.mxu0 %v7053
    %v7055 = vand.u32 %v5101, 4294901760
    %7056 = vmatprep.subr.mxu0 %v7055
    %v7057 = vand.u32 %v5100, 4294901760
    %7058 = vmatpush1.xpose.msra.mxu0 %v7057
    %7059 = vmatprep.subr.mxu0 0.0
    %7060 = vmatpush1.xpose.msra.mxu0 0.0
    %7061 = vmatprep.subr.mxu0 0.0
    %7062 = vmatpush1.xpose.msra.mxu0 0.0
    %7063 = vmatprep.subr.mxu0 0.0
    %7064 = vmatpush1.xpose.msra.mxu0 0.0
    %7065 = vmatprep.subr.mxu0 0.0
    %7066 = vmatpush1.xpose.msra.mxu0 0.0
    %7067 = vmatprep.subr.mxu0 0.0
    %7068 = vmatpush1.xpose.msra.mxu0 0.0
    %7069 = vmatprep.subr.mxu0 0.0
    %7070 = vmatpush1.xpose.msra.mxu0 0.0
    %7071 = vmatprep.subr.mxu0 0.0
    %7072 = vmatpush1.xpose.msra.mxu0 0.0
    %7073 = vmatprep.subr.mxu0 0.0
    %7074 = vmatpush1.xpose.msra.mxu0 0.0
    %7075 = vmatprep.subr.mxu0 0.0
    %7076 = vmatpush1.xpose.msra.mxu0 0.0
    %7077 = vmatprep.subr.mxu0 0.0
    %7078 = vmatpush1.xpose.msra.mxu0 0.0
    %7079 = vmatprep.subr.mxu0 0.0
    %7080 = vmatpush1.xpose.msra.mxu0 0.0
    %7081 = vmatprep.subr.mxu0 0.0
    %7082 = vmatpush1.xpose.msra.mxu0 0.0
    %7083 = vmatprep.subr.mxu0 0.0
    %7084 = vmatpush1.xpose.msra.mxu0 0.0
    %7085 = vmatprep.subr.mxu0 0.0
    %7086 = vmatpush1.xpose.msra.mxu0 0.0
    %7087 = vmatprep.subr.mxu0 0.0
    %7088 = vmatpush1.xpose.msra.mxu0 0.0
    %7089 = vmatprep.subr.mxu0 0.0
    %7090 = vmatpush1.xpose.msra.mxu0 0.0
    %7091 = vmatprep.subr.mxu0 0.0
    %7092 = vmatpush1.xpose.msra.mxu0 0.0
    %7093 = vmatprep.subr.mxu0 0.0
    %7094 = vmatpush1.xpose.msra.mxu0 0.0
    %7095 = vmatprep.subr.mxu0 0.0
    %7096 = vmatpush1.xpose.msra.mxu0 0.0
    %7097 = vmatprep.subr.mxu0 0.0
    %7098 = vmatpush1.xpose.msra.mxu0 0.0
    %7099 = vmatprep.subr.mxu0 0.0
    %7100 = vmatpush1.xpose.msra.mxu0 0.0
    %7101 = vmatprep.subr.mxu0 0.0
    %7102 = vmatpush1.xpose.msra.mxu0 0.0
    %7103 = vmatprep.subr.mxu0 0.0
    %7104 = vmatpush1.xpose.msra.mxu0 0.0
    %7105 = vmatprep.subr.mxu0 0.0
    %7106 = vmatpush1.xpose.msra.mxu0 0.0
    %7107 = vmatprep.subr.mxu0 0.0
    %7108 = vmatpush1.xpose.msra.mxu0 0.0
    %7109 = vmatprep.subr.mxu0 0.0
    %7110 = vmatpush1.xpose.msra.mxu0 0.0
    %7111 = vmatprep.subr.mxu0 0.0
    %7112 = vmatpush1.xpose.msra.mxu0 0.0
    %7113 = vmatprep.subr.mxu0 0.0
    %7114 = vmatpush1.xpose.msra.mxu0 0.0
    %v7115 = vand.u32 %v5085, 4294901760
    %v7116 = vsub.f32 %v5085, %v7115
    %v7117 = vand.u32 %v7116, 4294901760
    %7118 = vmatprep.mubr.f32.mxu0 %v7117
    %v7119 = vand.u32 %v5076, 4294901760
    %v7120 = vsub.f32 %v5076, %v7119
    %v7121 = vand.u32 %v7120, 4294901760
    %7122 = vmatmul.mubr.f32.gmra.mrb[0].mxu0 %v7121
    %v7123 = vpop.f32.mrb[0].mxu0
    %v7124 = vadd.f32 %v7040, %v7123
    %v7125 = vpop.f32.mrb[0].mxu0
    %7126 = vdwg.mxu0
    %v7127 = vand.u32 %v5089, 4294901760
    %v7128 = vsub.f32 %v5089, %v7127
    %v7129 = vand.u32 %v7128, 4294901760
    %7130 = vmatprep.subr.mxu0 %v7129
    %v7131 = vand.u32 %v5088, 4294901760
    %v7132 = vsub.f32 %v5088, %v7131
    %v7133 = vand.u32 %v7132, 4294901760
    %7134 = vmatpush1.xpose.msra.mxu0 %v7133
    %v7135 = vand.u32 %v5093, 4294901760
    %v7136 = vsub.f32 %v5093, %v7135
    %v7137 = vand.u32 %v7136, 4294901760
    %7138 = vmatprep.subr.mxu0 %v7137
    %v7139 = vand.u32 %v5092, 4294901760
    %v7140 = vsub.f32 %v5092, %v7139
    %v7141 = vand.u32 %v7140, 4294901760
    %7142 = vmatpush1.xpose.msra.mxu0 %v7141
    %v7143 = vand.u32 %v5097, 4294901760
    %v7144 = vsub.f32 %v5097, %v7143
    %v7145 = vand.u32 %v7144, 4294901760
    %7146 = vmatprep.subr.mxu0 %v7145
    %v7147 = vand.u32 %v5096, 4294901760
    %v7148 = vsub.f32 %v5096, %v7147
    %v7149 = vand.u32 %v7148, 4294901760
    %7150 = vmatpush1.xpose.msra.mxu0 %v7149
    %v7151 = vand.u32 %v5101, 4294901760
    %v7152 = vsub.f32 %v5101, %v7151
    %v7153 = vand.u32 %v7152, 4294901760
    %7154 = vmatprep.subr.mxu0 %v7153
    %v7155 = vand.u32 %v5100, 4294901760
    %v7156 = vsub.f32 %v5100, %v7155
    %v7157 = vand.u32 %v7156, 4294901760
    %7158 = vmatpush1.xpose.msra.mxu0 %v7157
    %7159 = vmatprep.subr.mxu0 0.0
    %7160 = vmatpush1.xpose.msra.mxu0 0.0
    %7161 = vmatprep.subr.mxu0 0.0
    %7162 = vmatpush1.xpose.msra.mxu0 0.0
    %7163 = vmatprep.subr.mxu0 0.0
    %7164 = vmatpush1.xpose.msra.mxu0 0.0
    %7165 = vmatprep.subr.mxu0 0.0
    %7166 = vmatpush1.xpose.msra.mxu0 0.0
    %7167 = vmatprep.subr.mxu0 0.0
    %7168 = vmatpush1.xpose.msra.mxu0 0.0
    %7169 = vmatprep.subr.mxu0 0.0
    %7170 = vmatpush1.xpose.msra.mxu0 0.0
    %7171 = vmatprep.subr.mxu0 0.0
    %7172 = vmatpush1.xpose.msra.mxu0 0.0
    %7173 = vmatprep.subr.mxu0 0.0
    %7174 = vmatpush1.xpose.msra.mxu0 0.0
    %7175 = vmatprep.subr.mxu0 0.0
    %7176 = vmatpush1.xpose.msra.mxu0 0.0
    %7177 = vmatprep.subr.mxu0 0.0
    %7178 = vmatpush1.xpose.msra.mxu0 0.0
    %7179 = vmatprep.subr.mxu0 0.0
    %7180 = vmatpush1.xpose.msra.mxu0 0.0
    %7181 = vmatprep.subr.mxu0 0.0
    %7182 = vmatpush1.xpose.msra.mxu0 0.0
    %7183 = vmatprep.subr.mxu0 0.0
    %7184 = vmatpush1.xpose.msra.mxu0 0.0
    %7185 = vmatprep.subr.mxu0 0.0
    %7186 = vmatpush1.xpose.msra.mxu0 0.0
    %7187 = vmatprep.subr.mxu0 0.0
    %7188 = vmatpush1.xpose.msra.mxu0 0.0
    %7189 = vmatprep.subr.mxu0 0.0
    %7190 = vmatpush1.xpose.msra.mxu0 0.0
    %7191 = vmatprep.subr.mxu0 0.0
    %7192 = vmatpush1.xpose.msra.mxu0 0.0
    %7193 = vmatprep.subr.mxu0 0.0
    %7194 = vmatpush1.xpose.msra.mxu0 0.0
    %7195 = vmatprep.subr.mxu0 0.0
    %7196 = vmatpush1.xpose.msra.mxu0 0.0
    %7197 = vmatprep.subr.mxu0 0.0
    %7198 = vmatpush1.xpose.msra.mxu0 0.0
    %7199 = vmatprep.subr.mxu0 0.0
    %7200 = vmatpush1.xpose.msra.mxu0 0.0
    %7201 = vmatprep.subr.mxu0 0.0
    %7202 = vmatpush1.xpose.msra.mxu0 0.0
    %7203 = vmatprep.subr.mxu0 0.0
    %7204 = vmatpush1.xpose.msra.mxu0 0.0
    %7205 = vmatprep.subr.mxu0 0.0
    %7206 = vmatpush1.xpose.msra.mxu0 0.0
    %7207 = vmatprep.subr.mxu0 0.0
    %7208 = vmatpush1.xpose.msra.mxu0 0.0
    %7209 = vmatprep.subr.mxu0 0.0
    %7210 = vmatpush1.xpose.msra.mxu0 0.0
    %7211 = vmatprep.subr.mxu0 0.0
    %7212 = vmatpush1.xpose.msra.mxu0 0.0
    %7213 = vmatprep.subr.mxu0 0.0
    %7214 = vmatpush1.xpose.msra.mxu0 0.0
    %v7215 = vand.u32 %v5085, 4294901760
    %7216 = vmatprep.mubr.f32.mxu0 %v7215
    %v7217 = vand.u32 %v5076, 4294901760
    %7218 = vmatmul.mubr.f32.gmra.mrb[0].mxu0 %v7217
    %v7219 = vpop.f32.mrb[0].mxu0
    %v7220 = vadd.f32 %v7124, %v7219
    %v7221 = vpop.f32.mrb[0].mxu0
    %7222 = vdwg.mxu0
    %v7223 = vand.u32 %v5089, 4294901760
    %7224 = vmatprep.subr.mxu0 %v7223
    %v7225 = vand.u32 %v5088, 4294901760
    %7226 = vmatpush1.xpose.msra.mxu0 %v7225
    %v7227 = vand.u32 %v5093, 4294901760
    %7228 = vmatprep.subr.mxu0 %v7227
    %v7229 = vand.u32 %v5092, 4294901760
    %7230 = vmatpush1.xpose.msra.mxu0 %v7229
    %v7231 = vand.u32 %v5097, 4294901760
    %7232 = vmatprep.subr.mxu0 %v7231
    %v7233 = vand.u32 %v5096, 4294901760
    %7234 = vmatpush1.xpose.msra.mxu0 %v7233
    %v7235 = vand.u32 %v5101, 4294901760
    %7236 = vmatprep.subr.mxu0 %v7235
    %v7237 = vand.u32 %v5100, 4294901760
    %7238 = vmatpush1.xpose.msra.mxu0 %v7237
    %7239 = vmatprep.subr.mxu0 0.0
    %7240 = vmatpush1.xpose.msra.mxu0 0.0
    %7241 = vmatprep.subr.mxu0 0.0
    %7242 = vmatpush1.xpose.msra.mxu0 0.0
    %7243 = vmatprep.subr.mxu0 0.0
    %7244 = vmatpush1.xpose.msra.mxu0 0.0
    %7245 = vmatprep.subr.mxu0 0.0
    %7246 = vmatpush1.xpose.msra.mxu0 0.0
    %7247 = vmatprep.subr.mxu0 0.0
    %7248 = vmatpush1.xpose.msra.mxu0 0.0
    %7249 = vmatprep.subr.mxu0 0.0
    %7250 = vmatpush1.xpose.msra.mxu0 0.0
    %7251 = vmatprep.subr.mxu0 0.0
    %7252 = vmatpush1.xpose.msra.mxu0 0.0
    %7253 = vmatprep.subr.mxu0 0.0
    %7254 = vmatpush1.xpose.msra.mxu0 0.0
    %7255 = vmatprep.subr.mxu0 0.0
    %7256 = vmatpush1.xpose.msra.mxu0 0.0
    %7257 = vmatprep.subr.mxu0 0.0
    %7258 = vmatpush1.xpose.msra.mxu0 0.0
    %7259 = vmatprep.subr.mxu0 0.0
    %7260 = vmatpush1.xpose.msra.mxu0 0.0
    %7261 = vmatprep.subr.mxu0 0.0
    %7262 = vmatpush1.xpose.msra.mxu0 0.0
    %7263 = vmatprep.subr.mxu0 0.0
    %7264 = vmatpush1.xpose.msra.mxu0 0.0
    %7265 = vmatprep.subr.mxu0 0.0
    %7266 = vmatpush1.xpose.msra.mxu0 0.0
    %7267 = vmatprep.subr.mxu0 0.0
    %7268 = vmatpush1.xpose.msra.mxu0 0.0
    %7269 = vmatprep.subr.mxu0 0.0
    %7270 = vmatpush1.xpose.msra.mxu0 0.0
    %7271 = vmatprep.subr.mxu0 0.0
    %7272 = vmatpush1.xpose.msra.mxu0 0.0
    %7273 = vmatprep.subr.mxu0 0.0
    %7274 = vmatpush1.xpose.msra.mxu0 0.0
    %7275 = vmatprep.subr.mxu0 0.0
    %7276 = vmatpush1.xpose.msra.mxu0 0.0
    %7277 = vmatprep.subr.mxu0 0.0
    %7278 = vmatpush1.xpose.msra.mxu0 0.0
    %7279 = vmatprep.subr.mxu0 0.0
    %7280 = vmatpush1.xpose.msra.mxu0 0.0
    %7281 = vmatprep.subr.mxu0 0.0
    %7282 = vmatpush1.xpose.msra.mxu0 0.0
    %7283 = vmatprep.subr.mxu0 0.0
    %7284 = vmatpush1.xpose.msra.mxu0 0.0
    %7285 = vmatprep.subr.mxu0 0.0
    %7286 = vmatpush1.xpose.msra.mxu0 0.0
    %7287 = vmatprep.subr.mxu0 0.0
    %7288 = vmatpush1.xpose.msra.mxu0 0.0
    %7289 = vmatprep.subr.mxu0 0.0
    %7290 = vmatpush1.xpose.msra.mxu0 0.0
    %7291 = vmatprep.subr.mxu0 0.0
    %7292 = vmatpush1.xpose.msra.mxu0 0.0
    %7293 = vmatprep.subr.mxu0 0.0
    %7294 = vmatpush1.xpose.msra.mxu0 0.0
    %v7295 = vand.u32 %v5085, 4294901760
    %7296 = vmatprep.mubr.f32.mxu0 %v7295
    %v7297 = vand.u32 %v5076, 4294901760
    %7298 = vmatmul.mubr.f32.gmra.mrb[0].mxu0 %v7297
    %v7299 = vpop.f32.mrb[0].mxu0
    %v7300 = vadd.f32 %v7220, %v7299
    %v7301 = vpop.f32.mrb[0].mxu0
    %7302 = vdwg.mxu0
    %v7303 = vmul.f32 %v7300, 0.001953125
    %v7304 = vmul.f32 %v6202, %v6202
    %v7305 = vsub.f32 %v7303, %v7304
    %v7306 = vmax.f32 %v7305, 0.0
    %v7307 = vadd.f32 %v7306, 1e-05
    %v7308 = vrsqrt.pop %v7307
    %vm7309 = vcmask 261120
    %v7311 = vsel %vm7309, %v7308, 0
    %v7313 = vand.u32 %v5087, 4294901760
    %7314 = vmatprep.subr.mxu0 %v7313
    %v7315 = vand.u32 %v5086, 4294901760
    %7316 = vmatpush1.msra.mxu0 %v7315
    %v7317 = vand.u32 %v5091, 4294901760
    %7318 = vmatprep.subr.mxu0 %v7317
    %v7319 = vand.u32 %v5090, 4294901760
    %7320 = vmatpush1.msra.mxu0 %v7319
    %v7321 = vand.u32 %v5095, 4294901760
    %7322 = vmatprep.subr.mxu0 %v7321
    %v7323 = vand.u32 %v5094, 4294901760
    %7324 = vmatpush1.msra.mxu0 %v7323
    %v7325 = vand.u32 %v5099, 4294901760
    %7326 = vmatprep.subr.mxu0 %v7325
    %v7327 = vand.u32 %v5098, 4294901760
    %7328 = vmatpush1.msra.mxu0 %v7327
    %7329 = vmatprep.subr.mxu0 0.0
    %7330 = vmatpush1.msra.mxu0 0.0
    %7331 = vmatprep.subr.mxu0 0.0
    %7332 = vmatpush1.msra.mxu0 0.0
    %7333 = vmatprep.subr.mxu0 0.0
    %7334 = vmatpush1.msra.mxu0 0.0
    %7335 = vmatprep.subr.mxu0 0.0
    %7336 = vmatpush1.msra.mxu0 0.0
    %7337 = vmatprep.subr.mxu0 0.0
    %7338 = vmatpush1.msra.mxu0 0.0
    %7339 = vmatprep.subr.mxu0 0.0
    %7340 = vmatpush1.msra.mxu0 0.0
    %7341 = vmatprep.subr.mxu0 0.0
    %7342 = vmatpush1.msra.mxu0 0.0
    %7343 = vmatprep.subr.mxu0 0.0
    %7344 = vmatpush1.msra.mxu0 0.0
    %7345 = vmatprep.subr.mxu0 0.0
    %7346 = vmatpush1.msra.mxu0 0.0
    %7347 = vmatprep.subr.mxu0 0.0
    %7348 = vmatpush1.msra.mxu0 0.0
    %7349 = vmatprep.subr.mxu0 0.0
    %7350 = vmatpush1.msra.mxu0 0.0
    %7351 = vmatprep.subr.mxu0 0.0
    %7352 = vmatpush1.msra.mxu0 0.0
    %7353 = vmatprep.subr.mxu0 0.0
    %7354 = vmatpush1.msra.mxu0 0.0
    %7355 = vmatprep.subr.mxu0 0.0
    %7356 = vmatpush1.msra.mxu0 0.0
    %7357 = vmatprep.subr.mxu0 0.0
    %7358 = vmatpush1.msra.mxu0 0.0
    %7359 = vmatprep.subr.mxu0 0.0
    %7360 = vmatpush1.msra.mxu0 0.0
    %7361 = vmatprep.subr.mxu0 0.0
    %7362 = vmatpush1.msra.mxu0 0.0
    %7363 = vmatprep.subr.mxu0 0.0
    %7364 = vmatpush1.msra.mxu0 0.0
    %7365 = vmatprep.subr.mxu0 0.0
    %7366 = vmatpush1.msra.mxu0 0.0
    %7367 = vmatprep.subr.mxu0 0.0
    %7368 = vmatpush1.msra.mxu0 0.0
    %7369 = vmatprep.subr.mxu0 0.0
    %7370 = vmatpush1.msra.mxu0 0.0
    %7371 = vmatprep.subr.mxu0 0.0
    %7372 = vmatpush1.msra.mxu0 0.0
    %7373 = vmatprep.subr.mxu0 0.0
    %7374 = vmatpush1.msra.mxu0 0.0
    %7375 = vmatprep.subr.mxu0 0.0
    %7376 = vmatpush1.msra.mxu0 0.0
    %7377 = vmatprep.subr.mxu0 0.0
    %7378 = vmatpush1.msra.mxu0 0.0
    %7379 = vmatprep.subr.mxu0 0.0
    %7380 = vmatpush1.msra.mxu0 0.0
    %7381 = vmatprep.subr.mxu0 0.0
    %7382 = vmatpush1.msra.mxu0 0.0
    %7383 = vmatprep.subr.mxu0 0.0
    %7384 = vmatpush1.msra.mxu0 0.0
    %7385 = vmatprep.mubr.f32.mxu0 0.0
    %v7386 = vand.u32 %v7311, 4294901760
    %v7387 = vsub.f32 %v7311, %v7386
    %v7388 = vand.u32 %v7387, 4294901760
    %v7389 = vsub.f32 %v7387, %v7388
    %v7390 = vand.u32 %v7389, 4294901760
    %7391 = vmatmul.mubr.f32.gmra.mrb[0].mxu0 %v7390
    %v7392 = vpop.f32.mrb[0].mxu0
    %v7393 = vadd.f32 0.0, %v7392
    %v7394 = vpop.f32.mrb[0].mxu0
    %v7395 = vadd.f32 0.0, %v7394
    %7396 = vdwg.mxu0
    %v7397 = vand.u32 %v5087, 4294901760
    %v7398 = vsub.f32 %v5087, %v7397
    %v7399 = vand.u32 %v7398, 4294901760
    %v7400 = vsub.f32 %v7398, %v7399
    %v7401 = vand.u32 %v7400, 4294901760
    %7402 = vmatprep.subr.mxu0 %v7401
    %v7403 = vand.u32 %v5086, 4294901760
    %v7404 = vsub.f32 %v5086, %v7403
    %v7405 = vand.u32 %v7404, 4294901760
    %v7406 = vsub.f32 %v7404, %v7405
    %v7407 = vand.u32 %v7406, 4294901760
    %7408 = vmatpush1.msra.mxu0 %v7407
    %v7409 = vand.u32 %v5091, 4294901760
    %v7410 = vsub.f32 %v5091, %v7409
    %v7411 = vand.u32 %v7410, 4294901760
    %v7412 = vsub.f32 %v7410, %v7411
    %v7413 = vand.u32 %v7412, 4294901760
    %7414 = vmatprep.subr.mxu0 %v7413
    %v7415 = vand.u32 %v5090, 4294901760
    %v7416 = vsub.f32 %v5090, %v7415
    %v7417 = vand.u32 %v7416, 4294901760
    %v7418 = vsub.f32 %v7416, %v7417
    %v7419 = vand.u32 %v7418, 4294901760
    %7420 = vmatpush1.msra.mxu0 %v7419
    %v7421 = vand.u32 %v5095, 4294901760
    %v7422 = vsub.f32 %v5095, %v7421
    %v7423 = vand.u32 %v7422, 4294901760
    %v7424 = vsub.f32 %v7422, %v7423
    %v7425 = vand.u32 %v7424, 4294901760
    %7426 = vmatprep.subr.mxu0 %v7425
    %v7427 = vand.u32 %v5094, 4294901760
    %v7428 = vsub.f32 %v5094, %v7427
    %v7429 = vand.u32 %v7428, 4294901760
    %v7430 = vsub.f32 %v7428, %v7429
    %v7431 = vand.u32 %v7430, 4294901760
    %7432 = vmatpush1.msra.mxu0 %v7431
    %v7433 = vand.u32 %v5099, 4294901760
    %v7434 = vsub.f32 %v5099, %v7433
    %v7435 = vand.u32 %v7434, 4294901760
    %v7436 = vsub.f32 %v7434, %v7435
    %v7437 = vand.u32 %v7436, 4294901760
    %7438 = vmatprep.subr.mxu0 %v7437
    %v7439 = vand.u32 %v5098, 4294901760
    %v7440 = vsub.f32 %v5098, %v7439
    %v7441 = vand.u32 %v7440, 4294901760
    %v7442 = vsub.f32 %v7440, %v7441
    %v7443 = vand.u32 %v7442, 4294901760
    %7444 = vmatpush1.msra.mxu0 %v7443
    %7445 = vmatprep.subr.mxu0 0.0
    %7446 = vmatpush1.msra.mxu0 0.0
    %7447 = vmatprep.subr.mxu0 0.0
    %7448 = vmatpush1.msra.mxu0 0.0
    %7449 = vmatprep.subr.mxu0 0.0
    %7450 = vmatpush1.msra.mxu0 0.0
    %7451 = vmatprep.subr.mxu0 0.0
    %7452 = vmatpush1.msra.mxu0 0.0
    %7453 = vmatprep.subr.mxu0 0.0
    %7454 = vmatpush1.msra.mxu0 0.0
    %7455 = vmatprep.subr.mxu0 0.0
    %7456 = vmatpush1.msra.mxu0 0.0
    %7457 = vmatprep.subr.mxu0 0.0
    %7458 = vmatpush1.msra.mxu0 0.0
    %7459 = vmatprep.subr.mxu0 0.0
    %7460 = vmatpush1.msra.mxu0 0.0
    %7461 = vmatprep.subr.mxu0 0.0
    %7462 = vmatpush1.msra.mxu0 0.0
    %7463 = vmatprep.subr.mxu0 0.0
    %7464 = vmatpush1.msra.mxu0 0.0
    %7465 = vmatprep.subr.mxu0 0.0
    %7466 = vmatpush1.msra.mxu0 0.0
    %7467 = vmatprep.subr.mxu0 0.0
    %7468 = vmatpush1.msra.mxu0 0.0
    %7469 = vmatprep.subr.mxu0 0.0
    %7470 = vmatpush1.msra.mxu0 0.0
    %7471 = vmatprep.subr.mxu0 0.0
    %7472 = vmatpush1.msra.mxu0 0.0
    %7473 = vmatprep.subr.mxu0 0.0
    %7474 = vmatpush1.msra.mxu0 0.0
    %7475 = vmatprep.subr.mxu0 0.0
    %7476 = vmatpush1.msra.mxu0 0.0
    %7477 = vmatprep.subr.mxu0 0.0
    %7478 = vmatpush1.msra.mxu0 0.0
    %7479 = vmatprep.subr.mxu0 0.0
    %7480 = vmatpush1.msra.mxu0 0.0
    %7481 = vmatprep.subr.mxu0 0.0
    %7482 = vmatpush1.msra.mxu0 0.0
    %7483 = vmatprep.subr.mxu0 0.0
    %7484 = vmatpush1.msra.mxu0 0.0
    %7485 = vmatprep.subr.mxu0 0.0
    %7486 = vmatpush1.msra.mxu0 0.0
    %7487 = vmatprep.subr.mxu0 0.0
    %7488 = vmatpush1.msra.mxu0 0.0
    %7489 = vmatprep.subr.mxu0 0.0
    %7490 = vmatpush1.msra.mxu0 0.0
    %7491 = vmatprep.subr.mxu0 0.0
    %7492 = vmatpush1.msra.mxu0 0.0
    %7493 = vmatprep.subr.mxu0 0.0
    %7494 = vmatpush1.msra.mxu0 0.0
    %7495 = vmatprep.subr.mxu0 0.0
    %7496 = vmatpush1.msra.mxu0 0.0
    %7497 = vmatprep.subr.mxu0 0.0
    %7498 = vmatpush1.msra.mxu0 0.0
    %7499 = vmatprep.subr.mxu0 0.0
    %7500 = vmatpush1.msra.mxu0 0.0
    %7501 = vmatprep.mubr.f32.mxu0 0.0
    %v7502 = vand.u32 %v7311, 4294901760
    %7503 = vmatmul.mubr.f32.gmra.mrb[0].mxu0 %v7502
    %v7504 = vpop.f32.mrb[0].mxu0
    %v7505 = vadd.f32 %v7393, %v7504
    %v7506 = vpop.f32.mrb[0].mxu0
    %v7507 = vadd.f32 %v7395, %v7506
    %7508 = vdwg.mxu0
    %v7509 = vand.u32 %v5087, 4294901760
    %v7510 = vsub.f32 %v5087, %v7509
    %7511 = vmatprep.subr.mxu0 %v7510
    %v7512 = vand.u32 %v5086, 4294901760
    %v7513 = vsub.f32 %v5086, %v7512
    %7514 = vmatpush1.msra.mxu0 %v7513
    %v7515 = vand.u32 %v5091, 4294901760
    %v7516 = vsub.f32 %v5091, %v7515
    %7517 = vmatprep.subr.mxu0 %v7516
    %v7518 = vand.u32 %v5090, 4294901760
    %v7519 = vsub.f32 %v5090, %v7518
    %7520 = vmatpush1.msra.mxu0 %v7519
    %v7521 = vand.u32 %v5095, 4294901760
    %v7522 = vsub.f32 %v5095, %v7521
    %7523 = vmatprep.subr.mxu0 %v7522
    %v7524 = vand.u32 %v5094, 4294901760
    %v7525 = vsub.f32 %v5094, %v7524
    %7526 = vmatpush1.msra.mxu0 %v7525
    %v7527 = vand.u32 %v5099, 4294901760
    %v7528 = vsub.f32 %v5099, %v7527
    %7529 = vmatprep.subr.mxu0 %v7528
    %v7530 = vand.u32 %v5098, 4294901760
    %v7531 = vsub.f32 %v5098, %v7530
    %7532 = vmatpush1.msra.mxu0 %v7531
    %7533 = vmatprep.subr.mxu0 0.0
    %7534 = vmatpush1.msra.mxu0 0.0
    %7535 = vmatprep.subr.mxu0 0.0
    %7536 = vmatpush1.msra.mxu0 0.0
    %7537 = vmatprep.subr.mxu0 0.0
    %7538 = vmatpush1.msra.mxu0 0.0
    %7539 = vmatprep.subr.mxu0 0.0
    %7540 = vmatpush1.msra.mxu0 0.0
    %7541 = vmatprep.subr.mxu0 0.0
    %7542 = vmatpush1.msra.mxu0 0.0
    %7543 = vmatprep.subr.mxu0 0.0
    %7544 = vmatpush1.msra.mxu0 0.0
    %7545 = vmatprep.subr.mxu0 0.0
    %7546 = vmatpush1.msra.mxu0 0.0
    %7547 = vmatprep.subr.mxu0 0.0
    %7548 = vmatpush1.msra.mxu0 0.0
    %7549 = vmatprep.subr.mxu0 0.0
    %7550 = vmatpush1.msra.mxu0 0.0
    %7551 = vmatprep.subr.mxu0 0.0
    %7552 = vmatpush1.msra.mxu0 0.0
    %7553 = vmatprep.subr.mxu0 0.0
    %7554 = vmatpush1.msra.mxu0 0.0
    %7555 = vmatprep.subr.mxu0 0.0
    %7556 = vmatpush1.msra.mxu0 0.0
    %7557 = vmatprep.subr.mxu0 0.0
    %7558 = vmatpush1.msra.mxu0 0.0
    %7559 = vmatprep.subr.mxu0 0.0
    %7560 = vmatpush1.msra.mxu0 0.0
    %7561 = vmatprep.subr.mxu0 0.0
    %7562 = vmatpush1.msra.mxu0 0.0
    %7563 = vmatprep.subr.mxu0 0.0
    %7564 = vmatpush1.msra.mxu0 0.0
    %7565 = vmatprep.subr.mxu0 0.0
    %7566 = vmatpush1.msra.mxu0 0.0
    %7567 = vmatprep.subr.mxu0 0.0
    %7568 = vmatpush1.msra.mxu0 0.0
    %7569 = vmatprep.subr.mxu0 0.0
    %7570 = vmatpush1.msra.mxu0 0.0
    %7571 = vmatprep.subr.mxu0 0.0
    %7572 = vmatpush1.msra.mxu0 0.0
    %7573 = vmatprep.subr.mxu0 0.0
    %7574 = vmatpush1.msra.mxu0 0.0
    %7575 = vmatprep.subr.mxu0 0.0
    %7576 = vmatpush1.msra.mxu0 0.0
    %7577 = vmatprep.subr.mxu0 0.0
    %7578 = vmatpush1.msra.mxu0 0.0
    %7579 = vmatprep.subr.mxu0 0.0
    %7580 = vmatpush1.msra.mxu0 0.0
    %7581 = vmatprep.subr.mxu0 0.0
    %7582 = vmatpush1.msra.mxu0 0.0
    %7583 = vmatprep.subr.mxu0 0.0
    %7584 = vmatpush1.msra.mxu0 0.0
    %7585 = vmatprep.subr.mxu0 0.0
    %7586 = vmatpush1.msra.mxu0 0.0
    %7587 = vmatprep.subr.mxu0 0.0
    %7588 = vmatpush1.msra.mxu0 0.0
    %7589 = vmatprep.mubr.f32.mxu0 0.0
    %v7590 = vand.u32 %v7311, 4294901760
    %v7591 = vsub.f32 %v7311, %v7590
    %7592 = vmatmul.mubr.f32.gmra.mrb[0].mxu0 %v7591
    %v7593 = vpop.f32.mrb[0].mxu0
    %v7594 = vadd.f32 %v7505, %v7593
    %v7595 = vpop.f32.mrb[0].mxu0
    %v7596 = vadd.f32 %v7507, %v7595
    %7597 = vdwg.mxu0
    %v7598 = vand.u32 %v5087, 4294901760
    %7599 = vmatprep.subr.mxu0 %v7598
    %v7600 = vand.u32 %v5086, 4294901760
    %7601 = vmatpush1.msra.mxu0 %v7600
    %v7602 = vand.u32 %v5091, 4294901760
    %7603 = vmatprep.subr.mxu0 %v7602
    %v7604 = vand.u32 %v5090, 4294901760
    %7605 = vmatpush1.msra.mxu0 %v7604
    %v7606 = vand.u32 %v5095, 4294901760
    %7607 = vmatprep.subr.mxu0 %v7606
    %v7608 = vand.u32 %v5094, 4294901760
    %7609 = vmatpush1.msra.mxu0 %v7608
    %v7610 = vand.u32 %v5099, 4294901760
    %7611 = vmatprep.subr.mxu0 %v7610
    %v7612 = vand.u32 %v5098, 4294901760
    %7613 = vmatpush1.msra.mxu0 %v7612
    %7614 = vmatprep.subr.mxu0 0.0
    %7615 = vmatpush1.msra.mxu0 0.0
    %7616 = vmatprep.subr.mxu0 0.0
    %7617 = vmatpush1.msra.mxu0 0.0
    %7618 = vmatprep.subr.mxu0 0.0
    %7619 = vmatpush1.msra.mxu0 0.0
    %7620 = vmatprep.subr.mxu0 0.0
    %7621 = vmatpush1.msra.mxu0 0.0
    %7622 = vmatprep.subr.mxu0 0.0
    %7623 = vmatpush1.msra.mxu0 0.0
    %7624 = vmatprep.subr.mxu0 0.0
    %7625 = vmatpush1.msra.mxu0 0.0
    %7626 = vmatprep.subr.mxu0 0.0
    %7627 = vmatpush1.msra.mxu0 0.0
    %7628 = vmatprep.subr.mxu0 0.0
    %7629 = vmatpush1.msra.mxu0 0.0
    %7630 = vmatprep.subr.mxu0 0.0
    %7631 = vmatpush1.msra.mxu0 0.0
    %7632 = vmatprep.subr.mxu0 0.0
    %7633 = vmatpush1.msra.mxu0 0.0
    %7634 = vmatprep.subr.mxu0 0.0
    %7635 = vmatpush1.msra.mxu0 0.0
    %7636 = vmatprep.subr.mxu0 0.0
    %7637 = vmatpush1.msra.mxu0 0.0
    %7638 = vmatprep.subr.mxu0 0.0
    %7639 = vmatpush1.msra.mxu0 0.0
    %7640 = vmatprep.subr.mxu0 0.0
    %7641 = vmatpush1.msra.mxu0 0.0
    %7642 = vmatprep.subr.mxu0 0.0
    %7643 = vmatpush1.msra.mxu0 0.0
    %7644 = vmatprep.subr.mxu0 0.0
    %7645 = vmatpush1.msra.mxu0 0.0
    %7646 = vmatprep.subr.mxu0 0.0
    %7647 = vmatpush1.msra.mxu0 0.0
    %7648 = vmatprep.subr.mxu0 0.0
    %7649 = vmatpush1.msra.mxu0 0.0
    %7650 = vmatprep.subr.mxu0 0.0
    %7651 = vmatpush1.msra.mxu0 0.0
    %7652 = vmatprep.subr.mxu0 0.0
    %7653 = vmatpush1.msra.mxu0 0.0
    %7654 = vmatprep.subr.mxu0 0.0
    %7655 = vmatpush1.msra.mxu0 0.0
    %7656 = vmatprep.subr.mxu0 0.0
    %7657 = vmatpush1.msra.mxu0 0.0
    %7658 = vmatprep.subr.mxu0 0.0
    %7659 = vmatpush1.msra.mxu0 0.0
    %7660 = vmatprep.subr.mxu0 0.0
    %7661 = vmatpush1.msra.mxu0 0.0
    %7662 = vmatprep.subr.mxu0 0.0
    %7663 = vmatpush1.msra.mxu0 0.0
    %7664 = vmatprep.subr.mxu0 0.0
    %7665 = vmatpush1.msra.mxu0 0.0
    %7666 = vmatprep.subr.mxu0 0.0
    %7667 = vmatpush1.msra.mxu0 0.0
    %7668 = vmatprep.subr.mxu0 0.0
    %7669 = vmatpush1.msra.mxu0 0.0
    %7670 = vmatprep.mubr.f32.mxu0 0.0
    %v7671 = vand.u32 %v7311, 4294901760
    %v7672 = vsub.f32 %v7311, %v7671
    %v7673 = vand.u32 %v7672, 4294901760
    %7674 = vmatmul.mubr.f32.gmra.mrb[0].mxu0 %v7673
    %v7675 = vpop.f32.mrb[0].mxu0
    %v7676 = vadd.f32 %v7594, %v7675
    %v7677 = vpop.f32.mrb[0].mxu0
    %v7678 = vadd.f32 %v7596, %v7677
    %7679 = vdwg.mxu0
    %v7680 = vand.u32 %v5087, 4294901760
    %v7681 = vsub.f32 %v5087, %v7680
    %v7682 = vand.u32 %v7681, 4294901760
    %7683 = vmatprep.subr.mxu0 %v7682
    %v7684 = vand.u32 %v5086, 4294901760
    %v7685 = vsub.f32 %v5086, %v7684
    %v7686 = vand.u32 %v7685, 4294901760
    %7687 = vmatpush1.msra.mxu0 %v7686
    %v7688 = vand.u32 %v5091, 4294901760
    %v7689 = vsub.f32 %v5091, %v7688
    %v7690 = vand.u32 %v7689, 4294901760
    %7691 = vmatprep.subr.mxu0 %v7690
    %v7692 = vand.u32 %v5090, 4294901760
    %v7693 = vsub.f32 %v5090, %v7692
    %v7694 = vand.u32 %v7693, 4294901760
    %7695 = vmatpush1.msra.mxu0 %v7694
    %v7696 = vand.u32 %v5095, 4294901760
    %v7697 = vsub.f32 %v5095, %v7696
    %v7698 = vand.u32 %v7697, 4294901760
    %7699 = vmatprep.subr.mxu0 %v7698
    %v7700 = vand.u32 %v5094, 4294901760
    %v7701 = vsub.f32 %v5094, %v7700
    %v7702 = vand.u32 %v7701, 4294901760
    %7703 = vmatpush1.msra.mxu0 %v7702
    %v7704 = vand.u32 %v5099, 4294901760
    %v7705 = vsub.f32 %v5099, %v7704
    %v7706 = vand.u32 %v7705, 4294901760
    %7707 = vmatprep.subr.mxu0 %v7706
    %v7708 = vand.u32 %v5098, 4294901760
    %v7709 = vsub.f32 %v5098, %v7708
    %v7710 = vand.u32 %v7709, 4294901760
    %7711 = vmatpush1.msra.mxu0 %v7710
    %7712 = vmatprep.subr.mxu0 0.0
    %7713 = vmatpush1.msra.mxu0 0.0
    %7714 = vmatprep.subr.mxu0 0.0
    %7715 = vmatpush1.msra.mxu0 0.0
    %7716 = vmatprep.subr.mxu0 0.0
    %7717 = vmatpush1.msra.mxu0 0.0
    %7718 = vmatprep.subr.mxu0 0.0
    %7719 = vmatpush1.msra.mxu0 0.0
    %7720 = vmatprep.subr.mxu0 0.0
    %7721 = vmatpush1.msra.mxu0 0.0
    %7722 = vmatprep.subr.mxu0 0.0
    %7723 = vmatpush1.msra.mxu0 0.0
    %7724 = vmatprep.subr.mxu0 0.0
    %7725 = vmatpush1.msra.mxu0 0.0
    %7726 = vmatprep.subr.mxu0 0.0
    %7727 = vmatpush1.msra.mxu0 0.0
    %7728 = vmatprep.subr.mxu0 0.0
    %7729 = vmatpush1.msra.mxu0 0.0
    %7730 = vmatprep.subr.mxu0 0.0
    %7731 = vmatpush1.msra.mxu0 0.0
    %7732 = vmatprep.subr.mxu0 0.0
    %7733 = vmatpush1.msra.mxu0 0.0
    %7734 = vmatprep.subr.mxu0 0.0
    %7735 = vmatpush1.msra.mxu0 0.0
    %7736 = vmatprep.subr.mxu0 0.0
    %7737 = vmatpush1.msra.mxu0 0.0
    %7738 = vmatprep.subr.mxu0 0.0
    %7739 = vmatpush1.msra.mxu0 0.0
    %7740 = vmatprep.subr.mxu0 0.0
    %7741 = vmatpush1.msra.mxu0 0.0
    %7742 = vmatprep.subr.mxu0 0.0
    %7743 = vmatpush1.msra.mxu0 0.0
    %7744 = vmatprep.subr.mxu0 0.0
    %7745 = vmatpush1.msra.mxu0 0.0
    %7746 = vmatprep.subr.mxu0 0.0
    %7747 = vmatpush1.msra.mxu0 0.0
    %7748 = vmatprep.subr.mxu0 0.0
    %7749 = vmatpush1.msra.mxu0 0.0
    %7750 = vmatprep.subr.mxu0 0.0
    %7751 = vmatpush1.msra.mxu0 0.0
    %7752 = vmatprep.subr.mxu0 0.0
    %7753 = vmatpush1.msra.mxu0 0.0
    %7754 = vmatprep.subr.mxu0 0.0
    %7755 = vmatpush1.msra.mxu0 0.0
    %7756 = vmatprep.subr.mxu0 0.0
    %7757 = vmatpush1.msra.mxu0 0.0
    %7758 = vmatprep.subr.mxu0 0.0
    %7759 = vmatpush1.msra.mxu0 0.0
    %7760 = vmatprep.subr.mxu0 0.0
    %7761 = vmatpush1.msra.mxu0 0.0
    %7762 = vmatprep.subr.mxu0 0.0
    %7763 = vmatpush1.msra.mxu0 0.0
    %7764 = vmatprep.subr.mxu0 0.0
    %7765 = vmatpush1.msra.mxu0 0.0
    %7766 = vmatprep.subr.mxu0 0.0
    %7767 = vmatpush1.msra.mxu0 0.0
    %7768 = vmatprep.mubr.f32.mxu0 0.0
    %v7769 = vand.u32 %v7311, 4294901760
    %7770 = vmatmul.mubr.f32.gmra.mrb[0].mxu0 %v7769
    %v7771 = vpop.f32.mrb[0].mxu0
    %v7772 = vadd.f32 %v7676, %v7771
    %v7773 = vpop.f32.mrb[0].mxu0
    %v7774 = vadd.f32 %v7678, %v7773
    %7775 = vdwg.mxu0
    %v7776 = vand.u32 %v5087, 4294901760
    %7777 = vmatprep.subr.mxu0 %v7776
    %v7778 = vand.u32 %v5086, 4294901760
    %7779 = vmatpush1.msra.mxu0 %v7778
    %v7780 = vand.u32 %v5091, 4294901760
    %7781 = vmatprep.subr.mxu0 %v7780
    %v7782 = vand.u32 %v5090, 4294901760
    %7783 = vmatpush1.msra.mxu0 %v7782
    %v7784 = vand.u32 %v5095, 4294901760
    %7785 = vmatprep.subr.mxu0 %v7784
    %v7786 = vand.u32 %v5094, 4294901760
    %7787 = vmatpush1.msra.mxu0 %v7786
    %v7788 = vand.u32 %v5099, 4294901760
    %7789 = vmatprep.subr.mxu0 %v7788
    %v7790 = vand.u32 %v5098, 4294901760
    %7791 = vmatpush1.msra.mxu0 %v7790
    %7792 = vmatprep.subr.mxu0 0.0
    %7793 = vmatpush1.msra.mxu0 0.0
    %7794 = vmatprep.subr.mxu0 0.0
    %7795 = vmatpush1.msra.mxu0 0.0
    %7796 = vmatprep.subr.mxu0 0.0
    %7797 = vmatpush1.msra.mxu0 0.0
    %7798 = vmatprep.subr.mxu0 0.0
    %7799 = vmatpush1.msra.mxu0 0.0
    %7800 = vmatprep.subr.mxu0 0.0
    %7801 = vmatpush1.msra.mxu0 0.0
    %7802 = vmatprep.subr.mxu0 0.0
    %7803 = vmatpush1.msra.mxu0 0.0
    %7804 = vmatprep.subr.mxu0 0.0
    %7805 = vmatpush1.msra.mxu0 0.0
    %7806 = vmatprep.subr.mxu0 0.0
    %7807 = vmatpush1.msra.mxu0 0.0
    %7808 = vmatprep.subr.mxu0 0.0
    %7809 = vmatpush1.msra.mxu0 0.0
    %7810 = vmatprep.subr.mxu0 0.0
    %7811 = vmatpush1.msra.mxu0 0.0
    %7812 = vmatprep.subr.mxu0 0.0
    %7813 = vmatpush1.msra.mxu0 0.0
    %7814 = vmatprep.subr.mxu0 0.0
    %7815 = vmatpush1.msra.mxu0 0.0
    %7816 = vmatprep.subr.mxu0 0.0
    %7817 = vmatpush1.msra.mxu0 0.0
    %7818 = vmatprep.subr.mxu0 0.0
    %7819 = vmatpush1.msra.mxu0 0.0
    %7820 = vmatprep.subr.mxu0 0.0
    %7821 = vmatpush1.msra.mxu0 0.0
    %7822 = vmatprep.subr.mxu0 0.0
    %7823 = vmatpush1.msra.mxu0 0.0
    %7824 = vmatprep.subr.mxu0 0.0
    %7825 = vmatpush1.msra.mxu0 0.0
    %7826 = vmatprep.subr.mxu0 0.0
    %7827 = vmatpush1.msra.mxu0 0.0
    %7828 = vmatprep.subr.mxu0 0.0
    %7829 = vmatpush1.msra.mxu0 0.0
    %7830 = vmatprep.subr.mxu0 0.0
    %7831 = vmatpush1.msra.mxu0 0.0
    %7832 = vmatprep.subr.mxu0 0.0
    %7833 = vmatpush1.msra.mxu0 0.0
    %7834 = vmatprep.subr.mxu0 0.0
    %7835 = vmatpush1.msra.mxu0 0.0
    %7836 = vmatprep.subr.mxu0 0.0
    %7837 = vmatpush1.msra.mxu0 0.0
    %7838 = vmatprep.subr.mxu0 0.0
    %7839 = vmatpush1.msra.mxu0 0.0
    %7840 = vmatprep.subr.mxu0 0.0
    %7841 = vmatpush1.msra.mxu0 0.0
    %7842 = vmatprep.subr.mxu0 0.0
    %7843 = vmatpush1.msra.mxu0 0.0
    %7844 = vmatprep.subr.mxu0 0.0
    %7845 = vmatpush1.msra.mxu0 0.0
    %7846 = vmatprep.subr.mxu0 0.0
    %7847 = vmatpush1.msra.mxu0 0.0
    %7848 = vmatprep.mubr.f32.mxu0 0.0
    %v7849 = vand.u32 %v7311, 4294901760
    %7850 = vmatmul.mubr.f32.gmra.mrb[0].mxu0 %v7849
    %v7851 = vpop.f32.mrb[0].mxu0
    %v7852 = vadd.f32 %v7772, %v7851
    %v7853 = vpop.f32.mrb[0].mxu0
    %v7854 = vadd.f32 %v7774, %v7853
    %7855 = vdwg.mxu0
    %v7856 = vand.u32 %v5089, 4294901760
    %7857 = vmatprep.subr.mxu0 %v7856
    %v7858 = vand.u32 %v5088, 4294901760
    %7859 = vmatpush1.msra.mxu0 %v7858
    %v7860 = vand.u32 %v5093, 4294901760
    %7861 = vmatprep.subr.mxu0 %v7860
    %v7862 = vand.u32 %v5092, 4294901760
    %7863 = vmatpush1.msra.mxu0 %v7862
    %v7864 = vand.u32 %v5097, 4294901760
    %7865 = vmatprep.subr.mxu0 %v7864
    %v7866 = vand.u32 %v5096, 4294901760
    %7867 = vmatpush1.msra.mxu0 %v7866
    %v7868 = vand.u32 %v5101, 4294901760
    %7869 = vmatprep.subr.mxu0 %v7868
    %v7870 = vand.u32 %v5100, 4294901760
    %7871 = vmatpush1.msra.mxu0 %v7870
    %7872 = vmatprep.subr.mxu0 0.0
    %7873 = vmatpush1.msra.mxu0 0.0
    %7874 = vmatprep.subr.mxu0 0.0
    %7875 = vmatpush1.msra.mxu0 0.0
    %7876 = vmatprep.subr.mxu0 0.0
    %7877 = vmatpush1.msra.mxu0 0.0
    %7878 = vmatprep.subr.mxu0 0.0
    %7879 = vmatpush1.msra.mxu0 0.0
    %7880 = vmatprep.subr.mxu0 0.0
    %7881 = vmatpush1.msra.mxu0 0.0
    %7882 = vmatprep.subr.mxu0 0.0
    %7883 = vmatpush1.msra.mxu0 0.0
    %7884 = vmatprep.subr.mxu0 0.0
    %7885 = vmatpush1.msra.mxu0 0.0
    %7886 = vmatprep.subr.mxu0 0.0
    %7887 = vmatpush1.msra.mxu0 0.0
    %7888 = vmatprep.subr.mxu0 0.0
    %7889 = vmatpush1.msra.mxu0 0.0
    %7890 = vmatprep.subr.mxu0 0.0
    %7891 = vmatpush1.msra.mxu0 0.0
    %7892 = vmatprep.subr.mxu0 0.0
    %7893 = vmatpush1.msra.mxu0 0.0
    %7894 = vmatprep.subr.mxu0 0.0
    %7895 = vmatpush1.msra.mxu0 0.0
    %7896 = vmatprep.subr.mxu0 0.0
    %7897 = vmatpush1.msra.mxu0 0.0
    %7898 = vmatprep.subr.mxu0 0.0
    %7899 = vmatpush1.msra.mxu0 0.0
    %7900 = vmatprep.subr.mxu0 0.0
    %7901 = vmatpush1.msra.mxu0 0.0
    %7902 = vmatprep.subr.mxu0 0.0
    %7903 = vmatpush1.msra.mxu0 0.0
    %7904 = vmatprep.subr.mxu0 0.0
    %7905 = vmatpush1.msra.mxu0 0.0
    %7906 = vmatprep.subr.mxu0 0.0
    %7907 = vmatpush1.msra.mxu0 0.0
    %7908 = vmatprep.subr.mxu0 0.0
    %7909 = vmatpush1.msra.mxu0 0.0
    %7910 = vmatprep.subr.mxu0 0.0
    %7911 = vmatpush1.msra.mxu0 0.0
    %7912 = vmatprep.subr.mxu0 0.0
    %7913 = vmatpush1.msra.mxu0 0.0
    %7914 = vmatprep.subr.mxu0 0.0
    %7915 = vmatpush1.msra.mxu0 0.0
    %7916 = vmatprep.subr.mxu0 0.0
    %7917 = vmatpush1.msra.mxu0 0.0
    %7918 = vmatprep.subr.mxu0 0.0
    %7919 = vmatpush1.msra.mxu0 0.0
    %7920 = vmatprep.subr.mxu0 0.0
    %7921 = vmatpush1.msra.mxu0 0.0
    %7922 = vmatprep.subr.mxu0 0.0
    %7923 = vmatpush1.msra.mxu0 0.0
    %7924 = vmatprep.subr.mxu0 0.0
    %7925 = vmatpush1.msra.mxu0 0.0
    %7926 = vmatprep.subr.mxu0 0.0
    %7927 = vmatpush1.msra.mxu0 0.0
    %7928 = vmatprep.mubr.f32.mxu0 0.0
    %v7929 = vand.u32 %v7311, 4294901760
    %v7930 = vsub.f32 %v7311, %v7929
    %v7931 = vand.u32 %v7930, 4294901760
    %v7932 = vsub.f32 %v7930, %v7931
    %v7933 = vand.u32 %v7932, 4294901760
    %7934 = vmatmul.mubr.f32.gmra.mrb[0].mxu0 %v7933
    %v7935 = vpop.f32.mrb[0].mxu0
    %v7936 = vadd.f32 0.0, %v7935
    %v7937 = vpop.f32.mrb[0].mxu0
    %v7938 = vadd.f32 0.0, %v7937
    %7939 = vdwg.mxu0
    %v7940 = vand.u32 %v5089, 4294901760
    %v7941 = vsub.f32 %v5089, %v7940
    %v7942 = vand.u32 %v7941, 4294901760
    %v7943 = vsub.f32 %v7941, %v7942
    %v7944 = vand.u32 %v7943, 4294901760
    %7945 = vmatprep.subr.mxu0 %v7944
    %v7946 = vand.u32 %v5088, 4294901760
    %v7947 = vsub.f32 %v5088, %v7946
    %v7948 = vand.u32 %v7947, 4294901760
    %v7949 = vsub.f32 %v7947, %v7948
    %v7950 = vand.u32 %v7949, 4294901760
    %7951 = vmatpush1.msra.mxu0 %v7950
    %v7952 = vand.u32 %v5093, 4294901760
    %v7953 = vsub.f32 %v5093, %v7952
    %v7954 = vand.u32 %v7953, 4294901760
    %v7955 = vsub.f32 %v7953, %v7954
    %v7956 = vand.u32 %v7955, 4294901760
    %7957 = vmatprep.subr.mxu0 %v7956
    %v7958 = vand.u32 %v5092, 4294901760
    %v7959 = vsub.f32 %v5092, %v7958
    %v7960 = vand.u32 %v7959, 4294901760
    %v7961 = vsub.f32 %v7959, %v7960
    %v7962 = vand.u32 %v7961, 4294901760
    %7963 = vmatpush1.msra.mxu0 %v7962
    %v7964 = vand.u32 %v5097, 4294901760
    %v7965 = vsub.f32 %v5097, %v7964
    %v7966 = vand.u32 %v7965, 4294901760
    %v7967 = vsub.f32 %v7965, %v7966
    %v7968 = vand.u32 %v7967, 4294901760
    %7969 = vmatprep.subr.mxu0 %v7968
    %v7970 = vand.u32 %v5096, 4294901760
    %v7971 = vsub.f32 %v5096, %v7970
    %v7972 = vand.u32 %v7971, 4294901760
    %v7973 = vsub.f32 %v7971, %v7972
    %v7974 = vand.u32 %v7973, 4294901760
    %7975 = vmatpush1.msra.mxu0 %v7974
    %v7976 = vand.u32 %v5101, 4294901760
    %v7977 = vsub.f32 %v5101, %v7976
    %v7978 = vand.u32 %v7977, 4294901760
    %v7979 = vsub.f32 %v7977, %v7978
    %v7980 = vand.u32 %v7979, 4294901760
    %7981 = vmatprep.subr.mxu0 %v7980
    %v7982 = vand.u32 %v5100, 4294901760
    %v7983 = vsub.f32 %v5100, %v7982
    %v7984 = vand.u32 %v7983, 4294901760
    %v7985 = vsub.f32 %v7983, %v7984
    %v7986 = vand.u32 %v7985, 4294901760
    %7987 = vmatpush1.msra.mxu0 %v7986
    %7988 = vmatprep.subr.mxu0 0.0
    %7989 = vmatpush1.msra.mxu0 0.0
    %7990 = vmatprep.subr.mxu0 0.0
    %7991 = vmatpush1.msra.mxu0 0.0
    %7992 = vmatprep.subr.mxu0 0.0
    %7993 = vmatpush1.msra.mxu0 0.0
    %7994 = vmatprep.subr.mxu0 0.0
    %7995 = vmatpush1.msra.mxu0 0.0
    %7996 = vmatprep.subr.mxu0 0.0
    %7997 = vmatpush1.msra.mxu0 0.0
    %7998 = vmatprep.subr.mxu0 0.0
    %7999 = vmatpush1.msra.mxu0 0.0
    %8000 = vmatprep.subr.mxu0 0.0
    %8001 = vmatpush1.msra.mxu0 0.0
    %8002 = vmatprep.subr.mxu0 0.0
    %8003 = vmatpush1.msra.mxu0 0.0
    %8004 = vmatprep.subr.mxu0 0.0
    %8005 = vmatpush1.msra.mxu0 0.0
    %8006 = vmatprep.subr.mxu0 0.0
    %8007 = vmatpush1.msra.mxu0 0.0
    %8008 = vmatprep.subr.mxu0 0.0
    %8009 = vmatpush1.msra.mxu0 0.0
    %8010 = vmatprep.subr.mxu0 0.0
    %8011 = vmatpush1.msra.mxu0 0.0
    %8012 = vmatprep.subr.mxu0 0.0
    %8013 = vmatpush1.msra.mxu0 0.0
    %8014 = vmatprep.subr.mxu0 0.0
    %8015 = vmatpush1.msra.mxu0 0.0
    %8016 = vmatprep.subr.mxu0 0.0
    %8017 = vmatpush1.msra.mxu0 0.0
    %8018 = vmatprep.subr.mxu0 0.0
    %8019 = vmatpush1.msra.mxu0 0.0
    %8020 = vmatprep.subr.mxu0 0.0
    %8021 = vmatpush1.msra.mxu0 0.0
    %8022 = vmatprep.subr.mxu0 0.0
    %8023 = vmatpush1.msra.mxu0 0.0
    %8024 = vmatprep.subr.mxu0 0.0
    %8025 = vmatpush1.msra.mxu0 0.0
    %8026 = vmatprep.subr.mxu0 0.0
    %8027 = vmatpush1.msra.mxu0 0.0
    %8028 = vmatprep.subr.mxu0 0.0
    %8029 = vmatpush1.msra.mxu0 0.0
    %8030 = vmatprep.subr.mxu0 0.0
    %8031 = vmatpush1.msra.mxu0 0.0
    %8032 = vmatprep.subr.mxu0 0.0
    %8033 = vmatpush1.msra.mxu0 0.0
    %8034 = vmatprep.subr.mxu0 0.0
    %8035 = vmatpush1.msra.mxu0 0.0
    %8036 = vmatprep.subr.mxu0 0.0
    %8037 = vmatpush1.msra.mxu0 0.0
    %8038 = vmatprep.subr.mxu0 0.0
    %8039 = vmatpush1.msra.mxu0 0.0
    %8040 = vmatprep.subr.mxu0 0.0
    %8041 = vmatpush1.msra.mxu0 0.0
    %8042 = vmatprep.subr.mxu0 0.0
    %8043 = vmatpush1.msra.mxu0 0.0
    %8044 = vmatprep.mubr.f32.mxu0 0.0
    %v8045 = vand.u32 %v7311, 4294901760
    %8046 = vmatmul.mubr.f32.gmra.mrb[0].mxu0 %v8045
    %v8047 = vpop.f32.mrb[0].mxu0
    %v8048 = vadd.f32 %v7936, %v8047
    %v8049 = vpop.f32.mrb[0].mxu0
    %v8050 = vadd.f32 %v7938, %v8049
    %8051 = vdwg.mxu0
    %v8052 = vand.u32 %v5089, 4294901760
    %v8053 = vsub.f32 %v5089, %v8052
    %8054 = vmatprep.subr.mxu0 %v8053
    %v8055 = vand.u32 %v5088, 4294901760
    %v8056 = vsub.f32 %v5088, %v8055
    %8057 = vmatpush1.msra.mxu0 %v8056
    %v8058 = vand.u32 %v5093, 4294901760
    %v8059 = vsub.f32 %v5093, %v8058
    %8060 = vmatprep.subr.mxu0 %v8059
    %v8061 = vand.u32 %v5092, 4294901760
    %v8062 = vsub.f32 %v5092, %v8061
    %8063 = vmatpush1.msra.mxu0 %v8062
    %v8064 = vand.u32 %v5097, 4294901760
    %v8065 = vsub.f32 %v5097, %v8064
    %8066 = vmatprep.subr.mxu0 %v8065
    %v8067 = vand.u32 %v5096, 4294901760
    %v8068 = vsub.f32 %v5096, %v8067
    %8069 = vmatpush1.msra.mxu0 %v8068
    %v8070 = vand.u32 %v5101, 4294901760
    %v8071 = vsub.f32 %v5101, %v8070
    %8072 = vmatprep.subr.mxu0 %v8071
    %v8073 = vand.u32 %v5100, 4294901760
    %v8074 = vsub.f32 %v5100, %v8073
    %8075 = vmatpush1.msra.mxu0 %v8074
    %8076 = vmatprep.subr.mxu0 0.0
    %8077 = vmatpush1.msra.mxu0 0.0
    %8078 = vmatprep.subr.mxu0 0.0
    %8079 = vmatpush1.msra.mxu0 0.0
    %8080 = vmatprep.subr.mxu0 0.0
    %8081 = vmatpush1.msra.mxu0 0.0
    %8082 = vmatprep.subr.mxu0 0.0
    %8083 = vmatpush1.msra.mxu0 0.0
    %8084 = vmatprep.subr.mxu0 0.0
    %8085 = vmatpush1.msra.mxu0 0.0
    %8086 = vmatprep.subr.mxu0 0.0
    %8087 = vmatpush1.msra.mxu0 0.0
    %8088 = vmatprep.subr.mxu0 0.0
    %8089 = vmatpush1.msra.mxu0 0.0
    %8090 = vmatprep.subr.mxu0 0.0
    %8091 = vmatpush1.msra.mxu0 0.0
    %8092 = vmatprep.subr.mxu0 0.0
    %8093 = vmatpush1.msra.mxu0 0.0
    %8094 = vmatprep.subr.mxu0 0.0
    %8095 = vmatpush1.msra.mxu0 0.0
    %8096 = vmatprep.subr.mxu0 0.0
    %8097 = vmatpush1.msra.mxu0 0.0
    %8098 = vmatprep.subr.mxu0 0.0
    %8099 = vmatpush1.msra.mxu0 0.0
    %8100 = vmatprep.subr.mxu0 0.0
    %8101 = vmatpush1.msra.mxu0 0.0
    %8102 = vmatprep.subr.mxu0 0.0
    %8103 = vmatpush1.msra.mxu0 0.0
    %8104 = vmatprep.subr.mxu0 0.0
    %8105 = vmatpush1.msra.mxu0 0.0
    %8106 = vmatprep.subr.mxu0 0.0
    %8107 = vmatpush1.msra.mxu0 0.0
    %8108 = vmatprep.subr.mxu0 0.0
    %8109 = vmatpush1.msra.mxu0 0.0
    %8110 = vmatprep.subr.mxu0 0.0
    %8111 = vmatpush1.msra.mxu0 0.0
    %8112 = vmatprep.subr.mxu0 0.0
    %8113 = vmatpush1.msra.mxu0 0.0
    %8114 = vmatprep.subr.mxu0 0.0
    %8115 = vmatpush1.msra.mxu0 0.0
    %8116 = vmatprep.subr.mxu0 0.0
    %8117 = vmatpush1.msra.mxu0 0.0
    %8118 = vmatprep.subr.mxu0 0.0
    %8119 = vmatpush1.msra.mxu0 0.0
    %8120 = vmatprep.subr.mxu0 0.0
    %8121 = vmatpush1.msra.mxu0 0.0
    %8122 = vmatprep.subr.mxu0 0.0
    %8123 = vmatpush1.msra.mxu0 0.0
    %8124 = vmatprep.subr.mxu0 0.0
    %8125 = vmatpush1.msra.mxu0 0.0
    %8126 = vmatprep.subr.mxu0 0.0
    %8127 = vmatpush1.msra.mxu0 0.0
    %8128 = vmatprep.subr.mxu0 0.0
    %8129 = vmatpush1.msra.mxu0 0.0
    %8130 = vmatprep.subr.mxu0 0.0
    %8131 = vmatpush1.msra.mxu0 0.0
    %8132 = vmatprep.mubr.f32.mxu0 0.0
    %v8133 = vand.u32 %v7311, 4294901760
    %v8134 = vsub.f32 %v7311, %v8133
    %8135 = vmatmul.mubr.f32.gmra.mrb[0].mxu0 %v8134
    %v8136 = vpop.f32.mrb[0].mxu0
    %v8137 = vadd.f32 %v8048, %v8136
    %v8138 = vpop.f32.mrb[0].mxu0
    %v8139 = vadd.f32 %v8050, %v8138
    %8140 = vdwg.mxu0
    %v8141 = vand.u32 %v5089, 4294901760
    %8142 = vmatprep.subr.mxu0 %v8141
    %v8143 = vand.u32 %v5088, 4294901760
    %8144 = vmatpush1.msra.mxu0 %v8143
    %v8145 = vand.u32 %v5093, 4294901760
    %8146 = vmatprep.subr.mxu0 %v8145
    %v8147 = vand.u32 %v5092, 4294901760
    %8148 = vmatpush1.msra.mxu0 %v8147
    %v8149 = vand.u32 %v5097, 4294901760
    %8150 = vmatprep.subr.mxu0 %v8149
    %v8151 = vand.u32 %v5096, 4294901760
    %8152 = vmatpush1.msra.mxu0 %v8151
    %v8153 = vand.u32 %v5101, 4294901760
    %8154 = vmatprep.subr.mxu0 %v8153
    %v8155 = vand.u32 %v5100, 4294901760
    %8156 = vmatpush1.msra.mxu0 %v8155
    %8157 = vmatprep.subr.mxu0 0.0
    %8158 = vmatpush1.msra.mxu0 0.0
    %8159 = vmatprep.subr.mxu0 0.0
    %8160 = vmatpush1.msra.mxu0 0.0
    %8161 = vmatprep.subr.mxu0 0.0
    %8162 = vmatpush1.msra.mxu0 0.0
    %8163 = vmatprep.subr.mxu0 0.0
    %8164 = vmatpush1.msra.mxu0 0.0
    %8165 = vmatprep.subr.mxu0 0.0
    %8166 = vmatpush1.msra.mxu0 0.0
    %8167 = vmatprep.subr.mxu0 0.0
    %8168 = vmatpush1.msra.mxu0 0.0
    %8169 = vmatprep.subr.mxu0 0.0
    %8170 = vmatpush1.msra.mxu0 0.0
    %8171 = vmatprep.subr.mxu0 0.0
    %8172 = vmatpush1.msra.mxu0 0.0
    %8173 = vmatprep.subr.mxu0 0.0
    %8174 = vmatpush1.msra.mxu0 0.0
    %8175 = vmatprep.subr.mxu0 0.0
    %8176 = vmatpush1.msra.mxu0 0.0
    %8177 = vmatprep.subr.mxu0 0.0
    %8178 = vmatpush1.msra.mxu0 0.0
    %8179 = vmatprep.subr.mxu0 0.0
    %8180 = vmatpush1.msra.mxu0 0.0
    %8181 = vmatprep.subr.mxu0 0.0
    %8182 = vmatpush1.msra.mxu0 0.0
    %8183 = vmatprep.subr.mxu0 0.0
    %8184 = vmatpush1.msra.mxu0 0.0
    %8185 = vmatprep.subr.mxu0 0.0
    %8186 = vmatpush1.msra.mxu0 0.0
    %8187 = vmatprep.subr.mxu0 0.0
    %8188 = vmatpush1.msra.mxu0 0.0
    %8189 = vmatprep.subr.mxu0 0.0
    %8190 = vmatpush1.msra.mxu0 0.0
    %8191 = vmatprep.subr.mxu0 0.0
    %8192 = vmatpush1.msra.mxu0 0.0
    %8193 = vmatprep.subr.mxu0 0.0
    %8194 = vmatpush1.msra.mxu0 0.0
    %8195 = vmatprep.subr.mxu0 0.0
    %8196 = vmatpush1.msra.mxu0 0.0
    %8197 = vmatprep.subr.mxu0 0.0
    %8198 = vmatpush1.msra.mxu0 0.0
    %8199 = vmatprep.subr.mxu0 0.0
    %8200 = vmatpush1.msra.mxu0 0.0
    %8201 = vmatprep.subr.mxu0 0.0
    %8202 = vmatpush1.msra.mxu0 0.0
    %8203 = vmatprep.subr.mxu0 0.0
    %8204 = vmatpush1.msra.mxu0 0.0
    %8205 = vmatprep.subr.mxu0 0.0
    %8206 = vmatpush1.msra.mxu0 0.0
    %8207 = vmatprep.subr.mxu0 0.0
    %8208 = vmatpush1.msra.mxu0 0.0
    %8209 = vmatprep.subr.mxu0 0.0
    %8210 = vmatpush1.msra.mxu0 0.0
    %8211 = vmatprep.subr.mxu0 0.0
    %8212 = vmatpush1.msra.mxu0 0.0
    %8213 = vmatprep.mubr.f32.mxu0 0.0
    %v8214 = vand.u32 %v7311, 4294901760
    %v8215 = vsub.f32 %v7311, %v8214
    %v8216 = vand.u32 %v8215, 4294901760
    %8217 = vmatmul.mubr.f32.gmra.mrb[0].mxu0 %v8216
    %v8218 = vpop.f32.mrb[0].mxu0
    %v8219 = vadd.f32 %v8137, %v8218
    %v8220 = vpop.f32.mrb[0].mxu0
    %v8221 = vadd.f32 %v8139, %v8220
    %8222 = vdwg.mxu0
    %v8223 = vand.u32 %v5089, 4294901760
    %v8224 = vsub.f32 %v5089, %v8223
    %v8225 = vand.u32 %v8224, 4294901760
    %8226 = vmatprep.subr.mxu0 %v8225
    %v8227 = vand.u32 %v5088, 4294901760
    %v8228 = vsub.f32 %v5088, %v8227
    %v8229 = vand.u32 %v8228, 4294901760
    %8230 = vmatpush1.msra.mxu0 %v8229
    %v8231 = vand.u32 %v5093, 4294901760
    %v8232 = vsub.f32 %v5093, %v8231
    %v8233 = vand.u32 %v8232, 4294901760
    %8234 = vmatprep.subr.mxu0 %v8233
    %v8235 = vand.u32 %v5092, 4294901760
    %v8236 = vsub.f32 %v5092, %v8235
    %v8237 = vand.u32 %v8236, 4294901760
    %8238 = vmatpush1.msra.mxu0 %v8237
    %v8239 = vand.u32 %v5097, 4294901760
    %v8240 = vsub.f32 %v5097, %v8239
    %v8241 = vand.u32 %v8240, 4294901760
    %8242 = vmatprep.subr.mxu0 %v8241
    %v8243 = vand.u32 %v5096, 4294901760
    %v8244 = vsub.f32 %v5096, %v8243
    %v8245 = vand.u32 %v8244, 4294901760
    %8246 = vmatpush1.msra.mxu0 %v8245
    %v8247 = vand.u32 %v5101, 4294901760
    %v8248 = vsub.f32 %v5101, %v8247
    %v8249 = vand.u32 %v8248, 4294901760
    %8250 = vmatprep.subr.mxu0 %v8249
    %v8251 = vand.u32 %v5100, 4294901760
    %v8252 = vsub.f32 %v5100, %v8251
    %v8253 = vand.u32 %v8252, 4294901760
    %8254 = vmatpush1.msra.mxu0 %v8253
    %8255 = vmatprep.subr.mxu0 0.0
    %8256 = vmatpush1.msra.mxu0 0.0
    %8257 = vmatprep.subr.mxu0 0.0
    %8258 = vmatpush1.msra.mxu0 0.0
    %8259 = vmatprep.subr.mxu0 0.0
    %8260 = vmatpush1.msra.mxu0 0.0
    %8261 = vmatprep.subr.mxu0 0.0
    %8262 = vmatpush1.msra.mxu0 0.0
    %8263 = vmatprep.subr.mxu0 0.0
    %8264 = vmatpush1.msra.mxu0 0.0
    %8265 = vmatprep.subr.mxu0 0.0
    %8266 = vmatpush1.msra.mxu0 0.0
    %8267 = vmatprep.subr.mxu0 0.0
    %8268 = vmatpush1.msra.mxu0 0.0
    %8269 = vmatprep.subr.mxu0 0.0
    %8270 = vmatpush1.msra.mxu0 0.0
    %8271 = vmatprep.subr.mxu0 0.0
    %8272 = vmatpush1.msra.mxu0 0.0
    %8273 = vmatprep.subr.mxu0 0.0
    %8274 = vmatpush1.msra.mxu0 0.0
    %8275 = vmatprep.subr.mxu0 0.0
    %8276 = vmatpush1.msra.mxu0 0.0
    %8277 = vmatprep.subr.mxu0 0.0
    %8278 = vmatpush1.msra.mxu0 0.0
    %8279 = vmatprep.subr.mxu0 0.0
    %8280 = vmatpush1.msra.mxu0 0.0
    %8281 = vmatprep.subr.mxu0 0.0
    %8282 = vmatpush1.msra.mxu0 0.0
    %8283 = vmatprep.subr.mxu0 0.0
    %8284 = vmatpush1.msra.mxu0 0.0
    %8285 = vmatprep.subr.mxu0 0.0
    %8286 = vmatpush1.msra.mxu0 0.0
    %8287 = vmatprep.subr.mxu0 0.0
    %8288 = vmatpush1.msra.mxu0 0.0
    %8289 = vmatprep.subr.mxu0 0.0
    %8290 = vmatpush1.msra.mxu0 0.0
    %8291 = vmatprep.subr.mxu0 0.0
    %8292 = vmatpush1.msra.mxu0 0.0
    %8293 = vmatprep.subr.mxu0 0.0
    %8294 = vmatpush1.msra.mxu0 0.0
    %8295 = vmatprep.subr.mxu0 0.0
    %8296 = vmatpush1.msra.mxu0 0.0
    %8297 = vmatprep.subr.mxu0 0.0
    %8298 = vmatpush1.msra.mxu0 0.0
    %8299 = vmatprep.subr.mxu0 0.0
    %8300 = vmatpush1.msra.mxu0 0.0
    %8301 = vmatprep.subr.mxu0 0.0
    %8302 = vmatpush1.msra.mxu0 0.0
    %8303 = vmatprep.subr.mxu0 0.0
    %8304 = vmatpush1.msra.mxu0 0.0
    %8305 = vmatprep.subr.mxu0 0.0
    %8306 = vmatpush1.msra.mxu0 0.0
    %8307 = vmatprep.subr.mxu0 0.0
    %8308 = vmatpush1.msra.mxu0 0.0
    %8309 = vmatprep.subr.mxu0 0.0
    %8310 = vmatpush1.msra.mxu0 0.0
    %8311 = vmatprep.mubr.f32.mxu0 0.0
    %v8312 = vand.u32 %v7311, 4294901760
    %8313 = vmatmul.mubr.f32.gmra.mrb[0].mxu0 %v8312
    %v8314 = vpop.f32.mrb[0].mxu0
    %v8315 = vadd.f32 %v8219, %v8314
    %v8316 = vpop.f32.mrb[0].mxu0
    %v8317 = vadd.f32 %v8221, %v8316
    %8318 = vdwg.mxu0
    %v8319 = vand.u32 %v5089, 4294901760
    %8320 = vmatprep.subr.mxu0 %v8319
    %v8321 = vand.u32 %v5088, 4294901760
    %8322 = vmatpush1.msra.mxu0 %v8321
    %v8323 = vand.u32 %v5093, 4294901760
    %8324 = vmatprep.subr.mxu0 %v8323
    %v8325 = vand.u32 %v5092, 4294901760
    %8326 = vmatpush1.msra.mxu0 %v8325
    %v8327 = vand.u32 %v5097, 4294901760
    %8328 = vmatprep.subr.mxu0 %v8327
    %v8329 = vand.u32 %v5096, 4294901760
    %8330 = vmatpush1.msra.mxu0 %v8329
    %v8331 = vand.u32 %v5101, 4294901760
    %8332 = vmatprep.subr.mxu0 %v8331
    %v8333 = vand.u32 %v5100, 4294901760
    %8334 = vmatpush1.msra.mxu0 %v8333
    %8335 = vmatprep.subr.mxu0 0.0
    %8336 = vmatpush1.msra.mxu0 0.0
    %8337 = vmatprep.subr.mxu0 0.0
    %8338 = vmatpush1.msra.mxu0 0.0
    %8339 = vmatprep.subr.mxu0 0.0
    %8340 = vmatpush1.msra.mxu0 0.0
    %8341 = vmatprep.subr.mxu0 0.0
    %8342 = vmatpush1.msra.mxu0 0.0
    %8343 = vmatprep.subr.mxu0 0.0
    %8344 = vmatpush1.msra.mxu0 0.0
    %8345 = vmatprep.subr.mxu0 0.0
    %8346 = vmatpush1.msra.mxu0 0.0
    %8347 = vmatprep.subr.mxu0 0.0
    %8348 = vmatpush1.msra.mxu0 0.0
    %8349 = vmatprep.subr.mxu0 0.0
    %8350 = vmatpush1.msra.mxu0 0.0
    %8351 = vmatprep.subr.mxu0 0.0
    %8352 = vmatpush1.msra.mxu0 0.0
    %8353 = vmatprep.subr.mxu0 0.0
    %8354 = vmatpush1.msra.mxu0 0.0
    %8355 = vmatprep.subr.mxu0 0.0
    %8356 = vmatpush1.msra.mxu0 0.0
    %8357 = vmatprep.subr.mxu0 0.0
    %8358 = vmatpush1.msra.mxu0 0.0
    %8359 = vmatprep.subr.mxu0 0.0
    %8360 = vmatpush1.msra.mxu0 0.0
    %8361 = vmatprep.subr.mxu0 0.0
    %8362 = vmatpush1.msra.mxu0 0.0
    %8363 = vmatprep.subr.mxu0 0.0
    %8364 = vmatpush1.msra.mxu0 0.0
    %8365 = vmatprep.subr.mxu0 0.0
    %8366 = vmatpush1.msra.mxu0 0.0
    %8367 = vmatprep.subr.mxu0 0.0
    %8368 = vmatpush1.msra.mxu0 0.0
    %8369 = vmatprep.subr.mxu0 0.0
    %8370 = vmatpush1.msra.mxu0 0.0
    %8371 = vmatprep.subr.mxu0 0.0
    %8372 = vmatpush1.msra.mxu0 0.0
    %8373 = vmatprep.subr.mxu0 0.0
    %8374 = vmatpush1.msra.mxu0 0.0
    %8375 = vmatprep.subr.mxu0 0.0
    %8376 = vmatpush1.msra.mxu0 0.0
    %8377 = vmatprep.subr.mxu0 0.0
    %8378 = vmatpush1.msra.mxu0 0.0
    %8379 = vmatprep.subr.mxu0 0.0
    %8380 = vmatpush1.msra.mxu0 0.0
    %8381 = vmatprep.subr.mxu0 0.0
    %8382 = vmatpush1.msra.mxu0 0.0
    %8383 = vmatprep.subr.mxu0 0.0
    %8384 = vmatpush1.msra.mxu0 0.0
    %8385 = vmatprep.subr.mxu0 0.0
    %8386 = vmatpush1.msra.mxu0 0.0
    %8387 = vmatprep.subr.mxu0 0.0
    %8388 = vmatpush1.msra.mxu0 0.0
    %8389 = vmatprep.subr.mxu0 0.0
    %8390 = vmatpush1.msra.mxu0 0.0
    %8391 = vmatprep.mubr.f32.mxu0 0.0
    %v8392 = vand.u32 %v7311, 4294901760
    %8393 = vmatmul.mubr.f32.gmra.mrb[0].mxu0 %v8392
    %v8394 = vpop.f32.mrb[0].mxu0
    %v8395 = vadd.f32 %v8315, %v8394
    %v8396 = vpop.f32.mrb[0].mxu0
    %v8397 = vadd.f32 %v8317, %v8396
    %8398 = vdwg.mxu0
    %v8399 = vsub.f32 0.0, %v6202
    %v8400 = vmul.f32 %v8399, %v7308
    %v8402 = vsel %vm7309, %v8400, 0
    %v8404 = vand.u32 %v5087, 4294901760
    %8405 = vmatprep.subr.mxu0 %v8404
    %v8406 = vand.u32 %v5086, 4294901760
    %8407 = vmatpush1.msra.mxu0 %v8406
    %v8408 = vand.u32 %v5091, 4294901760
    %8409 = vmatprep.subr.mxu0 %v8408
    %v8410 = vand.u32 %v5090, 4294901760
    %8411 = vmatpush1.msra.mxu0 %v8410
    %v8412 = vand.u32 %v5095, 4294901760
    %8413 = vmatprep.subr.mxu0 %v8412
    %v8414 = vand.u32 %v5094, 4294901760
    %8415 = vmatpush1.msra.mxu0 %v8414
    %v8416 = vand.u32 %v5099, 4294901760
    %8417 = vmatprep.subr.mxu0 %v8416
    %v8418 = vand.u32 %v5098, 4294901760
    %8419 = vmatpush1.msra.mxu0 %v8418
    %8420 = vmatprep.subr.mxu0 0.0
    %8421 = vmatpush1.msra.mxu0 0.0
    %8422 = vmatprep.subr.mxu0 0.0
    %8423 = vmatpush1.msra.mxu0 0.0
    %8424 = vmatprep.subr.mxu0 0.0
    %8425 = vmatpush1.msra.mxu0 0.0
    %8426 = vmatprep.subr.mxu0 0.0
    %8427 = vmatpush1.msra.mxu0 0.0
    %8428 = vmatprep.subr.mxu0 0.0
    %8429 = vmatpush1.msra.mxu0 0.0
    %8430 = vmatprep.subr.mxu0 0.0
    %8431 = vmatpush1.msra.mxu0 0.0
    %8432 = vmatprep.subr.mxu0 0.0
    %8433 = vmatpush1.msra.mxu0 0.0
    %8434 = vmatprep.subr.mxu0 0.0
    %8435 = vmatpush1.msra.mxu0 0.0
    %8436 = vmatprep.subr.mxu0 0.0
    %8437 = vmatpush1.msra.mxu0 0.0
    %8438 = vmatprep.subr.mxu0 0.0
    %8439 = vmatpush1.msra.mxu0 0.0
    %8440 = vmatprep.subr.mxu0 0.0
    %8441 = vmatpush1.msra.mxu0 0.0
    %8442 = vmatprep.subr.mxu0 0.0
    %8443 = vmatpush1.msra.mxu0 0.0
    %8444 = vmatprep.subr.mxu0 0.0
    %8445 = vmatpush1.msra.mxu0 0.0
    %8446 = vmatprep.subr.mxu0 0.0
    %8447 = vmatpush1.msra.mxu0 0.0
    %8448 = vmatprep.subr.mxu0 0.0
    %8449 = vmatpush1.msra.mxu0 0.0
    %8450 = vmatprep.subr.mxu0 0.0
    %8451 = vmatpush1.msra.mxu0 0.0
    %8452 = vmatprep.subr.mxu0 0.0
    %8453 = vmatpush1.msra.mxu0 0.0
    %8454 = vmatprep.subr.mxu0 0.0
    %8455 = vmatpush1.msra.mxu0 0.0
    %8456 = vmatprep.subr.mxu0 0.0
    %8457 = vmatpush1.msra.mxu0 0.0
    %8458 = vmatprep.subr.mxu0 0.0
    %8459 = vmatpush1.msra.mxu0 0.0
    %8460 = vmatprep.subr.mxu0 0.0
    %8461 = vmatpush1.msra.mxu0 0.0
    %8462 = vmatprep.subr.mxu0 0.0
    %8463 = vmatpush1.msra.mxu0 0.0
    %8464 = vmatprep.subr.mxu0 0.0
    %8465 = vmatpush1.msra.mxu0 0.0
    %8466 = vmatprep.subr.mxu0 0.0
    %8467 = vmatpush1.msra.mxu0 0.0
    %8468 = vmatprep.subr.mxu0 0.0
    %8469 = vmatpush1.msra.mxu0 0.0
    %8470 = vmatprep.subr.mxu0 0.0
    %8471 = vmatpush1.msra.mxu0 0.0
    %8472 = vmatprep.subr.mxu0 0.0
    %8473 = vmatpush1.msra.mxu0 0.0
    %8474 = vmatprep.subr.mxu0 0.0
    %8475 = vmatpush1.msra.mxu0 0.0
    %8476 = vmatprep.mubr.f32.mxu0 0.0
    %v8477 = vand.u32 %v8402, 4294901760
    %v8478 = vsub.f32 %v8402, %v8477
    %v8479 = vand.u32 %v8478, 4294901760
    %v8480 = vsub.f32 %v8478, %v8479
    %v8481 = vand.u32 %v8480, 4294901760
    %8482 = vmatmul.mubr.f32.gmra.mrb[0].mxu0 %v8481
    %v8483 = vpop.f32.mrb[0].mxu0
    %v8484 = vadd.f32 0.0, %v8483
    %v8485 = vpop.f32.mrb[0].mxu0
    %v8486 = vadd.f32 0.0, %v8485
    %8487 = vdwg.mxu0
    %v8488 = vand.u32 %v5087, 4294901760
    %v8489 = vsub.f32 %v5087, %v8488
    %v8490 = vand.u32 %v8489, 4294901760
    %v8491 = vsub.f32 %v8489, %v8490
    %v8492 = vand.u32 %v8491, 4294901760
    %8493 = vmatprep.subr.mxu0 %v8492
    %v8494 = vand.u32 %v5086, 4294901760
    %v8495 = vsub.f32 %v5086, %v8494
    %v8496 = vand.u32 %v8495, 4294901760
    %v8497 = vsub.f32 %v8495, %v8496
    %v8498 = vand.u32 %v8497, 4294901760
    %8499 = vmatpush1.msra.mxu0 %v8498
    %v8500 = vand.u32 %v5091, 4294901760
    %v8501 = vsub.f32 %v5091, %v8500
    %v8502 = vand.u32 %v8501, 4294901760
    %v8503 = vsub.f32 %v8501, %v8502
    %v8504 = vand.u32 %v8503, 4294901760
    %8505 = vmatprep.subr.mxu0 %v8504
    %v8506 = vand.u32 %v5090, 4294901760
    %v8507 = vsub.f32 %v5090, %v8506
    %v8508 = vand.u32 %v8507, 4294901760
    %v8509 = vsub.f32 %v8507, %v8508
    %v8510 = vand.u32 %v8509, 4294901760
    %8511 = vmatpush1.msra.mxu0 %v8510
    %v8512 = vand.u32 %v5095, 4294901760
    %v8513 = vsub.f32 %v5095, %v8512
    %v8514 = vand.u32 %v8513, 4294901760
    %v8515 = vsub.f32 %v8513, %v8514
    %v8516 = vand.u32 %v8515, 4294901760
    %8517 = vmatprep.subr.mxu0 %v8516
    %v8518 = vand.u32 %v5094, 4294901760
    %v8519 = vsub.f32 %v5094, %v8518
    %v8520 = vand.u32 %v8519, 4294901760
    %v8521 = vsub.f32 %v8519, %v8520
    %v8522 = vand.u32 %v8521, 4294901760
    %8523 = vmatpush1.msra.mxu0 %v8522
    %v8524 = vand.u32 %v5099, 4294901760
    %v8525 = vsub.f32 %v5099, %v8524
    %v8526 = vand.u32 %v8525, 4294901760
    %v8527 = vsub.f32 %v8525, %v8526
    %v8528 = vand.u32 %v8527, 4294901760
    %8529 = vmatprep.subr.mxu0 %v8528
    %v8530 = vand.u32 %v5098, 4294901760
    %v8531 = vsub.f32 %v5098, %v8530
    %v8532 = vand.u32 %v8531, 4294901760
    %v8533 = vsub.f32 %v8531, %v8532
    %v8534 = vand.u32 %v8533, 4294901760
    %8535 = vmatpush1.msra.mxu0 %v8534
    %8536 = vmatprep.subr.mxu0 0.0
    %8537 = vmatpush1.msra.mxu0 0.0
    %8538 = vmatprep.subr.mxu0 0.0
    %8539 = vmatpush1.msra.mxu0 0.0
    %8540 = vmatprep.subr.mxu0 0.0
    %8541 = vmatpush1.msra.mxu0 0.0
    %8542 = vmatprep.subr.mxu0 0.0
    %8543 = vmatpush1.msra.mxu0 0.0
    %8544 = vmatprep.subr.mxu0 0.0
    %8545 = vmatpush1.msra.mxu0 0.0
    %8546 = vmatprep.subr.mxu0 0.0
    %8547 = vmatpush1.msra.mxu0 0.0
    %8548 = vmatprep.subr.mxu0 0.0
    %8549 = vmatpush1.msra.mxu0 0.0
    %8550 = vmatprep.subr.mxu0 0.0
    %8551 = vmatpush1.msra.mxu0 0.0
    %8552 = vmatprep.subr.mxu0 0.0
    %8553 = vmatpush1.msra.mxu0 0.0
    %8554 = vmatprep.subr.mxu0 0.0
    %8555 = vmatpush1.msra.mxu0 0.0
    %8556 = vmatprep.subr.mxu0 0.0
    %8557 = vmatpush1.msra.mxu0 0.0
    %8558 = vmatprep.subr.mxu0 0.0
    %8559 = vmatpush1.msra.mxu0 0.0
    %8560 = vmatprep.subr.mxu0 0.0
    %8561 = vmatpush1.msra.mxu0 0.0
    %8562 = vmatprep.subr.mxu0 0.0
    %8563 = vmatpush1.msra.mxu0 0.0
    %8564 = vmatprep.subr.mxu0 0.0
    %8565 = vmatpush1.msra.mxu0 0.0
    %8566 = vmatprep.subr.mxu0 0.0
    %8567 = vmatpush1.msra.mxu0 0.0
    %8568 = vmatprep.subr.mxu0 0.0
    %8569 = vmatpush1.msra.mxu0 0.0
    %8570 = vmatprep.subr.mxu0 0.0
    %8571 = vmatpush1.msra.mxu0 0.0
    %8572 = vmatprep.subr.mxu0 0.0
    %8573 = vmatpush1.msra.mxu0 0.0
    %8574 = vmatprep.subr.mxu0 0.0
    %8575 = vmatpush1.msra.mxu0 0.0
    %8576 = vmatprep.subr.mxu0 0.0
    %8577 = vmatpush1.msra.mxu0 0.0
    %8578 = vmatprep.subr.mxu0 0.0
    %8579 = vmatpush1.msra.mxu0 0.0
    %8580 = vmatprep.subr.mxu0 0.0
    %8581 = vmatpush1.msra.mxu0 0.0
    %8582 = vmatprep.subr.mxu0 0.0
    %8583 = vmatpush1.msra.mxu0 0.0
    %8584 = vmatprep.subr.mxu0 0.0
    %8585 = vmatpush1.msra.mxu0 0.0
    %8586 = vmatprep.subr.mxu0 0.0
    %8587 = vmatpush1.msra.mxu0 0.0
    %8588 = vmatprep.subr.mxu0 0.0
    %8589 = vmatpush1.msra.mxu0 0.0
    %8590 = vmatprep.subr.mxu0 0.0
    %8591 = vmatpush1.msra.mxu0 0.0
    %8592 = vmatprep.mubr.f32.mxu0 0.0
    %v8593 = vand.u32 %v8402, 4294901760
    %8594 = vmatmul.mubr.f32.gmra.mrb[0].mxu0 %v8593
    %v8595 = vpop.f32.mrb[0].mxu0
    %v8596 = vadd.f32 %v8484, %v8595
    %v8597 = vpop.f32.mrb[0].mxu0
    %v8598 = vadd.f32 %v8486, %v8597
    %8599 = vdwg.mxu0
    %v8600 = vand.u32 %v5087, 4294901760
    %v8601 = vsub.f32 %v5087, %v8600
    %8602 = vmatprep.subr.mxu0 %v8601
    %v8603 = vand.u32 %v5086, 4294901760
    %v8604 = vsub.f32 %v5086, %v8603
    %8605 = vmatpush1.msra.mxu0 %v8604
    %v8606 = vand.u32 %v5091, 4294901760
    %v8607 = vsub.f32 %v5091, %v8606
    %8608 = vmatprep.subr.mxu0 %v8607
    %v8609 = vand.u32 %v5090, 4294901760
    %v8610 = vsub.f32 %v5090, %v8609
    %8611 = vmatpush1.msra.mxu0 %v8610
    %v8612 = vand.u32 %v5095, 4294901760
    %v8613 = vsub.f32 %v5095, %v8612
    %8614 = vmatprep.subr.mxu0 %v8613
    %v8615 = vand.u32 %v5094, 4294901760
    %v8616 = vsub.f32 %v5094, %v8615
    %8617 = vmatpush1.msra.mxu0 %v8616
    %v8618 = vand.u32 %v5099, 4294901760
    %v8619 = vsub.f32 %v5099, %v8618
    %8620 = vmatprep.subr.mxu0 %v8619
    %v8621 = vand.u32 %v5098, 4294901760
    %v8622 = vsub.f32 %v5098, %v8621
    %8623 = vmatpush1.msra.mxu0 %v8622
    %8624 = vmatprep.subr.mxu0 0.0
    %8625 = vmatpush1.msra.mxu0 0.0
    %8626 = vmatprep.subr.mxu0 0.0
    %8627 = vmatpush1.msra.mxu0 0.0
    %8628 = vmatprep.subr.mxu0 0.0
    %8629 = vmatpush1.msra.mxu0 0.0
    %8630 = vmatprep.subr.mxu0 0.0
    %8631 = vmatpush1.msra.mxu0 0.0
    %8632 = vmatprep.subr.mxu0 0.0
    %8633 = vmatpush1.msra.mxu0 0.0
    %8634 = vmatprep.subr.mxu0 0.0
    %8635 = vmatpush1.msra.mxu0 0.0
    %8636 = vmatprep.subr.mxu0 0.0
    %8637 = vmatpush1.msra.mxu0 0.0
    %8638 = vmatprep.subr.mxu0 0.0
    %8639 = vmatpush1.msra.mxu0 0.0
    %8640 = vmatprep.subr.mxu0 0.0
    %8641 = vmatpush1.msra.mxu0 0.0
    %8642 = vmatprep.subr.mxu0 0.0
    %8643 = vmatpush1.msra.mxu0 0.0
    %8644 = vmatprep.subr.mxu0 0.0
    %8645 = vmatpush1.msra.mxu0 0.0
    %8646 = vmatprep.subr.mxu0 0.0
    %8647 = vmatpush1.msra.mxu0 0.0
    %8648 = vmatprep.subr.mxu0 0.0
    %8649 = vmatpush1.msra.mxu0 0.0
    %8650 = vmatprep.subr.mxu0 0.0
    %8651 = vmatpush1.msra.mxu0 0.0
    %8652 = vmatprep.subr.mxu0 0.0
    %8653 = vmatpush1.msra.mxu0 0.0
    %8654 = vmatprep.subr.mxu0 0.0
    %8655 = vmatpush1.msra.mxu0 0.0
    %8656 = vmatprep.subr.mxu0 0.0
    %8657 = vmatpush1.msra.mxu0 0.0
    %8658 = vmatprep.subr.mxu0 0.0
    %8659 = vmatpush1.msra.mxu0 0.0
    %8660 = vmatprep.subr.mxu0 0.0
    %8661 = vmatpush1.msra.mxu0 0.0
    %8662 = vmatprep.subr.mxu0 0.0
    %8663 = vmatpush1.msra.mxu0 0.0
    %8664 = vmatprep.subr.mxu0 0.0
    %8665 = vmatpush1.msra.mxu0 0.0
    %8666 = vmatprep.subr.mxu0 0.0
    %8667 = vmatpush1.msra.mxu0 0.0
    %8668 = vmatprep.subr.mxu0 0.0
    %8669 = vmatpush1.msra.mxu0 0.0
    %8670 = vmatprep.subr.mxu0 0.0
    %8671 = vmatpush1.msra.mxu0 0.0
    %8672 = vmatprep.subr.mxu0 0.0
    %8673 = vmatpush1.msra.mxu0 0.0
    %8674 = vmatprep.subr.mxu0 0.0
    %8675 = vmatpush1.msra.mxu0 0.0
    %8676 = vmatprep.subr.mxu0 0.0
    %8677 = vmatpush1.msra.mxu0 0.0
    %8678 = vmatprep.subr.mxu0 0.0
    %8679 = vmatpush1.msra.mxu0 0.0
    %8680 = vmatprep.mubr.f32.mxu0 0.0
    %v8681 = vand.u32 %v8402, 4294901760
    %v8682 = vsub.f32 %v8402, %v8681
    %8683 = vmatmul.mubr.f32.gmra.mrb[0].mxu0 %v8682
    %v8684 = vpop.f32.mrb[0].mxu0
    %v8685 = vadd.f32 %v8596, %v8684
    %v8686 = vpop.f32.mrb[0].mxu0
    %v8687 = vadd.f32 %v8598, %v8686
    %8688 = vdwg.mxu0
    %v8689 = vand.u32 %v5087, 4294901760
    %8690 = vmatprep.subr.mxu0 %v8689
    %v8691 = vand.u32 %v5086, 4294901760
    %8692 = vmatpush1.msra.mxu0 %v8691
    %v8693 = vand.u32 %v5091, 4294901760
    %8694 = vmatprep.subr.mxu0 %v8693
    %v8695 = vand.u32 %v5090, 4294901760
    %8696 = vmatpush1.msra.mxu0 %v8695
    %v8697 = vand.u32 %v5095, 4294901760
    %8698 = vmatprep.subr.mxu0 %v8697
    %v8699 = vand.u32 %v5094, 4294901760
    %8700 = vmatpush1.msra.mxu0 %v8699
    %v8701 = vand.u32 %v5099, 4294901760
    %8702 = vmatprep.subr.mxu0 %v8701
    %v8703 = vand.u32 %v5098, 4294901760
    %8704 = vmatpush1.msra.mxu0 %v8703
    %8705 = vmatprep.subr.mxu0 0.0
    %8706 = vmatpush1.msra.mxu0 0.0
    %8707 = vmatprep.subr.mxu0 0.0
    %8708 = vmatpush1.msra.mxu0 0.0
    %8709 = vmatprep.subr.mxu0 0.0
    %8710 = vmatpush1.msra.mxu0 0.0
    %8711 = vmatprep.subr.mxu0 0.0
    %8712 = vmatpush1.msra.mxu0 0.0
    %8713 = vmatprep.subr.mxu0 0.0
    %8714 = vmatpush1.msra.mxu0 0.0
    %8715 = vmatprep.subr.mxu0 0.0
    %8716 = vmatpush1.msra.mxu0 0.0
    %8717 = vmatprep.subr.mxu0 0.0
    %8718 = vmatpush1.msra.mxu0 0.0
    %8719 = vmatprep.subr.mxu0 0.0
    %8720 = vmatpush1.msra.mxu0 0.0
    %8721 = vmatprep.subr.mxu0 0.0
    %8722 = vmatpush1.msra.mxu0 0.0
    %8723 = vmatprep.subr.mxu0 0.0
    %8724 = vmatpush1.msra.mxu0 0.0
    %8725 = vmatprep.subr.mxu0 0.0
    %8726 = vmatpush1.msra.mxu0 0.0
    %8727 = vmatprep.subr.mxu0 0.0
    %8728 = vmatpush1.msra.mxu0 0.0
    %8729 = vmatprep.subr.mxu0 0.0
    %8730 = vmatpush1.msra.mxu0 0.0
    %8731 = vmatprep.subr.mxu0 0.0
    %8732 = vmatpush1.msra.mxu0 0.0
    %8733 = vmatprep.subr.mxu0 0.0
    %8734 = vmatpush1.msra.mxu0 0.0
    %8735 = vmatprep.subr.mxu0 0.0
    %8736 = vmatpush1.msra.mxu0 0.0
    %8737 = vmatprep.subr.mxu0 0.0
    %8738 = vmatpush1.msra.mxu0 0.0
    %8739 = vmatprep.subr.mxu0 0.0
    %8740 = vmatpush1.msra.mxu0 0.0
    %8741 = vmatprep.subr.mxu0 0.0
    %8742 = vmatpush1.msra.mxu0 0.0
    %8743 = vmatprep.subr.mxu0 0.0
    %8744 = vmatpush1.msra.mxu0 0.0
    %8745 = vmatprep.subr.mxu0 0.0
    %8746 = vmatpush1.msra.mxu0 0.0
    %8747 = vmatprep.subr.mxu0 0.0
    %8748 = vmatpush1.msra.mxu0 0.0
    %8749 = vmatprep.subr.mxu0 0.0
    %8750 = vmatpush1.msra.mxu0 0.0
    %8751 = vmatprep.subr.mxu0 0.0
    %8752 = vmatpush1.msra.mxu0 0.0
    %8753 = vmatprep.subr.mxu0 0.0
    %8754 = vmatpush1.msra.mxu0 0.0
    %8755 = vmatprep.subr.mxu0 0.0
    %8756 = vmatpush1.msra.mxu0 0.0
    %8757 = vmatprep.subr.mxu0 0.0
    %8758 = vmatpush1.msra.mxu0 0.0
    %8759 = vmatprep.subr.mxu0 0.0
    %8760 = vmatpush1.msra.mxu0 0.0
    %8761 = vmatprep.mubr.f32.mxu0 0.0
    %v8762 = vand.u32 %v8402, 4294901760
    %v8763 = vsub.f32 %v8402, %v8762
    %v8764 = vand.u32 %v8763, 4294901760
    %8765 = vmatmul.mubr.f32.gmra.mrb[0].mxu0 %v8764
    %v8766 = vpop.f32.mrb[0].mxu0
    %v8767 = vadd.f32 %v8685, %v8766
    %v8768 = vpop.f32.mrb[0].mxu0
    %v8769 = vadd.f32 %v8687, %v8768
    %8770 = vdwg.mxu0
    %v8771 = vand.u32 %v5087, 4294901760
    %v8772 = vsub.f32 %v5087, %v8771
    %v8773 = vand.u32 %v8772, 4294901760
    %8774 = vmatprep.subr.mxu0 %v8773
    %v8775 = vand.u32 %v5086, 4294901760
    %v8776 = vsub.f32 %v5086, %v8775
    %v8777 = vand.u32 %v8776, 4294901760
    %8778 = vmatpush1.msra.mxu0 %v8777
    %v8779 = vand.u32 %v5091, 4294901760
    %v8780 = vsub.f32 %v5091, %v8779
    %v8781 = vand.u32 %v8780, 4294901760
    %8782 = vmatprep.subr.mxu0 %v8781
    %v8783 = vand.u32 %v5090, 4294901760
    %v8784 = vsub.f32 %v5090, %v8783
    %v8785 = vand.u32 %v8784, 4294901760
    %8786 = vmatpush1.msra.mxu0 %v8785
    %v8787 = vand.u32 %v5095, 4294901760
    %v8788 = vsub.f32 %v5095, %v8787
    %v8789 = vand.u32 %v8788, 4294901760
    %8790 = vmatprep.subr.mxu0 %v8789
    %v8791 = vand.u32 %v5094, 4294901760
    %v8792 = vsub.f32 %v5094, %v8791
    %v8793 = vand.u32 %v8792, 4294901760
    %8794 = vmatpush1.msra.mxu0 %v8793
    %v8795 = vand.u32 %v5099, 4294901760
    %v8796 = vsub.f32 %v5099, %v8795
    %v8797 = vand.u32 %v8796, 4294901760
    %8798 = vmatprep.subr.mxu0 %v8797
    %v8799 = vand.u32 %v5098, 4294901760
    %v8800 = vsub.f32 %v5098, %v8799
    %v8801 = vand.u32 %v8800, 4294901760
    %8802 = vmatpush1.msra.mxu0 %v8801
    %8803 = vmatprep.subr.mxu0 0.0
    %8804 = vmatpush1.msra.mxu0 0.0
    %8805 = vmatprep.subr.mxu0 0.0
    %8806 = vmatpush1.msra.mxu0 0.0
    %8807 = vmatprep.subr.mxu0 0.0
    %8808 = vmatpush1.msra.mxu0 0.0
    %8809 = vmatprep.subr.mxu0 0.0
    %8810 = vmatpush1.msra.mxu0 0.0
    %8811 = vmatprep.subr.mxu0 0.0
    %8812 = vmatpush1.msra.mxu0 0.0
    %8813 = vmatprep.subr.mxu0 0.0
    %8814 = vmatpush1.msra.mxu0 0.0
    %8815 = vmatprep.subr.mxu0 0.0
    %8816 = vmatpush1.msra.mxu0 0.0
    %8817 = vmatprep.subr.mxu0 0.0
    %8818 = vmatpush1.msra.mxu0 0.0
    %8819 = vmatprep.subr.mxu0 0.0
    %8820 = vmatpush1.msra.mxu0 0.0
    %8821 = vmatprep.subr.mxu0 0.0
    %8822 = vmatpush1.msra.mxu0 0.0
    %8823 = vmatprep.subr.mxu0 0.0
    %8824 = vmatpush1.msra.mxu0 0.0
    %8825 = vmatprep.subr.mxu0 0.0
    %8826 = vmatpush1.msra.mxu0 0.0
    %8827 = vmatprep.subr.mxu0 0.0
    %8828 = vmatpush1.msra.mxu0 0.0
    %8829 = vmatprep.subr.mxu0 0.0
    %8830 = vmatpush1.msra.mxu0 0.0
    %8831 = vmatprep.subr.mxu0 0.0
    %8832 = vmatpush1.msra.mxu0 0.0
    %8833 = vmatprep.subr.mxu0 0.0
    %8834 = vmatpush1.msra.mxu0 0.0
    %8835 = vmatprep.subr.mxu0 0.0
    %8836 = vmatpush1.msra.mxu0 0.0
    %8837 = vmatprep.subr.mxu0 0.0
    %8838 = vmatpush1.msra.mxu0 0.0
    %8839 = vmatprep.subr.mxu0 0.0
    %8840 = vmatpush1.msra.mxu0 0.0
    %8841 = vmatprep.subr.mxu0 0.0
    %8842 = vmatpush1.msra.mxu0 0.0
    %8843 = vmatprep.subr.mxu0 0.0
    %8844 = vmatpush1.msra.mxu0 0.0
    %8845 = vmatprep.subr.mxu0 0.0
    %8846 = vmatpush1.msra.mxu0 0.0
    %8847 = vmatprep.subr.mxu0 0.0
    %8848 = vmatpush1.msra.mxu0 0.0
    %8849 = vmatprep.subr.mxu0 0.0
    %8850 = vmatpush1.msra.mxu0 0.0
    %8851 = vmatprep.subr.mxu0 0.0
    %8852 = vmatpush1.msra.mxu0 0.0
    %8853 = vmatprep.subr.mxu0 0.0
    %8854 = vmatpush1.msra.mxu0 0.0
    %8855 = vmatprep.subr.mxu0 0.0
    %8856 = vmatpush1.msra.mxu0 0.0
    %8857 = vmatprep.subr.mxu0 0.0
    %8858 = vmatpush1.msra.mxu0 0.0
    %8859 = vmatprep.mubr.f32.mxu0 0.0
    %v8860 = vand.u32 %v8402, 4294901760
    %8861 = vmatmul.mubr.f32.gmra.mrb[0].mxu0 %v8860
    %v8862 = vpop.f32.mrb[0].mxu0
    %v8863 = vadd.f32 %v8767, %v8862
    %v8864 = vpop.f32.mrb[0].mxu0
    %v8865 = vadd.f32 %v8769, %v8864
    %8866 = vdwg.mxu0
    %v8867 = vand.u32 %v5087, 4294901760
    %8868 = vmatprep.subr.mxu0 %v8867
    %v8869 = vand.u32 %v5086, 4294901760
    %8870 = vmatpush1.msra.mxu0 %v8869
    %v8871 = vand.u32 %v5091, 4294901760
    %8872 = vmatprep.subr.mxu0 %v8871
    %v8873 = vand.u32 %v5090, 4294901760
    %8874 = vmatpush1.msra.mxu0 %v8873
    %v8875 = vand.u32 %v5095, 4294901760
    %8876 = vmatprep.subr.mxu0 %v8875
    %v8877 = vand.u32 %v5094, 4294901760
    %8878 = vmatpush1.msra.mxu0 %v8877
    %v8879 = vand.u32 %v5099, 4294901760
    %8880 = vmatprep.subr.mxu0 %v8879
    %v8881 = vand.u32 %v5098, 4294901760
    %8882 = vmatpush1.msra.mxu0 %v8881
    %8883 = vmatprep.subr.mxu0 0.0
    %8884 = vmatpush1.msra.mxu0 0.0
    %8885 = vmatprep.subr.mxu0 0.0
    %8886 = vmatpush1.msra.mxu0 0.0
    %8887 = vmatprep.subr.mxu0 0.0
    %8888 = vmatpush1.msra.mxu0 0.0
    %8889 = vmatprep.subr.mxu0 0.0
    %8890 = vmatpush1.msra.mxu0 0.0
    %8891 = vmatprep.subr.mxu0 0.0
    %8892 = vmatpush1.msra.mxu0 0.0
    %8893 = vmatprep.subr.mxu0 0.0
    %8894 = vmatpush1.msra.mxu0 0.0
    %8895 = vmatprep.subr.mxu0 0.0
    %8896 = vmatpush1.msra.mxu0 0.0
    %8897 = vmatprep.subr.mxu0 0.0
    %8898 = vmatpush1.msra.mxu0 0.0
    %8899 = vmatprep.subr.mxu0 0.0
    %8900 = vmatpush1.msra.mxu0 0.0
    %8901 = vmatprep.subr.mxu0 0.0
    %8902 = vmatpush1.msra.mxu0 0.0
    %8903 = vmatprep.subr.mxu0 0.0
    %8904 = vmatpush1.msra.mxu0 0.0
    %8905 = vmatprep.subr.mxu0 0.0
    %8906 = vmatpush1.msra.mxu0 0.0
    %8907 = vmatprep.subr.mxu0 0.0
    %8908 = vmatpush1.msra.mxu0 0.0
    %8909 = vmatprep.subr.mxu0 0.0
    %8910 = vmatpush1.msra.mxu0 0.0
    %8911 = vmatprep.subr.mxu0 0.0
    %8912 = vmatpush1.msra.mxu0 0.0
    %8913 = vmatprep.subr.mxu0 0.0
    %8914 = vmatpush1.msra.mxu0 0.0
    %8915 = vmatprep.subr.mxu0 0.0
    %8916 = vmatpush1.msra.mxu0 0.0
    %8917 = vmatprep.subr.mxu0 0.0
    %8918 = vmatpush1.msra.mxu0 0.0
    %8919 = vmatprep.subr.mxu0 0.0
    %8920 = vmatpush1.msra.mxu0 0.0
    %8921 = vmatprep.subr.mxu0 0.0
    %8922 = vmatpush1.msra.mxu0 0.0
    %8923 = vmatprep.subr.mxu0 0.0
    %8924 = vmatpush1.msra.mxu0 0.0
    %8925 = vmatprep.subr.mxu0 0.0
    %8926 = vmatpush1.msra.mxu0 0.0
    %8927 = vmatprep.subr.mxu0 0.0
    %8928 = vmatpush1.msra.mxu0 0.0
    %8929 = vmatprep.subr.mxu0 0.0
    %8930 = vmatpush1.msra.mxu0 0.0
    %8931 = vmatprep.subr.mxu0 0.0
    %8932 = vmatpush1.msra.mxu0 0.0
    %8933 = vmatprep.subr.mxu0 0.0
    %8934 = vmatpush1.msra.mxu0 0.0
    %8935 = vmatprep.subr.mxu0 0.0
    %8936 = vmatpush1.msra.mxu0 0.0
    %8937 = vmatprep.subr.mxu0 0.0
    %8938 = vmatpush1.msra.mxu0 0.0
    %8939 = vmatprep.mubr.f32.mxu0 0.0
    %v8940 = vand.u32 %v8402, 4294901760
    %8941 = vmatmul.mubr.f32.gmra.mrb[0].mxu0 %v8940
    %v8942 = vpop.f32.mrb[0].mxu0
    %v8943 = vadd.f32 %v8863, %v8942
    %v8944 = vpop.f32.mrb[0].mxu0
    %v8945 = vadd.f32 %v8865, %v8944
    %8946 = vdwg.mxu0
    %v8947 = vand.u32 %v5089, 4294901760
    %8948 = vmatprep.subr.mxu0 %v8947
    %v8949 = vand.u32 %v5088, 4294901760
    %8950 = vmatpush1.msra.mxu0 %v8949
    %v8951 = vand.u32 %v5093, 4294901760
    %8952 = vmatprep.subr.mxu0 %v8951
    %v8953 = vand.u32 %v5092, 4294901760
    %8954 = vmatpush1.msra.mxu0 %v8953
    %v8955 = vand.u32 %v5097, 4294901760
    %8956 = vmatprep.subr.mxu0 %v8955
    %v8957 = vand.u32 %v5096, 4294901760
    %8958 = vmatpush1.msra.mxu0 %v8957
    %v8959 = vand.u32 %v5101, 4294901760
    %8960 = vmatprep.subr.mxu0 %v8959
    %v8961 = vand.u32 %v5100, 4294901760
    %8962 = vmatpush1.msra.mxu0 %v8961
    %8963 = vmatprep.subr.mxu0 0.0
    %8964 = vmatpush1.msra.mxu0 0.0
    %8965 = vmatprep.subr.mxu0 0.0
    %8966 = vmatpush1.msra.mxu0 0.0
    %8967 = vmatprep.subr.mxu0 0.0
    %8968 = vmatpush1.msra.mxu0 0.0
    %8969 = vmatprep.subr.mxu0 0.0
    %8970 = vmatpush1.msra.mxu0 0.0
    %8971 = vmatprep.subr.mxu0 0.0
    %8972 = vmatpush1.msra.mxu0 0.0
    %8973 = vmatprep.subr.mxu0 0.0
    %8974 = vmatpush1.msra.mxu0 0.0
    %8975 = vmatprep.subr.mxu0 0.0
    %8976 = vmatpush1.msra.mxu0 0.0
    %8977 = vmatprep.subr.mxu0 0.0
    %8978 = vmatpush1.msra.mxu0 0.0
    %8979 = vmatprep.subr.mxu0 0.0
    %8980 = vmatpush1.msra.mxu0 0.0
    %8981 = vmatprep.subr.mxu0 0.0
    %8982 = vmatpush1.msra.mxu0 0.0
    %8983 = vmatprep.subr.mxu0 0.0
    %8984 = vmatpush1.msra.mxu0 0.0
    %8985 = vmatprep.subr.mxu0 0.0
    %8986 = vmatpush1.msra.mxu0 0.0
    %8987 = vmatprep.subr.mxu0 0.0
    %8988 = vmatpush1.msra.mxu0 0.0
    %8989 = vmatprep.subr.mxu0 0.0
    %8990 = vmatpush1.msra.mxu0 0.0
    %8991 = vmatprep.subr.mxu0 0.0
    %8992 = vmatpush1.msra.mxu0 0.0
    %8993 = vmatprep.subr.mxu0 0.0
    %8994 = vmatpush1.msra.mxu0 0.0
    %8995 = vmatprep.subr.mxu0 0.0
    %8996 = vmatpush1.msra.mxu0 0.0
    %8997 = vmatprep.subr.mxu0 0.0
    %8998 = vmatpush1.msra.mxu0 0.0
    %8999 = vmatprep.subr.mxu0 0.0
    %9000 = vmatpush1.msra.mxu0 0.0
    %9001 = vmatprep.subr.mxu0 0.0
    %9002 = vmatpush1.msra.mxu0 0.0
    %9003 = vmatprep.subr.mxu0 0.0
    %9004 = vmatpush1.msra.mxu0 0.0
    %9005 = vmatprep.subr.mxu0 0.0
    %9006 = vmatpush1.msra.mxu0 0.0
    %9007 = vmatprep.subr.mxu0 0.0
    %9008 = vmatpush1.msra.mxu0 0.0
    %9009 = vmatprep.subr.mxu0 0.0
    %9010 = vmatpush1.msra.mxu0 0.0
    %9011 = vmatprep.subr.mxu0 0.0
    %9012 = vmatpush1.msra.mxu0 0.0
    %9013 = vmatprep.subr.mxu0 0.0
    %9014 = vmatpush1.msra.mxu0 0.0
    %9015 = vmatprep.subr.mxu0 0.0
    %9016 = vmatpush1.msra.mxu0 0.0
    %9017 = vmatprep.subr.mxu0 0.0
    %9018 = vmatpush1.msra.mxu0 0.0
    %9019 = vmatprep.mubr.f32.mxu0 0.0
    %v9020 = vand.u32 %v8402, 4294901760
    %v9021 = vsub.f32 %v8402, %v9020
    %v9022 = vand.u32 %v9021, 4294901760
    %v9023 = vsub.f32 %v9021, %v9022
    %v9024 = vand.u32 %v9023, 4294901760
    %9025 = vmatmul.mubr.f32.gmra.mrb[0].mxu0 %v9024
    %v9026 = vpop.f32.mrb[0].mxu0
    %v9027 = vadd.f32 0.0, %v9026
    %v9028 = vpop.f32.mrb[0].mxu0
    %v9029 = vadd.f32 0.0, %v9028
    %9030 = vdwg.mxu0
    %v9031 = vand.u32 %v5089, 4294901760
    %v9032 = vsub.f32 %v5089, %v9031
    %v9033 = vand.u32 %v9032, 4294901760
    %v9034 = vsub.f32 %v9032, %v9033
    %v9035 = vand.u32 %v9034, 4294901760
    %9036 = vmatprep.subr.mxu0 %v9035
    %v9037 = vand.u32 %v5088, 4294901760
    %v9038 = vsub.f32 %v5088, %v9037
    %v9039 = vand.u32 %v9038, 4294901760
    %v9040 = vsub.f32 %v9038, %v9039
    %v9041 = vand.u32 %v9040, 4294901760
    %9042 = vmatpush1.msra.mxu0 %v9041
    %v9043 = vand.u32 %v5093, 4294901760
    %v9044 = vsub.f32 %v5093, %v9043
    %v9045 = vand.u32 %v9044, 4294901760
    %v9046 = vsub.f32 %v9044, %v9045
    %v9047 = vand.u32 %v9046, 4294901760
    %9048 = vmatprep.subr.mxu0 %v9047
    %v9049 = vand.u32 %v5092, 4294901760
    %v9050 = vsub.f32 %v5092, %v9049
    %v9051 = vand.u32 %v9050, 4294901760
    %v9052 = vsub.f32 %v9050, %v9051
    %v9053 = vand.u32 %v9052, 4294901760
    %9054 = vmatpush1.msra.mxu0 %v9053
    %v9055 = vand.u32 %v5097, 4294901760
    %v9056 = vsub.f32 %v5097, %v9055
    %v9057 = vand.u32 %v9056, 4294901760
    %v9058 = vsub.f32 %v9056, %v9057
    %v9059 = vand.u32 %v9058, 4294901760
    %9060 = vmatprep.subr.mxu0 %v9059
    %v9061 = vand.u32 %v5096, 4294901760
    %v9062 = vsub.f32 %v5096, %v9061
    %v9063 = vand.u32 %v9062, 4294901760
    %v9064 = vsub.f32 %v9062, %v9063
    %v9065 = vand.u32 %v9064, 4294901760
    %9066 = vmatpush1.msra.mxu0 %v9065
    %v9067 = vand.u32 %v5101, 4294901760
    %v9068 = vsub.f32 %v5101, %v9067
    %v9069 = vand.u32 %v9068, 4294901760
    %v9070 = vsub.f32 %v9068, %v9069
    %v9071 = vand.u32 %v9070, 4294901760
    %9072 = vmatprep.subr.mxu0 %v9071
    %v9073 = vand.u32 %v5100, 4294901760
    %v9074 = vsub.f32 %v5100, %v9073
    %v9075 = vand.u32 %v9074, 4294901760
    %v9076 = vsub.f32 %v9074, %v9075
    %v9077 = vand.u32 %v9076, 4294901760
    %9078 = vmatpush1.msra.mxu0 %v9077
    %9079 = vmatprep.subr.mxu0 0.0
    %9080 = vmatpush1.msra.mxu0 0.0
    %9081 = vmatprep.subr.mxu0 0.0
    %9082 = vmatpush1.msra.mxu0 0.0
    %9083 = vmatprep.subr.mxu0 0.0
    %9084 = vmatpush1.msra.mxu0 0.0
    %9085 = vmatprep.subr.mxu0 0.0
    %9086 = vmatpush1.msra.mxu0 0.0
    %9087 = vmatprep.subr.mxu0 0.0
    %9088 = vmatpush1.msra.mxu0 0.0
    %9089 = vmatprep.subr.mxu0 0.0
    %9090 = vmatpush1.msra.mxu0 0.0
    %9091 = vmatprep.subr.mxu0 0.0
    %9092 = vmatpush1.msra.mxu0 0.0
    %9093 = vmatprep.subr.mxu0 0.0
    %9094 = vmatpush1.msra.mxu0 0.0
    %9095 = vmatprep.subr.mxu0 0.0
    %9096 = vmatpush1.msra.mxu0 0.0
    %9097 = vmatprep.subr.mxu0 0.0
    %9098 = vmatpush1.msra.mxu0 0.0
    %9099 = vmatprep.subr.mxu0 0.0
    %9100 = vmatpush1.msra.mxu0 0.0
    %9101 = vmatprep.subr.mxu0 0.0
    %9102 = vmatpush1.msra.mxu0 0.0
    %9103 = vmatprep.subr.mxu0 0.0
    %9104 = vmatpush1.msra.mxu0 0.0
    %9105 = vmatprep.subr.mxu0 0.0
    %9106 = vmatpush1.msra.mxu0 0.0
    %9107 = vmatprep.subr.mxu0 0.0
    %9108 = vmatpush1.msra.mxu0 0.0
    %9109 = vmatprep.subr.mxu0 0.0
    %9110 = vmatpush1.msra.mxu0 0.0
    %9111 = vmatprep.subr.mxu0 0.0
    %9112 = vmatpush1.msra.mxu0 0.0
    %9113 = vmatprep.subr.mxu0 0.0
    %9114 = vmatpush1.msra.mxu0 0.0
    %9115 = vmatprep.subr.mxu0 0.0
    %9116 = vmatpush1.msra.mxu0 0.0
    %9117 = vmatprep.subr.mxu0 0.0
    %9118 = vmatpush1.msra.mxu0 0.0
    %9119 = vmatprep.subr.mxu0 0.0
    %9120 = vmatpush1.msra.mxu0 0.0
    %9121 = vmatprep.subr.mxu0 0.0
    %9122 = vmatpush1.msra.mxu0 0.0
    %9123 = vmatprep.subr.mxu0 0.0
    %9124 = vmatpush1.msra.mxu0 0.0
    %9125 = vmatprep.subr.mxu0 0.0
    %9126 = vmatpush1.msra.mxu0 0.0
    %9127 = vmatprep.subr.mxu0 0.0
    %9128 = vmatpush1.msra.mxu0 0.0
    %9129 = vmatprep.subr.mxu0 0.0
    %9130 = vmatpush1.msra.mxu0 0.0
    %9131 = vmatprep.subr.mxu0 0.0
    %9132 = vmatpush1.msra.mxu0 0.0
    %9133 = vmatprep.subr.mxu0 0.0
    %9134 = vmatpush1.msra.mxu0 0.0
    %9135 = vmatprep.mubr.f32.mxu0 0.0
    %v9136 = vand.u32 %v8402, 4294901760
    %9137 = vmatmul.mubr.f32.gmra.mrb[0].mxu0 %v9136
    %v9138 = vpop.f32.mrb[0].mxu0
    %v9139 = vadd.f32 %v9027, %v9138
    %v9140 = vpop.f32.mrb[0].mxu0
    %v9141 = vadd.f32 %v9029, %v9140
    %9142 = vdwg.mxu0
    %v9143 = vand.u32 %v5089, 4294901760
    %v9144 = vsub.f32 %v5089, %v9143
    %9145 = vmatprep.subr.mxu0 %v9144
    %v9146 = vand.u32 %v5088, 4294901760
    %v9147 = vsub.f32 %v5088, %v9146
    %9148 = vmatpush1.msra.mxu0 %v9147
    %v9149 = vand.u32 %v5093, 4294901760
    %v9150 = vsub.f32 %v5093, %v9149
    %9151 = vmatprep.subr.mxu0 %v9150
    %v9152 = vand.u32 %v5092, 4294901760
    %v9153 = vsub.f32 %v5092, %v9152
    %9154 = vmatpush1.msra.mxu0 %v9153
    %v9155 = vand.u32 %v5097, 4294901760
    %v9156 = vsub.f32 %v5097, %v9155
    %9157 = vmatprep.subr.mxu0 %v9156
    %v9158 = vand.u32 %v5096, 4294901760
    %v9159 = vsub.f32 %v5096, %v9158
    %9160 = vmatpush1.msra.mxu0 %v9159
    %v9161 = vand.u32 %v5101, 4294901760
    %v9162 = vsub.f32 %v5101, %v9161
    %9163 = vmatprep.subr.mxu0 %v9162
    %v9164 = vand.u32 %v5100, 4294901760
    %v9165 = vsub.f32 %v5100, %v9164
    %9166 = vmatpush1.msra.mxu0 %v9165
    %9167 = vmatprep.subr.mxu0 0.0
    %9168 = vmatpush1.msra.mxu0 0.0
    %9169 = vmatprep.subr.mxu0 0.0
    %9170 = vmatpush1.msra.mxu0 0.0
    %9171 = vmatprep.subr.mxu0 0.0
    %9172 = vmatpush1.msra.mxu0 0.0
    %9173 = vmatprep.subr.mxu0 0.0
    %9174 = vmatpush1.msra.mxu0 0.0
    %9175 = vmatprep.subr.mxu0 0.0
    %9176 = vmatpush1.msra.mxu0 0.0
    %9177 = vmatprep.subr.mxu0 0.0
    %9178 = vmatpush1.msra.mxu0 0.0
    %9179 = vmatprep.subr.mxu0 0.0
    %9180 = vmatpush1.msra.mxu0 0.0
    %9181 = vmatprep.subr.mxu0 0.0
    %9182 = vmatpush1.msra.mxu0 0.0
    %9183 = vmatprep.subr.mxu0 0.0
    %9184 = vmatpush1.msra.mxu0 0.0
    %9185 = vmatprep.subr.mxu0 0.0
    %9186 = vmatpush1.msra.mxu0 0.0
    %9187 = vmatprep.subr.mxu0 0.0
    %9188 = vmatpush1.msra.mxu0 0.0
    %9189 = vmatprep.subr.mxu0 0.0
    %9190 = vmatpush1.msra.mxu0 0.0
    %9191 = vmatprep.subr.mxu0 0.0
    %9192 = vmatpush1.msra.mxu0 0.0
    %9193 = vmatprep.subr.mxu0 0.0
    %9194 = vmatpush1.msra.mxu0 0.0
    %9195 = vmatprep.subr.mxu0 0.0
    %9196 = vmatpush1.msra.mxu0 0.0
    %9197 = vmatprep.subr.mxu0 0.0
    %9198 = vmatpush1.msra.mxu0 0.0
    %9199 = vmatprep.subr.mxu0 0.0
    %9200 = vmatpush1.msra.mxu0 0.0
    %9201 = vmatprep.subr.mxu0 0.0
    %9202 = vmatpush1.msra.mxu0 0.0
    %9203 = vmatprep.subr.mxu0 0.0
    %9204 = vmatpush1.msra.mxu0 0.0
    %9205 = vmatprep.subr.mxu0 0.0
    %9206 = vmatpush1.msra.mxu0 0.0
    %9207 = vmatprep.subr.mxu0 0.0
    %9208 = vmatpush1.msra.mxu0 0.0
    %9209 = vmatprep.subr.mxu0 0.0
    %9210 = vmatpush1.msra.mxu0 0.0
    %9211 = vmatprep.subr.mxu0 0.0
    %9212 = vmatpush1.msra.mxu0 0.0
    %9213 = vmatprep.subr.mxu0 0.0
    %9214 = vmatpush1.msra.mxu0 0.0
    %9215 = vmatprep.subr.mxu0 0.0
    %9216 = vmatpush1.msra.mxu0 0.0
    %9217 = vmatprep.subr.mxu0 0.0
    %9218 = vmatpush1.msra.mxu0 0.0
    %9219 = vmatprep.subr.mxu0 0.0
    %9220 = vmatpush1.msra.mxu0 0.0
    %9221 = vmatprep.subr.mxu0 0.0
    %9222 = vmatpush1.msra.mxu0 0.0
    %9223 = vmatprep.mubr.f32.mxu0 0.0
    %v9224 = vand.u32 %v8402, 4294901760
    %v9225 = vsub.f32 %v8402, %v9224
    %9226 = vmatmul.mubr.f32.gmra.mrb[0].mxu0 %v9225
    %v9227 = vpop.f32.mrb[0].mxu0
    %v9228 = vadd.f32 %v9139, %v9227
    %v9229 = vpop.f32.mrb[0].mxu0
    %v9230 = vadd.f32 %v9141, %v9229
    %9231 = vdwg.mxu0
    %v9232 = vand.u32 %v5089, 4294901760
    %9233 = vmatprep.subr.mxu0 %v9232
    %v9234 = vand.u32 %v5088, 4294901760
    %9235 = vmatpush1.msra.mxu0 %v9234
    %v9236 = vand.u32 %v5093, 4294901760
    %9237 = vmatprep.subr.mxu0 %v9236
    %v9238 = vand.u32 %v5092, 4294901760
    %9239 = vmatpush1.msra.mxu0 %v9238
    %v9240 = vand.u32 %v5097, 4294901760
    %9241 = vmatprep.subr.mxu0 %v9240
    %v9242 = vand.u32 %v5096, 4294901760
    %9243 = vmatpush1.msra.mxu0 %v9242
    %v9244 = vand.u32 %v5101, 4294901760
    %9245 = vmatprep.subr.mxu0 %v9244
    %v9246 = vand.u32 %v5100, 4294901760
    %9247 = vmatpush1.msra.mxu0 %v9246
    %9248 = vmatprep.subr.mxu0 0.0
    %9249 = vmatpush1.msra.mxu0 0.0
    %9250 = vmatprep.subr.mxu0 0.0
    %9251 = vmatpush1.msra.mxu0 0.0
    %9252 = vmatprep.subr.mxu0 0.0
    %9253 = vmatpush1.msra.mxu0 0.0
    %9254 = vmatprep.subr.mxu0 0.0
    %9255 = vmatpush1.msra.mxu0 0.0
    %9256 = vmatprep.subr.mxu0 0.0
    %9257 = vmatpush1.msra.mxu0 0.0
    %9258 = vmatprep.subr.mxu0 0.0
    %9259 = vmatpush1.msra.mxu0 0.0
    %9260 = vmatprep.subr.mxu0 0.0
    %9261 = vmatpush1.msra.mxu0 0.0
    %9262 = vmatprep.subr.mxu0 0.0
    %9263 = vmatpush1.msra.mxu0 0.0
    %9264 = vmatprep.subr.mxu0 0.0
    %9265 = vmatpush1.msra.mxu0 0.0
    %9266 = vmatprep.subr.mxu0 0.0
    %9267 = vmatpush1.msra.mxu0 0.0
    %9268 = vmatprep.subr.mxu0 0.0
    %9269 = vmatpush1.msra.mxu0 0.0
    %9270 = vmatprep.subr.mxu0 0.0
    %9271 = vmatpush1.msra.mxu0 0.0
    %9272 = vmatprep.subr.mxu0 0.0
    %9273 = vmatpush1.msra.mxu0 0.0
    %9274 = vmatprep.subr.mxu0 0.0
    %9275 = vmatpush1.msra.mxu0 0.0
    %9276 = vmatprep.subr.mxu0 0.0
    %9277 = vmatpush1.msra.mxu0 0.0
    %9278 = vmatprep.subr.mxu0 0.0
    %9279 = vmatpush1.msra.mxu0 0.0
    %9280 = vmatprep.subr.mxu0 0.0
    %9281 = vmatpush1.msra.mxu0 0.0
    %9282 = vmatprep.subr.mxu0 0.0
    %9283 = vmatpush1.msra.mxu0 0.0
    %9284 = vmatprep.subr.mxu0 0.0
    %9285 = vmatpush1.msra.mxu0 0.0
    %9286 = vmatprep.subr.mxu0 0.0
    %9287 = vmatpush1.msra.mxu0 0.0
    %9288 = vmatprep.subr.mxu0 0.0
    %9289 = vmatpush1.msra.mxu0 0.0
    %9290 = vmatprep.subr.mxu0 0.0
    %9291 = vmatpush1.msra.mxu0 0.0
    %9292 = vmatprep.subr.mxu0 0.0
    %9293 = vmatpush1.msra.mxu0 0.0
    %9294 = vmatprep.subr.mxu0 0.0
    %9295 = vmatpush1.msra.mxu0 0.0
    %9296 = vmatprep.subr.mxu0 0.0
    %9297 = vmatpush1.msra.mxu0 0.0
    %9298 = vmatprep.subr.mxu0 0.0
    %9299 = vmatpush1.msra.mxu0 0.0
    %9300 = vmatprep.subr.mxu0 0.0
    %9301 = vmatpush1.msra.mxu0 0.0
    %9302 = vmatprep.subr.mxu0 0.0
    %9303 = vmatpush1.msra.mxu0 0.0
    %9304 = vmatprep.mubr.f32.mxu0 0.0
    %v9305 = vand.u32 %v8402, 4294901760
    %v9306 = vsub.f32 %v8402, %v9305
    %v9307 = vand.u32 %v9306, 4294901760
    %9308 = vmatmul.mubr.f32.gmra.mrb[0].mxu0 %v9307
    %v9309 = vpop.f32.mrb[0].mxu0
    %v9310 = vadd.f32 %v9228, %v9309
    %v9311 = vpop.f32.mrb[0].mxu0
    %v9312 = vadd.f32 %v9230, %v9311
    %9313 = vdwg.mxu0
    %v9314 = vand.u32 %v5089, 4294901760
    %v9315 = vsub.f32 %v5089, %v9314
    %v9316 = vand.u32 %v9315, 4294901760
    %9317 = vmatprep.subr.mxu0 %v9316
    %v9318 = vand.u32 %v5088, 4294901760
    %v9319 = vsub.f32 %v5088, %v9318
    %v9320 = vand.u32 %v9319, 4294901760
    %9321 = vmatpush1.msra.mxu0 %v9320
    %v9322 = vand.u32 %v5093, 4294901760
    %v9323 = vsub.f32 %v5093, %v9322
    %v9324 = vand.u32 %v9323, 4294901760
    %9325 = vmatprep.subr.mxu0 %v9324
    %v9326 = vand.u32 %v5092, 4294901760
    %v9327 = vsub.f32 %v5092, %v9326
    %v9328 = vand.u32 %v9327, 4294901760
    %9329 = vmatpush1.msra.mxu0 %v9328
    %v9330 = vand.u32 %v5097, 4294901760
    %v9331 = vsub.f32 %v5097, %v9330
    %v9332 = vand.u32 %v9331, 4294901760
    %9333 = vmatprep.subr.mxu0 %v9332
    %v9334 = vand.u32 %v5096, 4294901760
    %v9335 = vsub.f32 %v5096, %v9334
    %v9336 = vand.u32 %v9335, 4294901760
    %9337 = vmatpush1.msra.mxu0 %v9336
    %v9338 = vand.u32 %v5101, 4294901760
    %v9339 = vsub.f32 %v5101, %v9338
    %v9340 = vand.u32 %v9339, 4294901760
    %9341 = vmatprep.subr.mxu0 %v9340
    %v9342 = vand.u32 %v5100, 4294901760
    %v9343 = vsub.f32 %v5100, %v9342
    %v9344 = vand.u32 %v9343, 4294901760
    %9345 = vmatpush1.msra.mxu0 %v9344
    %9346 = vmatprep.subr.mxu0 0.0
    %9347 = vmatpush1.msra.mxu0 0.0
    %9348 = vmatprep.subr.mxu0 0.0
    %9349 = vmatpush1.msra.mxu0 0.0
    %9350 = vmatprep.subr.mxu0 0.0
    %9351 = vmatpush1.msra.mxu0 0.0
    %9352 = vmatprep.subr.mxu0 0.0
    %9353 = vmatpush1.msra.mxu0 0.0
    %9354 = vmatprep.subr.mxu0 0.0
    %9355 = vmatpush1.msra.mxu0 0.0
    %9356 = vmatprep.subr.mxu0 0.0
    %9357 = vmatpush1.msra.mxu0 0.0
    %9358 = vmatprep.subr.mxu0 0.0
    %9359 = vmatpush1.msra.mxu0 0.0
    %9360 = vmatprep.subr.mxu0 0.0
    %9361 = vmatpush1.msra.mxu0 0.0
    %9362 = vmatprep.subr.mxu0 0.0
    %9363 = vmatpush1.msra.mxu0 0.0
    %9364 = vmatprep.subr.mxu0 0.0
    %9365 = vmatpush1.msra.mxu0 0.0
    %9366 = vmatprep.subr.mxu0 0.0
    %9367 = vmatpush1.msra.mxu0 0.0
    %9368 = vmatprep.subr.mxu0 0.0
    %9369 = vmatpush1.msra.mxu0 0.0
    %9370 = vmatprep.subr.mxu0 0.0
    %9371 = vmatpush1.msra.mxu0 0.0
    %9372 = vmatprep.subr.mxu0 0.0
    %9373 = vmatpush1.msra.mxu0 0.0
    %9374 = vmatprep.subr.mxu0 0.0
    %9375 = vmatpush1.msra.mxu0 0.0
    %9376 = vmatprep.subr.mxu0 0.0
    %9377 = vmatpush1.msra.mxu0 0.0
    %9378 = vmatprep.subr.mxu0 0.0
    %9379 = vmatpush1.msra.mxu0 0.0
    %9380 = vmatprep.subr.mxu0 0.0
    %9381 = vmatpush1.msra.mxu0 0.0
    %9382 = vmatprep.subr.mxu0 0.0
    %9383 = vmatpush1.msra.mxu0 0.0
    %9384 = vmatprep.subr.mxu0 0.0
    %9385 = vmatpush1.msra.mxu0 0.0
    %9386 = vmatprep.subr.mxu0 0.0
    %9387 = vmatpush1.msra.mxu0 0.0
    %9388 = vmatprep.subr.mxu0 0.0
    %9389 = vmatpush1.msra.mxu0 0.0
    %9390 = vmatprep.subr.mxu0 0.0
    %9391 = vmatpush1.msra.mxu0 0.0
    %9392 = vmatprep.subr.mxu0 0.0
    %9393 = vmatpush1.msra.mxu0 0.0
    %9394 = vmatprep.subr.mxu0 0.0
    %9395 = vmatpush1.msra.mxu0 0.0
    %9396 = vmatprep.subr.mxu0 0.0
    %9397 = vmatpush1.msra.mxu0 0.0
    %9398 = vmatprep.subr.mxu0 0.0
    %9399 = vmatpush1.msra.mxu0 0.0
    %9400 = vmatprep.subr.mxu0 0.0
    %9401 = vmatpush1.msra.mxu0 0.0
    %9402 = vmatprep.mubr.f32.mxu0 0.0
    %v9403 = vand.u32 %v8402, 4294901760
    %9404 = vmatmul.mubr.f32.gmra.mrb[0].mxu0 %v9403
    %v9405 = vpop.f32.mrb[0].mxu0
    %v9406 = vadd.f32 %v9310, %v9405
    %v9407 = vpop.f32.mrb[0].mxu0
    %v9408 = vadd.f32 %v9312, %v9407
    %9409 = vdwg.mxu0
    %v9410 = vand.u32 %v5089, 4294901760
    %9411 = vmatprep.subr.mxu0 %v9410
    %v9412 = vand.u32 %v5088, 4294901760
    %9413 = vmatpush1.msra.mxu0 %v9412
    %v9414 = vand.u32 %v5093, 4294901760
    %9415 = vmatprep.subr.mxu0 %v9414
    %v9416 = vand.u32 %v5092, 4294901760
    %9417 = vmatpush1.msra.mxu0 %v9416
    %v9418 = vand.u32 %v5097, 4294901760
    %9419 = vmatprep.subr.mxu0 %v9418
    %v9420 = vand.u32 %v5096, 4294901760
    %9421 = vmatpush1.msra.mxu0 %v9420
    %v9422 = vand.u32 %v5101, 4294901760
    %9423 = vmatprep.subr.mxu0 %v9422
    %v9424 = vand.u32 %v5100, 4294901760
    %9425 = vmatpush1.msra.mxu0 %v9424
    %9426 = vmatprep.subr.mxu0 0.0
    %9427 = vmatpush1.msra.mxu0 0.0
    %9428 = vmatprep.subr.mxu0 0.0
    %9429 = vmatpush1.msra.mxu0 0.0
    %9430 = vmatprep.subr.mxu0 0.0
    %9431 = vmatpush1.msra.mxu0 0.0
    %9432 = vmatprep.subr.mxu0 0.0
    %9433 = vmatpush1.msra.mxu0 0.0
    %9434 = vmatprep.subr.mxu0 0.0
    %9435 = vmatpush1.msra.mxu0 0.0
    %9436 = vmatprep.subr.mxu0 0.0
    %9437 = vmatpush1.msra.mxu0 0.0
    %9438 = vmatprep.subr.mxu0 0.0
    %9439 = vmatpush1.msra.mxu0 0.0
    %9440 = vmatprep.subr.mxu0 0.0
    %9441 = vmatpush1.msra.mxu0 0.0
    %9442 = vmatprep.subr.mxu0 0.0
    %9443 = vmatpush1.msra.mxu0 0.0
    %9444 = vmatprep.subr.mxu0 0.0
    %9445 = vmatpush1.msra.mxu0 0.0
    %9446 = vmatprep.subr.mxu0 0.0
    %9447 = vmatpush1.msra.mxu0 0.0
    %9448 = vmatprep.subr.mxu0 0.0
    %9449 = vmatpush1.msra.mxu0 0.0
    %9450 = vmatprep.subr.mxu0 0.0
    %9451 = vmatpush1.msra.mxu0 0.0
    %9452 = vmatprep.subr.mxu0 0.0
    %9453 = vmatpush1.msra.mxu0 0.0
    %9454 = vmatprep.subr.mxu0 0.0
    %9455 = vmatpush1.msra.mxu0 0.0
    %9456 = vmatprep.subr.mxu0 0.0
    %9457 = vmatpush1.msra.mxu0 0.0
    %9458 = vmatprep.subr.mxu0 0.0
    %9459 = vmatpush1.msra.mxu0 0.0
    %9460 = vmatprep.subr.mxu0 0.0
    %9461 = vmatpush1.msra.mxu0 0.0
    %9462 = vmatprep.subr.mxu0 0.0
    %9463 = vmatpush1.msra.mxu0 0.0
    %9464 = vmatprep.subr.mxu0 0.0
    %9465 = vmatpush1.msra.mxu0 0.0
    %9466 = vmatprep.subr.mxu0 0.0
    %9467 = vmatpush1.msra.mxu0 0.0
    %9468 = vmatprep.subr.mxu0 0.0
    %9469 = vmatpush1.msra.mxu0 0.0
    %9470 = vmatprep.subr.mxu0 0.0
    %9471 = vmatpush1.msra.mxu0 0.0
    %9472 = vmatprep.subr.mxu0 0.0
    %9473 = vmatpush1.msra.mxu0 0.0
    %9474 = vmatprep.subr.mxu0 0.0
    %9475 = vmatpush1.msra.mxu0 0.0
    %9476 = vmatprep.subr.mxu0 0.0
    %9477 = vmatpush1.msra.mxu0 0.0
    %9478 = vmatprep.subr.mxu0 0.0
    %9479 = vmatpush1.msra.mxu0 0.0
    %9480 = vmatprep.subr.mxu0 0.0
    %9481 = vmatpush1.msra.mxu0 0.0
    %9482 = vmatprep.mubr.f32.mxu0 0.0
    %v9483 = vand.u32 %v8402, 4294901760
    %9484 = vmatmul.mubr.f32.gmra.mrb[0].mxu0 %v9483
    %v9485 = vpop.f32.mrb[0].mxu0
    %v9486 = vadd.f32 %v9406, %v9485
    %v9487 = vpop.f32.mrb[0].mxu0
    %v9488 = vadd.f32 %v9408, %v9487
    %9489 = vdwg.mxu0
    %v9490 = vlaneseq
    %v9491 = vshrl.u32 %v9490, 7
    %v9492 = vsub.s32 0, %v9491
    %v9493 = vrot.slane %v7852, %v9492
    %v9494 = vlaneseq
    %v9495 = vshrl.u32 %v9494, 7
    %v9496 = vsub.s32 0, %v9495
    %v9497 = vrot.slane %v7854, %v9496
    %v9498 = vlaneseq
    %v9499 = vshrl.u32 %v9498, 7
    %v9500 = vsub.s32 0, %v9499
    %v9501 = vrot.slane %v8395, %v9500
    %v9502 = vlaneseq
    %v9503 = vshrl.u32 %v9502, 7
    %v9504 = vsub.s32 0, %v9503
    %v9505 = vrot.slane %v8397, %v9504
    %v9506 = vmul.f32 %v4982, %v9493
    %v9507 = vmul.f32 %v4983, %v9497
    %v9508 = vmul.f32 %v4984, %v9501
    %v9509 = vmul.f32 %v4985, %v9505
    %v9510 = vmul.f32 %v4986, %v9493
    %v9511 = vmul.f32 %v4987, %v9497
    %v9512 = vmul.f32 %v4988, %v9501
    %v9513 = vmul.f32 %v4989, %v9505
    %v9514 = vmul.f32 %v4990, %v9493
    %v9515 = vmul.f32 %v4991, %v9497
    %v9516 = vmul.f32 %v4992, %v9501
    %v9517 = vmul.f32 %v4993, %v9505
    %v9518 = vmul.f32 %v4994, %v9493
    %v9519 = vmul.f32 %v4995, %v9497
    %v9520 = vmul.f32 %v4996, %v9501
    %v9521 = vmul.f32 %v4997, %v9505
    %v9522 = vlaneseq
    %v9523 = vshrl.u32 %v9522, 7
    %v9524 = vsub.s32 0, %v9523
    %v9525 = vrot.slane %v8943, %v9524
    %v9526 = vlaneseq
    %v9527 = vshrl.u32 %v9526, 7
    %v9528 = vsub.s32 0, %v9527
    %v9529 = vrot.slane %v8945, %v9528
    %v9530 = vlaneseq
    %v9531 = vshrl.u32 %v9530, 7
    %v9532 = vsub.s32 0, %v9531
    %v9533 = vrot.slane %v9486, %v9532
    %v9534 = vlaneseq
    %v9535 = vshrl.u32 %v9534, 7
    %v9536 = vsub.s32 0, %v9535
    %v9537 = vrot.slane %v9488, %v9536
    %v9538 = vadd.f32 %v9506, %v9525
    %v9539 = vadd.f32 %v9507, %v9529
    %v9540 = vadd.f32 %v9508, %v9533
    %v9541 = vadd.f32 %v9509, %v9537
    %v9542 = vadd.f32 %v9510, %v9525
    %v9543 = vadd.f32 %v9511, %v9529
    %v9544 = vadd.f32 %v9512, %v9533
    %v9545 = vadd.f32 %v9513, %v9537
    %v9546 = vadd.f32 %v9514, %v9525
    %v9547 = vadd.f32 %v9515, %v9529
    %v9548 = vadd.f32 %v9516, %v9533
    %v9549 = vadd.f32 %v9517, %v9537
    %v9550 = vadd.f32 %v9518, %v9525
    %v9551 = vadd.f32 %v9519, %v9529
    %v9552 = vadd.f32 %v9520, %v9533
    %v9553 = vadd.f32 %v9521, %v9537
    %9554 = vst [vmem:[#allocation9] sm:$0xff] %v9538
    %9555 = vst [vmem:[#allocation9 + $0x8] sm:$0xff] %v9539
    %9556 = vst [vmem:[#allocation9 + $0x10] sm:$0xff] %v9540
    %9557 = vst [vmem:[#allocation9 + $0x18] sm:$0xff] %v9541
    %9558 = vst [vmem:[#allocation9 + $0x20] sm:$0xff] %v9542
    %9559 = vst [vmem:[#allocation9 + $0x28] sm:$0xff] %v9543
    %9560 = vst [vmem:[#allocation9 + $0x30] sm:$0xff] %v9544
    %9561 = vst [vmem:[#allocation9 + $0x38] sm:$0xff] %v9545
    %9562 = vst [vmem:[#allocation9 + $0x40] sm:$0xff] %v9546
    %9563 = vst [vmem:[#allocation9 + $0x48] sm:$0xff] %v9547
    %9564 = vst [vmem:[#allocation9 + $0x50] sm:$0xff] %v9548
    %9565 = vst [vmem:[#allocation9 + $0x58] sm:$0xff] %v9549
    %9566 = vst [vmem:[#allocation9 + $0x60] sm:$0xff] %v9550
    %9567 = vst [vmem:[#allocation9 + $0x68] sm:$0xff] %v9551
    %9568 = vst [vmem:[#allocation9 + $0x70] sm:$0xff] %v9552
    %9569 = vst [vmem:[#allocation9 + $0x78] sm:$0xff] %v9553
    // Predicated region
    $region26: #{tpu_custom_call.1} parent=1 // pred_check
      _
    $region27: #{tpu_custom_call.1} parent=1 // pred_check_branch
      %9571 = sbr.rel (0) target = $region29
    $region28: #{tpu_custom_call.1} parent=1 // pred_region
      %s9573 = ssub.s32 2048, 2048
      %9574 = vsyncadd [#allocation5], %s9573
      %s9575 = sshll.u32 [#allocation9], 4
      %s9576 = int_to_ptr.vmem [resolvable:$true] %s9575
      %9581 = dma.vmem_to_hbm [thread:$0]  %s9576, 2048, %s3, [#allocation5], 512, 512, 32
    $region29: #{tpu_custom_call.1} parent=1 // pred_fallthru
      _
    // Predicated region
    $region30: #{tpu_custom_call.1} parent=1 // pred_check
      _
    $region31: #{tpu_custom_call.1} parent=1 // pred_check_branch
      %9583 = sbr.rel (0) target = $region33
    $region32: #{tpu_custom_call.1} parent=1 // pred_region
      %9584 = dma.done [#allocation5], 2048
    $region33: #{tpu_custom_call.1} parent=1 // pred_fallthru
      _
    %9585 = vsyncpa [#allocation4], 1
    %9586 = vsyncpa [#allocation7], 1
    %9587 = vsyncpa [#allocation5], 1

</llo_original>
